<compile_context>
chip_gen: v5e
topology: v5e:2x2
jax: 0.10.0
libtpu: 0.0.40
codegen_flags: <defaults>
</compile_context>

<pallas_src>
import math

import jax
import jax.numpy as jnp
from jax.experimental import pallas as pl
from jax.experimental.pallas import tpu as pltpu

# ----------------------------- config (small, synthetic) -----------------------------
CODEBOOK_SIZE = 64
VOCAB_PAD = 128            # head output padded to lane-dense 128, sliced back to 64
N_EMBD = 32
COND_DIM = 4
N_HEAD = 4
N_LAYER = 2
SEQUENCE_LEN = 16
LN_EPS = 1e-5
BATCH_TILE = 16            # sequences per grid step -> 16 * 8 = 128 matmul rows / step
QKV_PAD = 128              # 3*N_EMBD = 96 zero-padded to a lane-dense 128


# ----------------------------- in-kernel helpers -----------------------------
def _layernorm(h, w, b):
    # single pass over h: var = E[h^2] - mu^2
    mu = jnp.mean(h, axis=-1, keepdims=True)
    msq = jnp.mean(h * h, axis=-1, keepdims=True)
    var = msq - mu * mu
    return (h - mu) * jax.lax.rsqrt(var + LN_EPS) * w + b


def _gelu(x):
    # TODO(synk): PyTorch nn.GELU() default is exact erf-GELU; tanh approximation
    #             used here for Mosaic-safe lowering (max abs diff ~1e-3).
    c = math.sqrt(2.0 / math.pi)
    return 0.5 * x * (1.0 + jnp.tanh(c * (x + 0.044715 * x * x * x)))


# ----------------------------- the Pallas kernel -----------------------------
def gpt_forward_kernel(x_ref, bias_ref,
                       ln1w_ref, ln1b_ref, ln2w_ref, ln2b_ref,
                       wqkv_ref, bqkv_ref, wo_ref, bo_ref,
                       wfc_ref, bfc_ref, wfc2_ref, bfc2_ref,
                       lnfw_ref, lnfb_ref, whead_ref,
                       out_ref,
                       ycat_ref):
    Bt, T, C = x_ref.shape
    H = N_HEAD
    hd = C // H
    BT = Bt * T

    # flatten (batch_tile, T) -> rows; all matmuls are plain 2-D (BT, *) on the MXU
    x = x_ref[...].reshape(BT, C)                      # (BT, C) f32
    # block-diagonal + causal additive mask, stored bf16, upcast once per grid step
    att_bias = bias_ref[...].astype(jnp.float32)       # (BT, BT) f32: 0 / -1e30

    for l in range(N_LAYER):
        # ---------------- causal self-attention sub-block ----------------
        h = _layernorm(x, ln1w_ref[l], ln1b_ref[l])    # (BT, C) f32
        h_b = h.astype(jnp.bfloat16)

        # fused QKV projection: one (BT,C)x(C,128) matmul (Q cols pre-scaled by 1/sqrt(hd))
        qkv = (jnp.dot(h_b, wqkv_ref[l], preferred_element_type=jnp.float32)
               + bqkv_ref[l]).astype(jnp.bfloat16)     # (BT, QKV_PAD) bf16

        for hh in range(H):
            o = hh * hd
            q = qkv[:, o:o + hd]                       # static lane slices (free, XLU)
            k = qkv[:, C + o:C + o + hd]
            v = qkv[:, 2 * C + o:2 * C + o + hd]

            # one (BT, BT) score matmul per head; cross-sequence entries masked by the
            # precomputed block-diagonal + causal additive bias
            att = jax.lax.dot_general(
                q, k, (((1,), (1,)), ((), ())),
                preferred_element_type=jnp.float32)    # (BT, BT) f32, already scaled
            att = att + att_bias
            att = att - jnp.max(att, axis=-1, keepdims=True)
            p = jnp.exp(att)
            p = p * pl.reciprocal(jnp.sum(p, axis=-1, keepdims=True), approx=True)

            yh = jnp.dot(p.astype(jnp.bfloat16), v,
                         preferred_element_type=jnp.float32)   # (BT, hd)
            # write this head's slice into VMEM scratch at a static lane offset:
            # materializes yh and lets the head's 16-vreg score tile die immediately
            ycat_ref[:, o:o + hd] = yh.astype(jnp.bfloat16)

        # fused output projection: single (BT,C)x(C,C) matmul against merged wo
        y = jnp.dot(ycat_ref[...], wo_ref[l],
                    preferred_element_type=jnp.float32) + bo_ref[l]
        x = x + y

        # ---------------- MLP sub-block ----------------
        h = _layernorm(x, ln2w_ref[l], ln2b_ref[l])
        m = jnp.dot(h.astype(jnp.bfloat16), wfc_ref[l],
                    preferred_element_type=jnp.float32) + bfc_ref[l]   # (BT, 4C)
        m = _gelu(m)
        m = jnp.dot(m.astype(jnp.bfloat16), wfc2_ref[l],
                    preferred_element_type=jnp.float32) + bfc2_ref[l]  # (BT, C)
        x = x + m

    # final LayerNorm + head (bias=False); head is vocab-padded to 128 lanes
    x = _layernorm(x, lnfw_ref[...], lnfb_ref[...])
    logits = jnp.dot(x.astype(jnp.bfloat16), whead_ref[...],
                     preferred_element_type=jnp.float32)               # (BT, VOCAB_PAD)
    out_ref[...] = logits.reshape(Bt, T, VOCAB_PAD)


# ----------------------------- parameter init (deterministic) -----------------------------
def init_params(key):
    ks = jax.random.split(key, 8)
    std = 0.02
    C, H, L = N_EMBD, N_HEAD, N_LAYER
    hd = C // H
    scale = 1.0 / math.sqrt(hd)
    p = {}
    # nn.Embedding(codebook, n_embd - cond_dim): normal(0, 0.02)
    p['tok_emb'] = std * jax.random.normal(ks[0], (CODEBOOK_SIZE, C - COND_DIM), jnp.float32)
    # pos_emb is nn.Parameter(zeros) and untouched by _init_weights
    p['pos_emb'] = jnp.zeros((1, SEQUENCE_LEN, C), jnp.float32)
    # per-block LayerNorms: weight=1, bias=0 (f32)
    p['ln1w'] = jnp.ones((L, 1, C), jnp.float32)
    p['ln1b'] = jnp.zeros((L, 1, C), jnp.float32)
    p['ln2w'] = jnp.ones((L, 1, C), jnp.float32)
    p['ln2b'] = jnp.zeros((L, 1, C), jnp.float32)

    # fused QKV weight, layout along lanes: [Q(all heads) | K | V | zero pad] -> (C, 128).
    # Attention scale 1/sqrt(hd) folded into the Q columns (and Q bias) at init time.
    wqkv = std * jax.random.normal(ks[1], (L, C, 3 * C), jnp.float32)
    wqkv = wqkv.at[:, :, :C].multiply(scale)
    p['wqkv'] = jnp.pad(wqkv, ((0, 0), (0, 0), (0, QKV_PAD - 3 * C))).astype(jnp.bfloat16)
    p['bqkv'] = jnp.zeros((L, 1, QKV_PAD), jnp.float32)        # Linear biases are zero-init

    # merged output projection (heads concatenated on the input axis), zero bias
    p['wo'] = (std * jax.random.normal(ks[2], (L, C, C), jnp.float32)).astype(jnp.bfloat16)
    p['bo'] = jnp.zeros((L, 1, C), jnp.float32)

    # MLP: Linear(C, 4C) -> GELU -> Linear(4C, C)
    p['wfc'] = (std * jax.random.normal(ks[3], (L, C, 4 * C), jnp.float32)).astype(jnp.bfloat16)
    p['bfc'] = jnp.zeros((L, 1, 4 * C), jnp.float32)
    p['wfc2'] = (std * jax.random.normal(ks[4], (L, 4 * C, C), jnp.float32)).astype(jnp.bfloat16)
    p['bfc2'] = jnp.zeros((L, 1, C), jnp.float32)

    # final LayerNorm + head (bias=False), vocab axis zero-padded to a lane-dense 128
    p['lnfw'] = jnp.ones((1, C), jnp.float32)
    p['lnfb'] = jnp.zeros((1, C), jnp.float32)
    whead = std * jax.random.normal(ks[5], (C, CODEBOOK_SIZE), jnp.float32)
    p['whead'] = jnp.pad(whead, ((0, 0), (0, VOCAB_PAD - CODEBOOK_SIZE))).astype(jnp.bfloat16)
    return p


# ----------------------------- wrapper (glue + pallas_call) -----------------------------
def gpt_forward(params, idx, cond):
    """Mirrors GPT.forward(idx, cond, targets=None) -> logits of shape (b, t+1, V)."""
    b, t_idx = idx.shape
    t = t_idx + 1
    assert t <= SEQUENCE_LEN, 'Cannot forward, model block size is exhausted.'
    C = N_EMBD

    # token embedding gather + zero-row prepend + cond broadcast-concat (JAX glue)
    tok = params['tok_emb'][idx]                                             # (b, t-1, C-cond)
    tok = jnp.concatenate(
        [jnp.zeros((b, 1, tok.shape[-1]), tok.dtype), tok], axis=1)          # (b, t, C-cond)
    cond_rep = jnp.broadcast_to(cond, (b, t, COND_DIM))                      # == cat([cond]*t, 1)
    x = jnp.concatenate([tok, cond_rep], axis=-1)                            # (b, t, C)
    x = x + params['pos_emb'][:, :t, :]                                      # pos emb (zeros)
    # dropout layers are identity in eval mode

    # pad batch up to a multiple of BATCH_TILE (never collapse the grid to one step)
    b_pad = ((b + BATCH_TILE - 1) // BATCH_TILE) * BATCH_TILE
    if b_pad != b:
        x = jnp.pad(x, ((0, b_pad - b), (0, 0), (0, 0)))
    grid = (b_pad // BATCH_TILE,)
    bt = BATCH_TILE * t

    # combined block-diagonal (per-sequence) + causal additive mask over flattened rows,
    # built once in plain JAX; stored bf16 (largest input block), upcast once in-kernel
    seq_id = jnp.repeat(jnp.arange(BATCH_TILE, dtype=jnp.int32), t)          # (bt,)
    pos_id = jnp.tile(jnp.arange(t, dtype=jnp.int32), BATCH_TILE)            # (bt,)
    keep = (seq_id[:, None] == seq_id[None, :]) & (pos_id[:, None] >= pos_id[None, :])
    att_bias = jnp.where(keep, 0.0, -1e30).astype(jnp.bfloat16)              # (bt, bt)

    weights = (params['ln1w'], params['ln1b'], params['ln2w'], params['ln2b'],
               params['wqkv'], params['bqkv'], params['wo'], params['bo'],
               params['wfc'], params['bfc'], params['wfc2'], params['bfc2'],
               params['lnfw'], params['lnfb'], params['whead'])

    def _full_spec(a):
        nd = a.ndim
        return pl.BlockSpec(a.shape, lambda i, _nd=nd: (0,) * _nd)

    in_specs = ([pl.BlockSpec((BATCH_TILE, t, C), lambda i: (i, 0, 0)),
                 _full_spec(att_bias)]
                + [_full_spec(w) for w in weights])
    out_spec = pl.BlockSpec((BATCH_TILE, t, VOCAB_PAD), lambda i: (i, 0, 0))

    logits_pad = pl.pallas_call(
        gpt_forward_kernel,
        out_shape=jax.ShapeDtypeStruct((b_pad, t, VOCAB_PAD), jnp.float32),
        grid=grid,
        in_specs=in_specs,
        out_specs=out_spec,
        scratch_shapes=[pltpu.VMEM((bt, C), jnp.bfloat16)],   # per-layer concatenated heads
        compiler_params=pltpu.CompilerParams(dimension_semantics=("parallel",)),
    )(x.astype(jnp.float32), att_bias, *weights)

    # drop the batch padding and the lane padding on the vocab axis
    return logits_pad[:b, :, :CODEBOOK_SIZE]


# ----------------------------- main -----------------------------
if __name__ == "__main__":
    key = jax.random.PRNGKey(0)
    kp, ki, kc = jax.random.split(key, 3)

    params = init_params(kp)

    # b chosen so each grid step presents 128 matmul rows (16 seqs x 8 tokens) to the MXU,
    # and the 2-step parallel grid can use both v7x TensorCores.
    b, t_idx = 32, 7   # t = t_idx + 1 = 8 <= SEQUENCE_LEN
    idx = jax.random.randint(ki, (b, t_idx), 0, CODEBOOK_SIZE, dtype=jnp.int32)
    cond = jax.random.normal(kc, (b, 1, COND_DIM), dtype=jnp.float32)

    logits = gpt_forward(params, idx, cond)
    logits = jax.block_until_ready(logits)

    assert logits.shape == (b, t_idx + 1, CODEBOOK_SIZE)
    assert bool(jnp.all(jnp.isfinite(logits)))
    print("KERNEL_OK")
</pallas_src>

<mosaic_0001>
module attributes {stable_mosaic.version = 11 : i64} {
  func.func @gpt_forward_kernel(%arg0: i32, %arg1: memref<16x8x32xf32, #tpu.memory_space<vmem>>, %arg2: memref<128x128xbf16, #tpu.memory_space<vmem>>, %arg3: memref<2x1x32xf32, #tpu.memory_space<vmem>>, %arg4: memref<2x1x32xf32, #tpu.memory_space<vmem>>, %arg5: memref<2x1x32xf32, #tpu.memory_space<vmem>>, %arg6: memref<2x1x32xf32, #tpu.memory_space<vmem>>, %arg7: memref<2x32x128xbf16, #tpu.memory_space<vmem>>, %arg8: memref<2x1x128xf32, #tpu.memory_space<vmem>>, %arg9: memref<2x32x32xbf16, #tpu.memory_space<vmem>>, %arg10: memref<2x1x32xf32, #tpu.memory_space<vmem>>, %arg11: memref<2x32x128xbf16, #tpu.memory_space<vmem>>, %arg12: memref<2x1x128xf32, #tpu.memory_space<vmem>>, %arg13: memref<2x128x32xbf16, #tpu.memory_space<vmem>>, %arg14: memref<2x1x32xf32, #tpu.memory_space<vmem>>, %arg15: memref<1x32xf32, #tpu.memory_space<vmem>>, %arg16: memref<1x32xf32, #tpu.memory_space<vmem>>, %arg17: memref<32x128xbf16, #tpu.memory_space<vmem>>, %arg18: memref<16x8x128xf32, #tpu.memory_space<vmem>>, %arg19: memref<128x32xbf16, #tpu.memory_space<vmem>>) attributes {dimension_semantics = [#tpu.dimension_semantics<parallel>], iteration_bounds = array<i64: 2>, scalar_prefetch = 0 : i64, scratch_operands = 1 : i64, tpu.core_type = #tpu.core_type<tc>, window_params = [{transform_indices = @transform_0, window_bounds = array<i64: 16, 8, 32>}, {pipeline_mode = #tpu.pipeline_mode<synchronous>, transform_indices = @transform_1, window_bounds = array<i64: 128, 128>}, {pipeline_mode = #tpu.pipeline_mode<synchronous>, transform_indices = @transform_2, window_bounds = array<i64: 2, 1, 32>}, {pipeline_mode = #tpu.pipeline_mode<synchronous>, transform_indices = @transform_3, window_bounds = array<i64: 2, 1, 32>}, {pipeline_mode = #tpu.pipeline_mode<synchronous>, transform_indices = @transform_4, window_bounds = array<i64: 2, 1, 32>}, {pipeline_mode = #tpu.pipeline_mode<synchronous>, transform_indices = @transform_5, window_bounds = array<i64: 2, 1, 32>}, {pipeline_mode = #tpu.pipeline_mode<synchronous>, transform_indices = @transform_6, window_bounds = array<i64: 2, 32, 128>}, {pipeline_mode = #tpu.pipeline_mode<synchronous>, transform_indices = @transform_7, window_bounds = array<i64: 2, 1, 128>}, {pipeline_mode = #tpu.pipeline_mode<synchronous>, transform_indices = @transform_8, window_bounds = array<i64: 2, 32, 32>}, {pipeline_mode = #tpu.pipeline_mode<synchronous>, transform_indices = @transform_9, window_bounds = array<i64: 2, 1, 32>}, {pipeline_mode = #tpu.pipeline_mode<synchronous>, transform_indices = @transform_10, window_bounds = array<i64: 2, 32, 128>}, {pipeline_mode = #tpu.pipeline_mode<synchronous>, transform_indices = @transform_11, window_bounds = array<i64: 2, 1, 128>}, {pipeline_mode = #tpu.pipeline_mode<synchronous>, transform_indices = @transform_12, window_bounds = array<i64: 2, 128, 32>}, {pipeline_mode = #tpu.pipeline_mode<synchronous>, transform_indices = @transform_13, window_bounds = array<i64: 2, 1, 32>}, {pipeline_mode = #tpu.pipeline_mode<synchronous>, transform_indices = @transform_14, window_bounds = array<i64: 1, 32>}, {pipeline_mode = #tpu.pipeline_mode<synchronous>, transform_indices = @transform_15, window_bounds = array<i64: 1, 32>}, {pipeline_mode = #tpu.pipeline_mode<synchronous>, transform_indices = @transform_16, window_bounds = array<i64: 32, 128>}, {transform_indices = @transform_17, window_bounds = array<i64: 16, 8, 128>}]} {
    %c0 = arith.constant 0 : index
    %c0_0 = arith.constant 0 : index
    %c0_1 = arith.constant 0 : index
    %0 = vector.load %arg1[%c0, %c0_0, %c0_1] : memref<16x8x32xf32, #tpu.memory_space<vmem>>, vector<16x8x32xf32>
    %1 = vector.shape_cast %0 : vector<16x8x32xf32> to vector<128x32xf32>
    %c0_2 = arith.constant 0 : index
    %c0_3 = arith.constant 0 : index
    %2 = vector.load %arg2[%c0_2, %c0_3] : memref<128x128xbf16, #tpu.memory_space<vmem>>, vector<128x128xbf16>
    %3 = arith.extf %2 : vector<128x128xbf16> to vector<128x128xf32>
    %c0_4 = arith.constant 0 : index
    %c0_5 = arith.constant 0 : index
    %c0_6 = arith.constant 0 : index
    %4 = vector.load %arg3[%c0_4, %c0_5, %c0_6] : memref<2x1x32xf32, #tpu.memory_space<vmem>>, vector<1x1x32xf32>
    %5 = vector.shape_cast %4 : vector<1x1x32xf32> to vector<1x32xf32>
    %c0_7 = arith.constant 0 : index
    %c0_8 = arith.constant 0 : index
    %c0_9 = arith.constant 0 : index
    %6 = vector.load %arg4[%c0_7, %c0_8, %c0_9] : memref<2x1x32xf32, #tpu.memory_space<vmem>>, vector<1x1x32xf32>
    %7 = vector.shape_cast %6 : vector<1x1x32xf32> to vector<1x32xf32>
    %cst = arith.constant dense<0.000000e+00> : vector<128xf32>
    %8 = vector.multi_reduction <add>, %1, %cst [1] : vector<128x32xf32> to vector<128xf32>
    %9 = vector.shape_cast %8 : vector<128xf32> to vector<128x1xf32>
    %cst_10 = arith.constant 3.200000e+01 : f32
    %10 = vector.broadcast %cst_10 : f32 to vector<128x1xf32>
    %11 = arith.divf %9, %10 : vector<128x1xf32>
    %12 = arith.mulf %1, %1 : vector<128x32xf32>
    %cst_11 = arith.constant dense<0.000000e+00> : vector<128xf32>
    %13 = vector.multi_reduction <add>, %12, %cst_11 [1] : vector<128x32xf32> to vector<128xf32>
    %14 = vector.shape_cast %13 : vector<128xf32> to vector<128x1xf32>
    %cst_12 = arith.constant 3.200000e+01 : f32
    %15 = vector.broadcast %cst_12 : f32 to vector<128x1xf32>
    %16 = arith.divf %14, %15 : vector<128x1xf32>
    %17 = arith.mulf %11, %11 : vector<128x1xf32>
    %18 = arith.subf %16, %17 : vector<128x1xf32>
    %19 = vector.broadcast %11 : vector<128x1xf32> to vector<128x32xf32>
    %20 = arith.subf %1, %19 : vector<128x32xf32>
    %cst_13 = arith.constant 9.99999974E-6 : f32
    %21 = vector.broadcast %cst_13 : f32 to vector<128x1xf32>
    %22 = arith.addf %18, %21 : vector<128x1xf32>
    %23 = math.rsqrt %22 : vector<128x1xf32>
    %24 = vector.broadcast %23 : vector<128x1xf32> to vector<128x32xf32>
    %25 = arith.mulf %20, %24 : vector<128x32xf32>
    %26 = vector.broadcast %5 : vector<1x32xf32> to vector<128x32xf32>
    %27 = arith.mulf %25, %26 : vector<128x32xf32>
    %28 = vector.broadcast %7 : vector<1x32xf32> to vector<128x32xf32>
    %29 = arith.addf %27, %28 : vector<128x32xf32>
    %30 = arith.truncf %29 : vector<128x32xf32> to vector<128x32xbf16>
    %c0_14 = arith.constant 0 : index
    %c0_15 = arith.constant 0 : index
    %c0_16 = arith.constant 0 : index
    %31 = vector.load %arg7[%c0_14, %c0_15, %c0_16] : memref<2x32x128xbf16, #tpu.memory_space<vmem>>, vector<1x32x128xbf16>
    %32 = vector.shape_cast %31 : vector<1x32x128xbf16> to vector<32x128xbf16>
    %cst_17 = arith.constant dense<0.000000e+00> : vector<128x128xf32>
    %33 = tpu.matmul %30, %32, %cst_17 {dimension_numbers = #tpu.dot_dimension_numbers<[1], [0], [0], [1], [0, 0, 1, 1], [], []>} : vector<128x32xbf16>, vector<32x128xbf16>, vector<128x128xf32> -> vector<128x128xf32>
    %c0_18 = arith.constant 0 : index
    %c0_19 = arith.constant 0 : index
    %c0_20 = arith.constant 0 : index
    %34 = vector.load %arg8[%c0_18, %c0_19, %c0_20] : memref<2x1x128xf32, #tpu.memory_space<vmem>>, vector<1x1x128xf32>
    %35 = vector.shape_cast %34 : vector<1x1x128xf32> to vector<1x128xf32>
    %36 = vector.broadcast %35 : vector<1x128xf32> to vector<128x128xf32>
    %37 = arith.addf %33, %36 : vector<128x128xf32>
    %38 = arith.truncf %37 : vector<128x128xf32> to vector<128x128xbf16>
    %39 = vector.extract_strided_slice %38 {offsets = [0, 0], sizes = [128, 8], strides = [1, 1]} : vector<128x128xbf16> to vector<128x8xbf16>
    %40 = vector.extract_strided_slice %38 {offsets = [0, 32], sizes = [128, 8], strides = [1, 1]} : vector<128x128xbf16> to vector<128x8xbf16>
    %41 = vector.extract_strided_slice %38 {offsets = [0, 64], sizes = [128, 8], strides = [1, 1]} : vector<128x128xbf16> to vector<128x8xbf16>
    %cst_21 = arith.constant dense<0.000000e+00> : vector<128x128xf32>
    %42 = tpu.matmul %39, %40, %cst_21 {dimension_numbers = #tpu.dot_dimension_numbers<[1], [1], [0], [0], [0, 0, 1, 0], [], []>} : vector<128x8xbf16>, vector<128x8xbf16>, vector<128x128xf32> -> vector<128x128xf32>
    %43 = arith.addf %42, %3 : vector<128x128xf32>
    %cst_22 = arith.constant dense<0xFF800000> : vector<128xf32>
    %44 = vector.multi_reduction <maximumf>, %43, %cst_22 [1] : vector<128x128xf32> to vector<128xf32>
    %45 = vector.shape_cast %44 : vector<128xf32> to vector<128x1xf32>
    %46 = vector.broadcast %45 : vector<128x1xf32> to vector<128x128xf32>
    %47 = arith.subf %43, %46 : vector<128x128xf32>
    %48 = math.exp %47 : vector<128x128xf32>
    %cst_23 = arith.constant dense<0.000000e+00> : vector<128xf32>
    %49 = vector.multi_reduction <add>, %48, %cst_23 [1] : vector<128x128xf32> to vector<128xf32>
    %50 = vector.shape_cast %49 : vector<128xf32> to vector<128x1xf32>
    %51 = tpu.reciprocal %50 {approx = true} : vector<128x1xf32> -> vector<128x1xf32>
    %52 = vector.broadcast %51 : vector<128x1xf32> to vector<128x128xf32>
    %53 = arith.mulf %48, %52 : vector<128x128xf32>
    %54 = arith.truncf %53 : vector<128x128xf32> to vector<128x128xbf16>
    %cst_24 = arith.constant dense<0.000000e+00> : vector<128x8xf32>
    %55 = tpu.matmul %54, %41, %cst_24 {dimension_numbers = #tpu.dot_dimension_numbers<[1], [0], [0], [1], [0, 0, 1, 1], [], []>} : vector<128x128xbf16>, vector<128x8xbf16>, vector<128x8xf32> -> vector<128x8xf32>
    %56 = arith.truncf %55 : vector<128x8xf32> to vector<128x8xbf16>
    %c0_25 = arith.constant 0 : index
    %c0_26 = arith.constant 0 : index
    %57 = vector.load %arg19[%c0_25, %c0_26] : memref<128x32xbf16, #tpu.memory_space<vmem>>, vector<128x8xbf16>
    tpu.vector_store %arg19[%c0_25, %c0_26], %56 {strides = array<i32>} : memref<128x32xbf16, #tpu.memory_space<vmem>>, vector<128x8xbf16>,
    %58 = vector.extract_strided_slice %38 {offsets = [0, 8], sizes = [128, 8], strides = [1, 1]} : vector<128x128xbf16> to vector<128x8xbf16>
    %59 = vector.extract_strided_slice %38 {offsets = [0, 40], sizes = [128, 8], strides = [1, 1]} : vector<128x128xbf16> to vector<128x8xbf16>
    %60 = vector.extract_strided_slice %38 {offsets = [0, 72], sizes = [128, 8], strides = [1, 1]} : vector<128x128xbf16> to vector<128x8xbf16>
    %cst_27 = arith.constant dense<0.000000e+00> : vector<128x128xf32>
    %61 = tpu.matmul %58, %59, %cst_27 {dimension_numbers = #tpu.dot_dimension_numbers<[1], [1], [0], [0], [0, 0, 1, 0], [], []>} : vector<128x8xbf16>, vector<128x8xbf16>, vector<128x128xf32> -> vector<128x128xf32>
    %62 = arith.addf %61, %3 : vector<128x128xf32>
    %cst_28 = arith.constant dense<0xFF800000> : vector<128xf32>
    %63 = vector.multi_reduction <maximumf>, %62, %cst_28 [1] : vector<128x128xf32> to vector<128xf32>
    %64 = vector.shape_cast %63 : vector<128xf32> to vector<128x1xf32>
    %65 = vector.broadcast %64 : vector<128x1xf32> to vector<128x128xf32>
    %66 = arith.subf %62, %65 : vector<128x128xf32>
    %67 = math.exp %66 : vector<128x128xf32>
    %cst_29 = arith.constant dense<0.000000e+00> : vector<128xf32>
    %68 = vector.multi_reduction <add>, %67, %cst_29 [1] : vector<128x128xf32> to vector<128xf32>
    %69 = vector.shape_cast %68 : vector<128xf32> to vector<128x1xf32>
    %70 = tpu.reciprocal %69 {approx = true} : vector<128x1xf32> -> vector<128x1xf32>
    %71 = vector.broadcast %70 : vector<128x1xf32> to vector<128x128xf32>
    %72 = arith.mulf %67, %71 : vector<128x128xf32>
    %73 = arith.truncf %72 : vector<128x128xf32> to vector<128x128xbf16>
    %cst_30 = arith.constant dense<0.000000e+00> : vector<128x8xf32>
    %74 = tpu.matmul %73, %60, %cst_30 {dimension_numbers = #tpu.dot_dimension_numbers<[1], [0], [0], [1], [0, 0, 1, 1], [], []>} : vector<128x128xbf16>, vector<128x8xbf16>, vector<128x8xf32> -> vector<128x8xf32>
    %75 = arith.truncf %74 : vector<128x8xf32> to vector<128x8xbf16>
    %c0_31 = arith.constant 0 : index
    %c8 = arith.constant 8 : index
    %76 = vector.load %arg19[%c0_31, %c8] : memref<128x32xbf16, #tpu.memory_space<vmem>>, vector<128x8xbf16>
    tpu.vector_store %arg19[%c0_31, %c8], %75 {strides = array<i32>} : memref<128x32xbf16, #tpu.memory_space<vmem>>, vector<128x8xbf16>,
    %77 = vector.extract_strided_slice %38 {offsets = [0, 16], sizes = [128, 8], strides = [1, 1]} : vector<128x128xbf16> to vector<128x8xbf16>
    %78 = vector.extract_strided_slice %38 {offsets = [0, 48], sizes = [128, 8], strides = [1, 1]} : vector<128x128xbf16> to vector<128x8xbf16>
    %79 = vector.extract_strided_slice %38 {offsets = [0, 80], sizes = [128, 8], strides = [1, 1]} : vector<128x128xbf16> to vector<128x8xbf16>
    %cst_32 = arith.constant dense<0.000000e+00> : vector<128x128xf32>
    %80 = tpu.matmul %77, %78, %cst_32 {dimension_numbers = #tpu.dot_dimension_numbers<[1], [1], [0], [0], [0, 0, 1, 0], [], []>} : vector<128x8xbf16>, vector<128x8xbf16>, vector<128x128xf32> -> vector<128x128xf32>
    %81 = arith.addf %80, %3 : vector<128x128xf32>
    %cst_33 = arith.constant dense<0xFF800000> : vector<128xf32>
    %82 = vector.multi_reduction <maximumf>, %81, %cst_33 [1] : vector<128x128xf32> to vector<128xf32>
    %83 = vector.shape_cast %82 : vector<128xf32> to vector<128x1xf32>
    %84 = vector.broadcast %83 : vector<128x1xf32> to vector<128x128xf32>
    %85 = arith.subf %81, %84 : vector<128x128xf32>
    %86 = math.exp %85 : vector<128x128xf32>
    %cst_34 = arith.constant dense<0.000000e+00> : vector<128xf32>
    %87 = vector.multi_reduction <add>, %86, %cst_34 [1] : vector<128x128xf32> to vector<128xf32>
    %88 = vector.shape_cast %87 : vector<128xf32> to vector<128x1xf32>
    %89 = tpu.reciprocal %88 {approx = true} : vector<128x1xf32> -> vector<128x1xf32>
    %90 = vector.broadcast %89 : vector<128x1xf32> to vector<128x128xf32>
    %91 = arith.mulf %86, %90 : vector<128x128xf32>
    %92 = arith.truncf %91 : vector<128x128xf32> to vector<128x128xbf16>
    %cst_35 = arith.constant dense<0.000000e+00> : vector<128x8xf32>
    %93 = tpu.matmul %92, %79, %cst_35 {dimension_numbers = #tpu.dot_dimension_numbers<[1], [0], [0], [1], [0, 0, 1, 1], [], []>} : vector<128x128xbf16>, vector<128x8xbf16>, vector<128x8xf32> -> vector<128x8xf32>
    %94 = arith.truncf %93 : vector<128x8xf32> to vector<128x8xbf16>
    %c0_36 = arith.constant 0 : index
    %c16 = arith.constant 16 : index
    %95 = vector.load %arg19[%c0_36, %c16] : memref<128x32xbf16, #tpu.memory_space<vmem>>, vector<128x8xbf16>
    tpu.vector_store %arg19[%c0_36, %c16], %94 {strides = array<i32>} : memref<128x32xbf16, #tpu.memory_space<vmem>>, vector<128x8xbf16>,
    %96 = vector.extract_strided_slice %38 {offsets = [0, 24], sizes = [128, 8], strides = [1, 1]} : vector<128x128xbf16> to vector<128x8xbf16>
    %97 = vector.extract_strided_slice %38 {offsets = [0, 56], sizes = [128, 8], strides = [1, 1]} : vector<128x128xbf16> to vector<128x8xbf16>
    %98 = vector.extract_strided_slice %38 {offsets = [0, 88], sizes = [128, 8], strides = [1, 1]} : vector<128x128xbf16> to vector<128x8xbf16>
    %cst_37 = arith.constant dense<0.000000e+00> : vector<128x128xf32>
    %99 = tpu.matmul %96, %97, %cst_37 {dimension_numbers = #tpu.dot_dimension_numbers<[1], [1], [0], [0], [0, 0, 1, 0], [], []>} : vector<128x8xbf16>, vector<128x8xbf16>, vector<128x128xf32> -> vector<128x128xf32>
    %100 = arith.addf %99, %3 : vector<128x128xf32>
    %cst_38 = arith.constant dense<0xFF800000> : vector<128xf32>
    %101 = vector.multi_reduction <maximumf>, %100, %cst_38 [1] : vector<128x128xf32> to vector<128xf32>
    %102 = vector.shape_cast %101 : vector<128xf32> to vector<128x1xf32>
    %103 = vector.broadcast %102 : vector<128x1xf32> to vector<128x128xf32>
    %104 = arith.subf %100, %103 : vector<128x128xf32>
    %105 = math.exp %104 : vector<128x128xf32>
    %cst_39 = arith.constant dense<0.000000e+00> : vector<128xf32>
    %106 = vector.multi_reduction <add>, %105, %cst_39 [1] : vector<128x128xf32> to vector<128xf32>
    %107 = vector.shape_cast %106 : vector<128xf32> to vector<128x1xf32>
    %108 = tpu.reciprocal %107 {approx = true} : vector<128x1xf32> -> vector<128x1xf32>
    %109 = vector.broadcast %108 : vector<128x1xf32> to vector<128x128xf32>
    %110 = arith.mulf %105, %109 : vector<128x128xf32>
    %111 = arith.truncf %110 : vector<128x128xf32> to vector<128x128xbf16>
    %cst_40 = arith.constant dense<0.000000e+00> : vector<128x8xf32>
    %112 = tpu.matmul %111, %98, %cst_40 {dimension_numbers = #tpu.dot_dimension_numbers<[1], [0], [0], [1], [0, 0, 1, 1], [], []>} : vector<128x128xbf16>, vector<128x8xbf16>, vector<128x8xf32> -> vector<128x8xf32>
    %113 = arith.truncf %112 : vector<128x8xf32> to vector<128x8xbf16>
    %c0_41 = arith.constant 0 : index
    %c24 = arith.constant 24 : index
    %114 = vector.load %arg19[%c0_41, %c24] : memref<128x32xbf16, #tpu.memory_space<vmem>>, vector<128x8xbf16>
    tpu.vector_store %arg19[%c0_41, %c24], %113 {strides = array<i32>} : memref<128x32xbf16, #tpu.memory_space<vmem>>, vector<128x8xbf16>,
    %c0_42 = arith.constant 0 : index
    %c0_43 = arith.constant 0 : index
    %115 = vector.load %arg19[%c0_42, %c0_43] : memref<128x32xbf16, #tpu.memory_space<vmem>>, vector<128x32xbf16>
    %c0_44 = arith.constant 0 : index
    %c0_45 = arith.constant 0 : index
    %c0_46 = arith.constant 0 : index
    %116 = vector.load %arg9[%c0_44, %c0_45, %c0_46] : memref<2x32x32xbf16, #tpu.memory_space<vmem>>, vector<1x32x32xbf16>
    %117 = vector.shape_cast %116 : vector<1x32x32xbf16> to vector<32x32xbf16>
    %cst_47 = arith.constant dense<0.000000e+00> : vector<128x32xf32>
    %118 = tpu.matmul %115, %117, %cst_47 {dimension_numbers = #tpu.dot_dimension_numbers<[1], [0], [0], [1], [0, 0, 1, 1], [], []>} : vector<128x32xbf16>, vector<32x32xbf16>, vector<128x32xf32> -> vector<128x32xf32>
    %c0_48 = arith.constant 0 : index
    %c0_49 = arith.constant 0 : index
    %c0_50 = arith.constant 0 : index
    %119 = vector.load %arg10[%c0_48, %c0_49, %c0_50] : memref<2x1x32xf32, #tpu.memory_space<vmem>>, vector<1x1x32xf32>
    %120 = vector.shape_cast %119 : vector<1x1x32xf32> to vector<1x32xf32>
    %121 = vector.broadcast %120 : vector<1x32xf32> to vector<128x32xf32>
    %122 = arith.addf %118, %121 : vector<128x32xf32>
    %123 = arith.addf %1, %122 : vector<128x32xf32>
    %c0_51 = arith.constant 0 : index
    %c0_52 = arith.constant 0 : index
    %c0_53 = arith.constant 0 : index
    %124 = vector.load %arg5[%c0_51, %c0_52, %c0_53] : memref<2x1x32xf32, #tpu.memory_space<vmem>>, vector<1x1x32xf32>
    %125 = vector.shape_cast %124 : vector<1x1x32xf32> to vector<1x32xf32>
    %c0_54 = arith.constant 0 : index
    %c0_55 = arith.constant 0 : index
    %c0_56 = arith.constant 0 : index
    %126 = vector.load %arg6[%c0_54, %c0_55, %c0_56] : memref<2x1x32xf32, #tpu.memory_space<vmem>>, vector<1x1x32xf32>
    %127 = vector.shape_cast %126 : vector<1x1x32xf32> to vector<1x32xf32>
    %cst_57 = arith.constant dense<0.000000e+00> : vector<128xf32>
    %128 = vector.multi_reduction <add>, %123, %cst_57 [1] : vector<128x32xf32> to vector<128xf32>
    %129 = vector.shape_cast %128 : vector<128xf32> to vector<128x1xf32>
    %cst_58 = arith.constant 3.200000e+01 : f32
    %130 = vector.broadcast %cst_58 : f32 to vector<128x1xf32>
    %131 = arith.divf %129, %130 : vector<128x1xf32>
    %132 = arith.mulf %123, %123 : vector<128x32xf32>
    %cst_59 = arith.constant dense<0.000000e+00> : vector<128xf32>
    %133 = vector.multi_reduction <add>, %132, %cst_59 [1] : vector<128x32xf32> to vector<128xf32>
    %134 = vector.shape_cast %133 : vector<128xf32> to vector<128x1xf32>
    %cst_60 = arith.constant 3.200000e+01 : f32
    %135 = vector.broadcast %cst_60 : f32 to vector<128x1xf32>
    %136 = arith.divf %134, %135 : vector<128x1xf32>
    %137 = arith.mulf %131, %131 : vector<128x1xf32>
    %138 = arith.subf %136, %137 : vector<128x1xf32>
    %139 = vector.broadcast %131 : vector<128x1xf32> to vector<128x32xf32>
    %140 = arith.subf %123, %139 : vector<128x32xf32>
    %cst_61 = arith.constant 9.99999974E-6 : f32
    %141 = vector.broadcast %cst_61 : f32 to vector<128x1xf32>
    %142 = arith.addf %138, %141 : vector<128x1xf32>
    %143 = math.rsqrt %142 : vector<128x1xf32>
    %144 = vector.broadcast %143 : vector<128x1xf32> to vector<128x32xf32>
    %145 = arith.mulf %140, %144 : vector<128x32xf32>
    %146 = vector.broadcast %125 : vector<1x32xf32> to vector<128x32xf32>
    %147 = arith.mulf %145, %146 : vector<128x32xf32>
    %148 = vector.broadcast %127 : vector<1x32xf32> to vector<128x32xf32>
    %149 = arith.addf %147, %148 : vector<128x32xf32>
    %150 = arith.truncf %149 : vector<128x32xf32> to vector<128x32xbf16>
    %c0_62 = arith.constant 0 : index
    %c0_63 = arith.constant 0 : index
    %c0_64 = arith.constant 0 : index
    %151 = vector.load %arg11[%c0_62, %c0_63, %c0_64] : memref<2x32x128xbf16, #tpu.memory_space<vmem>>, vector<1x32x128xbf16>
    %152 = vector.shape_cast %151 : vector<1x32x128xbf16> to vector<32x128xbf16>
    %cst_65 = arith.constant dense<0.000000e+00> : vector<128x128xf32>
    %153 = tpu.matmul %150, %152, %cst_65 {dimension_numbers = #tpu.dot_dimension_numbers<[1], [0], [0], [1], [0, 0, 1, 1], [], []>} : vector<128x32xbf16>, vector<32x128xbf16>, vector<128x128xf32> -> vector<128x128xf32>
    %c0_66 = arith.constant 0 : index
    %c0_67 = arith.constant 0 : index
    %c0_68 = arith.constant 0 : index
    %154 = vector.load %arg12[%c0_66, %c0_67, %c0_68] : memref<2x1x128xf32, #tpu.memory_space<vmem>>, vector<1x1x128xf32>
    %155 = vector.shape_cast %154 : vector<1x1x128xf32> to vector<1x128xf32>
    %156 = vector.broadcast %155 : vector<1x128xf32> to vector<128x128xf32>
    %157 = arith.addf %153, %156 : vector<128x128xf32>
    %cst_69 = arith.constant 5.000000e-01 : f32
    %158 = vector.broadcast %cst_69 : f32 to vector<128x128xf32>
    %159 = arith.mulf %158, %157 : vector<128x128xf32>
    %cst_70 = arith.constant 4.471500e-02 : f32
    %160 = vector.broadcast %cst_70 : f32 to vector<128x128xf32>
    %161 = arith.mulf %160, %157 : vector<128x128xf32>
    %162 = arith.mulf %161, %157 : vector<128x128xf32>
    %163 = arith.mulf %162, %157 : vector<128x128xf32>
    %164 = arith.addf %157, %163 : vector<128x128xf32>
    %cst_71 = arith.constant 0.797884583 : f32
    %165 = vector.broadcast %cst_71 : f32 to vector<128x128xf32>
    %166 = arith.mulf %165, %164 : vector<128x128xf32>
    %167 = math.tanh %166 : vector<128x128xf32>
    %cst_72 = arith.constant 1.000000e+00 : f32
    %168 = vector.broadcast %cst_72 : f32 to vector<128x128xf32>
    %169 = arith.addf %168, %167 : vector<128x128xf32>
    %170 = arith.mulf %159, %169 : vector<128x128xf32>
    %171 = arith.truncf %170 : vector<128x128xf32> to vector<128x128xbf16>
    %c0_73 = arith.constant 0 : index
    %c0_74 = arith.constant 0 : index
    %c0_75 = arith.constant 0 : index
    %172 = vector.load %arg13[%c0_73, %c0_74, %c0_75] : memref<2x128x32xbf16, #tpu.memory_space<vmem>>, vector<1x128x32xbf16>
    %173 = vector.shape_cast %172 : vector<1x128x32xbf16> to vector<128x32xbf16>
    %cst_76 = arith.constant dense<0.000000e+00> : vector<128x32xf32>
    %174 = tpu.matmul %171, %173, %cst_76 {dimension_numbers = #tpu.dot_dimension_numbers<[1], [0], [0], [1], [0, 0, 1, 1], [], []>} : vector<128x128xbf16>, vector<128x32xbf16>, vector<128x32xf32> -> vector<128x32xf32>
    %c0_77 = arith.constant 0 : index
    %c0_78 = arith.constant 0 : index
    %c0_79 = arith.constant 0 : index
    %175 = vector.load %arg14[%c0_77, %c0_78, %c0_79] : memref<2x1x32xf32, #tpu.memory_space<vmem>>, vector<1x1x32xf32>
    %176 = vector.shape_cast %175 : vector<1x1x32xf32> to vector<1x32xf32>
    %177 = vector.broadcast %176 : vector<1x32xf32> to vector<128x32xf32>
    %178 = arith.addf %174, %177 : vector<128x32xf32>
    %179 = arith.addf %123, %178 : vector<128x32xf32>
    %c1 = arith.constant 1 : index
    %c0_80 = arith.constant 0 : index
    %c0_81 = arith.constant 0 : index
    %180 = vector.load %arg3[%c1, %c0_80, %c0_81] : memref<2x1x32xf32, #tpu.memory_space<vmem>>, vector<1x1x32xf32>
    %181 = vector.shape_cast %180 : vector<1x1x32xf32> to vector<1x32xf32>
    %c1_82 = arith.constant 1 : index
    %c0_83 = arith.constant 0 : index
    %c0_84 = arith.constant 0 : index
    %182 = vector.load %arg4[%c1_82, %c0_83, %c0_84] : memref<2x1x32xf32, #tpu.memory_space<vmem>>, vector<1x1x32xf32>
    %183 = vector.shape_cast %182 : vector<1x1x32xf32> to vector<1x32xf32>
    %cst_85 = arith.constant dense<0.000000e+00> : vector<128xf32>
    %184 = vector.multi_reduction <add>, %179, %cst_85 [1] : vector<128x32xf32> to vector<128xf32>
    %185 = vector.shape_cast %184 : vector<128xf32> to vector<128x1xf32>
    %cst_86 = arith.constant 3.200000e+01 : f32
    %186 = vector.broadcast %cst_86 : f32 to vector<128x1xf32>
    %187 = arith.divf %185, %186 : vector<128x1xf32>
    %188 = arith.mulf %179, %179 : vector<128x32xf32>
    %cst_87 = arith.constant dense<0.000000e+00> : vector<128xf32>
    %189 = vector.multi_reduction <add>, %188, %cst_87 [1] : vector<128x32xf32> to vector<128xf32>
    %190 = vector.shape_cast %189 : vector<128xf32> to vector<128x1xf32>
    %cst_88 = arith.constant 3.200000e+01 : f32
    %191 = vector.broadcast %cst_88 : f32 to vector<128x1xf32>
    %192 = arith.divf %190, %191 : vector<128x1xf32>
    %193 = arith.mulf %187, %187 : vector<128x1xf32>
    %194 = arith.subf %192, %193 : vector<128x1xf32>
    %195 = vector.broadcast %187 : vector<128x1xf32> to vector<128x32xf32>
    %196 = arith.subf %179, %195 : vector<128x32xf32>
    %cst_89 = arith.constant 9.99999974E-6 : f32
    %197 = vector.broadcast %cst_89 : f32 to vector<128x1xf32>
    %198 = arith.addf %194, %197 : vector<128x1xf32>
    %199 = math.rsqrt %198 : vector<128x1xf32>
    %200 = vector.broadcast %199 : vector<128x1xf32> to vector<128x32xf32>
    %201 = arith.mulf %196, %200 : vector<128x32xf32>
    %202 = vector.broadcast %181 : vector<1x32xf32> to vector<128x32xf32>
    %203 = arith.mulf %201, %202 : vector<128x32xf32>
    %204 = vector.broadcast %183 : vector<1x32xf32> to vector<128x32xf32>
    %205 = arith.addf %203, %204 : vector<128x32xf32>
    %206 = arith.truncf %205 : vector<128x32xf32> to vector<128x32xbf16>
    %c1_90 = arith.constant 1 : index
    %c0_91 = arith.constant 0 : index
    %c0_92 = arith.constant 0 : index
    %207 = vector.load %arg7[%c1_90, %c0_91, %c0_92] : memref<2x32x128xbf16, #tpu.memory_space<vmem>>, vector<1x32x128xbf16>
    %208 = vector.shape_cast %207 : vector<1x32x128xbf16> to vector<32x128xbf16>
    %cst_93 = arith.constant dense<0.000000e+00> : vector<128x128xf32>
    %209 = tpu.matmul %206, %208, %cst_93 {dimension_numbers = #tpu.dot_dimension_numbers<[1], [0], [0], [1], [0, 0, 1, 1], [], []>} : vector<128x32xbf16>, vector<32x128xbf16>, vector<128x128xf32> -> vector<128x128xf32>
    %c1_94 = arith.constant 1 : index
    %c0_95 = arith.constant 0 : index
    %c0_96 = arith.constant 0 : index
    %210 = vector.load %arg8[%c1_94, %c0_95, %c0_96] : memref<2x1x128xf32, #tpu.memory_space<vmem>>, vector<1x1x128xf32>
    %211 = vector.shape_cast %210 : vector<1x1x128xf32> to vector<1x128xf32>
    %212 = vector.broadcast %211 : vector<1x128xf32> to vector<128x128xf32>
    %213 = arith.addf %209, %212 : vector<128x128xf32>
    %214 = arith.truncf %213 : vector<128x128xf32> to vector<128x128xbf16>
    %215 = vector.extract_strided_slice %214 {offsets = [0, 0], sizes = [128, 8], strides = [1, 1]} : vector<128x128xbf16> to vector<128x8xbf16>
    %216 = vector.extract_strided_slice %214 {offsets = [0, 32], sizes = [128, 8], strides = [1, 1]} : vector<128x128xbf16> to vector<128x8xbf16>
    %217 = vector.extract_strided_slice %214 {offsets = [0, 64], sizes = [128, 8], strides = [1, 1]} : vector<128x128xbf16> to vector<128x8xbf16>
    %cst_97 = arith.constant dense<0.000000e+00> : vector<128x128xf32>
    %218 = tpu.matmul %215, %216, %cst_97 {dimension_numbers = #tpu.dot_dimension_numbers<[1], [1], [0], [0], [0, 0, 1, 0], [], []>} : vector<128x8xbf16>, vector<128x8xbf16>, vector<128x128xf32> -> vector<128x128xf32>
    %219 = arith.addf %218, %3 : vector<128x128xf32>
    %cst_98 = arith.constant dense<0xFF800000> : vector<128xf32>
    %220 = vector.multi_reduction <maximumf>, %219, %cst_98 [1] : vector<128x128xf32> to vector<128xf32>
    %221 = vector.shape_cast %220 : vector<128xf32> to vector<128x1xf32>
    %222 = vector.broadcast %221 : vector<128x1xf32> to vector<128x128xf32>
    %223 = arith.subf %219, %222 : vector<128x128xf32>
    %224 = math.exp %223 : vector<128x128xf32>
    %cst_99 = arith.constant dense<0.000000e+00> : vector<128xf32>
    %225 = vector.multi_reduction <add>, %224, %cst_99 [1] : vector<128x128xf32> to vector<128xf32>
    %226 = vector.shape_cast %225 : vector<128xf32> to vector<128x1xf32>
    %227 = tpu.reciprocal %226 {approx = true} : vector<128x1xf32> -> vector<128x1xf32>
    %228 = vector.broadcast %227 : vector<128x1xf32> to vector<128x128xf32>
    %229 = arith.mulf %224, %228 : vector<128x128xf32>
    %230 = arith.truncf %229 : vector<128x128xf32> to vector<128x128xbf16>
    %cst_100 = arith.constant dense<0.000000e+00> : vector<128x8xf32>
    %231 = tpu.matmul %230, %217, %cst_100 {dimension_numbers = #tpu.dot_dimension_numbers<[1], [0], [0], [1], [0, 0, 1, 1], [], []>} : vector<128x128xbf16>, vector<128x8xbf16>, vector<128x8xf32> -> vector<128x8xf32>
    %232 = arith.truncf %231 : vector<128x8xf32> to vector<128x8xbf16>
    %c0_101 = arith.constant 0 : index
    %c0_102 = arith.constant 0 : index
    %233 = vector.load %arg19[%c0_101, %c0_102] : memref<128x32xbf16, #tpu.memory_space<vmem>>, vector<128x8xbf16>
    tpu.vector_store %arg19[%c0_101, %c0_102], %232 {strides = array<i32>} : memref<128x32xbf16, #tpu.memory_space<vmem>>, vector<128x8xbf16>,
    %234 = vector.extract_strided_slice %214 {offsets = [0, 8], sizes = [128, 8], strides = [1, 1]} : vector<128x128xbf16> to vector<128x8xbf16>
    %235 = vector.extract_strided_slice %214 {offsets = [0, 40], sizes = [128, 8], strides = [1, 1]} : vector<128x128xbf16> to vector<128x8xbf16>
    %236 = vector.extract_strided_slice %214 {offsets = [0, 72], sizes = [128, 8], strides = [1, 1]} : vector<128x128xbf16> to vector<128x8xbf16>
    %cst_103 = arith.constant dense<0.000000e+00> : vector<128x128xf32>
    %237 = tpu.matmul %234, %235, %cst_103 {dimension_numbers = #tpu.dot_dimension_numbers<[1], [1], [0], [0], [0, 0, 1, 0], [], []>} : vector<128x8xbf16>, vector<128x8xbf16>, vector<128x128xf32> -> vector<128x128xf32>
    %238 = arith.addf %237, %3 : vector<128x128xf32>
    %cst_104 = arith.constant dense<0xFF800000> : vector<128xf32>
    %239 = vector.multi_reduction <maximumf>, %238, %cst_104 [1] : vector<128x128xf32> to vector<128xf32>
    %240 = vector.shape_cast %239 : vector<128xf32> to vector<128x1xf32>
    %241 = vector.broadcast %240 : vector<128x1xf32> to vector<128x128xf32>
    %242 = arith.subf %238, %241 : vector<128x128xf32>
    %243 = math.exp %242 : vector<128x128xf32>
    %cst_105 = arith.constant dense<0.000000e+00> : vector<128xf32>
    %244 = vector.multi_reduction <add>, %243, %cst_105 [1] : vector<128x128xf32> to vector<128xf32>
    %245 = vector.shape_cast %244 : vector<128xf32> to vector<128x1xf32>
    %246 = tpu.reciprocal %245 {approx = true} : vector<128x1xf32> -> vector<128x1xf32>
    %247 = vector.broadcast %246 : vector<128x1xf32> to vector<128x128xf32>
    %248 = arith.mulf %243, %247 : vector<128x128xf32>
    %249 = arith.truncf %248 : vector<128x128xf32> to vector<128x128xbf16>
    %cst_106 = arith.constant dense<0.000000e+00> : vector<128x8xf32>
    %250 = tpu.matmul %249, %236, %cst_106 {dimension_numbers = #tpu.dot_dimension_numbers<[1], [0], [0], [1], [0, 0, 1, 1], [], []>} : vector<128x128xbf16>, vector<128x8xbf16>, vector<128x8xf32> -> vector<128x8xf32>
    %251 = arith.truncf %250 : vector<128x8xf32> to vector<128x8xbf16>
    %c0_107 = arith.constant 0 : index
    %c8_108 = arith.constant 8 : index
    %252 = vector.load %arg19[%c0_107, %c8_108] : memref<128x32xbf16, #tpu.memory_space<vmem>>, vector<128x8xbf16>
    tpu.vector_store %arg19[%c0_107, %c8_108], %251 {strides = array<i32>} : memref<128x32xbf16, #tpu.memory_space<vmem>>, vector<128x8xbf16>,
    %253 = vector.extract_strided_slice %214 {offsets = [0, 16], sizes = [128, 8], strides = [1, 1]} : vector<128x128xbf16> to vector<128x8xbf16>
    %254 = vector.extract_strided_slice %214 {offsets = [0, 48], sizes = [128, 8], strides = [1, 1]} : vector<128x128xbf16> to vector<128x8xbf16>
    %255 = vector.extract_strided_slice %214 {offsets = [0, 80], sizes = [128, 8], strides = [1, 1]} : vector<128x128xbf16> to vector<128x8xbf16>
    %cst_109 = arith.constant dense<0.000000e+00> : vector<128x128xf32>
    %256 = tpu.matmul %253, %254, %cst_109 {dimension_numbers = #tpu.dot_dimension_numbers<[1], [1], [0], [0], [0, 0, 1, 0], [], []>} : vector<128x8xbf16>, vector<128x8xbf16>, vector<128x128xf32> -> vector<128x128xf32>
    %257 = arith.addf %256, %3 : vector<128x128xf32>
    %cst_110 = arith.constant dense<0xFF800000> : vector<128xf32>
    %258 = vector.multi_reduction <maximumf>, %257, %cst_110 [1] : vector<128x128xf32> to vector<128xf32>
    %259 = vector.shape_cast %258 : vector<128xf32> to vector<128x1xf32>
    %260 = vector.broadcast %259 : vector<128x1xf32> to vector<128x128xf32>
    %261 = arith.subf %257, %260 : vector<128x128xf32>
    %262 = math.exp %261 : vector<128x128xf32>
    %cst_111 = arith.constant dense<0.000000e+00> : vector<128xf32>
    %263 = vector.multi_reduction <add>, %262, %cst_111 [1] : vector<128x128xf32> to vector<128xf32>
    %264 = vector.shape_cast %263 : vector<128xf32> to vector<128x1xf32>
    %265 = tpu.reciprocal %264 {approx = true} : vector<128x1xf32> -> vector<128x1xf32>
    %266 = vector.broadcast %265 : vector<128x1xf32> to vector<128x128xf32>
    %267 = arith.mulf %262, %266 : vector<128x128xf32>
    %268 = arith.truncf %267 : vector<128x128xf32> to vector<128x128xbf16>
    %cst_112 = arith.constant dense<0.000000e+00> : vector<128x8xf32>
    %269 = tpu.matmul %268, %255, %cst_112 {dimension_numbers = #tpu.dot_dimension_numbers<[1], [0], [0], [1], [0, 0, 1, 1], [], []>} : vector<128x128xbf16>, vector<128x8xbf16>, vector<128x8xf32> -> vector<128x8xf32>
    %270 = arith.truncf %269 : vector<128x8xf32> to vector<128x8xbf16>
    %c0_113 = arith.constant 0 : index
    %c16_114 = arith.constant 16 : index
    %271 = vector.load %arg19[%c0_113, %c16_114] : memref<128x32xbf16, #tpu.memory_space<vmem>>, vector<128x8xbf16>
    tpu.vector_store %arg19[%c0_113, %c16_114], %270 {strides = array<i32>} : memref<128x32xbf16, #tpu.memory_space<vmem>>, vector<128x8xbf16>,
    %272 = vector.extract_strided_slice %214 {offsets = [0, 24], sizes = [128, 8], strides = [1, 1]} : vector<128x128xbf16> to vector<128x8xbf16>
    %273 = vector.extract_strided_slice %214 {offsets = [0, 56], sizes = [128, 8], strides = [1, 1]} : vector<128x128xbf16> to vector<128x8xbf16>
    %274 = vector.extract_strided_slice %214 {offsets = [0, 88], sizes = [128, 8], strides = [1, 1]} : vector<128x128xbf16> to vector<128x8xbf16>
    %cst_115 = arith.constant dense<0.000000e+00> : vector<128x128xf32>
    %275 = tpu.matmul %272, %273, %cst_115 {dimension_numbers = #tpu.dot_dimension_numbers<[1], [1], [0], [0], [0, 0, 1, 0], [], []>} : vector<128x8xbf16>, vector<128x8xbf16>, vector<128x128xf32> -> vector<128x128xf32>
    %276 = arith.addf %275, %3 : vector<128x128xf32>
    %cst_116 = arith.constant dense<0xFF800000> : vector<128xf32>
    %277 = vector.multi_reduction <maximumf>, %276, %cst_116 [1] : vector<128x128xf32> to vector<128xf32>
    %278 = vector.shape_cast %277 : vector<128xf32> to vector<128x1xf32>
    %279 = vector.broadcast %278 : vector<128x1xf32> to vector<128x128xf32>
    %280 = arith.subf %276, %279 : vector<128x128xf32>
    %281 = math.exp %280 : vector<128x128xf32>
    %cst_117 = arith.constant dense<0.000000e+00> : vector<128xf32>
    %282 = vector.multi_reduction <add>, %281, %cst_117 [1] : vector<128x128xf32> to vector<128xf32>
    %283 = vector.shape_cast %282 : vector<128xf32> to vector<128x1xf32>
    %284 = tpu.reciprocal %283 {approx = true} : vector<128x1xf32> -> vector<128x1xf32>
    %285 = vector.broadcast %284 : vector<128x1xf32> to vector<128x128xf32>
    %286 = arith.mulf %281, %285 : vector<128x128xf32>
    %287 = arith.truncf %286 : vector<128x128xf32> to vector<128x128xbf16>
    %cst_118 = arith.constant dense<0.000000e+00> : vector<128x8xf32>
    %288 = tpu.matmul %287, %274, %cst_118 {dimension_numbers = #tpu.dot_dimension_numbers<[1], [0], [0], [1], [0, 0, 1, 1], [], []>} : vector<128x128xbf16>, vector<128x8xbf16>, vector<128x8xf32> -> vector<128x8xf32>
    %289 = arith.truncf %288 : vector<128x8xf32> to vector<128x8xbf16>
    %c0_119 = arith.constant 0 : index
    %c24_120 = arith.constant 24 : index
    %290 = vector.load %arg19[%c0_119, %c24_120] : memref<128x32xbf16, #tpu.memory_space<vmem>>, vector<128x8xbf16>
    tpu.vector_store %arg19[%c0_119, %c24_120], %289 {strides = array<i32>} : memref<128x32xbf16, #tpu.memory_space<vmem>>, vector<128x8xbf16>,
    %c0_121 = arith.constant 0 : index
    %c0_122 = arith.constant 0 : index
    %291 = vector.load %arg19[%c0_121, %c0_122] : memref<128x32xbf16, #tpu.memory_space<vmem>>, vector<128x32xbf16>
    %c1_123 = arith.constant 1 : index
    %c0_124 = arith.constant 0 : index
    %c0_125 = arith.constant 0 : index
    %292 = vector.load %arg9[%c1_123, %c0_124, %c0_125] : memref<2x32x32xbf16, #tpu.memory_space<vmem>>, vector<1x32x32xbf16>
    %293 = vector.shape_cast %292 : vector<1x32x32xbf16> to vector<32x32xbf16>
    %cst_126 = arith.constant dense<0.000000e+00> : vector<128x32xf32>
    %294 = tpu.matmul %291, %293, %cst_126 {dimension_numbers = #tpu.dot_dimension_numbers<[1], [0], [0], [1], [0, 0, 1, 1], [], []>} : vector<128x32xbf16>, vector<32x32xbf16>, vector<128x32xf32> -> vector<128x32xf32>
    %c1_127 = arith.constant 1 : index
    %c0_128 = arith.constant 0 : index
    %c0_129 = arith.constant 0 : index
    %295 = vector.load %arg10[%c1_127, %c0_128, %c0_129] : memref<2x1x32xf32, #tpu.memory_space<vmem>>, vector<1x1x32xf32>
    %296 = vector.shape_cast %295 : vector<1x1x32xf32> to vector<1x32xf32>
    %297 = vector.broadcast %296 : vector<1x32xf32> to vector<128x32xf32>
    %298 = arith.addf %294, %297 : vector<128x32xf32>
    %299 = arith.addf %179, %298 : vector<128x32xf32>
    %c1_130 = arith.constant 1 : index
    %c0_131 = arith.constant 0 : index
    %c0_132 = arith.constant 0 : index
    %300 = vector.load %arg5[%c1_130, %c0_131, %c0_132] : memref<2x1x32xf32, #tpu.memory_space<vmem>>, vector<1x1x32xf32>
    %301 = vector.shape_cast %300 : vector<1x1x32xf32> to vector<1x32xf32>
    %c1_133 = arith.constant 1 : index
    %c0_134 = arith.constant 0 : index
    %c0_135 = arith.constant 0 : index
    %302 = vector.load %arg6[%c1_133, %c0_134, %c0_135] : memref<2x1x32xf32, #tpu.memory_space<vmem>>, vector<1x1x32xf32>
    %303 = vector.shape_cast %302 : vector<1x1x32xf32> to vector<1x32xf32>
    %cst_136 = arith.constant dense<0.000000e+00> : vector<128xf32>
    %304 = vector.multi_reduction <add>, %299, %cst_136 [1] : vector<128x32xf32> to vector<128xf32>
    %305 = vector.shape_cast %304 : vector<128xf32> to vector<128x1xf32>
    %cst_137 = arith.constant 3.200000e+01 : f32
    %306 = vector.broadcast %cst_137 : f32 to vector<128x1xf32>
    %307 = arith.divf %305, %306 : vector<128x1xf32>
    %308 = arith.mulf %299, %299 : vector<128x32xf32>
    %cst_138 = arith.constant dense<0.000000e+00> : vector<128xf32>
    %309 = vector.multi_reduction <add>, %308, %cst_138 [1] : vector<128x32xf32> to vector<128xf32>
    %310 = vector.shape_cast %309 : vector<128xf32> to vector<128x1xf32>
    %cst_139 = arith.constant 3.200000e+01 : f32
    %311 = vector.broadcast %cst_139 : f32 to vector<128x1xf32>
    %312 = arith.divf %310, %311 : vector<128x1xf32>
    %313 = arith.mulf %307, %307 : vector<128x1xf32>
    %314 = arith.subf %312, %313 : vector<128x1xf32>
    %315 = vector.broadcast %307 : vector<128x1xf32> to vector<128x32xf32>
    %316 = arith.subf %299, %315 : vector<128x32xf32>
    %cst_140 = arith.constant 9.99999974E-6 : f32
    %317 = vector.broadcast %cst_140 : f32 to vector<128x1xf32>
    %318 = arith.addf %314, %317 : vector<128x1xf32>
    %319 = math.rsqrt %318 : vector<128x1xf32>
    %320 = vector.broadcast %319 : vector<128x1xf32> to vector<128x32xf32>
    %321 = arith.mulf %316, %320 : vector<128x32xf32>
    %322 = vector.broadcast %301 : vector<1x32xf32> to vector<128x32xf32>
    %323 = arith.mulf %321, %322 : vector<128x32xf32>
    %324 = vector.broadcast %303 : vector<1x32xf32> to vector<128x32xf32>
    %325 = arith.addf %323, %324 : vector<128x32xf32>
    %326 = arith.truncf %325 : vector<128x32xf32> to vector<128x32xbf16>
    %c1_141 = arith.constant 1 : index
    %c0_142 = arith.constant 0 : index
    %c0_143 = arith.constant 0 : index
    %327 = vector.load %arg11[%c1_141, %c0_142, %c0_143] : memref<2x32x128xbf16, #tpu.memory_space<vmem>>, vector<1x32x128xbf16>
    %328 = vector.shape_cast %327 : vector<1x32x128xbf16> to vector<32x128xbf16>
    %cst_144 = arith.constant dense<0.000000e+00> : vector<128x128xf32>
    %329 = tpu.matmul %326, %328, %cst_144 {dimension_numbers = #tpu.dot_dimension_numbers<[1], [0], [0], [1], [0, 0, 1, 1], [], []>} : vector<128x32xbf16>, vector<32x128xbf16>, vector<128x128xf32> -> vector<128x128xf32>
    %c1_145 = arith.constant 1 : index
    %c0_146 = arith.constant 0 : index
    %c0_147 = arith.constant 0 : index
    %330 = vector.load %arg12[%c1_145, %c0_146, %c0_147] : memref<2x1x128xf32, #tpu.memory_space<vmem>>, vector<1x1x128xf32>
    %331 = vector.shape_cast %330 : vector<1x1x128xf32> to vector<1x128xf32>
    %332 = vector.broadcast %331 : vector<1x128xf32> to vector<128x128xf32>
    %333 = arith.addf %329, %332 : vector<128x128xf32>
    %cst_148 = arith.constant 5.000000e-01 : f32
    %334 = vector.broadcast %cst_148 : f32 to vector<128x128xf32>
    %335 = arith.mulf %334, %333 : vector<128x128xf32>
    %cst_149 = arith.constant 4.471500e-02 : f32
    %336 = vector.broadcast %cst_149 : f32 to vector<128x128xf32>
    %337 = arith.mulf %336, %333 : vector<128x128xf32>
    %338 = arith.mulf %337, %333 : vector<128x128xf32>
    %339 = arith.mulf %338, %333 : vector<128x128xf32>
    %340 = arith.addf %333, %339 : vector<128x128xf32>
    %cst_150 = arith.constant 0.797884583 : f32
    %341 = vector.broadcast %cst_150 : f32 to vector<128x128xf32>
    %342 = arith.mulf %341, %340 : vector<128x128xf32>
    %343 = math.tanh %342 : vector<128x128xf32>
    %cst_151 = arith.constant 1.000000e+00 : f32
    %344 = vector.broadcast %cst_151 : f32 to vector<128x128xf32>
    %345 = arith.addf %344, %343 : vector<128x128xf32>
    %346 = arith.mulf %335, %345 : vector<128x128xf32>
    %347 = arith.truncf %346 : vector<128x128xf32> to vector<128x128xbf16>
    %c1_152 = arith.constant 1 : index
    %c0_153 = arith.constant 0 : index
    %c0_154 = arith.constant 0 : index
    %348 = vector.load %arg13[%c1_152, %c0_153, %c0_154] : memref<2x128x32xbf16, #tpu.memory_space<vmem>>, vector<1x128x32xbf16>
    %349 = vector.shape_cast %348 : vector<1x128x32xbf16> to vector<128x32xbf16>
    %cst_155 = arith.constant dense<0.000000e+00> : vector<128x32xf32>
    %350 = tpu.matmul %347, %349, %cst_155 {dimension_numbers = #tpu.dot_dimension_numbers<[1], [0], [0], [1], [0, 0, 1, 1], [], []>} : vector<128x128xbf16>, vector<128x32xbf16>, vector<128x32xf32> -> vector<128x32xf32>
    %c1_156 = arith.constant 1 : index
    %c0_157 = arith.constant 0 : index
    %c0_158 = arith.constant 0 : index
    %351 = vector.load %arg14[%c1_156, %c0_157, %c0_158] : memref<2x1x32xf32, #tpu.memory_space<vmem>>, vector<1x1x32xf32>
    %352 = vector.shape_cast %351 : vector<1x1x32xf32> to vector<1x32xf32>
    %353 = vector.broadcast %352 : vector<1x32xf32> to vector<128x32xf32>
    %354 = arith.addf %350, %353 : vector<128x32xf32>
    %355 = arith.addf %299, %354 : vector<128x32xf32>
    %c0_159 = arith.constant 0 : index
    %c0_160 = arith.constant 0 : index
    %356 = vector.load %arg15[%c0_159, %c0_160] : memref<1x32xf32, #tpu.memory_space<vmem>>, vector<1x32xf32>
    %c0_161 = arith.constant 0 : index
    %c0_162 = arith.constant 0 : index
    %357 = vector.load %arg16[%c0_161, %c0_162] : memref<1x32xf32, #tpu.memory_space<vmem>>, vector<1x32xf32>
    %cst_163 = arith.constant dense<0.000000e+00> : vector<128xf32>
    %358 = vector.multi_reduction <add>, %355, %cst_163 [1] : vector<128x32xf32> to vector<128xf32>
    %359 = vector.shape_cast %358 : vector<128xf32> to vector<128x1xf32>
    %cst_164 = arith.constant 3.200000e+01 : f32
    %360 = vector.broadcast %cst_164 : f32 to vector<128x1xf32>
    %361 = arith.divf %359, %360 : vector<128x1xf32>
    %362 = arith.mulf %355, %355 : vector<128x32xf32>
    %cst_165 = arith.constant dense<0.000000e+00> : vector<128xf32>
    %363 = vector.multi_reduction <add>, %362, %cst_165 [1] : vector<128x32xf32> to vector<128xf32>
    %364 = vector.shape_cast %363 : vector<128xf32> to vector<128x1xf32>
    %cst_166 = arith.constant 3.200000e+01 : f32
    %365 = vector.broadcast %cst_166 : f32 to vector<128x1xf32>
    %366 = arith.divf %364, %365 : vector<128x1xf32>
    %367 = arith.mulf %361, %361 : vector<128x1xf32>
    %368 = arith.subf %366, %367 : vector<128x1xf32>
    %369 = vector.broadcast %361 : vector<128x1xf32> to vector<128x32xf32>
    %370 = arith.subf %355, %369 : vector<128x32xf32>
    %cst_167 = arith.constant 9.99999974E-6 : f32
    %371 = vector.broadcast %cst_167 : f32 to vector<128x1xf32>
    %372 = arith.addf %368, %371 : vector<128x1xf32>
    %373 = math.rsqrt %372 : vector<128x1xf32>
    %374 = vector.broadcast %373 : vector<128x1xf32> to vector<128x32xf32>
    %375 = arith.mulf %370, %374 : vector<128x32xf32>
    %376 = vector.broadcast %356 : vector<1x32xf32> to vector<128x32xf32>
    %377 = arith.mulf %375, %376 : vector<128x32xf32>
    %378 = vector.broadcast %357 : vector<1x32xf32> to vector<128x32xf32>
    %379 = arith.addf %377, %378 : vector<128x32xf32>
    %380 = arith.truncf %379 : vector<128x32xf32> to vector<128x32xbf16>
    %c0_168 = arith.constant 0 : index
    %c0_169 = arith.constant 0 : index
    %381 = vector.load %arg17[%c0_168, %c0_169] : memref<32x128xbf16, #tpu.memory_space<vmem>>, vector<32x128xbf16>
    %cst_170 = arith.constant dense<0.000000e+00> : vector<128x128xf32>
    %382 = tpu.matmul %380, %381, %cst_170 {dimension_numbers = #tpu.dot_dimension_numbers<[1], [0], [0], [1], [0, 0, 1, 1], [], []>} : vector<128x32xbf16>, vector<32x128xbf16>, vector<128x128xf32> -> vector<128x128xf32>
    %383 = vector.shape_cast %382 : vector<128x128xf32> to vector<16x8x128xf32>
    %c0_171 = arith.constant 0 : index
    %c0_172 = arith.constant 0 : index
    %c0_173 = arith.constant 0 : index
    %384 = vector.load %arg18[%c0_171, %c0_172, %c0_173] : memref<16x8x128xf32, #tpu.memory_space<vmem>>, vector<16x8x128xf32>
    tpu.vector_store %arg18[%c0_171, %c0_172, %c0_173], %383 {strides = array<i32>} : memref<16x8x128xf32, #tpu.memory_space<vmem>>, vector<16x8x128xf32>,
    return
  }
  func.func @transform_0(%arg0: i32) -> (i32, i32, i32) {
    %c0_i32 = arith.constant 0 : i32
    %c0_i32_0 = arith.constant 0 : i32
    %c0_i32_1 = arith.constant 0 : i32
    return %arg0, %c0_i32, %c0_i32_0 : i32, i32, i32
  }
  func.func @transform_1(%arg0: i32) -> (i32, i32) {
    %c0_i32 = arith.constant 0 : i32
    %c0_i32_0 = arith.constant 0 : i32
    %c0_i32_1 = arith.constant 0 : i32
    return %c0_i32, %c0_i32_0 : i32, i32
  }
  func.func @transform_2(%arg0: i32) -> (i32, i32, i32) {
    %c0_i32 = arith.constant 0 : i32
    %c0_i32_0 = arith.constant 0 : i32
    %c0_i32_1 = arith.constant 0 : i32
    %c0_i32_2 = arith.constant 0 : i32
    return %c0_i32, %c0_i32_0, %c0_i32_1 : i32, i32, i32
  }
  func.func @transform_3(%arg0: i32) -> (i32, i32, i32) {
    %c0_i32 = arith.constant 0 : i32
    %c0_i32_0 = arith.constant 0 : i32
    %c0_i32_1 = arith.constant 0 : i32
    %c0_i32_2 = arith.constant 0 : i32
    return %c0_i32, %c0_i32_0, %c0_i32_1 : i32, i32, i32
  }
  func.func @transform_4(%arg0: i32) -> (i32, i32, i32) {
    %c0_i32 = arith.constant 0 : i32
    %c0_i32_0 = arith.constant 0 : i32
    %c0_i32_1 = arith.constant 0 : i32
    %c0_i32_2 = arith.constant 0 : i32
    return %c0_i32, %c0_i32_0, %c0_i32_1 : i32, i32, i32
  }
  func.func @transform_5(%arg0: i32) -> (i32, i32, i32) {
    %c0_i32 = arith.constant 0 : i32
    %c0_i32_0 = arith.constant 0 : i32
    %c0_i32_1 = arith.constant 0 : i32
    %c0_i32_2 = arith.constant 0 : i32
    return %c0_i32, %c0_i32_0, %c0_i32_1 : i32, i32, i32
  }
  func.func @transform_6(%arg0: i32) -> (i32, i32, i32) {
    %c0_i32 = arith.constant 0 : i32
    %c0_i32_0 = arith.constant 0 : i32
    %c0_i32_1 = arith.constant 0 : i32
    %c0_i32_2 = arith.constant 0 : i32
    return %c0_i32, %c0_i32_0, %c0_i32_1 : i32, i32, i32
  }
  func.func @transform_7(%arg0: i32) -> (i32, i32, i32) {
    %c0_i32 = arith.constant 0 : i32
    %c0_i32_0 = arith.constant 0 : i32
    %c0_i32_1 = arith.constant 0 : i32
    %c0_i32_2 = arith.constant 0 : i32
    return %c0_i32, %c0_i32_0, %c0_i32_1 : i32, i32, i32
  }
  func.func @transform_8(%arg0: i32) -> (i32, i32, i32) {
    %c0_i32 = arith.constant 0 : i32
    %c0_i32_0 = arith.constant 0 : i32
    %c0_i32_1 = arith.constant 0 : i32
    %c0_i32_2 = arith.constant 0 : i32
    return %c0_i32, %c0_i32_0, %c0_i32_1 : i32, i32, i32
  }
  func.func @transform_9(%arg0: i32) -> (i32, i32, i32) {
    %c0_i32 = arith.constant 0 : i32
    %c0_i32_0 = arith.constant 0 : i32
    %c0_i32_1 = arith.constant 0 : i32
    %c0_i32_2 = arith.constant 0 : i32
    return %c0_i32, %c0_i32_0, %c0_i32_1 : i32, i32, i32
  }
  func.func @transform_10(%arg0: i32) -> (i32, i32, i32) {
    %c0_i32 = arith.constant 0 : i32
    %c0_i32_0 = arith.constant 0 : i32
    %c0_i32_1 = arith.constant 0 : i32
    %c0_i32_2 = arith.constant 0 : i32
    return %c0_i32, %c0_i32_0, %c0_i32_1 : i32, i32, i32
  }
  func.func @transform_11(%arg0: i32) -> (i32, i32, i32) {
    %c0_i32 = arith.constant 0 : i32
    %c0_i32_0 = arith.constant 0 : i32
    %c0_i32_1 = arith.constant 0 : i32
    %c0_i32_2 = arith.constant 0 : i32
    return %c0_i32, %c0_i32_0, %c0_i32_1 : i32, i32, i32
  }
  func.func @transform_12(%arg0: i32) -> (i32, i32, i32) {
    %c0_i32 = arith.constant 0 : i32
    %c0_i32_0 = arith.constant 0 : i32
    %c0_i32_1 = arith.constant 0 : i32
    %c0_i32_2 = arith.constant 0 : i32
    return %c0_i32, %c0_i32_0, %c0_i32_1 : i32, i32, i32
  }
  func.func @transform_13(%arg0: i32) -> (i32, i32, i32) {
    %c0_i32 = arith.constant 0 : i32
    %c0_i32_0 = arith.constant 0 : i32
    %c0_i32_1 = arith.constant 0 : i32
    %c0_i32_2 = arith.constant 0 : i32
    return %c0_i32, %c0_i32_0, %c0_i32_1 : i32, i32, i32
  }
  func.func @transform_14(%arg0: i32) -> (i32, i32) {
    %c0_i32 = arith.constant 0 : i32
    %c0_i32_0 = arith.constant 0 : i32
    %c0_i32_1 = arith.constant 0 : i32
    return %c0_i32, %c0_i32_0 : i32, i32
  }
  func.func @transform_15(%arg0: i32) -> (i32, i32) {
    %c0_i32 = arith.constant 0 : i32
    %c0_i32_0 = arith.constant 0 : i32
    %c0_i32_1 = arith.constant 0 : i32
    return %c0_i32, %c0_i32_0 : i32, i32
  }
  func.func @transform_16(%arg0: i32) -> (i32, i32) {
    %c0_i32 = arith.constant 0 : i32
    %c0_i32_0 = arith.constant 0 : i32
    %c0_i32_1 = arith.constant 0 : i32
    return %c0_i32, %c0_i32_0 : i32, i32
  }
  func.func @transform_17(%arg0: i32) -> (i32, i32, i32) {
    %c0_i32 = arith.constant 0 : i32
    %c0_i32_0 = arith.constant 0 : i32
    %c0_i32_1 = arith.constant 0 : i32
    return %arg0, %c0_i32, %c0_i32_0 : i32, i32, i32
  }
}

</mosaic_0001>

<llo_original>
// kernel: tpu_custom_call.1
$region0: #{tpu_custom_call.1}
  #allocation0 [shape = 'u32[]', space=smem, size = 0x4, offset = 0x4, fixed_abs, tag = 'smem constant byte address 0x4 - core index']
  #allocation1 [shape = 'u32[72,128]{1,0:T(1,128)}', space=vmem, size = 0x9000, scoped, tag = 'internal scratch']
  #allocation2 [shape = 'bf16[128,32]{1,0:T(8,128)(2,1)}', space=vmem, size = 0x8000, scoped, tag = 'scratch operand']
  %s0 = inlined_call_operand.hbm [shape: f32[32,8,32], index: 0, kind: input, shape index: {}]
  %s1 = inlined_call_operand.vmem [shape: bf16[128,128], index: 1, kind: input, shape index: {}]
  %s2 = inlined_call_operand.hbm [shape: f32[2,1,32], index: 2, kind: input, shape index: {}]
  %s3 = inlined_call_operand.hbm [shape: f32[2,1,32], index: 3, kind: input, shape index: {}]
  %s4 = inlined_call_operand.vmem [shape: f32[2,1,32], index: 4, kind: input, shape index: {}]
  %s5 = inlined_call_operand.hbm [shape: f32[2,1,32], index: 5, kind: input, shape index: {}]
  %s6 = inlined_call_operand.vmem [shape: bf16[2,32,128], index: 6, kind: input, shape index: {}]
  %s7 = inlined_call_operand.vmem [shape: f32[2,1,128], index: 7, kind: input, shape index: {}]
  %s8 = inlined_call_operand.vmem [shape: bf16[2,32,32], index: 8, kind: input, shape index: {}]
  %s9 = inlined_call_operand.vmem [shape: f32[2,1,32], index: 9, kind: input, shape index: {}]
  %s10 = inlined_call_operand.vmem [shape: bf16[2,32,128], index: 10, kind: input, shape index: {}]
  %s11 = inlined_call_operand.vmem [shape: f32[2,1,128], index: 11, kind: input, shape index: {}]
  %s12 = inlined_call_operand.vmem [shape: bf16[2,128,32], index: 12, kind: input, shape index: {}]
  %s13 = inlined_call_operand.vmem [shape: f32[2,1,32], index: 13, kind: input, shape index: {}]
  %s14 = inlined_call_operand.vmem [shape: f32[1,32], index: 14, kind: input, shape index: {}]
  %s15 = inlined_call_operand.vmem [shape: f32[1,32], index: 15, kind: input, shape index: {}]
  %s16 = inlined_call_operand.hbm [shape: bf16[32,128], index: 16, kind: input, shape index: {}]
  %s17 = inlined_call_operand.hbm [shape: f32[32,8,128], index: 17, kind: output, shape index: {}]
  %s18 = sld [smem:[#allocation0]]
  $region121: #{tpu_custom_call.1} parent=0
    _
  %s20 = ssub.s32 1, %s18
  %s21 = scalar_select 0, %s20, %s18
  $region1: #{tpu_custom_call.1} parent=0
    #allocation3 [shape = 'u8[131072]{0}', space=vmem, size = 0x20000, scoped, tag = 'input window, operand 0']
    #allocation4 [shape = 's32[2]{0}', space=sflag, size = 0x8, scoped, tag = 'scoped memory for tpu_custom_call.1']
    #allocation5 [shape = 's32[2]{0}', space=sflag, size = 0x8, scoped, tag = 'scoped memory for tpu_custom_call.1']
    #allocation6 [shape = 'u8[1024]{0}', space=vmem, size = 0x400, scoped, tag = 'input window, operand 2, single buffered']
    #allocation7 [shape = 's32[1]{0}', space=sflag, size = 0x4, scoped, tag = 'scoped memory for tpu_custom_call.1']
    #allocation8 [shape = 'u8[1024]{0}', space=vmem, size = 0x400, scoped, tag = 'input window, operand 3, single buffered']
    #allocation9 [shape = 'u8[1024]{0}', space=vmem, size = 0x400, scoped, tag = 'input window, operand 5, single buffered']
    #allocation10 [shape = 's32[1]{0}', space=sflag, size = 0x4, scoped, tag = 'scoped memory for tpu_custom_call.1']
    #allocation11 [shape = 'u8[8192]{0}', space=vmem, size = 0x2000, scoped, tag = 'input window, operand 16, single buffered']
    #allocation12 [shape = 'u8[131072]{0}', space=vmem, size = 0x20000, scoped, tag = 'output window, operand 0']
    %22 = vsyncpa [#allocation4], 0
    %s23 = scalar_lea.sflag [#allocation4], 1
    %24 = vsyncpa %s23, 0
    %25 = vsyncpa [#allocation7], 0
    %26 = vsyncpa [#allocation10], 0
    %27 = vsyncpa [#allocation5], 0
    %s28 = scalar_lea.sflag [#allocation5], 1
    %29 = vsyncpa %s28, 0
    loop: start=0, step=1, limit=4
    $region2: #{tpu_custom_call.1} parent=1 // loop_pre_header
      _
    $region3: #{tpu_custom_call.1} parent=1 // loop_header
      %s31 = sphi 0, %s35
      %p32 = scmp.ge.s32.totalorder %s31, 4
      %s41 = sphi 0, %s43
      %s44 = sphi 0, %s41
      %s45 = sphi 0, %s44
      %s61 = sphi 0, %s45
      %s65 = sphi 0, %s65
      %s67 = sphi 0, %s65
      %s68 = sphi 0, %s67
      %s82 = sphi 0, %s68
      %s86 = sphi 0, %s86
      %s88 = sphi 0, %s86
      %s89 = sphi 0, %s88
      %s103 = sphi 0, %s89
      %s107 = sphi 0, %s107
      %s109 = sphi 0, %s107
      %s110 = sphi 0, %s109
      %s124 = sphi 0, %s110
      %s128 = sphi 0, %s128
      %s130 = sphi 0, %s128
      %s131 = sphi 0, %s130
      %s145 = sphi 0, %s131
      %s149 = sphi 0, %s149
      %s151 = sphi 0, %s149
      %s152 = sphi 0, %s151
      %s166 = sphi 0, %s152
      %s170 = sphi 0, %s170
      %s172 = sphi 0, %s170
      %s173 = sphi 0, %s172
      %s187 = sphi 0, %s173
      %s191 = sphi 0, %s191
      %s193 = sphi 0, %s191
      %s194 = sphi 0, %s193
      %s208 = sphi 0, %s194
      %s212 = sphi 0, %s212
      %s214 = sphi 0, %s212
      %s215 = sphi 0, %s214
      %s229 = sphi 0, %s215
      %s233 = sphi 0, %s233
      %s235 = sphi 0, %s233
      %s236 = sphi 0, %s235
      %s250 = sphi 0, %s236
      %s254 = sphi 0, %s254
      %s256 = sphi 0, %s254
      %s257 = sphi 0, %s256
      %s271 = sphi 0, %s257
      %s275 = sphi 0, %s275
      %s277 = sphi 0, %s275
      %s278 = sphi 0, %s277
      %s292 = sphi 0, %s278
      %s296 = sphi 0, %s296
      %s298 = sphi 0, %s296
      %s299 = sphi 0, %s298
      %s313 = sphi 0, %s299
      %s317 = sphi 0, %s317
      %s319 = sphi 0, %s317
      %s320 = sphi 0, %s319
      %s334 = sphi 0, %s320
      %s338 = sphi 0, %s338
      %s340 = sphi 0, %s338
      %s341 = sphi 0, %s340
      %s355 = sphi 0, %s341
      %s359 = sphi 0, %s359
      %s361 = sphi 0, %s359
      %s362 = sphi 0, %s361
      %s376 = sphi 0, %s362
      %s380 = sphi 0, %s380
      %s382 = sphi 0, %s380
      %s383 = sphi 0, %s382
      %s397 = sphi 0, %s383
      %s403 = sphi 0, %s405
      %s406 = sphi 0, %s403
      %s407 = sphi 0, %s406
      %s423 = sphi 0, %s407
    $region4: #{tpu_custom_call.1} parent=1 // loop_header_branch
      %34 = sbr.rel (%p32) target = $region8
    $region5: #{tpu_custom_call.1} parent=1 // loop_body
      %s36 = ssub.s32 %s31, 1
      %s37 = ssub.s32 %s31, 2
      %s38 = sadd.s32 %s31, 1
      %s39 = ssub.s32 %s31, %s38
      %p40 = scmp.eq.s32.totalorder %s39, 0
      %s42 = sadd.s32 %s41, 1
      %s43 = scalar_select %p40, %s41, %s42
      %p46 = pneg %p40
      %p47 = scmp.eq.s32.totalorder %s31, 1
      %p48 = por %p46, %p47
      %p49 = scmp.ne.s32.totalorder %s41, %s44
      %p50 = scmp.eq.s32.totalorder %s31, 0
      %p51 = por %p49, %p50
      %p52 = scmp.ne.s32.totalorder %s41, %s44
      %p53 = scmp.eq.s32.totalorder %s36, 1
      %p54 = por %p52, %p53
      %p55 = scmp.ne.s32.totalorder %s44, %s45
      %p56 = scmp.eq.s32.totalorder %s36, 0
      %p57 = por %p55, %p56
      %p58 = scmp.ne.s32.totalorder %s44, %s45
      %p59 = scmp.eq.s32.totalorder %s37, 1
      %p60 = por %p58, %p59
      %p62 = scmp.ne.s32.totalorder %s45, %s61
      %p63 = scmp.eq.s32.totalorder %s37, 0
      %p64 = por %p62, %p63
      %s66 = sadd.s32 %s65, 1
      %p69 = scmp.eq.s32.totalorder %s31, 1
      %p70 = scmp.ne.s32.totalorder %s65, %s67
      %p71 = scmp.eq.s32.totalorder %s31, 0
      %p72 = por %p70, %p71
      %p73 = scmp.ne.s32.totalorder %s65, %s67
      %p74 = scmp.eq.s32.totalorder %s36, 1
      %p75 = por %p73, %p74
      %p76 = scmp.ne.s32.totalorder %s67, %s68
      %p77 = scmp.eq.s32.totalorder %s36, 0
      %p78 = por %p76, %p77
      %p79 = scmp.ne.s32.totalorder %s67, %s68
      %p80 = scmp.eq.s32.totalorder %s37, 1
      %p81 = por %p79, %p80
      %p83 = scmp.ne.s32.totalorder %s68, %s82
      %p84 = scmp.eq.s32.totalorder %s37, 0
      %p85 = por %p83, %p84
      %s87 = sadd.s32 %s86, 1
      %p90 = scmp.eq.s32.totalorder %s31, 1
      %p91 = scmp.ne.s32.totalorder %s86, %s88
      %p92 = scmp.eq.s32.totalorder %s31, 0
      %p93 = por %p91, %p92
      %p94 = scmp.ne.s32.totalorder %s86, %s88
      %p95 = scmp.eq.s32.totalorder %s36, 1
      %p96 = por %p94, %p95
      %p97 = scmp.ne.s32.totalorder %s88, %s89
      %p98 = scmp.eq.s32.totalorder %s36, 0
      %p99 = por %p97, %p98
      %p100 = scmp.ne.s32.totalorder %s88, %s89
      %p101 = scmp.eq.s32.totalorder %s37, 1
      %p102 = por %p100, %p101
      %p104 = scmp.ne.s32.totalorder %s89, %s103
      %p105 = scmp.eq.s32.totalorder %s37, 0
      %p106 = por %p104, %p105
      %s108 = sadd.s32 %s107, 1
      %p111 = scmp.eq.s32.totalorder %s31, 1
      %p112 = scmp.ne.s32.totalorder %s107, %s109
      %p113 = scmp.eq.s32.totalorder %s31, 0
      %p114 = por %p112, %p113
      %p115 = scmp.ne.s32.totalorder %s107, %s109
      %p116 = scmp.eq.s32.totalorder %s36, 1
      %p117 = por %p115, %p116
      %p118 = scmp.ne.s32.totalorder %s109, %s110
      %p119 = scmp.eq.s32.totalorder %s36, 0
      %p120 = por %p118, %p119
      %p121 = scmp.ne.s32.totalorder %s109, %s110
      %p122 = scmp.eq.s32.totalorder %s37, 1
      %p123 = por %p121, %p122
      %p125 = scmp.ne.s32.totalorder %s110, %s124
      %p126 = scmp.eq.s32.totalorder %s37, 0
      %p127 = por %p125, %p126
      %s129 = sadd.s32 %s128, 1
      %p132 = scmp.eq.s32.totalorder %s31, 1
      %p133 = scmp.ne.s32.totalorder %s128, %s130
      %p134 = scmp.eq.s32.totalorder %s31, 0
      %p135 = por %p133, %p134
      %p136 = scmp.ne.s32.totalorder %s128, %s130
      %p137 = scmp.eq.s32.totalorder %s36, 1
      %p138 = por %p136, %p137
      %p139 = scmp.ne.s32.totalorder %s130, %s131
      %p140 = scmp.eq.s32.totalorder %s36, 0
      %p141 = por %p139, %p140
      %p142 = scmp.ne.s32.totalorder %s130, %s131
      %p143 = scmp.eq.s32.totalorder %s37, 1
      %p144 = por %p142, %p143
      %p146 = scmp.ne.s32.totalorder %s131, %s145
      %p147 = scmp.eq.s32.totalorder %s37, 0
      %p148 = por %p146, %p147
      %s150 = sadd.s32 %s149, 1
      %p153 = scmp.eq.s32.totalorder %s31, 1
      %p154 = scmp.ne.s32.totalorder %s149, %s151
      %p155 = scmp.eq.s32.totalorder %s31, 0
      %p156 = por %p154, %p155
      %p157 = scmp.ne.s32.totalorder %s149, %s151
      %p158 = scmp.eq.s32.totalorder %s36, 1
      %p159 = por %p157, %p158
      %p160 = scmp.ne.s32.totalorder %s151, %s152
      %p161 = scmp.eq.s32.totalorder %s36, 0
      %p162 = por %p160, %p161
      %p163 = scmp.ne.s32.totalorder %s151, %s152
      %p164 = scmp.eq.s32.totalorder %s37, 1
      %p165 = por %p163, %p164
      %p167 = scmp.ne.s32.totalorder %s152, %s166
      %p168 = scmp.eq.s32.totalorder %s37, 0
      %p169 = por %p167, %p168
      %s171 = sadd.s32 %s170, 1
      %p174 = scmp.eq.s32.totalorder %s31, 1
      %p175 = scmp.ne.s32.totalorder %s170, %s172
      %p176 = scmp.eq.s32.totalorder %s31, 0
      %p177 = por %p175, %p176
      %p178 = scmp.ne.s32.totalorder %s170, %s172
      %p179 = scmp.eq.s32.totalorder %s36, 1
      %p180 = por %p178, %p179
      %p181 = scmp.ne.s32.totalorder %s172, %s173
      %p182 = scmp.eq.s32.totalorder %s36, 0
      %p183 = por %p181, %p182
      %p184 = scmp.ne.s32.totalorder %s172, %s173
      %p185 = scmp.eq.s32.totalorder %s37, 1
      %p186 = por %p184, %p185
      %p188 = scmp.ne.s32.totalorder %s173, %s187
      %p189 = scmp.eq.s32.totalorder %s37, 0
      %p190 = por %p188, %p189
      %s192 = sadd.s32 %s191, 1
      %p195 = scmp.eq.s32.totalorder %s31, 1
      %p196 = scmp.ne.s32.totalorder %s191, %s193
      %p197 = scmp.eq.s32.totalorder %s31, 0
      %p198 = por %p196, %p197
      %p199 = scmp.ne.s32.totalorder %s191, %s193
      %p200 = scmp.eq.s32.totalorder %s36, 1
      %p201 = por %p199, %p200
      %p202 = scmp.ne.s32.totalorder %s193, %s194
      %p203 = scmp.eq.s32.totalorder %s36, 0
      %p204 = por %p202, %p203
      %p205 = scmp.ne.s32.totalorder %s193, %s194
      %p206 = scmp.eq.s32.totalorder %s37, 1
      %p207 = por %p205, %p206
      %p209 = scmp.ne.s32.totalorder %s194, %s208
      %p210 = scmp.eq.s32.totalorder %s37, 0
      %p211 = por %p209, %p210
      %s213 = sadd.s32 %s212, 1
      %p216 = scmp.eq.s32.totalorder %s31, 1
      %p217 = scmp.ne.s32.totalorder %s212, %s214
      %p218 = scmp.eq.s32.totalorder %s31, 0
      %p219 = por %p217, %p218
      %p220 = scmp.ne.s32.totalorder %s212, %s214
      %p221 = scmp.eq.s32.totalorder %s36, 1
      %p222 = por %p220, %p221
      %p223 = scmp.ne.s32.totalorder %s214, %s215
      %p224 = scmp.eq.s32.totalorder %s36, 0
      %p225 = por %p223, %p224
      %p226 = scmp.ne.s32.totalorder %s214, %s215
      %p227 = scmp.eq.s32.totalorder %s37, 1
      %p228 = por %p226, %p227
      %p230 = scmp.ne.s32.totalorder %s215, %s229
      %p231 = scmp.eq.s32.totalorder %s37, 0
      %p232 = por %p230, %p231
      %s234 = sadd.s32 %s233, 1
      %p237 = scmp.eq.s32.totalorder %s31, 1
      %p238 = scmp.ne.s32.totalorder %s233, %s235
      %p239 = scmp.eq.s32.totalorder %s31, 0
      %p240 = por %p238, %p239
      %p241 = scmp.ne.s32.totalorder %s233, %s235
      %p242 = scmp.eq.s32.totalorder %s36, 1
      %p243 = por %p241, %p242
      %p244 = scmp.ne.s32.totalorder %s235, %s236
      %p245 = scmp.eq.s32.totalorder %s36, 0
      %p246 = por %p244, %p245
      %p247 = scmp.ne.s32.totalorder %s235, %s236
      %p248 = scmp.eq.s32.totalorder %s37, 1
      %p249 = por %p247, %p248
      %p251 = scmp.ne.s32.totalorder %s236, %s250
      %p252 = scmp.eq.s32.totalorder %s37, 0
      %p253 = por %p251, %p252
      %s255 = sadd.s32 %s254, 1
      %p258 = scmp.eq.s32.totalorder %s31, 1
      %p259 = scmp.ne.s32.totalorder %s254, %s256
      %p260 = scmp.eq.s32.totalorder %s31, 0
      %p261 = por %p259, %p260
      %p262 = scmp.ne.s32.totalorder %s254, %s256
      %p263 = scmp.eq.s32.totalorder %s36, 1
      %p264 = por %p262, %p263
      %p265 = scmp.ne.s32.totalorder %s256, %s257
      %p266 = scmp.eq.s32.totalorder %s36, 0
      %p267 = por %p265, %p266
      %p268 = scmp.ne.s32.totalorder %s256, %s257
      %p269 = scmp.eq.s32.totalorder %s37, 1
      %p270 = por %p268, %p269
      %p272 = scmp.ne.s32.totalorder %s257, %s271
      %p273 = scmp.eq.s32.totalorder %s37, 0
      %p274 = por %p272, %p273
      %s276 = sadd.s32 %s275, 1
      %p279 = scmp.eq.s32.totalorder %s31, 1
      %p280 = scmp.ne.s32.totalorder %s275, %s277
      %p281 = scmp.eq.s32.totalorder %s31, 0
      %p282 = por %p280, %p281
      %p283 = scmp.ne.s32.totalorder %s275, %s277
      %p284 = scmp.eq.s32.totalorder %s36, 1
      %p285 = por %p283, %p284
      %p286 = scmp.ne.s32.totalorder %s277, %s278
      %p287 = scmp.eq.s32.totalorder %s36, 0
      %p288 = por %p286, %p287
      %p289 = scmp.ne.s32.totalorder %s277, %s278
      %p290 = scmp.eq.s32.totalorder %s37, 1
      %p291 = por %p289, %p290
      %p293 = scmp.ne.s32.totalorder %s278, %s292
      %p294 = scmp.eq.s32.totalorder %s37, 0
      %p295 = por %p293, %p294
      %s297 = sadd.s32 %s296, 1
      %p300 = scmp.eq.s32.totalorder %s31, 1
      %p301 = scmp.ne.s32.totalorder %s296, %s298
      %p302 = scmp.eq.s32.totalorder %s31, 0
      %p303 = por %p301, %p302
      %p304 = scmp.ne.s32.totalorder %s296, %s298
      %p305 = scmp.eq.s32.totalorder %s36, 1
      %p306 = por %p304, %p305
      %p307 = scmp.ne.s32.totalorder %s298, %s299
      %p308 = scmp.eq.s32.totalorder %s36, 0
      %p309 = por %p307, %p308
      %p310 = scmp.ne.s32.totalorder %s298, %s299
      %p311 = scmp.eq.s32.totalorder %s37, 1
      %p312 = por %p310, %p311
      %p314 = scmp.ne.s32.totalorder %s299, %s313
      %p315 = scmp.eq.s32.totalorder %s37, 0
      %p316 = por %p314, %p315
      %s318 = sadd.s32 %s317, 1
      %p321 = scmp.eq.s32.totalorder %s31, 1
      %p322 = scmp.ne.s32.totalorder %s317, %s319
      %p323 = scmp.eq.s32.totalorder %s31, 0
      %p324 = por %p322, %p323
      %p325 = scmp.ne.s32.totalorder %s317, %s319
      %p326 = scmp.eq.s32.totalorder %s36, 1
      %p327 = por %p325, %p326
      %p328 = scmp.ne.s32.totalorder %s319, %s320
      %p329 = scmp.eq.s32.totalorder %s36, 0
      %p330 = por %p328, %p329
      %p331 = scmp.ne.s32.totalorder %s319, %s320
      %p332 = scmp.eq.s32.totalorder %s37, 1
      %p333 = por %p331, %p332
      %p335 = scmp.ne.s32.totalorder %s320, %s334
      %p336 = scmp.eq.s32.totalorder %s37, 0
      %p337 = por %p335, %p336
      %s339 = sadd.s32 %s338, 1
      %p342 = scmp.eq.s32.totalorder %s31, 1
      %p343 = scmp.ne.s32.totalorder %s338, %s340
      %p344 = scmp.eq.s32.totalorder %s31, 0
      %p345 = por %p343, %p344
      %p346 = scmp.ne.s32.totalorder %s338, %s340
      %p347 = scmp.eq.s32.totalorder %s36, 1
      %p348 = por %p346, %p347
      %p349 = scmp.ne.s32.totalorder %s340, %s341
      %p350 = scmp.eq.s32.totalorder %s36, 0
      %p351 = por %p349, %p350
      %p352 = scmp.ne.s32.totalorder %s340, %s341
      %p353 = scmp.eq.s32.totalorder %s37, 1
      %p354 = por %p352, %p353
      %p356 = scmp.ne.s32.totalorder %s341, %s355
      %p357 = scmp.eq.s32.totalorder %s37, 0
      %p358 = por %p356, %p357
      %s360 = sadd.s32 %s359, 1
      %p363 = scmp.eq.s32.totalorder %s31, 1
      %p364 = scmp.ne.s32.totalorder %s359, %s361
      %p365 = scmp.eq.s32.totalorder %s31, 0
      %p366 = por %p364, %p365
      %p367 = scmp.ne.s32.totalorder %s359, %s361
      %p368 = scmp.eq.s32.totalorder %s36, 1
      %p369 = por %p367, %p368
      %p370 = scmp.ne.s32.totalorder %s361, %s362
      %p371 = scmp.eq.s32.totalorder %s36, 0
      %p372 = por %p370, %p371
      %p373 = scmp.ne.s32.totalorder %s361, %s362
      %p374 = scmp.eq.s32.totalorder %s37, 1
      %p375 = por %p373, %p374
      %p377 = scmp.ne.s32.totalorder %s362, %s376
      %p378 = scmp.eq.s32.totalorder %s37, 0
      %p379 = por %p377, %p378
      %s381 = sadd.s32 %s380, 1
      %p384 = scmp.eq.s32.totalorder %s31, 1
      %p385 = scmp.ne.s32.totalorder %s380, %s382
      %p386 = scmp.eq.s32.totalorder %s31, 0
      %p387 = por %p385, %p386
      %p388 = scmp.ne.s32.totalorder %s380, %s382
      %p389 = scmp.eq.s32.totalorder %s36, 1
      %p390 = por %p388, %p389
      %p391 = scmp.ne.s32.totalorder %s382, %s383
      %p392 = scmp.eq.s32.totalorder %s36, 0
      %p393 = por %p391, %p392
      %p394 = scmp.ne.s32.totalorder %s382, %s383
      %p395 = scmp.eq.s32.totalorder %s37, 1
      %p396 = por %p394, %p395
      %p398 = scmp.ne.s32.totalorder %s383, %s397
      %p399 = scmp.eq.s32.totalorder %s37, 0
      %p400 = por %p398, %p399
      %s401 = ssub.s32 %s31, %s38
      %p402 = scmp.eq.s32.totalorder %s401, 0
      %s404 = sadd.s32 %s403, 1
      %s405 = scalar_select %p402, %s403, %s404
      %p408 = pneg %p402
      %p409 = scmp.eq.s32.totalorder %s31, 1
      %p410 = por %p408, %p409
      %p411 = scmp.ne.s32.totalorder %s403, %s406
      %p412 = scmp.eq.s32.totalorder %s31, 0
      %p413 = por %p411, %p412
      %p414 = scmp.ne.s32.totalorder %s403, %s406
      %p415 = scmp.eq.s32.totalorder %s36, 1
      %p416 = por %p414, %p415
      %p417 = scmp.ne.s32.totalorder %s406, %s407
      %p418 = scmp.eq.s32.totalorder %s36, 0
      %p419 = por %p417, %p418
      %p420 = scmp.ne.s32.totalorder %s406, %s407
      %p421 = scmp.eq.s32.totalorder %s37, 1
      %p422 = por %p420, %p421
      %p424 = scmp.ne.s32.totalorder %s407, %s423
      %p425 = scmp.eq.s32.totalorder %s37, 0
      %p426 = por %p424, %p425
      %p427 = scmp.le.s32.totalorder 1, %s31
      %p428 = scmp.lt.s32.totalorder %s31, 3
      %p429 = pnand %p427, %p428
      %p430 = pneg %p429
      // Predicated region
      $region9: #{tpu_custom_call.1} parent=5 // pred_check
        _
      $region10: #{tpu_custom_call.1} parent=5 // pred_check_branch
        %432 = sbr.rel (%p429) target = $region12
      $region11: #{tpu_custom_call.1} parent=5 // pred_region
        %s433 = ssub.s32 %s31, 1
        // Predicated region
        $region13: #{tpu_custom_call.1} parent=11 // pred_check
          %p434 = pneg %p78
        $region14: #{tpu_custom_call.1} parent=11 // pred_check_branch
          %436 = sbr.rel (%p434) target = $region16
        $region15: #{tpu_custom_call.1} parent=11 // pred_region
          _
        $region16: #{tpu_custom_call.1} parent=11 // pred_fallthru
          _
        // Predicated region
        $region17: #{tpu_custom_call.1} parent=11 // pred_check
          %p437 = pneg %p99
        $region18: #{tpu_custom_call.1} parent=11 // pred_check_branch
          %439 = sbr.rel (%p437) target = $region20
        $region19: #{tpu_custom_call.1} parent=11 // pred_region
          %441 = vsyncadd [#allocation7], 0
          %s442 = sshll.u32 %s2, 4
          %s443 = int_to_ptr.hbm [resolvable:$true] %s442
          %s444 = sshll.u32 [#allocation6], 4
          %s445 = int_to_ptr.vmem [resolvable:$true] %s444
          %450 = dma.hbm_to_vmem [thread:$0]  %s443, 32, %s445, [#allocation7], 16, 16, 1
        $region20: #{tpu_custom_call.1} parent=11 // pred_fallthru
          _
        // Predicated region
        $region21: #{tpu_custom_call.1} parent=11 // pred_check
          %p451 = pneg %p120
        $region22: #{tpu_custom_call.1} parent=11 // pred_check_branch
          %453 = sbr.rel (%p451) target = $region24
        $region23: #{tpu_custom_call.1} parent=11 // pred_region
          %455 = vsyncadd [#allocation7], 0
          %s456 = sshll.u32 %s3, 4
          %s457 = int_to_ptr.hbm [resolvable:$true] %s456
          %s458 = sshll.u32 [#allocation8], 4
          %s459 = int_to_ptr.vmem [resolvable:$true] %s458
          %464 = dma.hbm_to_vmem [thread:$0]  %s457, 32, %s459, [#allocation7], 16, 16, 1
        $region24: #{tpu_custom_call.1} parent=11 // pred_fallthru
          _
        // Predicated region
        $region25: #{tpu_custom_call.1} parent=11 // pred_check
          %p465 = pneg %p141
        $region26: #{tpu_custom_call.1} parent=11 // pred_check_branch
          %467 = sbr.rel (%p465) target = $region28
        $region27: #{tpu_custom_call.1} parent=11 // pred_region
          _
        $region28: #{tpu_custom_call.1} parent=11 // pred_fallthru
          _
        // Predicated region
        $region29: #{tpu_custom_call.1} parent=11 // pred_check
          %p468 = pneg %p162
        $region30: #{tpu_custom_call.1} parent=11 // pred_check_branch
          %470 = sbr.rel (%p468) target = $region32
        $region31: #{tpu_custom_call.1} parent=11 // pred_region
          %472 = vsyncadd [#allocation10], 0
          %s473 = sshll.u32 %s5, 4
          %s474 = int_to_ptr.hbm [resolvable:$true] %s473
          %s475 = sshll.u32 [#allocation9], 4
          %s476 = int_to_ptr.vmem [resolvable:$true] %s475
          %481 = dma.hbm_to_vmem [thread:$0]  %s474, 32, %s476, [#allocation10], 16, 16, 1
        $region32: #{tpu_custom_call.1} parent=11 // pred_fallthru
          _
        // Predicated region
        $region33: #{tpu_custom_call.1} parent=11 // pred_check
          %p482 = pneg %p183
        $region34: #{tpu_custom_call.1} parent=11 // pred_check_branch
          %484 = sbr.rel (%p482) target = $region36
        $region35: #{tpu_custom_call.1} parent=11 // pred_region
          _
        $region36: #{tpu_custom_call.1} parent=11 // pred_fallthru
          _
        // Predicated region
        $region37: #{tpu_custom_call.1} parent=11 // pred_check
          %p485 = pneg %p204
        $region38: #{tpu_custom_call.1} parent=11 // pred_check_branch
          %487 = sbr.rel (%p485) target = $region40
        $region39: #{tpu_custom_call.1} parent=11 // pred_region
          _
        $region40: #{tpu_custom_call.1} parent=11 // pred_fallthru
          _
        // Predicated region
        $region41: #{tpu_custom_call.1} parent=11 // pred_check
          %p488 = pneg %p225
        $region42: #{tpu_custom_call.1} parent=11 // pred_check_branch
          %490 = sbr.rel (%p488) target = $region44
        $region43: #{tpu_custom_call.1} parent=11 // pred_region
          _
        $region44: #{tpu_custom_call.1} parent=11 // pred_fallthru
          _
        // Predicated region
        $region45: #{tpu_custom_call.1} parent=11 // pred_check
          %p491 = pneg %p246
        $region46: #{tpu_custom_call.1} parent=11 // pred_check_branch
          %493 = sbr.rel (%p491) target = $region48
        $region47: #{tpu_custom_call.1} parent=11 // pred_region
          _
        $region48: #{tpu_custom_call.1} parent=11 // pred_fallthru
          _
        // Predicated region
        $region49: #{tpu_custom_call.1} parent=11 // pred_check
          %p494 = pneg %p267
        $region50: #{tpu_custom_call.1} parent=11 // pred_check_branch
          %496 = sbr.rel (%p494) target = $region52
        $region51: #{tpu_custom_call.1} parent=11 // pred_region
          _
        $region52: #{tpu_custom_call.1} parent=11 // pred_fallthru
          _
        // Predicated region
        $region53: #{tpu_custom_call.1} parent=11 // pred_check
          %p497 = pneg %p288
        $region54: #{tpu_custom_call.1} parent=11 // pred_check_branch
          %499 = sbr.rel (%p497) target = $region56
        $region55: #{tpu_custom_call.1} parent=11 // pred_region
          _
        $region56: #{tpu_custom_call.1} parent=11 // pred_fallthru
          _
        // Predicated region
        $region57: #{tpu_custom_call.1} parent=11 // pred_check
          %p500 = pneg %p309
        $region58: #{tpu_custom_call.1} parent=11 // pred_check_branch
          %502 = sbr.rel (%p500) target = $region60
        $region59: #{tpu_custom_call.1} parent=11 // pred_region
          _
        $region60: #{tpu_custom_call.1} parent=11 // pred_fallthru
          _
        // Predicated region
        $region61: #{tpu_custom_call.1} parent=11 // pred_check
          %p503 = pneg %p330
        $region62: #{tpu_custom_call.1} parent=11 // pred_check_branch
          %505 = sbr.rel (%p503) target = $region64
        $region63: #{tpu_custom_call.1} parent=11 // pred_region
          _
        $region64: #{tpu_custom_call.1} parent=11 // pred_fallthru
          _
        // Predicated region
        $region65: #{tpu_custom_call.1} parent=11 // pred_check
          %p506 = pneg %p351
        $region66: #{tpu_custom_call.1} parent=11 // pred_check_branch
          %508 = sbr.rel (%p506) target = $region68
        $region67: #{tpu_custom_call.1} parent=11 // pred_region
          _
        $region68: #{tpu_custom_call.1} parent=11 // pred_fallthru
          _
        // Predicated region
        $region69: #{tpu_custom_call.1} parent=11 // pred_check
          %p509 = pneg %p372
        $region70: #{tpu_custom_call.1} parent=11 // pred_check_branch
          %511 = sbr.rel (%p509) target = $region72
        $region71: #{tpu_custom_call.1} parent=11 // pred_region
          _
        $region72: #{tpu_custom_call.1} parent=11 // pred_fallthru
          _
        // Predicated region
        $region73: #{tpu_custom_call.1} parent=11 // pred_check
          %p512 = pneg %p393
        $region74: #{tpu_custom_call.1} parent=11 // pred_check_branch
          %514 = sbr.rel (%p512) target = $region76
        $region75: #{tpu_custom_call.1} parent=11 // pred_region
          %516 = vsyncadd [#allocation10], 0
          %s517 = sshll.u32 %s16, 4
          %s518 = int_to_ptr.hbm [resolvable:$true] %s517
          %s519 = sshll.u32 [#allocation11], 4
          %s520 = int_to_ptr.vmem [resolvable:$true] %s519
          %525 = dma.hbm_to_vmem [thread:$0]  %s518, 256, %s520, [#allocation10], 64, 64, 4
        $region76: #{tpu_custom_call.1} parent=11 // pred_fallthru
          _
      $region12: #{tpu_custom_call.1} parent=5 // pred_fallthru
        _
      %p526 = scmp.lt.s32.totalorder %s31, 2
      // Predicated region
      $region77: #{tpu_custom_call.1} parent=5 // pred_check
        %p527 = pneg %p526
      $region78: #{tpu_custom_call.1} parent=5 // pred_check_branch
        %529 = sbr.rel (%p527) target = $region80
      $region79: #{tpu_custom_call.1} parent=5 // pred_region
        // Predicated region
        $region81: #{tpu_custom_call.1} parent=79 // pred_check
          %p530 = pneg %p51
        $region82: #{tpu_custom_call.1} parent=79 // pred_check_branch
          %532 = sbr.rel (%p530) target = $region84
        $region83: #{tpu_custom_call.1} parent=79 // pred_region
          %s533 = sand.u32 %s41, 1
          %s534 = scalar_lea.sflag [#allocation4], %s533
          %s535 = sand.u32 %s41, 1
          %s536 = smul.addr %s535, 128
          %s537 = scalar_lea.vmem [#allocation3], %s536
          %s538 = smul.u32 16, %s31
          %540 = vsyncadd %s534, 0
          %s541 = smul.addr %s538, 8
          %s542 = scalar_lea.hbm %s0, %s541
          %s543 = sshll.u32 %s542, 4
          %s544 = int_to_ptr.hbm [resolvable:$true] %s543
          %s545 = sshll.u32 %s537, 4
          %s546 = int_to_ptr.vmem [resolvable:$true] %s545
          %551 = dma.hbm_to_vmem [thread:$0]  %s544, 2048, %s546, %s534, 128, 128, 8
        $region84: #{tpu_custom_call.1} parent=79 // pred_fallthru
          _
      $region80: #{tpu_custom_call.1} parent=5 // pred_fallthru
        _
      %p552 = scmp.le.s32.totalorder 1, %s31
      %p553 = scmp.lt.s32.totalorder %s31, 3
      %p554 = pnand %p552, %p553
      %p555 = pneg %p554
      // Predicated region
      $region85: #{tpu_custom_call.1} parent=5 // pred_check
        _
      $region86: #{tpu_custom_call.1} parent=5 // pred_check_branch
        %557 = sbr.rel (%p554) target = $region88
      $region87: #{tpu_custom_call.1} parent=5 // pred_region
        %s558 = ssub.s32 %s31, 1
        %s559 = sand.u32 %s44, 1
        %s560 = scalar_lea.sflag [#allocation4], %s559
        %s561 = sand.u32 %s44, 1
        %s562 = smul.addr %s561, 128
        %s563 = scalar_lea.vmem [#allocation3], %s562
        // Predicated region
        $region89: #{tpu_custom_call.1} parent=87 // pred_check
          %p564 = pneg %p57
        $region90: #{tpu_custom_call.1} parent=87 // pred_check_branch
          %566 = sbr.rel (%p564) target = $region92
        $region91: #{tpu_custom_call.1} parent=87 // pred_region
          %568 = dma.done %s560, 2048
        $region92: #{tpu_custom_call.1} parent=87 // pred_fallthru
          _
        // Predicated region
        $region93: #{tpu_custom_call.1} parent=87 // pred_check
          %p569 = pneg %p99
        $region94: #{tpu_custom_call.1} parent=87 // pred_check_branch
          %571 = sbr.rel (%p569) target = $region96
        $region95: #{tpu_custom_call.1} parent=87 // pred_region
          %573 = dma.done [#allocation7], 32
        $region96: #{tpu_custom_call.1} parent=87 // pred_fallthru
          _
        // Predicated region
        $region97: #{tpu_custom_call.1} parent=87 // pred_check
          %p574 = pneg %p120
        $region98: #{tpu_custom_call.1} parent=87 // pred_check_branch
          %576 = sbr.rel (%p574) target = $region100
        $region99: #{tpu_custom_call.1} parent=87 // pred_region
          %578 = dma.done [#allocation7], 32
        $region100: #{tpu_custom_call.1} parent=87 // pred_fallthru
          _
        // Predicated region
        $region101: #{tpu_custom_call.1} parent=87 // pred_check
          %p579 = pneg %p162
        $region102: #{tpu_custom_call.1} parent=87 // pred_check_branch
          %581 = sbr.rel (%p579) target = $region104
        $region103: #{tpu_custom_call.1} parent=87 // pred_region
          %583 = dma.done [#allocation10], 32
        $region104: #{tpu_custom_call.1} parent=87 // pred_fallthru
          _
        // Predicated region
        $region105: #{tpu_custom_call.1} parent=87 // pred_check
          %p584 = pneg %p393
        $region106: #{tpu_custom_call.1} parent=87 // pred_check_branch
          %586 = sbr.rel (%p584) target = $region108
        $region107: #{tpu_custom_call.1} parent=87 // pred_region
          %588 = dma.done [#allocation10], 256
        $region108: #{tpu_custom_call.1} parent=87 // pred_fallthru
          _
        %s589 = sand.u32 %s44, 1
        %s590 = scalar_lea.sflag [#allocation4], %s589
        %s591 = sand.u32 %s44, 1
        %s592 = smul.addr %s591, 128
        %s593 = scalar_lea.vmem [#allocation3], %s592
        %p594 = pneg %p57
        %p595 = pneg %p54
        %p596 = pneg %p78
        %p597 = pneg %p75
        %p598 = pneg %p99
        %p599 = pneg %p96
        %p600 = pneg %p120
        %p601 = pneg %p117
        %p602 = pneg %p141
        %p603 = pneg %p138
        %p604 = pneg %p162
        %p605 = pneg %p159
        %p606 = pneg %p183
        %p607 = pneg %p180
        %p608 = pneg %p204
        %p609 = pneg %p201
        %p610 = pneg %p225
        %p611 = pneg %p222
        %p612 = pneg %p246
        %p613 = pneg %p243
        %p614 = pneg %p267
        %p615 = pneg %p264
        %p616 = pneg %p288
        %p617 = pneg %p285
        %p618 = pneg %p309
        %p619 = pneg %p306
        %p620 = pneg %p330
        %p621 = pneg %p327
        %p622 = pneg %p351
        %p623 = pneg %p348
        %p624 = pneg %p372
        %p625 = pneg %p369
        %p626 = pneg %p393
        %p627 = pneg %p390
        %p628 = pneg %p419
        %p629 = pneg %p416
        %s630 = sand.u32 %s406, 1
        %s631 = scalar_lea.sflag [#allocation5], %s630
        %s632 = sand.u32 %s406, 1
        %s633 = smul.addr %s632, 128
        %s634 = scalar_lea.vmem [#allocation12], %s633
        %s635 = smul.u32 16, %s36
        %s636 = smul.u32 16, %s36
        %v638 = vld [vmem:[%s563] sm:$0xff]
        %v639 = vld [vmem:[%s563 + $0x8] sm:$0xff]
        %v640 = vld [vmem:[%s563 + $0x10] sm:$0xff]
        %v641 = vld [vmem:[%s563 + $0x18] sm:$0xff]
        %v642 = vld [vmem:[%s563 + $0x20] sm:$0xff]
        %v643 = vld [vmem:[%s563 + $0x28] sm:$0xff]
        %v644 = vld [vmem:[%s563 + $0x30] sm:$0xff]
        %v645 = vld [vmem:[%s563 + $0x38] sm:$0xff]
        %v646 = vld [vmem:[%s563 + $0x40] sm:$0xff]
        %v647 = vld [vmem:[%s563 + $0x48] sm:$0xff]
        %v648 = vld [vmem:[%s563 + $0x50] sm:$0xff]
        %v649 = vld [vmem:[%s563 + $0x58] sm:$0xff]
        %v650 = vld [vmem:[%s563 + $0x60] sm:$0xff]
        %v651 = vld [vmem:[%s563 + $0x68] sm:$0xff]
        %v652 = vld [vmem:[%s563 + $0x70] sm:$0xff]
        %v653 = vld [vmem:[%s563 + $0x78] sm:$0xff]
        %v654 = vld [vmem:[%s1] sm:$0xf]
        %v655 = vld [vmem:[%s1 + $0x4] sm:$0xf]
        %v656 = vld [vmem:[%s1 + $0x8] sm:$0xf]
        %v657 = vld [vmem:[%s1 + $0xc] sm:$0xf]
        %v658 = vld [vmem:[%s1 + $0x10] sm:$0xf]
        %v659 = vld [vmem:[%s1 + $0x14] sm:$0xf]
        %v660 = vld [vmem:[%s1 + $0x18] sm:$0xf]
        %v661 = vld [vmem:[%s1 + $0x1c] sm:$0xf]
        %v662 = vld [vmem:[%s1 + $0x20] sm:$0xf]
        %v663 = vld [vmem:[%s1 + $0x24] sm:$0xf]
        %v664 = vld [vmem:[%s1 + $0x28] sm:$0xf]
        %v665 = vld [vmem:[%s1 + $0x2c] sm:$0xf]
        %v666 = vld [vmem:[%s1 + $0x30] sm:$0xf]
        %v667 = vld [vmem:[%s1 + $0x34] sm:$0xf]
        %v668 = vld [vmem:[%s1 + $0x38] sm:$0xf]
        %v669 = vld [vmem:[%s1 + $0x3c] sm:$0xf]
        %v670 = vunpack.c.l.bf16 %v654
        %v671 = vunpack.c.l.bf16 %v655
        %v672 = vunpack.c.l.bf16 %v656
        %v673 = vunpack.c.l.bf16 %v657
        %v674 = vunpack.c.l.bf16 %v658
        %v675 = vunpack.c.l.bf16 %v659
        %v676 = vunpack.c.l.bf16 %v660
        %v677 = vunpack.c.l.bf16 %v661
        %v678 = vunpack.c.l.bf16 %v662
        %v679 = vunpack.c.l.bf16 %v663
        %v680 = vunpack.c.l.bf16 %v664
        %v681 = vunpack.c.l.bf16 %v665
        %v682 = vunpack.c.l.bf16 %v666
        %v683 = vunpack.c.l.bf16 %v667
        %v684 = vunpack.c.l.bf16 %v668
        %v685 = vunpack.c.l.bf16 %v669
        %v686 = vld [vmem:[#allocation6] sm:$0x1]
        %v687 = vld [vmem:[#allocation8] sm:$0x1]
        %vm688 = vcmask 261120
        %v689 = vsel %vm688, %v638, 0.0
        %690 = vadd.xlane.f32.xlu0 %v689
        %v691 = vpop.xlane.xlu0 %690
        %v692 = vsel %vm688, %v639, 0.0
        %693 = vadd.xlane.f32.xlu0 %v692
        %v694 = vpop.xlane.xlu0 %693
        %v695 = vsel %vm688, %v640, 0.0
        %696 = vadd.xlane.f32.xlu0 %v695
        %v697 = vpop.xlane.xlu0 %696
        %v698 = vsel %vm688, %v641, 0.0
        %699 = vadd.xlane.f32.xlu0 %v698
        %v700 = vpop.xlane.xlu0 %699
        %v701 = vsel %vm688, %v642, 0.0
        %702 = vadd.xlane.f32.xlu0 %v701
        %v703 = vpop.xlane.xlu0 %702
        %v704 = vsel %vm688, %v643, 0.0
        %705 = vadd.xlane.f32.xlu0 %v704
        %v706 = vpop.xlane.xlu0 %705
        %v707 = vsel %vm688, %v644, 0.0
        %708 = vadd.xlane.f32.xlu0 %v707
        %v709 = vpop.xlane.xlu0 %708
        %v710 = vsel %vm688, %v645, 0.0
        %711 = vadd.xlane.f32.xlu0 %v710
        %v712 = vpop.xlane.xlu0 %711
        %v713 = vsel %vm688, %v646, 0.0
        %714 = vadd.xlane.f32.xlu0 %v713
        %v715 = vpop.xlane.xlu0 %714
        %v716 = vsel %vm688, %v647, 0.0
        %717 = vadd.xlane.f32.xlu0 %v716
        %v718 = vpop.xlane.xlu0 %717
        %v719 = vsel %vm688, %v648, 0.0
        %720 = vadd.xlane.f32.xlu0 %v719
        %v721 = vpop.xlane.xlu0 %720
        %v722 = vsel %vm688, %v649, 0.0
        %723 = vadd.xlane.f32.xlu0 %v722
        %v724 = vpop.xlane.xlu0 %723
        %v725 = vsel %vm688, %v650, 0.0
        %726 = vadd.xlane.f32.xlu0 %v725
        %v727 = vpop.xlane.xlu0 %726
        %v728 = vsel %vm688, %v651, 0.0
        %729 = vadd.xlane.f32.xlu0 %v728
        %v730 = vpop.xlane.xlu0 %729
        %v731 = vsel %vm688, %v652, 0.0
        %732 = vadd.xlane.f32.xlu0 %v731
        %v733 = vpop.xlane.xlu0 %732
        %v734 = vsel %vm688, %v653, 0.0
        %735 = vadd.xlane.f32.xlu0 %v734
        %v736 = vpop.xlane.xlu0 %735
        %v737 = vrcp.pop 32.0
        %v738 = vmul.f32 32.0, %v737
        %v739 = vsub.f32 1.0, %v738
        %v740 = vmul.f32 %v737, %v739
        %v741 = vadd.f32 %v737, %v740
        %vm742 = vweird.f32 %v737
        %v743 = vsel %vm742, %v737, %v741
        %v744 = vmul.f32 %v691, %v743
        %v745 = vmul.f32 %v694, %v743
        %v746 = vmul.f32 %v697, %v743
        %v747 = vmul.f32 %v700, %v743
        %v748 = vmul.f32 %v703, %v743
        %v749 = vmul.f32 %v706, %v743
        %v750 = vmul.f32 %v709, %v743
        %v751 = vmul.f32 %v712, %v743
        %v752 = vmul.f32 %v715, %v743
        %v753 = vmul.f32 %v718, %v743
        %v754 = vmul.f32 %v721, %v743
        %v755 = vmul.f32 %v724, %v743
        %v756 = vmul.f32 %v727, %v743
        %v757 = vmul.f32 %v730, %v743
        %v758 = vmul.f32 %v733, %v743
        %v759 = vmul.f32 %v736, %v743
        %v760 = vmul.f32 %v638, %v638
        %v761 = vmul.f32 %v639, %v639
        %v762 = vmul.f32 %v640, %v640
        %v763 = vmul.f32 %v641, %v641
        %v764 = vmul.f32 %v642, %v642
        %v765 = vmul.f32 %v643, %v643
        %v766 = vmul.f32 %v644, %v644
        %v767 = vmul.f32 %v645, %v645
        %v768 = vmul.f32 %v646, %v646
        %v769 = vmul.f32 %v647, %v647
        %v770 = vmul.f32 %v648, %v648
        %v771 = vmul.f32 %v649, %v649
        %v772 = vmul.f32 %v650, %v650
        %v773 = vmul.f32 %v651, %v651
        %v774 = vmul.f32 %v652, %v652
        %v775 = vmul.f32 %v653, %v653
        %v776 = vsel %vm688, %v760, 0.0
        %777 = vadd.xlane.f32.xlu0 %v776
        %v778 = vpop.xlane.xlu0 %777
        %v779 = vsel %vm688, %v761, 0.0
        %780 = vadd.xlane.f32.xlu0 %v779
        %v781 = vpop.xlane.xlu0 %780
        %v782 = vsel %vm688, %v762, 0.0
        %783 = vadd.xlane.f32.xlu0 %v782
        %v784 = vpop.xlane.xlu0 %783
        %v785 = vsel %vm688, %v763, 0.0
        %786 = vadd.xlane.f32.xlu0 %v785
        %v787 = vpop.xlane.xlu0 %786
        %v788 = vsel %vm688, %v764, 0.0
        %789 = vadd.xlane.f32.xlu0 %v788
        %v790 = vpop.xlane.xlu0 %789
        %v791 = vsel %vm688, %v765, 0.0
        %792 = vadd.xlane.f32.xlu0 %v791
        %v793 = vpop.xlane.xlu0 %792
        %v794 = vsel %vm688, %v766, 0.0
        %795 = vadd.xlane.f32.xlu0 %v794
        %v796 = vpop.xlane.xlu0 %795
        %v797 = vsel %vm688, %v767, 0.0
        %798 = vadd.xlane.f32.xlu0 %v797
        %v799 = vpop.xlane.xlu0 %798
        %v800 = vsel %vm688, %v768, 0.0
        %801 = vadd.xlane.f32.xlu0 %v800
        %v802 = vpop.xlane.xlu0 %801
        %v803 = vsel %vm688, %v769, 0.0
        %804 = vadd.xlane.f32.xlu0 %v803
        %v805 = vpop.xlane.xlu0 %804
        %v806 = vsel %vm688, %v770, 0.0
        %807 = vadd.xlane.f32.xlu0 %v806
        %v808 = vpop.xlane.xlu0 %807
        %v809 = vsel %vm688, %v771, 0.0
        %810 = vadd.xlane.f32.xlu0 %v809
        %v811 = vpop.xlane.xlu0 %810
        %v812 = vsel %vm688, %v772, 0.0
        %813 = vadd.xlane.f32.xlu0 %v812
        %v814 = vpop.xlane.xlu0 %813
        %v815 = vsel %vm688, %v773, 0.0
        %816 = vadd.xlane.f32.xlu0 %v815
        %v817 = vpop.xlane.xlu0 %816
        %v818 = vsel %vm688, %v774, 0.0
        %819 = vadd.xlane.f32.xlu0 %v818
        %v820 = vpop.xlane.xlu0 %819
        %v821 = vsel %vm688, %v775, 0.0
        %822 = vadd.xlane.f32.xlu0 %v821
        %v823 = vpop.xlane.xlu0 %822
        %v824 = vmul.f32 %v778, %v743
        %v825 = vmul.f32 %v781, %v743
        %v826 = vmul.f32 %v784, %v743
        %v827 = vmul.f32 %v787, %v743
        %v828 = vmul.f32 %v790, %v743
        %v829 = vmul.f32 %v793, %v743
        %v830 = vmul.f32 %v796, %v743
        %v831 = vmul.f32 %v799, %v743
        %v832 = vmul.f32 %v802, %v743
        %v833 = vmul.f32 %v805, %v743
        %v834 = vmul.f32 %v808, %v743
        %v835 = vmul.f32 %v811, %v743
        %v836 = vmul.f32 %v814, %v743
        %v837 = vmul.f32 %v817, %v743
        %v838 = vmul.f32 %v820, %v743
        %v839 = vmul.f32 %v823, %v743
        %v840 = vmul.f32 %v744, %v744
        %v841 = vmul.f32 %v745, %v745
        %v842 = vmul.f32 %v746, %v746
        %v843 = vmul.f32 %v747, %v747
        %v844 = vmul.f32 %v748, %v748
        %v845 = vmul.f32 %v749, %v749
        %v846 = vmul.f32 %v750, %v750
        %v847 = vmul.f32 %v751, %v751
        %v848 = vmul.f32 %v752, %v752
        %v849 = vmul.f32 %v753, %v753
        %v850 = vmul.f32 %v754, %v754
        %v851 = vmul.f32 %v755, %v755
        %v852 = vmul.f32 %v756, %v756
        %v853 = vmul.f32 %v757, %v757
        %v854 = vmul.f32 %v758, %v758
        %v855 = vmul.f32 %v759, %v759
        %v856 = vsub.f32 %v824, %v840
        %v857 = vsub.f32 %v825, %v841
        %v858 = vsub.f32 %v826, %v842
        %v859 = vsub.f32 %v827, %v843
        %v860 = vsub.f32 %v828, %v844
        %v861 = vsub.f32 %v829, %v845
        %v862 = vsub.f32 %v830, %v846
        %v863 = vsub.f32 %v831, %v847
        %v864 = vsub.f32 %v832, %v848
        %v865 = vsub.f32 %v833, %v849
        %v866 = vsub.f32 %v834, %v850
        %v867 = vsub.f32 %v835, %v851
        %v868 = vsub.f32 %v836, %v852
        %v869 = vsub.f32 %v837, %v853
        %v870 = vsub.f32 %v838, %v854
        %v871 = vsub.f32 %v839, %v855
        %v872 = vsub.f32 %v638, %v744
        %v873 = vsub.f32 %v639, %v745
        %v874 = vsub.f32 %v640, %v746
        %v875 = vsub.f32 %v641, %v747
        %v876 = vsub.f32 %v642, %v748
        %v877 = vsub.f32 %v643, %v749
        %v878 = vsub.f32 %v644, %v750
        %v879 = vsub.f32 %v645, %v751
        %v880 = vsub.f32 %v646, %v752
        %v881 = vsub.f32 %v647, %v753
        %v882 = vsub.f32 %v648, %v754
        %v883 = vsub.f32 %v649, %v755
        %v884 = vsub.f32 %v650, %v756
        %v885 = vsub.f32 %v651, %v757
        %v886 = vsub.f32 %v652, %v758
        %v887 = vsub.f32 %v653, %v759
        %v888 = vadd.f32 %v856, 1e-05
        %v889 = vadd.f32 %v857, 1e-05
        %v890 = vadd.f32 %v858, 1e-05
        %v891 = vadd.f32 %v859, 1e-05
        %v892 = vadd.f32 %v860, 1e-05
        %v893 = vadd.f32 %v861, 1e-05
        %v894 = vadd.f32 %v862, 1e-05
        %v895 = vadd.f32 %v863, 1e-05
        %v896 = vadd.f32 %v864, 1e-05
        %v897 = vadd.f32 %v865, 1e-05
        %v898 = vadd.f32 %v866, 1e-05
        %v899 = vadd.f32 %v867, 1e-05
        %v900 = vadd.f32 %v868, 1e-05
        %v901 = vadd.f32 %v869, 1e-05
        %v902 = vadd.f32 %v870, 1e-05
        %v903 = vadd.f32 %v871, 1e-05
        %v904 = vrsqrt.pop %v888
        %v905 = vmul.f32 %v904, %v888
        %v906 = vmul.f32 %v905, %v904
        %v907 = vmul.f32 0.5, %v906
        %v908 = vsub.f32 1.5, %v907
        %v909 = vmul.f32 %v904, %v908
        %vm910 = vweird.f32 %v888
        %vm911 = vweird.f32 %v904
        %vm912 = vmor %vm910, %vm911
        %v913 = vsel %vm912, %v904, %v909
        %v914 = vrsqrt.pop %v889
        %v915 = vmul.f32 %v914, %v889
        %v916 = vmul.f32 %v915, %v914
        %v917 = vmul.f32 0.5, %v916
        %v918 = vsub.f32 1.5, %v917
        %v919 = vmul.f32 %v914, %v918
        %vm920 = vweird.f32 %v889
        %vm921 = vweird.f32 %v914
        %vm922 = vmor %vm920, %vm921
        %v923 = vsel %vm922, %v914, %v919
        %v924 = vrsqrt.pop %v890
        %v925 = vmul.f32 %v924, %v890
        %v926 = vmul.f32 %v925, %v924
        %v927 = vmul.f32 0.5, %v926
        %v928 = vsub.f32 1.5, %v927
        %v929 = vmul.f32 %v924, %v928
        %vm930 = vweird.f32 %v890
        %vm931 = vweird.f32 %v924
        %vm932 = vmor %vm930, %vm931
        %v933 = vsel %vm932, %v924, %v929
        %v934 = vrsqrt.pop %v891
        %v935 = vmul.f32 %v934, %v891
        %v936 = vmul.f32 %v935, %v934
        %v937 = vmul.f32 0.5, %v936
        %v938 = vsub.f32 1.5, %v937
        %v939 = vmul.f32 %v934, %v938
        %vm940 = vweird.f32 %v891
        %vm941 = vweird.f32 %v934
        %vm942 = vmor %vm940, %vm941
        %v943 = vsel %vm942, %v934, %v939
        %v944 = vrsqrt.pop %v892
        %v945 = vmul.f32 %v944, %v892
        %v946 = vmul.f32 %v945, %v944
        %v947 = vmul.f32 0.5, %v946
        %v948 = vsub.f32 1.5, %v947
        %v949 = vmul.f32 %v944, %v948
        %vm950 = vweird.f32 %v892
        %vm951 = vweird.f32 %v944
        %vm952 = vmor %vm950, %vm951
        %v953 = vsel %vm952, %v944, %v949
        %v954 = vrsqrt.pop %v893
        %v955 = vmul.f32 %v954, %v893
        %v956 = vmul.f32 %v955, %v954
        %v957 = vmul.f32 0.5, %v956
        %v958 = vsub.f32 1.5, %v957
        %v959 = vmul.f32 %v954, %v958
        %vm960 = vweird.f32 %v893
        %vm961 = vweird.f32 %v954
        %vm962 = vmor %vm960, %vm961
        %v963 = vsel %vm962, %v954, %v959
        %v964 = vrsqrt.pop %v894
        %v965 = vmul.f32 %v964, %v894
        %v966 = vmul.f32 %v965, %v964
        %v967 = vmul.f32 0.5, %v966
        %v968 = vsub.f32 1.5, %v967
        %v969 = vmul.f32 %v964, %v968
        %vm970 = vweird.f32 %v894
        %vm971 = vweird.f32 %v964
        %vm972 = vmor %vm970, %vm971
        %v973 = vsel %vm972, %v964, %v969
        %v974 = vrsqrt.pop %v895
        %v975 = vmul.f32 %v974, %v895
        %v976 = vmul.f32 %v975, %v974
        %v977 = vmul.f32 0.5, %v976
        %v978 = vsub.f32 1.5, %v977
        %v979 = vmul.f32 %v974, %v978
        %vm980 = vweird.f32 %v895
        %vm981 = vweird.f32 %v974
        %vm982 = vmor %vm980, %vm981
        %v983 = vsel %vm982, %v974, %v979
        %v984 = vrsqrt.pop %v896
        %v985 = vmul.f32 %v984, %v896
        %v986 = vmul.f32 %v985, %v984
        %v987 = vmul.f32 0.5, %v986
        %v988 = vsub.f32 1.5, %v987
        %v989 = vmul.f32 %v984, %v988
        %vm990 = vweird.f32 %v896
        %vm991 = vweird.f32 %v984
        %vm992 = vmor %vm990, %vm991
        %v993 = vsel %vm992, %v984, %v989
        %v994 = vrsqrt.pop %v897
        %v995 = vmul.f32 %v994, %v897
        %v996 = vmul.f32 %v995, %v994
        %v997 = vmul.f32 0.5, %v996
        %v998 = vsub.f32 1.5, %v997
        %v999 = vmul.f32 %v994, %v998
        %vm1000 = vweird.f32 %v897
        %vm1001 = vweird.f32 %v994
        %vm1002 = vmor %vm1000, %vm1001
        %v1003 = vsel %vm1002, %v994, %v999
        %v1004 = vrsqrt.pop %v898
        %v1005 = vmul.f32 %v1004, %v898
        %v1006 = vmul.f32 %v1005, %v1004
        %v1007 = vmul.f32 0.5, %v1006
        %v1008 = vsub.f32 1.5, %v1007
        %v1009 = vmul.f32 %v1004, %v1008
        %vm1010 = vweird.f32 %v898
        %vm1011 = vweird.f32 %v1004
        %vm1012 = vmor %vm1010, %vm1011
        %v1013 = vsel %vm1012, %v1004, %v1009
        %v1014 = vrsqrt.pop %v899
        %v1015 = vmul.f32 %v1014, %v899
        %v1016 = vmul.f32 %v1015, %v1014
        %v1017 = vmul.f32 0.5, %v1016
        %v1018 = vsub.f32 1.5, %v1017
        %v1019 = vmul.f32 %v1014, %v1018
        %vm1020 = vweird.f32 %v899
        %vm1021 = vweird.f32 %v1014
        %vm1022 = vmor %vm1020, %vm1021
        %v1023 = vsel %vm1022, %v1014, %v1019
        %v1024 = vrsqrt.pop %v900
        %v1025 = vmul.f32 %v1024, %v900
        %v1026 = vmul.f32 %v1025, %v1024
        %v1027 = vmul.f32 0.5, %v1026
        %v1028 = vsub.f32 1.5, %v1027
        %v1029 = vmul.f32 %v1024, %v1028
        %vm1030 = vweird.f32 %v900
        %vm1031 = vweird.f32 %v1024
        %vm1032 = vmor %vm1030, %vm1031
        %v1033 = vsel %vm1032, %v1024, %v1029
        %v1034 = vrsqrt.pop %v901
        %v1035 = vmul.f32 %v1034, %v901
        %v1036 = vmul.f32 %v1035, %v1034
        %v1037 = vmul.f32 0.5, %v1036
        %v1038 = vsub.f32 1.5, %v1037
        %v1039 = vmul.f32 %v1034, %v1038
        %vm1040 = vweird.f32 %v901
        %vm1041 = vweird.f32 %v1034
        %vm1042 = vmor %vm1040, %vm1041
        %v1043 = vsel %vm1042, %v1034, %v1039
        %v1044 = vrsqrt.pop %v902
        %v1045 = vmul.f32 %v1044, %v902
        %v1046 = vmul.f32 %v1045, %v1044
        %v1047 = vmul.f32 0.5, %v1046
        %v1048 = vsub.f32 1.5, %v1047
        %v1049 = vmul.f32 %v1044, %v1048
        %vm1050 = vweird.f32 %v902
        %vm1051 = vweird.f32 %v1044
        %vm1052 = vmor %vm1050, %vm1051
        %v1053 = vsel %vm1052, %v1044, %v1049
        %v1054 = vrsqrt.pop %v903
        %v1055 = vmul.f32 %v1054, %v903
        %v1056 = vmul.f32 %v1055, %v1054
        %v1057 = vmul.f32 0.5, %v1056
        %v1058 = vsub.f32 1.5, %v1057
        %v1059 = vmul.f32 %v1054, %v1058
        %vm1060 = vweird.f32 %v903
        %vm1061 = vweird.f32 %v1054
        %vm1062 = vmor %vm1060, %vm1061
        %v1063 = vsel %vm1062, %v1054, %v1059
        %v1064 = vmul.f32 %v872, %v913
        %v1065 = vmul.f32 %v873, %v923
        %v1066 = vmul.f32 %v874, %v933
        %v1067 = vmul.f32 %v875, %v943
        %v1068 = vmul.f32 %v876, %v953
        %v1069 = vmul.f32 %v877, %v963
        %v1070 = vmul.f32 %v878, %v973
        %v1071 = vmul.f32 %v879, %v983
        %v1072 = vmul.f32 %v880, %v993
        %v1073 = vmul.f32 %v881, %v1003
        %v1074 = vmul.f32 %v882, %v1013
        %v1075 = vmul.f32 %v883, %v1023
        %v1076 = vmul.f32 %v884, %v1033
        %v1077 = vmul.f32 %v885, %v1043
        %v1078 = vmul.f32 %v886, %v1053
        %v1079 = vmul.f32 %v887, %v1063
        %v1081 = vperm.slane %v686, 0
        %v1083 = vmul.f32 %v1064, %v1081
        %v1084 = vmul.f32 %v1065, %v1081
        %v1085 = vmul.f32 %v1066, %v1081
        %v1086 = vmul.f32 %v1067, %v1081
        %v1087 = vmul.f32 %v1068, %v1081
        %v1088 = vmul.f32 %v1069, %v1081
        %v1089 = vmul.f32 %v1070, %v1081
        %v1090 = vmul.f32 %v1071, %v1081
        %v1091 = vmul.f32 %v1072, %v1081
        %v1092 = vmul.f32 %v1073, %v1081
        %v1093 = vmul.f32 %v1074, %v1081
        %v1094 = vmul.f32 %v1075, %v1081
        %v1095 = vmul.f32 %v1076, %v1081
        %v1096 = vmul.f32 %v1077, %v1081
        %v1097 = vmul.f32 %v1078, %v1081
        %v1098 = vmul.f32 %v1079, %v1081
        %v1100 = vperm.slane %v687, 0
        %v1102 = vadd.f32 %v1083, %v1100
        %v1103 = vadd.f32 %v1084, %v1100
        %v1104 = vadd.f32 %v1085, %v1100
        %v1105 = vadd.f32 %v1086, %v1100
        %v1106 = vadd.f32 %v1087, %v1100
        %v1107 = vadd.f32 %v1088, %v1100
        %v1108 = vadd.f32 %v1089, %v1100
        %v1109 = vadd.f32 %v1090, %v1100
        %v1110 = vadd.f32 %v1091, %v1100
        %v1111 = vadd.f32 %v1092, %v1100
        %v1112 = vadd.f32 %v1093, %v1100
        %v1113 = vadd.f32 %v1094, %v1100
        %v1114 = vadd.f32 %v1095, %v1100
        %v1115 = vadd.f32 %v1096, %v1100
        %v1116 = vadd.f32 %v1097, %v1100
        %v1117 = vadd.f32 %v1098, %v1100
        %v1118 = vpack.c.bf16 %v1103, %v1102
        %v1119 = vpack.c.bf16 %v1105, %v1104
        %v1120 = vpack.c.bf16 %v1107, %v1106
        %v1121 = vpack.c.bf16 %v1109, %v1108
        %v1122 = vpack.c.bf16 %v1111, %v1110
        %v1123 = vpack.c.bf16 %v1113, %v1112
        %v1124 = vpack.c.bf16 %v1115, %v1114
        %v1125 = vpack.c.bf16 %v1117, %v1116
        %v1126 = vld [vmem:[%s6] sm:$0xf]
        %v1127 = vld [vmem:[%s6 + $0x4] sm:$0xf]
        %v1128 = vld [vmem:[%s6 + $0x8] sm:$0xf]
        %v1129 = vld [vmem:[%s6 + $0xc] sm:$0xf]
        %v1130 = vld [vmem:[%s7] sm:$0x1]
        %v1132 = vperm.slane %v1130, 0
        %v1138 = vunpack.c.l.b16 %v1126
        %v1139 = vunpack.c.l.b16 %v1127
        %v1140 = vunpack.c.l.b16 %v1128
        %v1141 = vunpack.c.l.b16 %v1129
        %v1142 = vpack.c.b16 %v1139, %v1138
        %v1143 = vpack.c.b16 %v1141, %v1140
        %v1147 = vsel %vm688, %v1118, 0
        %v1150 = vsel %vm688, %v1119, 0
        %v1153 = vsel %vm688, %v1120, 0
        %v1156 = vsel %vm688, %v1121, 0
        %v1159 = vsel %vm688, %v1122, 0
        %v1162 = vsel %vm688, %v1123, 0
        %v1165 = vsel %vm688, %v1124, 0
        %v1168 = vsel %vm688, %v1125, 0
        %1170 = vmatpush.bf16.msra.mxu0 0
        %1171 = vmatpush.bf16.msra.mxu0 0
        %1172 = vmatpush.bf16.msra.mxu0 0
        %1173 = vmatpush.bf16.msra.mxu0 0
        %1174 = vmatpush.bf16.msra.mxu0 0
        %1175 = vmatpush.bf16.msra.mxu0 0
        %1176 = vmatpush.bf16.msra.mxu0 %v1143
        %1177 = vmatpush.bf16.msra.mxu0 %v1142
        %1178 = vmatmul.bf16.gmra.mxu0 %v1147
        %v1179 = vpop.f32.mrf.mxu0
        %v1180 = vadd.f32 %v1132, %v1179
        %v1181 = vpop.f32.mrf.mxu0
        %v1182 = vadd.f32 %v1132, %v1181
        %1183 = vmatmul.bf16.gmra.mxu0 %v1150
        %v1184 = vpop.f32.mrf.mxu0
        %v1185 = vadd.f32 %v1132, %v1184
        %v1186 = vpop.f32.mrf.mxu0
        %v1187 = vadd.f32 %v1132, %v1186
        %1188 = vmatmul.bf16.gmra.mxu0 %v1153
        %v1189 = vpop.f32.mrf.mxu0
        %v1190 = vadd.f32 %v1132, %v1189
        %v1191 = vpop.f32.mrf.mxu0
        %v1192 = vadd.f32 %v1132, %v1191
        %1193 = vmatmul.bf16.gmra.mxu0 %v1156
        %v1194 = vpop.f32.mrf.mxu0
        %v1195 = vadd.f32 %v1132, %v1194
        %v1196 = vpop.f32.mrf.mxu0
        %v1197 = vadd.f32 %v1132, %v1196
        %1198 = vmatmul.bf16.gmra.mxu0 %v1159
        %v1199 = vpop.f32.mrf.mxu0
        %v1200 = vadd.f32 %v1132, %v1199
        %v1201 = vpop.f32.mrf.mxu0
        %v1202 = vadd.f32 %v1132, %v1201
        %1203 = vmatmul.bf16.gmra.mxu0 %v1162
        %v1204 = vpop.f32.mrf.mxu0
        %v1205 = vadd.f32 %v1132, %v1204
        %v1206 = vpop.f32.mrf.mxu0
        %v1207 = vadd.f32 %v1132, %v1206
        %1208 = vmatmul.bf16.gmra.mxu0 %v1165
        %v1209 = vpop.f32.mrf.mxu0
        %v1210 = vadd.f32 %v1132, %v1209
        %v1211 = vpop.f32.mrf.mxu0
        %v1212 = vadd.f32 %v1132, %v1211
        %1213 = vmatmul.bf16.gmra.mxu0 %v1168
        %v1214 = vpop.f32.mrf.mxu0
        %v1215 = vadd.f32 %v1132, %v1214
        %v1216 = vpop.f32.mrf.mxu0
        %v1217 = vadd.f32 %v1132, %v1216
        %1218 = vdwg.mxu0
        %v1219 = vpack.c.bf16 %v1180, %v1180
        %v1220 = vpack.c.bf16 %v1182, %v1182
        %v1221 = vpack.c.bf16 %v1185, %v1185
        %v1222 = vpack.c.bf16 %v1187, %v1187
        %v1223 = vpack.c.bf16 %v1190, %v1190
        %v1224 = vpack.c.bf16 %v1192, %v1192
        %v1225 = vpack.c.bf16 %v1195, %v1195
        %v1226 = vpack.c.bf16 %v1197, %v1197
        %v1227 = vpack.c.bf16 %v1200, %v1200
        %v1228 = vpack.c.bf16 %v1202, %v1202
        %v1229 = vpack.c.bf16 %v1205, %v1205
        %v1230 = vpack.c.bf16 %v1207, %v1207
        %v1231 = vpack.c.bf16 %v1210, %v1210
        %v1232 = vpack.c.bf16 %v1212, %v1212
        %v1233 = vpack.c.bf16 %v1215, %v1215
        %v1234 = vpack.c.bf16 %v1217, %v1217
        %v1251 = vunpack.c.l.b16 %v1219
        %v1252 = vunpack.c.l.b16 %v1220
        %v1253 = vunpack.c.l.b16 %v1221
        %v1254 = vunpack.c.l.b16 %v1222
        %v1255 = vunpack.c.l.b16 %v1223
        %v1256 = vunpack.c.l.b16 %v1224
        %v1257 = vunpack.c.l.b16 %v1225
        %v1258 = vunpack.c.l.b16 %v1226
        %v1259 = vunpack.c.l.b16 %v1227
        %v1260 = vunpack.c.l.b16 %v1228
        %v1261 = vunpack.c.l.b16 %v1229
        %v1262 = vunpack.c.l.b16 %v1230
        %v1263 = vunpack.c.l.b16 %v1231
        %v1264 = vunpack.c.l.b16 %v1232
        %v1265 = vunpack.c.l.b16 %v1233
        %v1266 = vunpack.c.l.b16 %v1234
        %v1267 = vpack.c.b16 %v1252, %v1251
        %v1268 = vpack.c.b16 %v1254, %v1253
        %v1269 = vpack.c.b16 %v1256, %v1255
        %v1270 = vpack.c.b16 %v1258, %v1257
        %v1271 = vpack.c.b16 %v1260, %v1259
        %v1272 = vpack.c.b16 %v1262, %v1261
        %v1273 = vpack.c.b16 %v1264, %v1263
        %v1274 = vpack.c.b16 %v1266, %v1265
        %1275 = vrot.lane.b32.xlu0 %v1267, 96
        %v1276 = vpop.permute.xlu0 %1275
        %1277 = vrot.lane.b32.xlu0 %v1268, 96
        %v1278 = vpop.permute.xlu0 %1277
        %1279 = vrot.lane.b32.xlu0 %v1269, 96
        %v1280 = vpop.permute.xlu0 %1279
        %1281 = vrot.lane.b32.xlu0 %v1270, 96
        %v1282 = vpop.permute.xlu0 %1281
        %1283 = vrot.lane.b32.xlu0 %v1271, 96
        %v1284 = vpop.permute.xlu0 %1283
        %1285 = vrot.lane.b32.xlu0 %v1272, 96
        %v1286 = vpop.permute.xlu0 %1285
        %1287 = vrot.lane.b32.xlu0 %v1273, 96
        %v1288 = vpop.permute.xlu0 %1287
        %1289 = vrot.lane.b32.xlu0 %v1274, 96
        %v1290 = vpop.permute.xlu0 %1289
        %vm1291 = vcmask 64512
        %v1293 = vsel %vm1291, %v1267, 0
        %v1296 = vsel %vm1291, %v1268, 0
        %v1299 = vsel %vm1291, %v1269, 0
        %v1302 = vsel %vm1291, %v1270, 0
        %v1305 = vsel %vm1291, %v1271, 0
        %v1308 = vsel %vm1291, %v1272, 0
        %v1311 = vsel %vm1291, %v1273, 0
        %v1314 = vsel %vm1291, %v1274, 0
        %v1317 = vsel %vm1291, %v1276, 0
        %v1320 = vsel %vm1291, %v1278, 0
        %v1323 = vsel %vm1291, %v1280, 0
        %v1326 = vsel %vm1291, %v1282, 0
        %v1329 = vsel %vm1291, %v1284, 0
        %v1332 = vsel %vm1291, %v1286, 0
        %v1335 = vsel %vm1291, %v1288, 0
        %v1338 = vsel %vm1291, %v1290, 0
        %1340 = vmatpush.bf16.xpose.msra.mxu0 %v1338
        %1341 = vmatpush.bf16.xpose.msra.mxu0 %v1335
        %1342 = vmatpush.bf16.xpose.msra.mxu0 %v1332
        %1343 = vmatpush.bf16.xpose.msra.mxu0 %v1329
        %1344 = vmatpush.bf16.xpose.msra.mxu0 %v1326
        %1345 = vmatpush.bf16.xpose.msra.mxu0 %v1323
        %1346 = vmatpush.bf16.xpose.msra.mxu0 %v1320
        %1347 = vmatpush.bf16.xpose.msra.mxu0 %v1317
        %1348 = vmatmul.bf16.gmra.mxu0 %v1293
        %v1349 = vpop.f32.mrf.mxu0
        %v1350 = vadd.f32 %v670, %v1349
        %v1351 = vpop.f32.mrf.mxu0
        %v1352 = vadd.f32 %v671, %v1351
        %1353 = vmatmul.bf16.gmra.mxu0 %v1296
        %v1354 = vpop.f32.mrf.mxu0
        %v1355 = vadd.f32 %v672, %v1354
        %v1356 = vpop.f32.mrf.mxu0
        %v1357 = vadd.f32 %v673, %v1356
        %1358 = vmatmul.bf16.gmra.mxu0 %v1299
        %v1359 = vpop.f32.mrf.mxu0
        %v1360 = vadd.f32 %v674, %v1359
        %v1361 = vpop.f32.mrf.mxu0
        %v1362 = vadd.f32 %v675, %v1361
        %1363 = vmatmul.bf16.gmra.mxu0 %v1302
        %v1364 = vpop.f32.mrf.mxu0
        %v1365 = vadd.f32 %v676, %v1364
        %v1366 = vpop.f32.mrf.mxu0
        %v1367 = vadd.f32 %v677, %v1366
        %1368 = vmatmul.bf16.gmra.mxu0 %v1305
        %v1369 = vpop.f32.mrf.mxu0
        %v1370 = vadd.f32 %v678, %v1369
        %v1371 = vpop.f32.mrf.mxu0
        %v1372 = vadd.f32 %v679, %v1371
        %1373 = vmatmul.bf16.gmra.mxu0 %v1308
        %v1374 = vpop.f32.mrf.mxu0
        %v1375 = vadd.f32 %v680, %v1374
        %v1376 = vpop.f32.mrf.mxu0
        %v1377 = vadd.f32 %v681, %v1376
        %1378 = vmatmul.bf16.gmra.mxu0 %v1311
        %v1379 = vpop.f32.mrf.mxu0
        %v1380 = vadd.f32 %v682, %v1379
        %v1381 = vpop.f32.mrf.mxu0
        %v1382 = vadd.f32 %v683, %v1381
        %1383 = vmatmul.bf16.gmra.mxu0 %v1314
        %v1384 = vpop.f32.mrf.mxu0
        %v1385 = vadd.f32 %v684, %v1384
        %v1386 = vpop.f32.mrf.mxu0
        %v1387 = vadd.f32 %v685, %v1386
        %1388 = vdwg.mxu0
        %1389 = vmax.xlane.f32.xlu0 %v1350
        %v1390 = vpop.xlane.xlu0 %1389
        %1391 = vmax.xlane.f32.xlu0 %v1352
        %v1392 = vpop.xlane.xlu0 %1391
        %1393 = vmax.xlane.f32.xlu0 %v1355
        %v1394 = vpop.xlane.xlu0 %1393
        %1395 = vmax.xlane.f32.xlu0 %v1357
        %v1396 = vpop.xlane.xlu0 %1395
        %1397 = vmax.xlane.f32.xlu0 %v1360
        %v1398 = vpop.xlane.xlu0 %1397
        %1399 = vmax.xlane.f32.xlu0 %v1362
        %v1400 = vpop.xlane.xlu0 %1399
        %1401 = vmax.xlane.f32.xlu0 %v1365
        %v1402 = vpop.xlane.xlu0 %1401
        %1403 = vmax.xlane.f32.xlu0 %v1367
        %v1404 = vpop.xlane.xlu0 %1403
        %1405 = vmax.xlane.f32.xlu0 %v1370
        %v1406 = vpop.xlane.xlu0 %1405
        %1407 = vmax.xlane.f32.xlu0 %v1372
        %v1408 = vpop.xlane.xlu0 %1407
        %1409 = vmax.xlane.f32.xlu0 %v1375
        %v1410 = vpop.xlane.xlu0 %1409
        %1411 = vmax.xlane.f32.xlu0 %v1377
        %v1412 = vpop.xlane.xlu0 %1411
        %1413 = vmax.xlane.f32.xlu0 %v1380
        %v1414 = vpop.xlane.xlu0 %1413
        %1415 = vmax.xlane.f32.xlu0 %v1382
        %v1416 = vpop.xlane.xlu0 %1415
        %1417 = vmax.xlane.f32.xlu0 %v1385
        %v1418 = vpop.xlane.xlu0 %1417
        %1419 = vmax.xlane.f32.xlu0 %v1387
        %v1420 = vpop.xlane.xlu0 %1419
        %v1421 = vsub.f32 %v1350, %v1390
        %v1422 = vsub.f32 %v1352, %v1392
        %v1423 = vsub.f32 %v1355, %v1394
        %v1424 = vsub.f32 %v1357, %v1396
        %v1425 = vsub.f32 %v1360, %v1398
        %v1426 = vsub.f32 %v1362, %v1400
        %v1427 = vsub.f32 %v1365, %v1402
        %v1428 = vsub.f32 %v1367, %v1404
        %v1429 = vsub.f32 %v1370, %v1406
        %v1430 = vsub.f32 %v1372, %v1408
        %v1431 = vsub.f32 %v1375, %v1410
        %v1432 = vsub.f32 %v1377, %v1412
        %v1433 = vsub.f32 %v1380, %v1414
        %v1434 = vsub.f32 %v1382, %v1416
        %v1435 = vsub.f32 %v1385, %v1418
        %v1436 = vsub.f32 %v1387, %v1420
        %v1437 = vmul.f32 %v1421, 1.442695
        %v1438 = vpow.pop %v1437
        %v1439 = vmul.f32 %v1422, 1.442695
        %v1440 = vpow.pop %v1439
        %v1441 = vmul.f32 %v1423, 1.442695
        %v1442 = vpow.pop %v1441
        %v1443 = vmul.f32 %v1424, 1.442695
        %v1444 = vpow.pop %v1443
        %v1445 = vmul.f32 %v1425, 1.442695
        %v1446 = vpow.pop %v1445
        %v1447 = vmul.f32 %v1426, 1.442695
        %v1448 = vpow.pop %v1447
        %v1449 = vmul.f32 %v1427, 1.442695
        %v1450 = vpow.pop %v1449
        %v1451 = vmul.f32 %v1428, 1.442695
        %v1452 = vpow.pop %v1451
        %v1453 = vmul.f32 %v1429, 1.442695
        %v1454 = vpow.pop %v1453
        %v1455 = vmul.f32 %v1430, 1.442695
        %v1456 = vpow.pop %v1455
        %v1457 = vmul.f32 %v1431, 1.442695
        %v1458 = vpow.pop %v1457
        %v1459 = vmul.f32 %v1432, 1.442695
        %v1460 = vpow.pop %v1459
        %v1461 = vmul.f32 %v1433, 1.442695
        %v1462 = vpow.pop %v1461
        %v1463 = vmul.f32 %v1434, 1.442695
        %v1464 = vpow.pop %v1463
        %v1465 = vmul.f32 %v1435, 1.442695
        %v1466 = vpow.pop %v1465
        %v1467 = vmul.f32 %v1436, 1.442695
        %v1468 = vpow.pop %v1467
        %1469 = vadd.xlane.f32.xlu0 %v1438
        %v1470 = vpop.xlane.xlu0 %1469
        %1471 = vadd.xlane.f32.xlu0 %v1440
        %v1472 = vpop.xlane.xlu0 %1471
        %1473 = vadd.xlane.f32.xlu0 %v1442
        %v1474 = vpop.xlane.xlu0 %1473
        %1475 = vadd.xlane.f32.xlu0 %v1444
        %v1476 = vpop.xlane.xlu0 %1475
        %1477 = vadd.xlane.f32.xlu0 %v1446
        %v1478 = vpop.xlane.xlu0 %1477
        %1479 = vadd.xlane.f32.xlu0 %v1448
        %v1480 = vpop.xlane.xlu0 %1479
        %1481 = vadd.xlane.f32.xlu0 %v1450
        %v1482 = vpop.xlane.xlu0 %1481
        %1483 = vadd.xlane.f32.xlu0 %v1452
        %v1484 = vpop.xlane.xlu0 %1483
        %1485 = vadd.xlane.f32.xlu0 %v1454
        %v1486 = vpop.xlane.xlu0 %1485
        %1487 = vadd.xlane.f32.xlu0 %v1456
        %v1488 = vpop.xlane.xlu0 %1487
        %1489 = vadd.xlane.f32.xlu0 %v1458
        %v1490 = vpop.xlane.xlu0 %1489
        %1491 = vadd.xlane.f32.xlu0 %v1460
        %v1492 = vpop.xlane.xlu0 %1491
        %1493 = vadd.xlane.f32.xlu0 %v1462
        %v1494 = vpop.xlane.xlu0 %1493
        %1495 = vadd.xlane.f32.xlu0 %v1464
        %v1496 = vpop.xlane.xlu0 %1495
        %1497 = vadd.xlane.f32.xlu0 %v1466
        %v1498 = vpop.xlane.xlu0 %1497
        %1499 = vadd.xlane.f32.xlu0 %v1468
        %v1500 = vpop.xlane.xlu0 %1499
        %v1501 = vrcp.pop %v1470
        %v1502 = vrcp.pop %v1472
        %v1503 = vrcp.pop %v1474
        %v1504 = vrcp.pop %v1476
        %v1505 = vrcp.pop %v1478
        %v1506 = vrcp.pop %v1480
        %v1507 = vrcp.pop %v1482
        %v1508 = vrcp.pop %v1484
        %v1509 = vrcp.pop %v1486
        %v1510 = vrcp.pop %v1488
        %v1511 = vrcp.pop %v1490
        %v1512 = vrcp.pop %v1492
        %v1513 = vrcp.pop %v1494
        %v1514 = vrcp.pop %v1496
        %v1515 = vrcp.pop %v1498
        %v1516 = vrcp.pop %v1500
        %v1517 = vmul.f32 %v1438, %v1501
        %v1518 = vmul.f32 %v1440, %v1502
        %v1519 = vmul.f32 %v1442, %v1503
        %v1520 = vmul.f32 %v1444, %v1504
        %v1521 = vmul.f32 %v1446, %v1505
        %v1522 = vmul.f32 %v1448, %v1506
        %v1523 = vmul.f32 %v1450, %v1507
        %v1524 = vmul.f32 %v1452, %v1508
        %v1525 = vmul.f32 %v1454, %v1509
        %v1526 = vmul.f32 %v1456, %v1510
        %v1527 = vmul.f32 %v1458, %v1511
        %v1528 = vmul.f32 %v1460, %v1512
        %v1529 = vmul.f32 %v1462, %v1513
        %v1530 = vmul.f32 %v1464, %v1514
        %v1531 = vmul.f32 %v1466, %v1515
        %v1532 = vmul.f32 %v1468, %v1516
        %v1533 = vpack.c.bf16 %v1518, %v1517
        %v1534 = vpack.c.bf16 %v1520, %v1519
        %v1535 = vpack.c.bf16 %v1522, %v1521
        %v1536 = vpack.c.bf16 %v1524, %v1523
        %v1537 = vpack.c.bf16 %v1526, %v1525
        %v1538 = vpack.c.bf16 %v1528, %v1527
        %v1539 = vpack.c.bf16 %v1530, %v1529
        %v1540 = vpack.c.bf16 %v1532, %v1531
        %1541 = vrot.lane.b32.xlu0 %v1267, 64
        %v1542 = vpop.permute.xlu0 %1541
        %1543 = vrot.lane.b32.xlu0 %v1268, 64
        %v1544 = vpop.permute.xlu0 %1543
        %1545 = vrot.lane.b32.xlu0 %v1269, 64
        %v1546 = vpop.permute.xlu0 %1545
        %1547 = vrot.lane.b32.xlu0 %v1270, 64
        %v1548 = vpop.permute.xlu0 %1547
        %1549 = vrot.lane.b32.xlu0 %v1271, 64
        %v1550 = vpop.permute.xlu0 %1549
        %1551 = vrot.lane.b32.xlu0 %v1272, 64
        %v1552 = vpop.permute.xlu0 %1551
        %1553 = vrot.lane.b32.xlu0 %v1273, 64
        %v1554 = vpop.permute.xlu0 %1553
        %1555 = vrot.lane.b32.xlu0 %v1274, 64
        %v1556 = vpop.permute.xlu0 %1555
        %1565 = vmatpush.bf16.msra.mxu0 %v1556
        %1566 = vmatpush.bf16.msra.mxu0 %v1554
        %1567 = vmatpush.bf16.msra.mxu0 %v1552
        %1568 = vmatpush.bf16.msra.mxu0 %v1550
        %1569 = vmatpush.bf16.msra.mxu0 %v1548
        %1570 = vmatpush.bf16.msra.mxu0 %v1546
        %1571 = vmatpush.bf16.msra.mxu0 %v1544
        %1572 = vmatpush.bf16.msra.mxu0 %v1542
        %1573 = vmatmul.bf16.gmra.mxu0 %v1533
        %v1574 = vpop.f32.mrf.mxu0
        %v1575 = vadd.f32 0.0, %v1574
        %v1576 = vpop.f32.mrf.mxu0
        %v1577 = vadd.f32 0.0, %v1576
        %1578 = vmatmul.bf16.gmra.mxu0 %v1534
        %v1579 = vpop.f32.mrf.mxu0
        %v1580 = vadd.f32 0.0, %v1579
        %v1581 = vpop.f32.mrf.mxu0
        %v1582 = vadd.f32 0.0, %v1581
        %1583 = vmatmul.bf16.gmra.mxu0 %v1535
        %v1584 = vpop.f32.mrf.mxu0
        %v1585 = vadd.f32 0.0, %v1584
        %v1586 = vpop.f32.mrf.mxu0
        %v1587 = vadd.f32 0.0, %v1586
        %1588 = vmatmul.bf16.gmra.mxu0 %v1536
        %v1589 = vpop.f32.mrf.mxu0
        %v1590 = vadd.f32 0.0, %v1589
        %v1591 = vpop.f32.mrf.mxu0
        %v1592 = vadd.f32 0.0, %v1591
        %1593 = vmatmul.bf16.gmra.mxu0 %v1537
        %v1594 = vpop.f32.mrf.mxu0
        %v1595 = vadd.f32 0.0, %v1594
        %v1596 = vpop.f32.mrf.mxu0
        %v1597 = vadd.f32 0.0, %v1596
        %1598 = vmatmul.bf16.gmra.mxu0 %v1538
        %v1599 = vpop.f32.mrf.mxu0
        %v1600 = vadd.f32 0.0, %v1599
        %v1601 = vpop.f32.mrf.mxu0
        %v1602 = vadd.f32 0.0, %v1601
        %1603 = vmatmul.bf16.gmra.mxu0 %v1539
        %v1604 = vpop.f32.mrf.mxu0
        %v1605 = vadd.f32 0.0, %v1604
        %v1606 = vpop.f32.mrf.mxu0
        %v1607 = vadd.f32 0.0, %v1606
        %1608 = vmatmul.bf16.gmra.mxu0 %v1540
        %v1609 = vpop.f32.mrf.mxu0
        %v1610 = vadd.f32 0.0, %v1609
        %v1611 = vpop.f32.mrf.mxu0
        %v1612 = vadd.f32 0.0, %v1611
        %1613 = vdwg.mxu0
        %v1614 = vpack.c.bf16 %v1575, %v1575
        %v1615 = vpack.c.bf16 %v1577, %v1577
        %v1616 = vpack.c.bf16 %v1580, %v1580
        %v1617 = vpack.c.bf16 %v1582, %v1582
        %v1618 = vpack.c.bf16 %v1585, %v1585
        %v1619 = vpack.c.bf16 %v1587, %v1587
        %v1620 = vpack.c.bf16 %v1590, %v1590
        %v1621 = vpack.c.bf16 %v1592, %v1592
        %v1622 = vpack.c.bf16 %v1595, %v1595
        %v1623 = vpack.c.bf16 %v1597, %v1597
        %v1624 = vpack.c.bf16 %v1600, %v1600
        %v1625 = vpack.c.bf16 %v1602, %v1602
        %v1626 = vpack.c.bf16 %v1605, %v1605
        %v1627 = vpack.c.bf16 %v1607, %v1607
        %v1628 = vpack.c.bf16 %v1610, %v1610
        %v1629 = vpack.c.bf16 %v1612, %v1612
        %vm1630 = vcmask 60416
        %1631 = vst.msk [vmem:[#allocation2] sm:$0xf] %vm1630, %v1614
        %1632 = vst.msk [vmem:[#allocation2 + $0x4] sm:$0xf] %vm1630, %v1615
        %1633 = vst.msk [vmem:[#allocation2 + $0x8] sm:$0xf] %vm1630, %v1616
        %1634 = vst.msk [vmem:[#allocation2 + $0xc] sm:$0xf] %vm1630, %v1617
        %1635 = vst.msk [vmem:[#allocation2 + $0x10] sm:$0xf] %vm1630, %v1618
        %1636 = vst.msk [vmem:[#allocation2 + $0x14] sm:$0xf] %vm1630, %v1619
        %1637 = vst.msk [vmem:[#allocation2 + $0x18] sm:$0xf] %vm1630, %v1620
        %1638 = vst.msk [vmem:[#allocation2 + $0x1c] sm:$0xf] %vm1630, %v1621
        %1639 = vst.msk [vmem:[#allocation2 + $0x20] sm:$0xf] %vm1630, %v1622
        %1640 = vst.msk [vmem:[#allocation2 + $0x24] sm:$0xf] %vm1630, %v1623
        %1641 = vst.msk [vmem:[#allocation2 + $0x28] sm:$0xf] %vm1630, %v1624
        %1642 = vst.msk [vmem:[#allocation2 + $0x2c] sm:$0xf] %vm1630, %v1625
        %1643 = vst.msk [vmem:[#allocation2 + $0x30] sm:$0xf] %vm1630, %v1626
        %1644 = vst.msk [vmem:[#allocation2 + $0x34] sm:$0xf] %vm1630, %v1627
        %1645 = vst.msk [vmem:[#allocation2 + $0x38] sm:$0xf] %vm1630, %v1628
        %1646 = vst.msk [vmem:[#allocation2 + $0x3c] sm:$0xf] %vm1630, %v1629
        %1647 = vrot.lane.b32.xlu0 %v1267, 120
        %v1648 = vpop.permute.xlu0 %1647
        %1649 = vrot.lane.b32.xlu0 %v1268, 120
        %v1650 = vpop.permute.xlu0 %1649
        %1651 = vrot.lane.b32.xlu0 %v1269, 120
        %v1652 = vpop.permute.xlu0 %1651
        %1653 = vrot.lane.b32.xlu0 %v1270, 120
        %v1654 = vpop.permute.xlu0 %1653
        %1655 = vrot.lane.b32.xlu0 %v1271, 120
        %v1656 = vpop.permute.xlu0 %1655
        %1657 = vrot.lane.b32.xlu0 %v1272, 120
        %v1658 = vpop.permute.xlu0 %1657
        %1659 = vrot.lane.b32.xlu0 %v1273, 120
        %v1660 = vpop.permute.xlu0 %1659
        %1661 = vrot.lane.b32.xlu0 %v1274, 120
        %v1662 = vpop.permute.xlu0 %1661
        %1663 = vrot.lane.b32.xlu0 %v1267, 88
        %v1664 = vpop.permute.xlu0 %1663
        %1665 = vrot.lane.b32.xlu0 %v1268, 88
        %v1666 = vpop.permute.xlu0 %1665
        %1667 = vrot.lane.b32.xlu0 %v1269, 88
        %v1668 = vpop.permute.xlu0 %1667
        %1669 = vrot.lane.b32.xlu0 %v1270, 88
        %v1670 = vpop.permute.xlu0 %1669
        %1671 = vrot.lane.b32.xlu0 %v1271, 88
        %v1672 = vpop.permute.xlu0 %1671
        %1673 = vrot.lane.b32.xlu0 %v1272, 88
        %v1674 = vpop.permute.xlu0 %1673
        %1675 = vrot.lane.b32.xlu0 %v1273, 88
        %v1676 = vpop.permute.xlu0 %1675
        %1677 = vrot.lane.b32.xlu0 %v1274, 88
        %v1678 = vpop.permute.xlu0 %1677
        %v1680 = vsel %vm1291, %v1648, 0
        %v1683 = vsel %vm1291, %v1650, 0
        %v1686 = vsel %vm1291, %v1652, 0
        %v1689 = vsel %vm1291, %v1654, 0
        %v1692 = vsel %vm1291, %v1656, 0
        %v1695 = vsel %vm1291, %v1658, 0
        %v1698 = vsel %vm1291, %v1660, 0
        %v1701 = vsel %vm1291, %v1662, 0
        %v1704 = vsel %vm1291, %v1664, 0
        %v1707 = vsel %vm1291, %v1666, 0
        %v1710 = vsel %vm1291, %v1668, 0
        %v1713 = vsel %vm1291, %v1670, 0
        %v1716 = vsel %vm1291, %v1672, 0
        %v1719 = vsel %vm1291, %v1674, 0
        %v1722 = vsel %vm1291, %v1676, 0
        %v1725 = vsel %vm1291, %v1678, 0
        %1727 = vmatpush.bf16.xpose.msra.mxu0 %v1725
        %1728 = vmatpush.bf16.xpose.msra.mxu0 %v1722
        %1729 = vmatpush.bf16.xpose.msra.mxu0 %v1719
        %1730 = vmatpush.bf16.xpose.msra.mxu0 %v1716
        %1731 = vmatpush.bf16.xpose.msra.mxu0 %v1713
        %1732 = vmatpush.bf16.xpose.msra.mxu0 %v1710
        %1733 = vmatpush.bf16.xpose.msra.mxu0 %v1707
        %1734 = vmatpush.bf16.xpose.msra.mxu0 %v1704
        %1735 = vmatmul.bf16.gmra.mxu0 %v1680
        %v1736 = vpop.f32.mrf.mxu0
        %v1737 = vadd.f32 %v670, %v1736
        %v1738 = vpop.f32.mrf.mxu0
        %v1739 = vadd.f32 %v671, %v1738
        %1740 = vmatmul.bf16.gmra.mxu0 %v1683
        %v1741 = vpop.f32.mrf.mxu0
        %v1742 = vadd.f32 %v672, %v1741
        %v1743 = vpop.f32.mrf.mxu0
        %v1744 = vadd.f32 %v673, %v1743
        %1745 = vmatmul.bf16.gmra.mxu0 %v1686
        %v1746 = vpop.f32.mrf.mxu0
        %v1747 = vadd.f32 %v674, %v1746
        %v1748 = vpop.f32.mrf.mxu0
        %v1749 = vadd.f32 %v675, %v1748
        %1750 = vmatmul.bf16.gmra.mxu0 %v1689
        %v1751 = vpop.f32.mrf.mxu0
        %v1752 = vadd.f32 %v676, %v1751
        %v1753 = vpop.f32.mrf.mxu0
        %v1754 = vadd.f32 %v677, %v1753
        %1755 = vmatmul.bf16.gmra.mxu0 %v1692
        %v1756 = vpop.f32.mrf.mxu0
        %v1757 = vadd.f32 %v678, %v1756
        %v1758 = vpop.f32.mrf.mxu0
        %v1759 = vadd.f32 %v679, %v1758
        %1760 = vmatmul.bf16.gmra.mxu0 %v1695
        %v1761 = vpop.f32.mrf.mxu0
        %v1762 = vadd.f32 %v680, %v1761
        %v1763 = vpop.f32.mrf.mxu0
        %v1764 = vadd.f32 %v681, %v1763
        %1765 = vmatmul.bf16.gmra.mxu0 %v1698
        %v1766 = vpop.f32.mrf.mxu0
        %v1767 = vadd.f32 %v682, %v1766
        %v1768 = vpop.f32.mrf.mxu0
        %v1769 = vadd.f32 %v683, %v1768
        %1770 = vmatmul.bf16.gmra.mxu0 %v1701
        %v1771 = vpop.f32.mrf.mxu0
        %v1772 = vadd.f32 %v684, %v1771
        %v1773 = vpop.f32.mrf.mxu0
        %v1774 = vadd.f32 %v685, %v1773
        %1775 = vdwg.mxu0
        %1776 = vmax.xlane.f32.xlu0 %v1737
        %v1777 = vpop.xlane.xlu0 %1776
        %1778 = vmax.xlane.f32.xlu0 %v1739
        %v1779 = vpop.xlane.xlu0 %1778
        %1780 = vmax.xlane.f32.xlu0 %v1742
        %v1781 = vpop.xlane.xlu0 %1780
        %1782 = vmax.xlane.f32.xlu0 %v1744
        %v1783 = vpop.xlane.xlu0 %1782
        %1784 = vmax.xlane.f32.xlu0 %v1747
        %v1785 = vpop.xlane.xlu0 %1784
        %1786 = vmax.xlane.f32.xlu0 %v1749
        %v1787 = vpop.xlane.xlu0 %1786
        %1788 = vmax.xlane.f32.xlu0 %v1752
        %v1789 = vpop.xlane.xlu0 %1788
        %1790 = vmax.xlane.f32.xlu0 %v1754
        %v1791 = vpop.xlane.xlu0 %1790
        %1792 = vmax.xlane.f32.xlu0 %v1757
        %v1793 = vpop.xlane.xlu0 %1792
        %1794 = vmax.xlane.f32.xlu0 %v1759
        %v1795 = vpop.xlane.xlu0 %1794
        %1796 = vmax.xlane.f32.xlu0 %v1762
        %v1797 = vpop.xlane.xlu0 %1796
        %1798 = vmax.xlane.f32.xlu0 %v1764
        %v1799 = vpop.xlane.xlu0 %1798
        %1800 = vmax.xlane.f32.xlu0 %v1767
        %v1801 = vpop.xlane.xlu0 %1800
        %1802 = vmax.xlane.f32.xlu0 %v1769
        %v1803 = vpop.xlane.xlu0 %1802
        %1804 = vmax.xlane.f32.xlu0 %v1772
        %v1805 = vpop.xlane.xlu0 %1804
        %1806 = vmax.xlane.f32.xlu0 %v1774
        %v1807 = vpop.xlane.xlu0 %1806
        %v1808 = vsub.f32 %v1737, %v1777
        %v1809 = vsub.f32 %v1739, %v1779
        %v1810 = vsub.f32 %v1742, %v1781
        %v1811 = vsub.f32 %v1744, %v1783
        %v1812 = vsub.f32 %v1747, %v1785
        %v1813 = vsub.f32 %v1749, %v1787
        %v1814 = vsub.f32 %v1752, %v1789
        %v1815 = vsub.f32 %v1754, %v1791
        %v1816 = vsub.f32 %v1757, %v1793
        %v1817 = vsub.f32 %v1759, %v1795
        %v1818 = vsub.f32 %v1762, %v1797
        %v1819 = vsub.f32 %v1764, %v1799
        %v1820 = vsub.f32 %v1767, %v1801
        %v1821 = vsub.f32 %v1769, %v1803
        %v1822 = vsub.f32 %v1772, %v1805
        %v1823 = vsub.f32 %v1774, %v1807
        %v1824 = vmul.f32 %v1808, 1.442695
        %v1825 = vpow.pop %v1824
        %v1826 = vmul.f32 %v1809, 1.442695
        %v1827 = vpow.pop %v1826
        %v1828 = vmul.f32 %v1810, 1.442695
        %v1829 = vpow.pop %v1828
        %v1830 = vmul.f32 %v1811, 1.442695
        %v1831 = vpow.pop %v1830
        %v1832 = vmul.f32 %v1812, 1.442695
        %v1833 = vpow.pop %v1832
        %v1834 = vmul.f32 %v1813, 1.442695
        %v1835 = vpow.pop %v1834
        %v1836 = vmul.f32 %v1814, 1.442695
        %v1837 = vpow.pop %v1836
        %v1838 = vmul.f32 %v1815, 1.442695
        %v1839 = vpow.pop %v1838
        %v1840 = vmul.f32 %v1816, 1.442695
        %v1841 = vpow.pop %v1840
        %v1842 = vmul.f32 %v1817, 1.442695
        %v1843 = vpow.pop %v1842
        %v1844 = vmul.f32 %v1818, 1.442695
        %v1845 = vpow.pop %v1844
        %v1846 = vmul.f32 %v1819, 1.442695
        %v1847 = vpow.pop %v1846
        %v1848 = vmul.f32 %v1820, 1.442695
        %v1849 = vpow.pop %v1848
        %v1850 = vmul.f32 %v1821, 1.442695
        %v1851 = vpow.pop %v1850
        %v1852 = vmul.f32 %v1822, 1.442695
        %v1853 = vpow.pop %v1852
        %v1854 = vmul.f32 %v1823, 1.442695
        %v1855 = vpow.pop %v1854
        %1856 = vadd.xlane.f32.xlu0 %v1825
        %v1857 = vpop.xlane.xlu0 %1856
        %1858 = vadd.xlane.f32.xlu0 %v1827
        %v1859 = vpop.xlane.xlu0 %1858
        %1860 = vadd.xlane.f32.xlu0 %v1829
        %v1861 = vpop.xlane.xlu0 %1860
        %1862 = vadd.xlane.f32.xlu0 %v1831
        %v1863 = vpop.xlane.xlu0 %1862
        %1864 = vadd.xlane.f32.xlu0 %v1833
        %v1865 = vpop.xlane.xlu0 %1864
        %1866 = vadd.xlane.f32.xlu0 %v1835
        %v1867 = vpop.xlane.xlu0 %1866
        %1868 = vadd.xlane.f32.xlu0 %v1837
        %v1869 = vpop.xlane.xlu0 %1868
        %1870 = vadd.xlane.f32.xlu0 %v1839
        %v1871 = vpop.xlane.xlu0 %1870
        %1872 = vadd.xlane.f32.xlu0 %v1841
        %v1873 = vpop.xlane.xlu0 %1872
        %1874 = vadd.xlane.f32.xlu0 %v1843
        %v1875 = vpop.xlane.xlu0 %1874
        %1876 = vadd.xlane.f32.xlu0 %v1845
        %v1877 = vpop.xlane.xlu0 %1876
        %1878 = vadd.xlane.f32.xlu0 %v1847
        %v1879 = vpop.xlane.xlu0 %1878
        %1880 = vadd.xlane.f32.xlu0 %v1849
        %v1881 = vpop.xlane.xlu0 %1880
        %1882 = vadd.xlane.f32.xlu0 %v1851
        %v1883 = vpop.xlane.xlu0 %1882
        %1884 = vadd.xlane.f32.xlu0 %v1853
        %v1885 = vpop.xlane.xlu0 %1884
        %1886 = vadd.xlane.f32.xlu0 %v1855
        %v1887 = vpop.xlane.xlu0 %1886
        %v1888 = vrcp.pop %v1857
        %v1889 = vrcp.pop %v1859
        %v1890 = vrcp.pop %v1861
        %v1891 = vrcp.pop %v1863
        %v1892 = vrcp.pop %v1865
        %v1893 = vrcp.pop %v1867
        %v1894 = vrcp.pop %v1869
        %v1895 = vrcp.pop %v1871
        %v1896 = vrcp.pop %v1873
        %v1897 = vrcp.pop %v1875
        %v1898 = vrcp.pop %v1877
        %v1899 = vrcp.pop %v1879
        %v1900 = vrcp.pop %v1881
        %v1901 = vrcp.pop %v1883
        %v1902 = vrcp.pop %v1885
        %v1903 = vrcp.pop %v1887
        %v1904 = vmul.f32 %v1825, %v1888
        %v1905 = vmul.f32 %v1827, %v1889
        %v1906 = vmul.f32 %v1829, %v1890
        %v1907 = vmul.f32 %v1831, %v1891
        %v1908 = vmul.f32 %v1833, %v1892
        %v1909 = vmul.f32 %v1835, %v1893
        %v1910 = vmul.f32 %v1837, %v1894
        %v1911 = vmul.f32 %v1839, %v1895
        %v1912 = vmul.f32 %v1841, %v1896
        %v1913 = vmul.f32 %v1843, %v1897
        %v1914 = vmul.f32 %v1845, %v1898
        %v1915 = vmul.f32 %v1847, %v1899
        %v1916 = vmul.f32 %v1849, %v1900
        %v1917 = vmul.f32 %v1851, %v1901
        %v1918 = vmul.f32 %v1853, %v1902
        %v1919 = vmul.f32 %v1855, %v1903
        %v1920 = vpack.c.bf16 %v1905, %v1904
        %v1921 = vpack.c.bf16 %v1907, %v1906
        %v1922 = vpack.c.bf16 %v1909, %v1908
        %v1923 = vpack.c.bf16 %v1911, %v1910
        %v1924 = vpack.c.bf16 %v1913, %v1912
        %v1925 = vpack.c.bf16 %v1915, %v1914
        %v1926 = vpack.c.bf16 %v1917, %v1916
        %v1927 = vpack.c.bf16 %v1919, %v1918
        %1928 = vrot.lane.b32.xlu0 %v1267, 56
        %v1929 = vpop.permute.xlu0 %1928
        %1930 = vrot.lane.b32.xlu0 %v1268, 56
        %v1931 = vpop.permute.xlu0 %1930
        %1932 = vrot.lane.b32.xlu0 %v1269, 56
        %v1933 = vpop.permute.xlu0 %1932
        %1934 = vrot.lane.b32.xlu0 %v1270, 56
        %v1935 = vpop.permute.xlu0 %1934
        %1936 = vrot.lane.b32.xlu0 %v1271, 56
        %v1937 = vpop.permute.xlu0 %1936
        %1938 = vrot.lane.b32.xlu0 %v1272, 56
        %v1939 = vpop.permute.xlu0 %1938
        %1940 = vrot.lane.b32.xlu0 %v1273, 56
        %v1941 = vpop.permute.xlu0 %1940
        %1942 = vrot.lane.b32.xlu0 %v1274, 56
        %v1943 = vpop.permute.xlu0 %1942
        %1952 = vmatpush.bf16.msra.mxu0 %v1943
        %1953 = vmatpush.bf16.msra.mxu0 %v1941
        %1954 = vmatpush.bf16.msra.mxu0 %v1939
        %1955 = vmatpush.bf16.msra.mxu0 %v1937
        %1956 = vmatpush.bf16.msra.mxu0 %v1935
        %1957 = vmatpush.bf16.msra.mxu0 %v1933
        %1958 = vmatpush.bf16.msra.mxu0 %v1931
        %1959 = vmatpush.bf16.msra.mxu0 %v1929
        %1960 = vmatmul.bf16.gmra.mxu0 %v1920
        %v1961 = vpop.f32.mrf.mxu0
        %v1962 = vadd.f32 0.0, %v1961
        %v1963 = vpop.f32.mrf.mxu0
        %v1964 = vadd.f32 0.0, %v1963
        %1965 = vmatmul.bf16.gmra.mxu0 %v1921
        %v1966 = vpop.f32.mrf.mxu0
        %v1967 = vadd.f32 0.0, %v1966
        %v1968 = vpop.f32.mrf.mxu0
        %v1969 = vadd.f32 0.0, %v1968
        %1970 = vmatmul.bf16.gmra.mxu0 %v1922
        %v1971 = vpop.f32.mrf.mxu0
        %v1972 = vadd.f32 0.0, %v1971
        %v1973 = vpop.f32.mrf.mxu0
        %v1974 = vadd.f32 0.0, %v1973
        %1975 = vmatmul.bf16.gmra.mxu0 %v1923
        %v1976 = vpop.f32.mrf.mxu0
        %v1977 = vadd.f32 0.0, %v1976
        %v1978 = vpop.f32.mrf.mxu0
        %v1979 = vadd.f32 0.0, %v1978
        %1980 = vmatmul.bf16.gmra.mxu0 %v1924
        %v1981 = vpop.f32.mrf.mxu0
        %v1982 = vadd.f32 0.0, %v1981
        %v1983 = vpop.f32.mrf.mxu0
        %v1984 = vadd.f32 0.0, %v1983
        %1985 = vmatmul.bf16.gmra.mxu0 %v1925
        %v1986 = vpop.f32.mrf.mxu0
        %v1987 = vadd.f32 0.0, %v1986
        %v1988 = vpop.f32.mrf.mxu0
        %v1989 = vadd.f32 0.0, %v1988
        %1990 = vmatmul.bf16.gmra.mxu0 %v1926
        %v1991 = vpop.f32.mrf.mxu0
        %v1992 = vadd.f32 0.0, %v1991
        %v1993 = vpop.f32.mrf.mxu0
        %v1994 = vadd.f32 0.0, %v1993
        %1995 = vmatmul.bf16.gmra.mxu0 %v1927
        %v1996 = vpop.f32.mrf.mxu0
        %v1997 = vadd.f32 0.0, %v1996
        %v1998 = vpop.f32.mrf.mxu0
        %v1999 = vadd.f32 0.0, %v1998
        %2000 = vdwg.mxu0
        %v2001 = vpack.c.bf16 %v1962, %v1962
        %v2002 = vpack.c.bf16 %v1964, %v1964
        %v2003 = vpack.c.bf16 %v1967, %v1967
        %v2004 = vpack.c.bf16 %v1969, %v1969
        %v2005 = vpack.c.bf16 %v1972, %v1972
        %v2006 = vpack.c.bf16 %v1974, %v1974
        %v2007 = vpack.c.bf16 %v1977, %v1977
        %v2008 = vpack.c.bf16 %v1979, %v1979
        %v2009 = vpack.c.bf16 %v1982, %v1982
        %v2010 = vpack.c.bf16 %v1984, %v1984
        %v2011 = vpack.c.bf16 %v1987, %v1987
        %v2012 = vpack.c.bf16 %v1989, %v1989
        %v2013 = vpack.c.bf16 %v1992, %v1992
        %v2014 = vpack.c.bf16 %v1994, %v1994
        %v2015 = vpack.c.bf16 %v1997, %v1997
        %v2016 = vpack.c.bf16 %v1999, %v1999
        %2033 = vrot.lane.b32.xlu0 %v2001, 8
        %v2034 = vpop.permute.xlu0 %2033
        %2035 = vrot.lane.b32.xlu0 %v2002, 8
        %v2036 = vpop.permute.xlu0 %2035
        %2037 = vrot.lane.b32.xlu0 %v2003, 8
        %v2038 = vpop.permute.xlu0 %2037
        %2039 = vrot.lane.b32.xlu0 %v2004, 8
        %v2040 = vpop.permute.xlu0 %2039
        %2041 = vrot.lane.b32.xlu0 %v2005, 8
        %v2042 = vpop.permute.xlu0 %2041
        %2043 = vrot.lane.b32.xlu0 %v2006, 8
        %v2044 = vpop.permute.xlu0 %2043
        %2045 = vrot.lane.b32.xlu0 %v2007, 8
        %v2046 = vpop.permute.xlu0 %2045
        %2047 = vrot.lane.b32.xlu0 %v2008, 8
        %v2048 = vpop.permute.xlu0 %2047
        %2049 = vrot.lane.b32.xlu0 %v2009, 8
        %v2050 = vpop.permute.xlu0 %2049
        %2051 = vrot.lane.b32.xlu0 %v2010, 8
        %v2052 = vpop.permute.xlu0 %2051
        %2053 = vrot.lane.b32.xlu0 %v2011, 8
        %v2054 = vpop.permute.xlu0 %2053
        %2055 = vrot.lane.b32.xlu0 %v2012, 8
        %v2056 = vpop.permute.xlu0 %2055
        %2057 = vrot.lane.b32.xlu0 %v2013, 8
        %v2058 = vpop.permute.xlu0 %2057
        %2059 = vrot.lane.b32.xlu0 %v2014, 8
        %v2060 = vpop.permute.xlu0 %2059
        %2061 = vrot.lane.b32.xlu0 %v2015, 8
        %v2062 = vpop.permute.xlu0 %2061
        %2063 = vrot.lane.b32.xlu0 %v2016, 8
        %v2064 = vpop.permute.xlu0 %2063
        %vm2081 = vcmask 126016
        %2082 = vst.msk [vmem:[#allocation2] sm:$0xf] %vm2081, %v2034
        %2083 = vst.msk [vmem:[#allocation2 + $0x4] sm:$0xf] %vm2081, %v2036
        %2084 = vst.msk [vmem:[#allocation2 + $0x8] sm:$0xf] %vm2081, %v2038
        %2085 = vst.msk [vmem:[#allocation2 + $0xc] sm:$0xf] %vm2081, %v2040
        %2086 = vst.msk [vmem:[#allocation2 + $0x10] sm:$0xf] %vm2081, %v2042
        %2087 = vst.msk [vmem:[#allocation2 + $0x14] sm:$0xf] %vm2081, %v2044
        %2088 = vst.msk [vmem:[#allocation2 + $0x18] sm:$0xf] %vm2081, %v2046
        %2089 = vst.msk [vmem:[#allocation2 + $0x1c] sm:$0xf] %vm2081, %v2048
        %2090 = vst.msk [vmem:[#allocation2 + $0x20] sm:$0xf] %vm2081, %v2050
        %2091 = vst.msk [vmem:[#allocation2 + $0x24] sm:$0xf] %vm2081, %v2052
        %2092 = vst.msk [vmem:[#allocation2 + $0x28] sm:$0xf] %vm2081, %v2054
        %2093 = vst.msk [vmem:[#allocation2 + $0x2c] sm:$0xf] %vm2081, %v2056
        %2094 = vst.msk [vmem:[#allocation2 + $0x30] sm:$0xf] %vm2081, %v2058
        %2095 = vst.msk [vmem:[#allocation2 + $0x34] sm:$0xf] %vm2081, %v2060
        %2096 = vst.msk [vmem:[#allocation2 + $0x38] sm:$0xf] %vm2081, %v2062
        %2097 = vst.msk [vmem:[#allocation2 + $0x3c] sm:$0xf] %vm2081, %v2064
        %2098 = vrot.lane.b32.xlu0 %v1267, 112
        %v2099 = vpop.permute.xlu0 %2098
        %2100 = vrot.lane.b32.xlu0 %v1268, 112
        %v2101 = vpop.permute.xlu0 %2100
        %2102 = vrot.lane.b32.xlu0 %v1269, 112
        %v2103 = vpop.permute.xlu0 %2102
        %2104 = vrot.lane.b32.xlu0 %v1270, 112
        %v2105 = vpop.permute.xlu0 %2104
        %2106 = vrot.lane.b32.xlu0 %v1271, 112
        %v2107 = vpop.permute.xlu0 %2106
        %2108 = vrot.lane.b32.xlu0 %v1272, 112
        %v2109 = vpop.permute.xlu0 %2108
        %2110 = vrot.lane.b32.xlu0 %v1273, 112
        %v2111 = vpop.permute.xlu0 %2110
        %2112 = vrot.lane.b32.xlu0 %v1274, 112
        %v2113 = vpop.permute.xlu0 %2112
        %2114 = vrot.lane.b32.xlu0 %v1267, 80
        %v2115 = vpop.permute.xlu0 %2114
        %2116 = vrot.lane.b32.xlu0 %v1268, 80
        %v2117 = vpop.permute.xlu0 %2116
        %2118 = vrot.lane.b32.xlu0 %v1269, 80
        %v2119 = vpop.permute.xlu0 %2118
        %2120 = vrot.lane.b32.xlu0 %v1270, 80
        %v2121 = vpop.permute.xlu0 %2120
        %2122 = vrot.lane.b32.xlu0 %v1271, 80
        %v2123 = vpop.permute.xlu0 %2122
        %2124 = vrot.lane.b32.xlu0 %v1272, 80
        %v2125 = vpop.permute.xlu0 %2124
        %2126 = vrot.lane.b32.xlu0 %v1273, 80
        %v2127 = vpop.permute.xlu0 %2126
        %2128 = vrot.lane.b32.xlu0 %v1274, 80
        %v2129 = vpop.permute.xlu0 %2128
        %v2131 = vsel %vm1291, %v2099, 0
        %v2134 = vsel %vm1291, %v2101, 0
        %v2137 = vsel %vm1291, %v2103, 0
        %v2140 = vsel %vm1291, %v2105, 0
        %v2143 = vsel %vm1291, %v2107, 0
        %v2146 = vsel %vm1291, %v2109, 0
        %v2149 = vsel %vm1291, %v2111, 0
        %v2152 = vsel %vm1291, %v2113, 0
        %v2155 = vsel %vm1291, %v2115, 0
        %v2158 = vsel %vm1291, %v2117, 0
        %v2161 = vsel %vm1291, %v2119, 0
        %v2164 = vsel %vm1291, %v2121, 0
        %v2167 = vsel %vm1291, %v2123, 0
        %v2170 = vsel %vm1291, %v2125, 0
        %v2173 = vsel %vm1291, %v2127, 0
        %v2176 = vsel %vm1291, %v2129, 0
        %2178 = vmatpush.bf16.xpose.msra.mxu0 %v2176
        %2179 = vmatpush.bf16.xpose.msra.mxu0 %v2173
        %2180 = vmatpush.bf16.xpose.msra.mxu0 %v2170
        %2181 = vmatpush.bf16.xpose.msra.mxu0 %v2167
        %2182 = vmatpush.bf16.xpose.msra.mxu0 %v2164
        %2183 = vmatpush.bf16.xpose.msra.mxu0 %v2161
        %2184 = vmatpush.bf16.xpose.msra.mxu0 %v2158
        %2185 = vmatpush.bf16.xpose.msra.mxu0 %v2155
        %2186 = vmatmul.bf16.gmra.mxu0 %v2131
        %v2187 = vpop.f32.mrf.mxu0
        %v2188 = vadd.f32 %v670, %v2187
        %v2189 = vpop.f32.mrf.mxu0
        %v2190 = vadd.f32 %v671, %v2189
        %2191 = vmatmul.bf16.gmra.mxu0 %v2134
        %v2192 = vpop.f32.mrf.mxu0
        %v2193 = vadd.f32 %v672, %v2192
        %v2194 = vpop.f32.mrf.mxu0
        %v2195 = vadd.f32 %v673, %v2194
        %2196 = vmatmul.bf16.gmra.mxu0 %v2137
        %v2197 = vpop.f32.mrf.mxu0
        %v2198 = vadd.f32 %v674, %v2197
        %v2199 = vpop.f32.mrf.mxu0
        %v2200 = vadd.f32 %v675, %v2199
        %2201 = vmatmul.bf16.gmra.mxu0 %v2140
        %v2202 = vpop.f32.mrf.mxu0
        %v2203 = vadd.f32 %v676, %v2202
        %v2204 = vpop.f32.mrf.mxu0
        %v2205 = vadd.f32 %v677, %v2204
        %2206 = vmatmul.bf16.gmra.mxu0 %v2143
        %v2207 = vpop.f32.mrf.mxu0
        %v2208 = vadd.f32 %v678, %v2207
        %v2209 = vpop.f32.mrf.mxu0
        %v2210 = vadd.f32 %v679, %v2209
        %2211 = vmatmul.bf16.gmra.mxu0 %v2146
        %v2212 = vpop.f32.mrf.mxu0
        %v2213 = vadd.f32 %v680, %v2212
        %v2214 = vpop.f32.mrf.mxu0
        %v2215 = vadd.f32 %v681, %v2214
        %2216 = vmatmul.bf16.gmra.mxu0 %v2149
        %v2217 = vpop.f32.mrf.mxu0
        %v2218 = vadd.f32 %v682, %v2217
        %v2219 = vpop.f32.mrf.mxu0
        %v2220 = vadd.f32 %v683, %v2219
        %2221 = vmatmul.bf16.gmra.mxu0 %v2152
        %v2222 = vpop.f32.mrf.mxu0
        %v2223 = vadd.f32 %v684, %v2222
        %v2224 = vpop.f32.mrf.mxu0
        %v2225 = vadd.f32 %v685, %v2224
        %2226 = vdwg.mxu0
        %2227 = vmax.xlane.f32.xlu0 %v2188
        %v2228 = vpop.xlane.xlu0 %2227
        %2229 = vmax.xlane.f32.xlu0 %v2190
        %v2230 = vpop.xlane.xlu0 %2229
        %2231 = vmax.xlane.f32.xlu0 %v2193
        %v2232 = vpop.xlane.xlu0 %2231
        %2233 = vmax.xlane.f32.xlu0 %v2195
        %v2234 = vpop.xlane.xlu0 %2233
        %2235 = vmax.xlane.f32.xlu0 %v2198
        %v2236 = vpop.xlane.xlu0 %2235
        %2237 = vmax.xlane.f32.xlu0 %v2200
        %v2238 = vpop.xlane.xlu0 %2237
        %2239 = vmax.xlane.f32.xlu0 %v2203
        %v2240 = vpop.xlane.xlu0 %2239
        %2241 = vmax.xlane.f32.xlu0 %v2205
        %v2242 = vpop.xlane.xlu0 %2241
        %2243 = vmax.xlane.f32.xlu0 %v2208
        %v2244 = vpop.xlane.xlu0 %2243
        %2245 = vmax.xlane.f32.xlu0 %v2210
        %v2246 = vpop.xlane.xlu0 %2245
        %2247 = vmax.xlane.f32.xlu0 %v2213
        %v2248 = vpop.xlane.xlu0 %2247
        %2249 = vmax.xlane.f32.xlu0 %v2215
        %v2250 = vpop.xlane.xlu0 %2249
        %2251 = vmax.xlane.f32.xlu0 %v2218
        %v2252 = vpop.xlane.xlu0 %2251
        %2253 = vmax.xlane.f32.xlu0 %v2220
        %v2254 = vpop.xlane.xlu0 %2253
        %2255 = vmax.xlane.f32.xlu0 %v2223
        %v2256 = vpop.xlane.xlu0 %2255
        %2257 = vmax.xlane.f32.xlu0 %v2225
        %v2258 = vpop.xlane.xlu0 %2257
        %v2259 = vsub.f32 %v2188, %v2228
        %v2260 = vsub.f32 %v2190, %v2230
        %v2261 = vsub.f32 %v2193, %v2232
        %v2262 = vsub.f32 %v2195, %v2234
        %v2263 = vsub.f32 %v2198, %v2236
        %v2264 = vsub.f32 %v2200, %v2238
        %v2265 = vsub.f32 %v2203, %v2240
        %v2266 = vsub.f32 %v2205, %v2242
        %v2267 = vsub.f32 %v2208, %v2244
        %v2268 = vsub.f32 %v2210, %v2246
        %v2269 = vsub.f32 %v2213, %v2248
        %v2270 = vsub.f32 %v2215, %v2250
        %v2271 = vsub.f32 %v2218, %v2252
        %v2272 = vsub.f32 %v2220, %v2254
        %v2273 = vsub.f32 %v2223, %v2256
        %v2274 = vsub.f32 %v2225, %v2258
        %v2275 = vmul.f32 %v2259, 1.442695
        %v2276 = vpow.pop %v2275
        %v2277 = vmul.f32 %v2260, 1.442695
        %v2278 = vpow.pop %v2277
        %v2279 = vmul.f32 %v2261, 1.442695
        %v2280 = vpow.pop %v2279
        %v2281 = vmul.f32 %v2262, 1.442695
        %v2282 = vpow.pop %v2281
        %v2283 = vmul.f32 %v2263, 1.442695
        %v2284 = vpow.pop %v2283
        %v2285 = vmul.f32 %v2264, 1.442695
        %v2286 = vpow.pop %v2285
        %v2287 = vmul.f32 %v2265, 1.442695
        %v2288 = vpow.pop %v2287
        %v2289 = vmul.f32 %v2266, 1.442695
        %v2290 = vpow.pop %v2289
        %v2291 = vmul.f32 %v2267, 1.442695
        %v2292 = vpow.pop %v2291
        %v2293 = vmul.f32 %v2268, 1.442695
        %v2294 = vpow.pop %v2293
        %v2295 = vmul.f32 %v2269, 1.442695
        %v2296 = vpow.pop %v2295
        %v2297 = vmul.f32 %v2270, 1.442695
        %v2298 = vpow.pop %v2297
        %v2299 = vmul.f32 %v2271, 1.442695
        %v2300 = vpow.pop %v2299
        %v2301 = vmul.f32 %v2272, 1.442695
        %v2302 = vpow.pop %v2301
        %v2303 = vmul.f32 %v2273, 1.442695
        %v2304 = vpow.pop %v2303
        %v2305 = vmul.f32 %v2274, 1.442695
        %v2306 = vpow.pop %v2305
        %2307 = vadd.xlane.f32.xlu0 %v2276
        %v2308 = vpop.xlane.xlu0 %2307
        %2309 = vadd.xlane.f32.xlu0 %v2278
        %v2310 = vpop.xlane.xlu0 %2309
        %2311 = vadd.xlane.f32.xlu0 %v2280
        %v2312 = vpop.xlane.xlu0 %2311
        %2313 = vadd.xlane.f32.xlu0 %v2282
        %v2314 = vpop.xlane.xlu0 %2313
        %2315 = vadd.xlane.f32.xlu0 %v2284
        %v2316 = vpop.xlane.xlu0 %2315
        %2317 = vadd.xlane.f32.xlu0 %v2286
        %v2318 = vpop.xlane.xlu0 %2317
        %2319 = vadd.xlane.f32.xlu0 %v2288
        %v2320 = vpop.xlane.xlu0 %2319
        %2321 = vadd.xlane.f32.xlu0 %v2290
        %v2322 = vpop.xlane.xlu0 %2321
        %2323 = vadd.xlane.f32.xlu0 %v2292
        %v2324 = vpop.xlane.xlu0 %2323
        %2325 = vadd.xlane.f32.xlu0 %v2294
        %v2326 = vpop.xlane.xlu0 %2325
        %2327 = vadd.xlane.f32.xlu0 %v2296
        %v2328 = vpop.xlane.xlu0 %2327
        %2329 = vadd.xlane.f32.xlu0 %v2298
        %v2330 = vpop.xlane.xlu0 %2329
        %2331 = vadd.xlane.f32.xlu0 %v2300
        %v2332 = vpop.xlane.xlu0 %2331
        %2333 = vadd.xlane.f32.xlu0 %v2302
        %v2334 = vpop.xlane.xlu0 %2333
        %2335 = vadd.xlane.f32.xlu0 %v2304
        %v2336 = vpop.xlane.xlu0 %2335
        %2337 = vadd.xlane.f32.xlu0 %v2306
        %v2338 = vpop.xlane.xlu0 %2337
        %v2339 = vrcp.pop %v2308
        %v2340 = vrcp.pop %v2310
        %v2341 = vrcp.pop %v2312
        %v2342 = vrcp.pop %v2314
        %v2343 = vrcp.pop %v2316
        %v2344 = vrcp.pop %v2318
        %v2345 = vrcp.pop %v2320
        %v2346 = vrcp.pop %v2322
        %v2347 = vrcp.pop %v2324
        %v2348 = vrcp.pop %v2326
        %v2349 = vrcp.pop %v2328
        %v2350 = vrcp.pop %v2330
        %v2351 = vrcp.pop %v2332
        %v2352 = vrcp.pop %v2334
        %v2353 = vrcp.pop %v2336
        %v2354 = vrcp.pop %v2338
        %v2355 = vmul.f32 %v2276, %v2339
        %v2356 = vmul.f32 %v2278, %v2340
        %v2357 = vmul.f32 %v2280, %v2341
        %v2358 = vmul.f32 %v2282, %v2342
        %v2359 = vmul.f32 %v2284, %v2343
        %v2360 = vmul.f32 %v2286, %v2344
        %v2361 = vmul.f32 %v2288, %v2345
        %v2362 = vmul.f32 %v2290, %v2346
        %v2363 = vmul.f32 %v2292, %v2347
        %v2364 = vmul.f32 %v2294, %v2348
        %v2365 = vmul.f32 %v2296, %v2349
        %v2366 = vmul.f32 %v2298, %v2350
        %v2367 = vmul.f32 %v2300, %v2351
        %v2368 = vmul.f32 %v2302, %v2352
        %v2369 = vmul.f32 %v2304, %v2353
        %v2370 = vmul.f32 %v2306, %v2354
        %v2371 = vpack.c.bf16 %v2356, %v2355
        %v2372 = vpack.c.bf16 %v2358, %v2357
        %v2373 = vpack.c.bf16 %v2360, %v2359
        %v2374 = vpack.c.bf16 %v2362, %v2361
        %v2375 = vpack.c.bf16 %v2364, %v2363
        %v2376 = vpack.c.bf16 %v2366, %v2365
        %v2377 = vpack.c.bf16 %v2368, %v2367
        %v2378 = vpack.c.bf16 %v2370, %v2369
        %2379 = vrot.lane.b32.xlu0 %v1267, 48
        %v2380 = vpop.permute.xlu0 %2379
        %2381 = vrot.lane.b32.xlu0 %v1268, 48
        %v2382 = vpop.permute.xlu0 %2381
        %2383 = vrot.lane.b32.xlu0 %v1269, 48
        %v2384 = vpop.permute.xlu0 %2383
        %2385 = vrot.lane.b32.xlu0 %v1270, 48
        %v2386 = vpop.permute.xlu0 %2385
        %2387 = vrot.lane.b32.xlu0 %v1271, 48
        %v2388 = vpop.permute.xlu0 %2387
        %2389 = vrot.lane.b32.xlu0 %v1272, 48
        %v2390 = vpop.permute.xlu0 %2389
        %2391 = vrot.lane.b32.xlu0 %v1273, 48
        %v2392 = vpop.permute.xlu0 %2391
        %2393 = vrot.lane.b32.xlu0 %v1274, 48
        %v2394 = vpop.permute.xlu0 %2393
        %2403 = vmatpush.bf16.msra.mxu0 %v2394
        %2404 = vmatpush.bf16.msra.mxu0 %v2392
        %2405 = vmatpush.bf16.msra.mxu0 %v2390
        %2406 = vmatpush.bf16.msra.mxu0 %v2388
        %2407 = vmatpush.bf16.msra.mxu0 %v2386
        %2408 = vmatpush.bf16.msra.mxu0 %v2384
        %2409 = vmatpush.bf16.msra.mxu0 %v2382
        %2410 = vmatpush.bf16.msra.mxu0 %v2380
        %2411 = vmatmul.bf16.gmra.mxu0 %v2371
        %v2412 = vpop.f32.mrf.mxu0
        %v2413 = vadd.f32 0.0, %v2412
        %v2414 = vpop.f32.mrf.mxu0
        %v2415 = vadd.f32 0.0, %v2414
        %2416 = vmatmul.bf16.gmra.mxu0 %v2372
        %v2417 = vpop.f32.mrf.mxu0
        %v2418 = vadd.f32 0.0, %v2417
        %v2419 = vpop.f32.mrf.mxu0
        %v2420 = vadd.f32 0.0, %v2419
        %2421 = vmatmul.bf16.gmra.mxu0 %v2373
        %v2422 = vpop.f32.mrf.mxu0
        %v2423 = vadd.f32 0.0, %v2422
        %v2424 = vpop.f32.mrf.mxu0
        %v2425 = vadd.f32 0.0, %v2424
        %2426 = vmatmul.bf16.gmra.mxu0 %v2374
        %v2427 = vpop.f32.mrf.mxu0
        %v2428 = vadd.f32 0.0, %v2427
        %v2429 = vpop.f32.mrf.mxu0
        %v2430 = vadd.f32 0.0, %v2429
        %2431 = vmatmul.bf16.gmra.mxu0 %v2375
        %v2432 = vpop.f32.mrf.mxu0
        %v2433 = vadd.f32 0.0, %v2432
        %v2434 = vpop.f32.mrf.mxu0
        %v2435 = vadd.f32 0.0, %v2434
        %2436 = vmatmul.bf16.gmra.mxu0 %v2376
        %v2437 = vpop.f32.mrf.mxu0
        %v2438 = vadd.f32 0.0, %v2437
        %v2439 = vpop.f32.mrf.mxu0
        %v2440 = vadd.f32 0.0, %v2439
        %2441 = vmatmul.bf16.gmra.mxu0 %v2377
        %v2442 = vpop.f32.mrf.mxu0
        %v2443 = vadd.f32 0.0, %v2442
        %v2444 = vpop.f32.mrf.mxu0
        %v2445 = vadd.f32 0.0, %v2444
        %2446 = vmatmul.bf16.gmra.mxu0 %v2378
        %v2447 = vpop.f32.mrf.mxu0
        %v2448 = vadd.f32 0.0, %v2447
        %v2449 = vpop.f32.mrf.mxu0
        %v2450 = vadd.f32 0.0, %v2449
        %2451 = vdwg.mxu0
        %v2452 = vpack.c.bf16 %v2413, %v2413
        %v2453 = vpack.c.bf16 %v2415, %v2415
        %v2454 = vpack.c.bf16 %v2418, %v2418
        %v2455 = vpack.c.bf16 %v2420, %v2420
        %v2456 = vpack.c.bf16 %v2423, %v2423
        %v2457 = vpack.c.bf16 %v2425, %v2425
        %v2458 = vpack.c.bf16 %v2428, %v2428
        %v2459 = vpack.c.bf16 %v2430, %v2430
        %v2460 = vpack.c.bf16 %v2433, %v2433
        %v2461 = vpack.c.bf16 %v2435, %v2435
        %v2462 = vpack.c.bf16 %v2438, %v2438
        %v2463 = vpack.c.bf16 %v2440, %v2440
        %v2464 = vpack.c.bf16 %v2443, %v2443
        %v2465 = vpack.c.bf16 %v2445, %v2445
        %v2466 = vpack.c.bf16 %v2448, %v2448
        %v2467 = vpack.c.bf16 %v2450, %v2450
        %2484 = vrot.lane.b32.xlu0 %v2452, 16
        %v2485 = vpop.permute.xlu0 %2484
        %2486 = vrot.lane.b32.xlu0 %v2453, 16
        %v2487 = vpop.permute.xlu0 %2486
        %2488 = vrot.lane.b32.xlu0 %v2454, 16
        %v2489 = vpop.permute.xlu0 %2488
        %2490 = vrot.lane.b32.xlu0 %v2455, 16
        %v2491 = vpop.permute.xlu0 %2490
        %2492 = vrot.lane.b32.xlu0 %v2456, 16
        %v2493 = vpop.permute.xlu0 %2492
        %2494 = vrot.lane.b32.xlu0 %v2457, 16
        %v2495 = vpop.permute.xlu0 %2494
        %2496 = vrot.lane.b32.xlu0 %v2458, 16
        %v2497 = vpop.permute.xlu0 %2496
        %2498 = vrot.lane.b32.xlu0 %v2459, 16
        %v2499 = vpop.permute.xlu0 %2498
        %2500 = vrot.lane.b32.xlu0 %v2460, 16
        %v2501 = vpop.permute.xlu0 %2500
        %2502 = vrot.lane.b32.xlu0 %v2461, 16
        %v2503 = vpop.permute.xlu0 %2502
        %2504 = vrot.lane.b32.xlu0 %v2462, 16
        %v2505 = vpop.permute.xlu0 %2504
        %2506 = vrot.lane.b32.xlu0 %v2463, 16
        %v2507 = vpop.permute.xlu0 %2506
        %2508 = vrot.lane.b32.xlu0 %v2464, 16
        %v2509 = vpop.permute.xlu0 %2508
        %2510 = vrot.lane.b32.xlu0 %v2465, 16
        %v2511 = vpop.permute.xlu0 %2510
        %2512 = vrot.lane.b32.xlu0 %v2466, 16
        %v2513 = vpop.permute.xlu0 %2512
        %2514 = vrot.lane.b32.xlu0 %v2467, 16
        %v2515 = vpop.permute.xlu0 %2514
        %vm2532 = vcmask 191616
        %2533 = vst.msk [vmem:[#allocation2] sm:$0xf] %vm2532, %v2485
        %2534 = vst.msk [vmem:[#allocation2 + $0x4] sm:$0xf] %vm2532, %v2487
        %2535 = vst.msk [vmem:[#allocation2 + $0x8] sm:$0xf] %vm2532, %v2489
        %2536 = vst.msk [vmem:[#allocation2 + $0xc] sm:$0xf] %vm2532, %v2491
        %2537 = vst.msk [vmem:[#allocation2 + $0x10] sm:$0xf] %vm2532, %v2493
        %2538 = vst.msk [vmem:[#allocation2 + $0x14] sm:$0xf] %vm2532, %v2495
        %2539 = vst.msk [vmem:[#allocation2 + $0x18] sm:$0xf] %vm2532, %v2497
        %2540 = vst.msk [vmem:[#allocation2 + $0x1c] sm:$0xf] %vm2532, %v2499
        %2541 = vst.msk [vmem:[#allocation2 + $0x20] sm:$0xf] %vm2532, %v2501
        %2542 = vst.msk [vmem:[#allocation2 + $0x24] sm:$0xf] %vm2532, %v2503
        %2543 = vst.msk [vmem:[#allocation2 + $0x28] sm:$0xf] %vm2532, %v2505
        %2544 = vst.msk [vmem:[#allocation2 + $0x2c] sm:$0xf] %vm2532, %v2507
        %2545 = vst.msk [vmem:[#allocation2 + $0x30] sm:$0xf] %vm2532, %v2509
        %2546 = vst.msk [vmem:[#allocation2 + $0x34] sm:$0xf] %vm2532, %v2511
        %2547 = vst.msk [vmem:[#allocation2 + $0x38] sm:$0xf] %vm2532, %v2513
        %2548 = vst.msk [vmem:[#allocation2 + $0x3c] sm:$0xf] %vm2532, %v2515
        %2549 = vrot.lane.b32.xlu0 %v1267, 104
        %v2550 = vpop.permute.xlu0 %2549
        %2551 = vrot.lane.b32.xlu0 %v1268, 104
        %v2552 = vpop.permute.xlu0 %2551
        %2553 = vrot.lane.b32.xlu0 %v1269, 104
        %v2554 = vpop.permute.xlu0 %2553
        %2555 = vrot.lane.b32.xlu0 %v1270, 104
        %v2556 = vpop.permute.xlu0 %2555
        %2557 = vrot.lane.b32.xlu0 %v1271, 104
        %v2558 = vpop.permute.xlu0 %2557
        %2559 = vrot.lane.b32.xlu0 %v1272, 104
        %v2560 = vpop.permute.xlu0 %2559
        %2561 = vrot.lane.b32.xlu0 %v1273, 104
        %v2562 = vpop.permute.xlu0 %2561
        %2563 = vrot.lane.b32.xlu0 %v1274, 104
        %v2564 = vpop.permute.xlu0 %2563
        %2565 = vrot.lane.b32.xlu0 %v1267, 72
        %v2566 = vpop.permute.xlu0 %2565
        %2567 = vrot.lane.b32.xlu0 %v1268, 72
        %v2568 = vpop.permute.xlu0 %2567
        %2569 = vrot.lane.b32.xlu0 %v1269, 72
        %v2570 = vpop.permute.xlu0 %2569
        %2571 = vrot.lane.b32.xlu0 %v1270, 72
        %v2572 = vpop.permute.xlu0 %2571
        %2573 = vrot.lane.b32.xlu0 %v1271, 72
        %v2574 = vpop.permute.xlu0 %2573
        %2575 = vrot.lane.b32.xlu0 %v1272, 72
        %v2576 = vpop.permute.xlu0 %2575
        %2577 = vrot.lane.b32.xlu0 %v1273, 72
        %v2578 = vpop.permute.xlu0 %2577
        %2579 = vrot.lane.b32.xlu0 %v1274, 72
        %v2580 = vpop.permute.xlu0 %2579
        %v2582 = vsel %vm1291, %v2550, 0
        %v2585 = vsel %vm1291, %v2552, 0
        %v2588 = vsel %vm1291, %v2554, 0
        %v2591 = vsel %vm1291, %v2556, 0
        %v2594 = vsel %vm1291, %v2558, 0
        %v2597 = vsel %vm1291, %v2560, 0
        %v2600 = vsel %vm1291, %v2562, 0
        %v2603 = vsel %vm1291, %v2564, 0
        %v2606 = vsel %vm1291, %v2566, 0
        %v2609 = vsel %vm1291, %v2568, 0
        %v2612 = vsel %vm1291, %v2570, 0
        %v2615 = vsel %vm1291, %v2572, 0
        %v2618 = vsel %vm1291, %v2574, 0
        %v2621 = vsel %vm1291, %v2576, 0
        %v2624 = vsel %vm1291, %v2578, 0
        %v2627 = vsel %vm1291, %v2580, 0
        %2629 = vmatpush.bf16.xpose.msra.mxu0 %v2627
        %2630 = vmatpush.bf16.xpose.msra.mxu0 %v2624
        %2631 = vmatpush.bf16.xpose.msra.mxu0 %v2621
        %2632 = vmatpush.bf16.xpose.msra.mxu0 %v2618
        %2633 = vmatpush.bf16.xpose.msra.mxu0 %v2615
        %2634 = vmatpush.bf16.xpose.msra.mxu0 %v2612
        %2635 = vmatpush.bf16.xpose.msra.mxu0 %v2609
        %2636 = vmatpush.bf16.xpose.msra.mxu0 %v2606
        %2637 = vmatmul.bf16.gmra.mxu0 %v2582
        %v2638 = vpop.f32.mrf.mxu0
        %v2639 = vadd.f32 %v670, %v2638
        %v2640 = vpop.f32.mrf.mxu0
        %v2641 = vadd.f32 %v671, %v2640
        %2642 = vmatmul.bf16.gmra.mxu0 %v2585
        %v2643 = vpop.f32.mrf.mxu0
        %v2644 = vadd.f32 %v672, %v2643
        %v2645 = vpop.f32.mrf.mxu0
        %v2646 = vadd.f32 %v673, %v2645
        %2647 = vmatmul.bf16.gmra.mxu0 %v2588
        %v2648 = vpop.f32.mrf.mxu0
        %v2649 = vadd.f32 %v674, %v2648
        %v2650 = vpop.f32.mrf.mxu0
        %v2651 = vadd.f32 %v675, %v2650
        %2652 = vmatmul.bf16.gmra.mxu0 %v2591
        %v2653 = vpop.f32.mrf.mxu0
        %v2654 = vadd.f32 %v676, %v2653
        %v2655 = vpop.f32.mrf.mxu0
        %v2656 = vadd.f32 %v677, %v2655
        %2657 = vmatmul.bf16.gmra.mxu0 %v2594
        %v2658 = vpop.f32.mrf.mxu0
        %v2659 = vadd.f32 %v678, %v2658
        %v2660 = vpop.f32.mrf.mxu0
        %v2661 = vadd.f32 %v679, %v2660
        %2662 = vmatmul.bf16.gmra.mxu0 %v2597
        %v2663 = vpop.f32.mrf.mxu0
        %v2664 = vadd.f32 %v680, %v2663
        %v2665 = vpop.f32.mrf.mxu0
        %v2666 = vadd.f32 %v681, %v2665
        %2667 = vmatmul.bf16.gmra.mxu0 %v2600
        %v2668 = vpop.f32.mrf.mxu0
        %v2669 = vadd.f32 %v682, %v2668
        %v2670 = vpop.f32.mrf.mxu0
        %v2671 = vadd.f32 %v683, %v2670
        %2672 = vmatmul.bf16.gmra.mxu0 %v2603
        %v2673 = vpop.f32.mrf.mxu0
        %v2674 = vadd.f32 %v684, %v2673
        %v2675 = vpop.f32.mrf.mxu0
        %v2676 = vadd.f32 %v685, %v2675
        %2677 = vdwg.mxu0
        %2678 = vmax.xlane.f32.xlu0 %v2639
        %v2679 = vpop.xlane.xlu0 %2678
        %2680 = vmax.xlane.f32.xlu0 %v2641
        %v2681 = vpop.xlane.xlu0 %2680
        %2682 = vmax.xlane.f32.xlu0 %v2644
        %v2683 = vpop.xlane.xlu0 %2682
        %2684 = vmax.xlane.f32.xlu0 %v2646
        %v2685 = vpop.xlane.xlu0 %2684
        %2686 = vmax.xlane.f32.xlu0 %v2649
        %v2687 = vpop.xlane.xlu0 %2686
        %2688 = vmax.xlane.f32.xlu0 %v2651
        %v2689 = vpop.xlane.xlu0 %2688
        %2690 = vmax.xlane.f32.xlu0 %v2654
        %v2691 = vpop.xlane.xlu0 %2690
        %2692 = vmax.xlane.f32.xlu0 %v2656
        %v2693 = vpop.xlane.xlu0 %2692
        %2694 = vmax.xlane.f32.xlu0 %v2659
        %v2695 = vpop.xlane.xlu0 %2694
        %2696 = vmax.xlane.f32.xlu0 %v2661
        %v2697 = vpop.xlane.xlu0 %2696
        %2698 = vmax.xlane.f32.xlu0 %v2664
        %v2699 = vpop.xlane.xlu0 %2698
        %2700 = vmax.xlane.f32.xlu0 %v2666
        %v2701 = vpop.xlane.xlu0 %2700
        %2702 = vmax.xlane.f32.xlu0 %v2669
        %v2703 = vpop.xlane.xlu0 %2702
        %2704 = vmax.xlane.f32.xlu0 %v2671
        %v2705 = vpop.xlane.xlu0 %2704
        %2706 = vmax.xlane.f32.xlu0 %v2674
        %v2707 = vpop.xlane.xlu0 %2706
        %2708 = vmax.xlane.f32.xlu0 %v2676
        %v2709 = vpop.xlane.xlu0 %2708
        %v2710 = vsub.f32 %v2639, %v2679
        %v2711 = vsub.f32 %v2641, %v2681
        %v2712 = vsub.f32 %v2644, %v2683
        %v2713 = vsub.f32 %v2646, %v2685
        %v2714 = vsub.f32 %v2649, %v2687
        %v2715 = vsub.f32 %v2651, %v2689
        %v2716 = vsub.f32 %v2654, %v2691
        %v2717 = vsub.f32 %v2656, %v2693
        %v2718 = vsub.f32 %v2659, %v2695
        %v2719 = vsub.f32 %v2661, %v2697
        %v2720 = vsub.f32 %v2664, %v2699
        %v2721 = vsub.f32 %v2666, %v2701
        %v2722 = vsub.f32 %v2669, %v2703
        %v2723 = vsub.f32 %v2671, %v2705
        %v2724 = vsub.f32 %v2674, %v2707
        %v2725 = vsub.f32 %v2676, %v2709
        %v2726 = vmul.f32 %v2710, 1.442695
        %v2727 = vpow.pop %v2726
        %v2728 = vmul.f32 %v2711, 1.442695
        %v2729 = vpow.pop %v2728
        %v2730 = vmul.f32 %v2712, 1.442695
        %v2731 = vpow.pop %v2730
        %v2732 = vmul.f32 %v2713, 1.442695
        %v2733 = vpow.pop %v2732
        %v2734 = vmul.f32 %v2714, 1.442695
        %v2735 = vpow.pop %v2734
        %v2736 = vmul.f32 %v2715, 1.442695
        %v2737 = vpow.pop %v2736
        %v2738 = vmul.f32 %v2716, 1.442695
        %v2739 = vpow.pop %v2738
        %v2740 = vmul.f32 %v2717, 1.442695
        %v2741 = vpow.pop %v2740
        %v2742 = vmul.f32 %v2718, 1.442695
        %v2743 = vpow.pop %v2742
        %v2744 = vmul.f32 %v2719, 1.442695
        %v2745 = vpow.pop %v2744
        %v2746 = vmul.f32 %v2720, 1.442695
        %v2747 = vpow.pop %v2746
        %v2748 = vmul.f32 %v2721, 1.442695
        %v2749 = vpow.pop %v2748
        %v2750 = vmul.f32 %v2722, 1.442695
        %v2751 = vpow.pop %v2750
        %v2752 = vmul.f32 %v2723, 1.442695
        %v2753 = vpow.pop %v2752
        %v2754 = vmul.f32 %v2724, 1.442695
        %v2755 = vpow.pop %v2754
        %v2756 = vmul.f32 %v2725, 1.442695
        %v2757 = vpow.pop %v2756
        %2758 = vadd.xlane.f32.xlu0 %v2727
        %v2759 = vpop.xlane.xlu0 %2758
        %2760 = vadd.xlane.f32.xlu0 %v2729
        %v2761 = vpop.xlane.xlu0 %2760
        %2762 = vadd.xlane.f32.xlu0 %v2731
        %v2763 = vpop.xlane.xlu0 %2762
        %2764 = vadd.xlane.f32.xlu0 %v2733
        %v2765 = vpop.xlane.xlu0 %2764
        %2766 = vadd.xlane.f32.xlu0 %v2735
        %v2767 = vpop.xlane.xlu0 %2766
        %2768 = vadd.xlane.f32.xlu0 %v2737
        %v2769 = vpop.xlane.xlu0 %2768
        %2770 = vadd.xlane.f32.xlu0 %v2739
        %v2771 = vpop.xlane.xlu0 %2770
        %2772 = vadd.xlane.f32.xlu0 %v2741
        %v2773 = vpop.xlane.xlu0 %2772
        %2774 = vadd.xlane.f32.xlu0 %v2743
        %v2775 = vpop.xlane.xlu0 %2774
        %2776 = vadd.xlane.f32.xlu0 %v2745
        %v2777 = vpop.xlane.xlu0 %2776
        %2778 = vadd.xlane.f32.xlu0 %v2747
        %v2779 = vpop.xlane.xlu0 %2778
        %2780 = vadd.xlane.f32.xlu0 %v2749
        %v2781 = vpop.xlane.xlu0 %2780
        %2782 = vadd.xlane.f32.xlu0 %v2751
        %v2783 = vpop.xlane.xlu0 %2782
        %2784 = vadd.xlane.f32.xlu0 %v2753
        %v2785 = vpop.xlane.xlu0 %2784
        %2786 = vadd.xlane.f32.xlu0 %v2755
        %v2787 = vpop.xlane.xlu0 %2786
        %2788 = vadd.xlane.f32.xlu0 %v2757
        %v2789 = vpop.xlane.xlu0 %2788
        %v2790 = vrcp.pop %v2759
        %v2791 = vrcp.pop %v2761
        %v2792 = vrcp.pop %v2763
        %v2793 = vrcp.pop %v2765
        %v2794 = vrcp.pop %v2767
        %v2795 = vrcp.pop %v2769
        %v2796 = vrcp.pop %v2771
        %v2797 = vrcp.pop %v2773
        %v2798 = vrcp.pop %v2775
        %v2799 = vrcp.pop %v2777
        %v2800 = vrcp.pop %v2779
        %v2801 = vrcp.pop %v2781
        %v2802 = vrcp.pop %v2783
        %v2803 = vrcp.pop %v2785
        %v2804 = vrcp.pop %v2787
        %v2805 = vrcp.pop %v2789
        %v2806 = vmul.f32 %v2727, %v2790
        %v2807 = vmul.f32 %v2729, %v2791
        %v2808 = vmul.f32 %v2731, %v2792
        %v2809 = vmul.f32 %v2733, %v2793
        %v2810 = vmul.f32 %v2735, %v2794
        %v2811 = vmul.f32 %v2737, %v2795
        %v2812 = vmul.f32 %v2739, %v2796
        %v2813 = vmul.f32 %v2741, %v2797
        %v2814 = vmul.f32 %v2743, %v2798
        %v2815 = vmul.f32 %v2745, %v2799
        %v2816 = vmul.f32 %v2747, %v2800
        %v2817 = vmul.f32 %v2749, %v2801
        %v2818 = vmul.f32 %v2751, %v2802
        %v2819 = vmul.f32 %v2753, %v2803
        %v2820 = vmul.f32 %v2755, %v2804
        %v2821 = vmul.f32 %v2757, %v2805
        %v2822 = vpack.c.bf16 %v2807, %v2806
        %v2823 = vpack.c.bf16 %v2809, %v2808
        %v2824 = vpack.c.bf16 %v2811, %v2810
        %v2825 = vpack.c.bf16 %v2813, %v2812
        %v2826 = vpack.c.bf16 %v2815, %v2814
        %v2827 = vpack.c.bf16 %v2817, %v2816
        %v2828 = vpack.c.bf16 %v2819, %v2818
        %v2829 = vpack.c.bf16 %v2821, %v2820
        %2830 = vrot.lane.b32.xlu0 %v1267, 40
        %v2831 = vpop.permute.xlu0 %2830
        %2832 = vrot.lane.b32.xlu0 %v1268, 40
        %v2833 = vpop.permute.xlu0 %2832
        %2834 = vrot.lane.b32.xlu0 %v1269, 40
        %v2835 = vpop.permute.xlu0 %2834
        %2836 = vrot.lane.b32.xlu0 %v1270, 40
        %v2837 = vpop.permute.xlu0 %2836
        %2838 = vrot.lane.b32.xlu0 %v1271, 40
        %v2839 = vpop.permute.xlu0 %2838
        %2840 = vrot.lane.b32.xlu0 %v1272, 40
        %v2841 = vpop.permute.xlu0 %2840
        %2842 = vrot.lane.b32.xlu0 %v1273, 40
        %v2843 = vpop.permute.xlu0 %2842
        %2844 = vrot.lane.b32.xlu0 %v1274, 40
        %v2845 = vpop.permute.xlu0 %2844
        %2854 = vmatpush.bf16.msra.mxu0 %v2845
        %2855 = vmatpush.bf16.msra.mxu0 %v2843
        %2856 = vmatpush.bf16.msra.mxu0 %v2841
        %2857 = vmatpush.bf16.msra.mxu0 %v2839
        %2858 = vmatpush.bf16.msra.mxu0 %v2837
        %2859 = vmatpush.bf16.msra.mxu0 %v2835
        %2860 = vmatpush.bf16.msra.mxu0 %v2833
        %2861 = vmatpush.bf16.msra.mxu0 %v2831
        %2862 = vmatmul.bf16.gmra.mxu0 %v2822
        %v2863 = vpop.f32.mrf.mxu0
        %v2864 = vadd.f32 0.0, %v2863
        %v2865 = vpop.f32.mrf.mxu0
        %v2866 = vadd.f32 0.0, %v2865
        %2867 = vmatmul.bf16.gmra.mxu0 %v2823
        %v2868 = vpop.f32.mrf.mxu0
        %v2869 = vadd.f32 0.0, %v2868
        %v2870 = vpop.f32.mrf.mxu0
        %v2871 = vadd.f32 0.0, %v2870
        %2872 = vmatmul.bf16.gmra.mxu0 %v2824
        %v2873 = vpop.f32.mrf.mxu0
        %v2874 = vadd.f32 0.0, %v2873
        %v2875 = vpop.f32.mrf.mxu0
        %v2876 = vadd.f32 0.0, %v2875
        %2877 = vmatmul.bf16.gmra.mxu0 %v2825
        %v2878 = vpop.f32.mrf.mxu0
        %v2879 = vadd.f32 0.0, %v2878
        %v2880 = vpop.f32.mrf.mxu0
        %v2881 = vadd.f32 0.0, %v2880
        %2882 = vmatmul.bf16.gmra.mxu0 %v2826
        %v2883 = vpop.f32.mrf.mxu0
        %v2884 = vadd.f32 0.0, %v2883
        %v2885 = vpop.f32.mrf.mxu0
        %v2886 = vadd.f32 0.0, %v2885
        %2887 = vmatmul.bf16.gmra.mxu0 %v2827
        %v2888 = vpop.f32.mrf.mxu0
        %v2889 = vadd.f32 0.0, %v2888
        %v2890 = vpop.f32.mrf.mxu0
        %v2891 = vadd.f32 0.0, %v2890
        %2892 = vmatmul.bf16.gmra.mxu0 %v2828
        %v2893 = vpop.f32.mrf.mxu0
        %v2894 = vadd.f32 0.0, %v2893
        %v2895 = vpop.f32.mrf.mxu0
        %v2896 = vadd.f32 0.0, %v2895
        %2897 = vmatmul.bf16.gmra.mxu0 %v2829
        %v2898 = vpop.f32.mrf.mxu0
        %v2899 = vadd.f32 0.0, %v2898
        %v2900 = vpop.f32.mrf.mxu0
        %v2901 = vadd.f32 0.0, %v2900
        %2902 = vdwg.mxu0
        %v2903 = vpack.c.bf16 %v2864, %v2864
        %v2904 = vpack.c.bf16 %v2866, %v2866
        %v2905 = vpack.c.bf16 %v2869, %v2869
        %v2906 = vpack.c.bf16 %v2871, %v2871
        %v2907 = vpack.c.bf16 %v2874, %v2874
        %v2908 = vpack.c.bf16 %v2876, %v2876
        %v2909 = vpack.c.bf16 %v2879, %v2879
        %v2910 = vpack.c.bf16 %v2881, %v2881
        %v2911 = vpack.c.bf16 %v2884, %v2884
        %v2912 = vpack.c.bf16 %v2886, %v2886
        %v2913 = vpack.c.bf16 %v2889, %v2889
        %v2914 = vpack.c.bf16 %v2891, %v2891
        %v2915 = vpack.c.bf16 %v2894, %v2894
        %v2916 = vpack.c.bf16 %v2896, %v2896
        %v2917 = vpack.c.bf16 %v2899, %v2899
        %v2918 = vpack.c.bf16 %v2901, %v2901
        %2935 = vrot.lane.b32.xlu0 %v2903, 24
        %v2936 = vpop.permute.xlu0 %2935
        %2937 = vrot.lane.b32.xlu0 %v2904, 24
        %v2938 = vpop.permute.xlu0 %2937
        %2939 = vrot.lane.b32.xlu0 %v2905, 24
        %v2940 = vpop.permute.xlu0 %2939
        %2941 = vrot.lane.b32.xlu0 %v2906, 24
        %v2942 = vpop.permute.xlu0 %2941
        %2943 = vrot.lane.b32.xlu0 %v2907, 24
        %v2944 = vpop.permute.xlu0 %2943
        %2945 = vrot.lane.b32.xlu0 %v2908, 24
        %v2946 = vpop.permute.xlu0 %2945
        %2947 = vrot.lane.b32.xlu0 %v2909, 24
        %v2948 = vpop.permute.xlu0 %2947
        %2949 = vrot.lane.b32.xlu0 %v2910, 24
        %v2950 = vpop.permute.xlu0 %2949
        %2951 = vrot.lane.b32.xlu0 %v2911, 24
        %v2952 = vpop.permute.xlu0 %2951
        %2953 = vrot.lane.b32.xlu0 %v2912, 24
        %v2954 = vpop.permute.xlu0 %2953
        %2955 = vrot.lane.b32.xlu0 %v2913, 24
        %v2956 = vpop.permute.xlu0 %2955
        %2957 = vrot.lane.b32.xlu0 %v2914, 24
        %v2958 = vpop.permute.xlu0 %2957
        %2959 = vrot.lane.b32.xlu0 %v2915, 24
        %v2960 = vpop.permute.xlu0 %2959
        %2961 = vrot.lane.b32.xlu0 %v2916, 24
        %v2962 = vpop.permute.xlu0 %2961
        %2963 = vrot.lane.b32.xlu0 %v2917, 24
        %v2964 = vpop.permute.xlu0 %2963
        %2965 = vrot.lane.b32.xlu0 %v2918, 24
        %v2966 = vpop.permute.xlu0 %2965
        %vm2983 = vcmask 257216
        %2984 = vst.msk [vmem:[#allocation2] sm:$0xf] %vm2983, %v2936
        %2985 = vst.msk [vmem:[#allocation2 + $0x4] sm:$0xf] %vm2983, %v2938
        %2986 = vst.msk [vmem:[#allocation2 + $0x8] sm:$0xf] %vm2983, %v2940
        %2987 = vst.msk [vmem:[#allocation2 + $0xc] sm:$0xf] %vm2983, %v2942
        %2988 = vst.msk [vmem:[#allocation2 + $0x10] sm:$0xf] %vm2983, %v2944
        %2989 = vst.msk [vmem:[#allocation2 + $0x14] sm:$0xf] %vm2983, %v2946
        %2990 = vst.msk [vmem:[#allocation2 + $0x18] sm:$0xf] %vm2983, %v2948
        %2991 = vst.msk [vmem:[#allocation2 + $0x1c] sm:$0xf] %vm2983, %v2950
        %2992 = vst.msk [vmem:[#allocation2 + $0x20] sm:$0xf] %vm2983, %v2952
        %2993 = vst.msk [vmem:[#allocation2 + $0x24] sm:$0xf] %vm2983, %v2954
        %2994 = vst.msk [vmem:[#allocation2 + $0x28] sm:$0xf] %vm2983, %v2956
        %2995 = vst.msk [vmem:[#allocation2 + $0x2c] sm:$0xf] %vm2983, %v2958
        %2996 = vst.msk [vmem:[#allocation2 + $0x30] sm:$0xf] %vm2983, %v2960
        %2997 = vst.msk [vmem:[#allocation2 + $0x34] sm:$0xf] %vm2983, %v2962
        %2998 = vst.msk [vmem:[#allocation2 + $0x38] sm:$0xf] %vm2983, %v2964
        %2999 = vst.msk [vmem:[#allocation2 + $0x3c] sm:$0xf] %vm2983, %v2966
        %v3000 = vld [vmem:[#allocation2] sm:$0xf]
        %v3001 = vld [vmem:[#allocation2 + $0x4] sm:$0xf]
        %v3002 = vld [vmem:[#allocation2 + $0x8] sm:$0xf]
        %v3003 = vld [vmem:[#allocation2 + $0xc] sm:$0xf]
        %v3004 = vld [vmem:[#allocation2 + $0x10] sm:$0xf]
        %v3005 = vld [vmem:[#allocation2 + $0x14] sm:$0xf]
        %v3006 = vld [vmem:[#allocation2 + $0x18] sm:$0xf]
        %v3007 = vld [vmem:[#allocation2 + $0x1c] sm:$0xf]
        %v3008 = vld [vmem:[#allocation2 + $0x20] sm:$0xf]
        %v3009 = vld [vmem:[#allocation2 + $0x24] sm:$0xf]
        %v3010 = vld [vmem:[#allocation2 + $0x28] sm:$0xf]
        %v3011 = vld [vmem:[#allocation2 + $0x2c] sm:$0xf]
        %v3012 = vld [vmem:[#allocation2 + $0x30] sm:$0xf]
        %v3013 = vld [vmem:[#allocation2 + $0x34] sm:$0xf]
        %v3014 = vld [vmem:[#allocation2 + $0x38] sm:$0xf]
        %v3015 = vld [vmem:[#allocation2 + $0x3c] sm:$0xf]
        %v3016 = vld [vmem:[%s8] sm:$0xf]
        %v3017 = vld [vmem:[%s8 + $0x4] sm:$0xf]
        %v3018 = vld [vmem:[%s8 + $0x8] sm:$0xf]
        %v3019 = vld [vmem:[%s8 + $0xc] sm:$0xf]
        %v3020 = vld [vmem:[%s9] sm:$0x1]
        %v3022 = vperm.slane %v3020, 0
        %v3040 = vunpack.c.l.b16 %v3000
        %v3041 = vunpack.c.l.b16 %v3001
        %v3042 = vunpack.c.l.b16 %v3002
        %v3043 = vunpack.c.l.b16 %v3003
        %v3044 = vunpack.c.l.b16 %v3004
        %v3045 = vunpack.c.l.b16 %v3005
        %v3046 = vunpack.c.l.b16 %v3006
        %v3047 = vunpack.c.l.b16 %v3007
        %v3048 = vunpack.c.l.b16 %v3008
        %v3049 = vunpack.c.l.b16 %v3009
        %v3050 = vunpack.c.l.b16 %v3010
        %v3051 = vunpack.c.l.b16 %v3011
        %v3052 = vunpack.c.l.b16 %v3012
        %v3053 = vunpack.c.l.b16 %v3013
        %v3054 = vunpack.c.l.b16 %v3014
        %v3055 = vunpack.c.l.b16 %v3015
        %v3056 = vpack.c.b16 %v3041, %v3040
        %v3057 = vpack.c.b16 %v3043, %v3042
        %v3058 = vpack.c.b16 %v3045, %v3044
        %v3059 = vpack.c.b16 %v3047, %v3046
        %v3060 = vpack.c.b16 %v3049, %v3048
        %v3061 = vpack.c.b16 %v3051, %v3050
        %v3062 = vpack.c.b16 %v3053, %v3052
        %v3063 = vpack.c.b16 %v3055, %v3054
        %v3068 = vunpack.c.l.b16 %v3016
        %v3069 = vunpack.c.l.b16 %v3017
        %v3070 = vunpack.c.l.b16 %v3018
        %v3071 = vunpack.c.l.b16 %v3019
        %v3072 = vpack.c.b16 %v3069, %v3068
        %v3073 = vpack.c.b16 %v3071, %v3070
        %v3077 = vsel %vm688, %v3056, 0
        %v3080 = vsel %vm688, %v3057, 0
        %v3083 = vsel %vm688, %v3058, 0
        %v3086 = vsel %vm688, %v3059, 0
        %v3089 = vsel %vm688, %v3060, 0
        %v3092 = vsel %vm688, %v3061, 0
        %v3095 = vsel %vm688, %v3062, 0
        %v3098 = vsel %vm688, %v3063, 0
        %3100 = vmatpush.bf16.msra.mxu0 0
        %3101 = vmatpush.bf16.msra.mxu0 0
        %3102 = vmatpush.bf16.msra.mxu0 0
        %3103 = vmatpush.bf16.msra.mxu0 0
        %3104 = vmatpush.bf16.msra.mxu0 0
        %3105 = vmatpush.bf16.msra.mxu0 0
        %3106 = vmatpush.bf16.msra.mxu0 %v3073
        %3107 = vmatpush.bf16.msra.mxu0 %v3072
        %3108 = vmatmul.bf16.gmra.mxu0 %v3077
        %v3109 = vpop.f32.mrf.mxu0
        %v3110 = vadd.f32 %v3022, %v3109
        %v3111 = vpop.f32.mrf.mxu0
        %v3112 = vadd.f32 %v3022, %v3111
        %3113 = vmatmul.bf16.gmra.mxu0 %v3080
        %v3114 = vpop.f32.mrf.mxu0
        %v3115 = vadd.f32 %v3022, %v3114
        %v3116 = vpop.f32.mrf.mxu0
        %v3117 = vadd.f32 %v3022, %v3116
        %3118 = vmatmul.bf16.gmra.mxu0 %v3083
        %v3119 = vpop.f32.mrf.mxu0
        %v3120 = vadd.f32 %v3022, %v3119
        %v3121 = vpop.f32.mrf.mxu0
        %v3122 = vadd.f32 %v3022, %v3121
        %3123 = vmatmul.bf16.gmra.mxu0 %v3086
        %v3124 = vpop.f32.mrf.mxu0
        %v3125 = vadd.f32 %v3022, %v3124
        %v3126 = vpop.f32.mrf.mxu0
        %v3127 = vadd.f32 %v3022, %v3126
        %3128 = vmatmul.bf16.gmra.mxu0 %v3089
        %v3129 = vpop.f32.mrf.mxu0
        %v3130 = vadd.f32 %v3022, %v3129
        %v3131 = vpop.f32.mrf.mxu0
        %v3132 = vadd.f32 %v3022, %v3131
        %3133 = vmatmul.bf16.gmra.mxu0 %v3092
        %v3134 = vpop.f32.mrf.mxu0
        %v3135 = vadd.f32 %v3022, %v3134
        %v3136 = vpop.f32.mrf.mxu0
        %v3137 = vadd.f32 %v3022, %v3136
        %3138 = vmatmul.bf16.gmra.mxu0 %v3095
        %v3139 = vpop.f32.mrf.mxu0
        %v3140 = vadd.f32 %v3022, %v3139
        %v3141 = vpop.f32.mrf.mxu0
        %v3142 = vadd.f32 %v3022, %v3141
        %3143 = vmatmul.bf16.gmra.mxu0 %v3098
        %v3144 = vpop.f32.mrf.mxu0
        %v3145 = vadd.f32 %v3022, %v3144
        %v3146 = vpop.f32.mrf.mxu0
        %v3147 = vadd.f32 %v3022, %v3146
        %3148 = vdwg.mxu0
        %v3149 = vadd.f32 %v638, %v3110
        %v3150 = vadd.f32 %v639, %v3112
        %v3151 = vadd.f32 %v640, %v3115
        %v3152 = vadd.f32 %v641, %v3117
        %v3153 = vadd.f32 %v642, %v3120
        %v3154 = vadd.f32 %v643, %v3122
        %v3155 = vadd.f32 %v644, %v3125
        %v3156 = vadd.f32 %v645, %v3127
        %v3157 = vadd.f32 %v646, %v3130
        %v3158 = vadd.f32 %v647, %v3132
        %v3159 = vadd.f32 %v648, %v3135
        %v3160 = vadd.f32 %v649, %v3137
        %v3161 = vadd.f32 %v650, %v3140
        %v3162 = vadd.f32 %v651, %v3142
        %v3163 = vadd.f32 %v652, %v3145
        %v3164 = vadd.f32 %v653, %v3147
        %v3165 = vld [vmem:[%s4] sm:$0x1]
        %v3166 = vld [vmem:[#allocation9] sm:$0x1]
        %v3167 = vsel %vm688, %v3149, 0.0
        %3168 = vadd.xlane.f32.xlu0 %v3167
        %v3169 = vpop.xlane.xlu0 %3168
        %v3170 = vsel %vm688, %v3150, 0.0
        %3171 = vadd.xlane.f32.xlu0 %v3170
        %v3172 = vpop.xlane.xlu0 %3171
        %v3173 = vsel %vm688, %v3151, 0.0
        %3174 = vadd.xlane.f32.xlu0 %v3173
        %v3175 = vpop.xlane.xlu0 %3174
        %v3176 = vsel %vm688, %v3152, 0.0
        %3177 = vadd.xlane.f32.xlu0 %v3176
        %v3178 = vpop.xlane.xlu0 %3177
        %v3179 = vsel %vm688, %v3153, 0.0
        %3180 = vadd.xlane.f32.xlu0 %v3179
        %v3181 = vpop.xlane.xlu0 %3180
        %v3182 = vsel %vm688, %v3154, 0.0
        %3183 = vadd.xlane.f32.xlu0 %v3182
        %v3184 = vpop.xlane.xlu0 %3183
        %v3185 = vsel %vm688, %v3155, 0.0
        %3186 = vadd.xlane.f32.xlu0 %v3185
        %v3187 = vpop.xlane.xlu0 %3186
        %v3188 = vsel %vm688, %v3156, 0.0
        %3189 = vadd.xlane.f32.xlu0 %v3188
        %v3190 = vpop.xlane.xlu0 %3189
        %v3191 = vsel %vm688, %v3157, 0.0
        %3192 = vadd.xlane.f32.xlu0 %v3191
        %v3193 = vpop.xlane.xlu0 %3192
        %v3194 = vsel %vm688, %v3158, 0.0
        %3195 = vadd.xlane.f32.xlu0 %v3194
        %v3196 = vpop.xlane.xlu0 %3195
        %v3197 = vsel %vm688, %v3159, 0.0
        %3198 = vadd.xlane.f32.xlu0 %v3197
        %v3199 = vpop.xlane.xlu0 %3198
        %v3200 = vsel %vm688, %v3160, 0.0
        %3201 = vadd.xlane.f32.xlu0 %v3200
        %v3202 = vpop.xlane.xlu0 %3201
        %v3203 = vsel %vm688, %v3161, 0.0
        %3204 = vadd.xlane.f32.xlu0 %v3203
        %v3205 = vpop.xlane.xlu0 %3204
        %v3206 = vsel %vm688, %v3162, 0.0
        %3207 = vadd.xlane.f32.xlu0 %v3206
        %v3208 = vpop.xlane.xlu0 %3207
        %v3209 = vsel %vm688, %v3163, 0.0
        %3210 = vadd.xlane.f32.xlu0 %v3209
        %v3211 = vpop.xlane.xlu0 %3210
        %v3212 = vsel %vm688, %v3164, 0.0
        %3213 = vadd.xlane.f32.xlu0 %v3212
        %v3214 = vpop.xlane.xlu0 %3213
        %v3215 = vmul.f32 %v3169, %v743
        %v3216 = vmul.f32 %v3172, %v743
        %v3217 = vmul.f32 %v3175, %v743
        %v3218 = vmul.f32 %v3178, %v743
        %v3219 = vmul.f32 %v3181, %v743
        %v3220 = vmul.f32 %v3184, %v743
        %v3221 = vmul.f32 %v3187, %v743
        %v3222 = vmul.f32 %v3190, %v743
        %v3223 = vmul.f32 %v3193, %v743
        %v3224 = vmul.f32 %v3196, %v743
        %v3225 = vmul.f32 %v3199, %v743
        %v3226 = vmul.f32 %v3202, %v743
        %v3227 = vmul.f32 %v3205, %v743
        %v3228 = vmul.f32 %v3208, %v743
        %v3229 = vmul.f32 %v3211, %v743
        %v3230 = vmul.f32 %v3214, %v743
        %v3231 = vmul.f32 %v3149, %v3149
        %v3232 = vmul.f32 %v3150, %v3150
        %v3233 = vmul.f32 %v3151, %v3151
        %v3234 = vmul.f32 %v3152, %v3152
        %v3235 = vmul.f32 %v3153, %v3153
        %v3236 = vmul.f32 %v3154, %v3154
        %v3237 = vmul.f32 %v3155, %v3155
        %v3238 = vmul.f32 %v3156, %v3156
        %v3239 = vmul.f32 %v3157, %v3157
        %v3240 = vmul.f32 %v3158, %v3158
        %v3241 = vmul.f32 %v3159, %v3159
        %v3242 = vmul.f32 %v3160, %v3160
        %v3243 = vmul.f32 %v3161, %v3161
        %v3244 = vmul.f32 %v3162, %v3162
        %v3245 = vmul.f32 %v3163, %v3163
        %v3246 = vmul.f32 %v3164, %v3164
        %v3247 = vsel %vm688, %v3231, 0.0
        %3248 = vadd.xlane.f32.xlu0 %v3247
        %v3249 = vpop.xlane.xlu0 %3248
        %v3250 = vsel %vm688, %v3232, 0.0
        %3251 = vadd.xlane.f32.xlu0 %v3250
        %v3252 = vpop.xlane.xlu0 %3251
        %v3253 = vsel %vm688, %v3233, 0.0
        %3254 = vadd.xlane.f32.xlu0 %v3253
        %v3255 = vpop.xlane.xlu0 %3254
        %v3256 = vsel %vm688, %v3234, 0.0
        %3257 = vadd.xlane.f32.xlu0 %v3256
        %v3258 = vpop.xlane.xlu0 %3257
        %v3259 = vsel %vm688, %v3235, 0.0
        %3260 = vadd.xlane.f32.xlu0 %v3259
        %v3261 = vpop.xlane.xlu0 %3260
        %v3262 = vsel %vm688, %v3236, 0.0
        %3263 = vadd.xlane.f32.xlu0 %v3262
        %v3264 = vpop.xlane.xlu0 %3263
        %v3265 = vsel %vm688, %v3237, 0.0
        %3266 = vadd.xlane.f32.xlu0 %v3265
        %v3267 = vpop.xlane.xlu0 %3266
        %v3268 = vsel %vm688, %v3238, 0.0
        %3269 = vadd.xlane.f32.xlu0 %v3268
        %v3270 = vpop.xlane.xlu0 %3269
        %v3271 = vsel %vm688, %v3239, 0.0
        %3272 = vadd.xlane.f32.xlu0 %v3271
        %v3273 = vpop.xlane.xlu0 %3272
        %v3274 = vsel %vm688, %v3240, 0.0
        %3275 = vadd.xlane.f32.xlu0 %v3274
        %v3276 = vpop.xlane.xlu0 %3275
        %v3277 = vsel %vm688, %v3241, 0.0
        %3278 = vadd.xlane.f32.xlu0 %v3277
        %v3279 = vpop.xlane.xlu0 %3278
        %v3280 = vsel %vm688, %v3242, 0.0
        %3281 = vadd.xlane.f32.xlu0 %v3280
        %v3282 = vpop.xlane.xlu0 %3281
        %v3283 = vsel %vm688, %v3243, 0.0
        %3284 = vadd.xlane.f32.xlu0 %v3283
        %v3285 = vpop.xlane.xlu0 %3284
        %v3286 = vsel %vm688, %v3244, 0.0
        %3287 = vadd.xlane.f32.xlu0 %v3286
        %v3288 = vpop.xlane.xlu0 %3287
        %v3289 = vsel %vm688, %v3245, 0.0
        %3290 = vadd.xlane.f32.xlu0 %v3289
        %v3291 = vpop.xlane.xlu0 %3290
        %v3292 = vsel %vm688, %v3246, 0.0
        %3293 = vadd.xlane.f32.xlu0 %v3292
        %v3294 = vpop.xlane.xlu0 %3293
        %v3295 = vmul.f32 %v3249, %v743
        %v3296 = vmul.f32 %v3252, %v743
        %v3297 = vmul.f32 %v3255, %v743
        %v3298 = vmul.f32 %v3258, %v743
        %v3299 = vmul.f32 %v3261, %v743
        %v3300 = vmul.f32 %v3264, %v743
        %v3301 = vmul.f32 %v3267, %v743
        %v3302 = vmul.f32 %v3270, %v743
        %v3303 = vmul.f32 %v3273, %v743
        %v3304 = vmul.f32 %v3276, %v743
        %v3305 = vmul.f32 %v3279, %v743
        %v3306 = vmul.f32 %v3282, %v743
        %v3307 = vmul.f32 %v3285, %v743
        %v3308 = vmul.f32 %v3288, %v743
        %v3309 = vmul.f32 %v3291, %v743
        %v3310 = vmul.f32 %v3294, %v743
        %v3311 = vmul.f32 %v3215, %v3215
        %v3312 = vmul.f32 %v3216, %v3216
        %v3313 = vmul.f32 %v3217, %v3217
        %v3314 = vmul.f32 %v3218, %v3218
        %v3315 = vmul.f32 %v3219, %v3219
        %v3316 = vmul.f32 %v3220, %v3220
        %v3317 = vmul.f32 %v3221, %v3221
        %v3318 = vmul.f32 %v3222, %v3222
        %v3319 = vmul.f32 %v3223, %v3223
        %v3320 = vmul.f32 %v3224, %v3224
        %v3321 = vmul.f32 %v3225, %v3225
        %v3322 = vmul.f32 %v3226, %v3226
        %v3323 = vmul.f32 %v3227, %v3227
        %v3324 = vmul.f32 %v3228, %v3228
        %v3325 = vmul.f32 %v3229, %v3229
        %v3326 = vmul.f32 %v3230, %v3230
        %v3327 = vsub.f32 %v3295, %v3311
        %v3328 = vsub.f32 %v3296, %v3312
        %v3329 = vsub.f32 %v3297, %v3313
        %v3330 = vsub.f32 %v3298, %v3314
        %v3331 = vsub.f32 %v3299, %v3315
        %v3332 = vsub.f32 %v3300, %v3316
        %v3333 = vsub.f32 %v3301, %v3317
        %v3334 = vsub.f32 %v3302, %v3318
        %v3335 = vsub.f32 %v3303, %v3319
        %v3336 = vsub.f32 %v3304, %v3320
        %v3337 = vsub.f32 %v3305, %v3321
        %v3338 = vsub.f32 %v3306, %v3322
        %v3339 = vsub.f32 %v3307, %v3323
        %v3340 = vsub.f32 %v3308, %v3324
        %v3341 = vsub.f32 %v3309, %v3325
        %v3342 = vsub.f32 %v3310, %v3326
        %v3343 = vsub.f32 %v3149, %v3215
        %v3344 = vsub.f32 %v3150, %v3216
        %v3345 = vsub.f32 %v3151, %v3217
        %v3346 = vsub.f32 %v3152, %v3218
        %v3347 = vsub.f32 %v3153, %v3219
        %v3348 = vsub.f32 %v3154, %v3220
        %v3349 = vsub.f32 %v3155, %v3221
        %v3350 = vsub.f32 %v3156, %v3222
        %v3351 = vsub.f32 %v3157, %v3223
        %v3352 = vsub.f32 %v3158, %v3224
        %v3353 = vsub.f32 %v3159, %v3225
        %v3354 = vsub.f32 %v3160, %v3226
        %v3355 = vsub.f32 %v3161, %v3227
        %v3356 = vsub.f32 %v3162, %v3228
        %v3357 = vsub.f32 %v3163, %v3229
        %v3358 = vsub.f32 %v3164, %v3230
        %v3359 = vadd.f32 %v3327, 1e-05
        %v3360 = vadd.f32 %v3328, 1e-05
        %v3361 = vadd.f32 %v3329, 1e-05
        %v3362 = vadd.f32 %v3330, 1e-05
        %v3363 = vadd.f32 %v3331, 1e-05
        %v3364 = vadd.f32 %v3332, 1e-05
        %v3365 = vadd.f32 %v3333, 1e-05
        %v3366 = vadd.f32 %v3334, 1e-05
        %v3367 = vadd.f32 %v3335, 1e-05
        %v3368 = vadd.f32 %v3336, 1e-05
        %v3369 = vadd.f32 %v3337, 1e-05
        %v3370 = vadd.f32 %v3338, 1e-05
        %v3371 = vadd.f32 %v3339, 1e-05
        %v3372 = vadd.f32 %v3340, 1e-05
        %v3373 = vadd.f32 %v3341, 1e-05
        %v3374 = vadd.f32 %v3342, 1e-05
        %v3375 = vrsqrt.pop %v3359
        %v3376 = vmul.f32 %v3375, %v3359
        %v3377 = vmul.f32 %v3376, %v3375
        %v3378 = vmul.f32 0.5, %v3377
        %v3379 = vsub.f32 1.5, %v3378
        %v3380 = vmul.f32 %v3375, %v3379
        %vm3381 = vweird.f32 %v3359
        %vm3382 = vweird.f32 %v3375
        %vm3383 = vmor %vm3381, %vm3382
        %v3384 = vsel %vm3383, %v3375, %v3380
        %v3385 = vrsqrt.pop %v3360
        %v3386 = vmul.f32 %v3385, %v3360
        %v3387 = vmul.f32 %v3386, %v3385
        %v3388 = vmul.f32 0.5, %v3387
        %v3389 = vsub.f32 1.5, %v3388
        %v3390 = vmul.f32 %v3385, %v3389
        %vm3391 = vweird.f32 %v3360
        %vm3392 = vweird.f32 %v3385
        %vm3393 = vmor %vm3391, %vm3392
        %v3394 = vsel %vm3393, %v3385, %v3390
        %v3395 = vrsqrt.pop %v3361
        %v3396 = vmul.f32 %v3395, %v3361
        %v3397 = vmul.f32 %v3396, %v3395
        %v3398 = vmul.f32 0.5, %v3397
        %v3399 = vsub.f32 1.5, %v3398
        %v3400 = vmul.f32 %v3395, %v3399
        %vm3401 = vweird.f32 %v3361
        %vm3402 = vweird.f32 %v3395
        %vm3403 = vmor %vm3401, %vm3402
        %v3404 = vsel %vm3403, %v3395, %v3400
        %v3405 = vrsqrt.pop %v3362
        %v3406 = vmul.f32 %v3405, %v3362
        %v3407 = vmul.f32 %v3406, %v3405
        %v3408 = vmul.f32 0.5, %v3407
        %v3409 = vsub.f32 1.5, %v3408
        %v3410 = vmul.f32 %v3405, %v3409
        %vm3411 = vweird.f32 %v3362
        %vm3412 = vweird.f32 %v3405
        %vm3413 = vmor %vm3411, %vm3412
        %v3414 = vsel %vm3413, %v3405, %v3410
        %v3415 = vrsqrt.pop %v3363
        %v3416 = vmul.f32 %v3415, %v3363
        %v3417 = vmul.f32 %v3416, %v3415
        %v3418 = vmul.f32 0.5, %v3417
        %v3419 = vsub.f32 1.5, %v3418
        %v3420 = vmul.f32 %v3415, %v3419
        %vm3421 = vweird.f32 %v3363
        %vm3422 = vweird.f32 %v3415
        %vm3423 = vmor %vm3421, %vm3422
        %v3424 = vsel %vm3423, %v3415, %v3420
        %v3425 = vrsqrt.pop %v3364
        %v3426 = vmul.f32 %v3425, %v3364
        %v3427 = vmul.f32 %v3426, %v3425
        %v3428 = vmul.f32 0.5, %v3427
        %v3429 = vsub.f32 1.5, %v3428
        %v3430 = vmul.f32 %v3425, %v3429
        %vm3431 = vweird.f32 %v3364
        %vm3432 = vweird.f32 %v3425
        %vm3433 = vmor %vm3431, %vm3432
        %v3434 = vsel %vm3433, %v3425, %v3430
        %v3435 = vrsqrt.pop %v3365
        %v3436 = vmul.f32 %v3435, %v3365
        %v3437 = vmul.f32 %v3436, %v3435
        %v3438 = vmul.f32 0.5, %v3437
        %v3439 = vsub.f32 1.5, %v3438
        %v3440 = vmul.f32 %v3435, %v3439
        %vm3441 = vweird.f32 %v3365
        %vm3442 = vweird.f32 %v3435
        %vm3443 = vmor %vm3441, %vm3442
        %v3444 = vsel %vm3443, %v3435, %v3440
        %v3445 = vrsqrt.pop %v3366
        %v3446 = vmul.f32 %v3445, %v3366
        %v3447 = vmul.f32 %v3446, %v3445
        %v3448 = vmul.f32 0.5, %v3447
        %v3449 = vsub.f32 1.5, %v3448
        %v3450 = vmul.f32 %v3445, %v3449
        %vm3451 = vweird.f32 %v3366
        %vm3452 = vweird.f32 %v3445
        %vm3453 = vmor %vm3451, %vm3452
        %v3454 = vsel %vm3453, %v3445, %v3450
        %v3455 = vrsqrt.pop %v3367
        %v3456 = vmul.f32 %v3455, %v3367
        %v3457 = vmul.f32 %v3456, %v3455
        %v3458 = vmul.f32 0.5, %v3457
        %v3459 = vsub.f32 1.5, %v3458
        %v3460 = vmul.f32 %v3455, %v3459
        %vm3461 = vweird.f32 %v3367
        %vm3462 = vweird.f32 %v3455
        %vm3463 = vmor %vm3461, %vm3462
        %v3464 = vsel %vm3463, %v3455, %v3460
        %v3465 = vrsqrt.pop %v3368
        %v3466 = vmul.f32 %v3465, %v3368
        %v3467 = vmul.f32 %v3466, %v3465
        %v3468 = vmul.f32 0.5, %v3467
        %v3469 = vsub.f32 1.5, %v3468
        %v3470 = vmul.f32 %v3465, %v3469
        %vm3471 = vweird.f32 %v3368
        %vm3472 = vweird.f32 %v3465
        %vm3473 = vmor %vm3471, %vm3472
        %v3474 = vsel %vm3473, %v3465, %v3470
        %v3475 = vrsqrt.pop %v3369
        %v3476 = vmul.f32 %v3475, %v3369
        %v3477 = vmul.f32 %v3476, %v3475
        %v3478 = vmul.f32 0.5, %v3477
        %v3479 = vsub.f32 1.5, %v3478
        %v3480 = vmul.f32 %v3475, %v3479
        %vm3481 = vweird.f32 %v3369
        %vm3482 = vweird.f32 %v3475
        %vm3483 = vmor %vm3481, %vm3482
        %v3484 = vsel %vm3483, %v3475, %v3480
        %v3485 = vrsqrt.pop %v3370
        %v3486 = vmul.f32 %v3485, %v3370
        %v3487 = vmul.f32 %v3486, %v3485
        %v3488 = vmul.f32 0.5, %v3487
        %v3489 = vsub.f32 1.5, %v3488
        %v3490 = vmul.f32 %v3485, %v3489
        %vm3491 = vweird.f32 %v3370
        %vm3492 = vweird.f32 %v3485
        %vm3493 = vmor %vm3491, %vm3492
        %v3494 = vsel %vm3493, %v3485, %v3490
        %v3495 = vrsqrt.pop %v3371
        %v3496 = vmul.f32 %v3495, %v3371
        %v3497 = vmul.f32 %v3496, %v3495
        %v3498 = vmul.f32 0.5, %v3497
        %v3499 = vsub.f32 1.5, %v3498
        %v3500 = vmul.f32 %v3495, %v3499
        %vm3501 = vweird.f32 %v3371
        %vm3502 = vweird.f32 %v3495
        %vm3503 = vmor %vm3501, %vm3502
        %v3504 = vsel %vm3503, %v3495, %v3500
        %v3505 = vrsqrt.pop %v3372
        %v3506 = vmul.f32 %v3505, %v3372
        %v3507 = vmul.f32 %v3506, %v3505
        %v3508 = vmul.f32 0.5, %v3507
        %v3509 = vsub.f32 1.5, %v3508
        %v3510 = vmul.f32 %v3505, %v3509
        %vm3511 = vweird.f32 %v3372
        %vm3512 = vweird.f32 %v3505
        %vm3513 = vmor %vm3511, %vm3512
        %v3514 = vsel %vm3513, %v3505, %v3510
        %v3515 = vrsqrt.pop %v3373
        %v3516 = vmul.f32 %v3515, %v3373
        %v3517 = vmul.f32 %v3516, %v3515
        %v3518 = vmul.f32 0.5, %v3517
        %v3519 = vsub.f32 1.5, %v3518
        %v3520 = vmul.f32 %v3515, %v3519
        %vm3521 = vweird.f32 %v3373
        %vm3522 = vweird.f32 %v3515
        %vm3523 = vmor %vm3521, %vm3522
        %v3524 = vsel %vm3523, %v3515, %v3520
        %v3525 = vrsqrt.pop %v3374
        %v3526 = vmul.f32 %v3525, %v3374
        %v3527 = vmul.f32 %v3526, %v3525
        %v3528 = vmul.f32 0.5, %v3527
        %v3529 = vsub.f32 1.5, %v3528
        %v3530 = vmul.f32 %v3525, %v3529
        %vm3531 = vweird.f32 %v3374
        %vm3532 = vweird.f32 %v3525
        %vm3533 = vmor %vm3531, %vm3532
        %v3534 = vsel %vm3533, %v3525, %v3530
        %v3535 = vmul.f32 %v3343, %v3384
        %v3536 = vmul.f32 %v3344, %v3394
        %v3537 = vmul.f32 %v3345, %v3404
        %v3538 = vmul.f32 %v3346, %v3414
        %v3539 = vmul.f32 %v3347, %v3424
        %v3540 = vmul.f32 %v3348, %v3434
        %v3541 = vmul.f32 %v3349, %v3444
        %v3542 = vmul.f32 %v3350, %v3454
        %v3543 = vmul.f32 %v3351, %v3464
        %v3544 = vmul.f32 %v3352, %v3474
        %v3545 = vmul.f32 %v3353, %v3484
        %v3546 = vmul.f32 %v3354, %v3494
        %v3547 = vmul.f32 %v3355, %v3504
        %v3548 = vmul.f32 %v3356, %v3514
        %v3549 = vmul.f32 %v3357, %v3524
        %v3550 = vmul.f32 %v3358, %v3534
        %v3552 = vperm.slane %v3165, 0
        %v3554 = vmul.f32 %v3535, %v3552
        %v3555 = vmul.f32 %v3536, %v3552
        %v3556 = vmul.f32 %v3537, %v3552
        %v3557 = vmul.f32 %v3538, %v3552
        %v3558 = vmul.f32 %v3539, %v3552
        %v3559 = vmul.f32 %v3540, %v3552
        %v3560 = vmul.f32 %v3541, %v3552
        %v3561 = vmul.f32 %v3542, %v3552
        %v3562 = vmul.f32 %v3543, %v3552
        %v3563 = vmul.f32 %v3544, %v3552
        %v3564 = vmul.f32 %v3545, %v3552
        %v3565 = vmul.f32 %v3546, %v3552
        %v3566 = vmul.f32 %v3547, %v3552
        %v3567 = vmul.f32 %v3548, %v3552
        %v3568 = vmul.f32 %v3549, %v3552
        %v3569 = vmul.f32 %v3550, %v3552
        %v3571 = vperm.slane %v3166, 0
        %v3573 = vadd.f32 %v3554, %v3571
        %v3574 = vadd.f32 %v3555, %v3571
        %v3575 = vadd.f32 %v3556, %v3571
        %v3576 = vadd.f32 %v3557, %v3571
        %v3577 = vadd.f32 %v3558, %v3571
        %v3578 = vadd.f32 %v3559, %v3571
        %v3579 = vadd.f32 %v3560, %v3571
        %v3580 = vadd.f32 %v3561, %v3571
        %v3581 = vadd.f32 %v3562, %v3571
        %v3582 = vadd.f32 %v3563, %v3571
        %v3583 = vadd.f32 %v3564, %v3571
        %v3584 = vadd.f32 %v3565, %v3571
        %v3585 = vadd.f32 %v3566, %v3571
        %v3586 = vadd.f32 %v3567, %v3571
        %v3587 = vadd.f32 %v3568, %v3571
        %v3588 = vadd.f32 %v3569, %v3571
        %v3589 = vpack.c.bf16 %v3574, %v3573
        %v3590 = vpack.c.bf16 %v3576, %v3575
        %v3591 = vpack.c.bf16 %v3578, %v3577
        %v3592 = vpack.c.bf16 %v3580, %v3579
        %v3593 = vpack.c.bf16 %v3582, %v3581
        %v3594 = vpack.c.bf16 %v3584, %v3583
        %v3595 = vpack.c.bf16 %v3586, %v3585
        %v3596 = vpack.c.bf16 %v3588, %v3587
        %v3597 = vld [vmem:[%s10] sm:$0xf]
        %v3598 = vld [vmem:[%s10 + $0x4] sm:$0xf]
        %v3599 = vld [vmem:[%s10 + $0x8] sm:$0xf]
        %v3600 = vld [vmem:[%s10 + $0xc] sm:$0xf]
        %v3601 = vld [vmem:[%s11] sm:$0x1]
        %v3603 = vperm.slane %v3601, 0
        %v3609 = vunpack.c.l.b16 %v3597
        %v3610 = vunpack.c.l.b16 %v3598
        %v3611 = vunpack.c.l.b16 %v3599
        %v3612 = vunpack.c.l.b16 %v3600
        %v3613 = vpack.c.b16 %v3610, %v3609
        %v3614 = vpack.c.b16 %v3612, %v3611
        %v3618 = vsel %vm688, %v3589, 0
        %v3621 = vsel %vm688, %v3590, 0
        %v3624 = vsel %vm688, %v3591, 0
        %v3627 = vsel %vm688, %v3592, 0
        %v3630 = vsel %vm688, %v3593, 0
        %v3633 = vsel %vm688, %v3594, 0
        %v3636 = vsel %vm688, %v3595, 0
        %v3639 = vsel %vm688, %v3596, 0
        %3641 = vmatpush.bf16.msra.mxu0 0
        %3642 = vmatpush.bf16.msra.mxu0 0
        %3643 = vmatpush.bf16.msra.mxu0 0
        %3644 = vmatpush.bf16.msra.mxu0 0
        %3645 = vmatpush.bf16.msra.mxu0 0
        %3646 = vmatpush.bf16.msra.mxu0 0
        %3647 = vmatpush.bf16.msra.mxu0 %v3614
        %3648 = vmatpush.bf16.msra.mxu0 %v3613
        %3649 = vmatmul.bf16.gmra.mxu0 %v3618
        %v3650 = vpop.f32.mrf.mxu0
        %v3651 = vadd.f32 %v3603, %v3650
        %v3652 = vpop.f32.mrf.mxu0
        %v3653 = vadd.f32 %v3603, %v3652
        %3654 = vmatmul.bf16.gmra.mxu0 %v3621
        %v3655 = vpop.f32.mrf.mxu0
        %v3656 = vadd.f32 %v3603, %v3655
        %v3657 = vpop.f32.mrf.mxu0
        %v3658 = vadd.f32 %v3603, %v3657
        %3659 = vmatmul.bf16.gmra.mxu0 %v3624
        %v3660 = vpop.f32.mrf.mxu0
        %v3661 = vadd.f32 %v3603, %v3660
        %v3662 = vpop.f32.mrf.mxu0
        %v3663 = vadd.f32 %v3603, %v3662
        %3664 = vmatmul.bf16.gmra.mxu0 %v3627
        %v3665 = vpop.f32.mrf.mxu0
        %v3666 = vadd.f32 %v3603, %v3665
        %v3667 = vpop.f32.mrf.mxu0
        %v3668 = vadd.f32 %v3603, %v3667
        %3669 = vmatmul.bf16.gmra.mxu0 %v3630
        %v3670 = vpop.f32.mrf.mxu0
        %v3671 = vadd.f32 %v3603, %v3670
        %v3672 = vpop.f32.mrf.mxu0
        %v3673 = vadd.f32 %v3603, %v3672
        %3674 = vmatmul.bf16.gmra.mxu0 %v3633
        %v3675 = vpop.f32.mrf.mxu0
        %v3676 = vadd.f32 %v3603, %v3675
        %v3677 = vpop.f32.mrf.mxu0
        %v3678 = vadd.f32 %v3603, %v3677
        %3679 = vmatmul.bf16.gmra.mxu0 %v3636
        %v3680 = vpop.f32.mrf.mxu0
        %v3681 = vadd.f32 %v3603, %v3680
        %v3682 = vpop.f32.mrf.mxu0
        %v3683 = vadd.f32 %v3603, %v3682
        %3684 = vmatmul.bf16.gmra.mxu0 %v3639
        %v3685 = vpop.f32.mrf.mxu0
        %v3686 = vadd.f32 %v3603, %v3685
        %v3687 = vpop.f32.mrf.mxu0
        %v3688 = vadd.f32 %v3603, %v3687
        %3689 = vdwg.mxu0
        %v3690 = vmul.f32 %v3651, 0.5
        %v3691 = vmul.f32 %v3653, 0.5
        %v3692 = vmul.f32 %v3656, 0.5
        %v3693 = vmul.f32 %v3658, 0.5
        %v3694 = vmul.f32 %v3661, 0.5
        %v3695 = vmul.f32 %v3663, 0.5
        %v3696 = vmul.f32 %v3666, 0.5
        %v3697 = vmul.f32 %v3668, 0.5
        %v3698 = vmul.f32 %v3671, 0.5
        %v3699 = vmul.f32 %v3673, 0.5
        %v3700 = vmul.f32 %v3676, 0.5
        %v3701 = vmul.f32 %v3678, 0.5
        %v3702 = vmul.f32 %v3681, 0.5
        %v3703 = vmul.f32 %v3683, 0.5
        %v3704 = vmul.f32 %v3686, 0.5
        %v3705 = vmul.f32 %v3688, 0.5
        %v3706 = vmul.f32 %v3651, 0.044715
        %v3707 = vmul.f32 %v3653, 0.044715
        %v3708 = vmul.f32 %v3656, 0.044715
        %v3709 = vmul.f32 %v3658, 0.044715
        %v3710 = vmul.f32 %v3661, 0.044715
        %v3711 = vmul.f32 %v3663, 0.044715
        %v3712 = vmul.f32 %v3666, 0.044715
        %v3713 = vmul.f32 %v3668, 0.044715
        %v3714 = vmul.f32 %v3671, 0.044715
        %v3715 = vmul.f32 %v3673, 0.044715
        %v3716 = vmul.f32 %v3676, 0.044715
        %v3717 = vmul.f32 %v3678, 0.044715
        %v3718 = vmul.f32 %v3681, 0.044715
        %v3719 = vmul.f32 %v3683, 0.044715
        %v3720 = vmul.f32 %v3686, 0.044715
        %v3721 = vmul.f32 %v3688, 0.044715
        %v3722 = vmul.f32 %v3706, %v3651
        %v3723 = vmul.f32 %v3707, %v3653
        %v3724 = vmul.f32 %v3708, %v3656
        %v3725 = vmul.f32 %v3709, %v3658
        %v3726 = vmul.f32 %v3710, %v3661
        %v3727 = vmul.f32 %v3711, %v3663
        %v3728 = vmul.f32 %v3712, %v3666
        %v3729 = vmul.f32 %v3713, %v3668
        %v3730 = vmul.f32 %v3714, %v3671
        %v3731 = vmul.f32 %v3715, %v3673
        %v3732 = vmul.f32 %v3716, %v3676
        %v3733 = vmul.f32 %v3717, %v3678
        %v3734 = vmul.f32 %v3718, %v3681
        %v3735 = vmul.f32 %v3719, %v3683
        %v3736 = vmul.f32 %v3720, %v3686
        %v3737 = vmul.f32 %v3721, %v3688
        %v3738 = vmul.f32 %v3722, %v3651
        %v3739 = vmul.f32 %v3723, %v3653
        %v3740 = vmul.f32 %v3724, %v3656
        %v3741 = vmul.f32 %v3725, %v3658
        %v3742 = vmul.f32 %v3726, %v3661
        %v3743 = vmul.f32 %v3727, %v3663
        %v3744 = vmul.f32 %v3728, %v3666
        %v3745 = vmul.f32 %v3729, %v3668
        %v3746 = vmul.f32 %v3730, %v3671
        %v3747 = vmul.f32 %v3731, %v3673
        %v3748 = vmul.f32 %v3732, %v3676
        %v3749 = vmul.f32 %v3733, %v3678
        %v3750 = vmul.f32 %v3734, %v3681
        %v3751 = vmul.f32 %v3735, %v3683
        %v3752 = vmul.f32 %v3736, %v3686
        %v3753 = vmul.f32 %v3737, %v3688
        %v3754 = vadd.f32 %v3651, %v3738
        %v3755 = vadd.f32 %v3653, %v3739
        %v3756 = vadd.f32 %v3656, %v3740
        %v3757 = vadd.f32 %v3658, %v3741
        %v3758 = vadd.f32 %v3661, %v3742
        %v3759 = vadd.f32 %v3663, %v3743
        %v3760 = vadd.f32 %v3666, %v3744
        %v3761 = vadd.f32 %v3668, %v3745
        %v3762 = vadd.f32 %v3671, %v3746
        %v3763 = vadd.f32 %v3673, %v3747
        %v3764 = vadd.f32 %v3676, %v3748
        %v3765 = vadd.f32 %v3678, %v3749
        %v3766 = vadd.f32 %v3681, %v3750
        %v3767 = vadd.f32 %v3683, %v3751
        %v3768 = vadd.f32 %v3686, %v3752
        %v3769 = vadd.f32 %v3688, %v3753
        %v3770 = vmul.f32 %v3754, 0.7978846
        %v3771 = vmul.f32 %v3755, 0.7978846
        %v3772 = vmul.f32 %v3756, 0.7978846
        %v3773 = vmul.f32 %v3757, 0.7978846
        %v3774 = vmul.f32 %v3758, 0.7978846
        %v3775 = vmul.f32 %v3759, 0.7978846
        %v3776 = vmul.f32 %v3760, 0.7978846
        %v3777 = vmul.f32 %v3761, 0.7978846
        %v3778 = vmul.f32 %v3762, 0.7978846
        %v3779 = vmul.f32 %v3763, 0.7978846
        %v3780 = vmul.f32 %v3764, 0.7978846
        %v3781 = vmul.f32 %v3765, 0.7978846
        %v3782 = vmul.f32 %v3766, 0.7978846
        %v3783 = vmul.f32 %v3767, 0.7978846
        %v3784 = vmul.f32 %v3768, 0.7978846
        %v3785 = vmul.f32 %v3769, 0.7978846
        %v3786 = vtanh.pop %v3770
        %v3787 = vtanh.pop %v3771
        %v3788 = vtanh.pop %v3772
        %v3789 = vtanh.pop %v3773
        %v3790 = vtanh.pop %v3774
        %v3791 = vtanh.pop %v3775
        %v3792 = vtanh.pop %v3776
        %v3793 = vtanh.pop %v3777
        %v3794 = vtanh.pop %v3778
        %v3795 = vtanh.pop %v3779
        %v3796 = vtanh.pop %v3780
        %v3797 = vtanh.pop %v3781
        %v3798 = vtanh.pop %v3782
        %v3799 = vtanh.pop %v3783
        %v3800 = vtanh.pop %v3784
        %v3801 = vtanh.pop %v3785
        %v3802 = vadd.f32 %v3786, 1.0
        %v3803 = vadd.f32 %v3787, 1.0
        %v3804 = vadd.f32 %v3788, 1.0
        %v3805 = vadd.f32 %v3789, 1.0
        %v3806 = vadd.f32 %v3790, 1.0
        %v3807 = vadd.f32 %v3791, 1.0
        %v3808 = vadd.f32 %v3792, 1.0
        %v3809 = vadd.f32 %v3793, 1.0
        %v3810 = vadd.f32 %v3794, 1.0
        %v3811 = vadd.f32 %v3795, 1.0
        %v3812 = vadd.f32 %v3796, 1.0
        %v3813 = vadd.f32 %v3797, 1.0
        %v3814 = vadd.f32 %v3798, 1.0
        %v3815 = vadd.f32 %v3799, 1.0
        %v3816 = vadd.f32 %v3800, 1.0
        %v3817 = vadd.f32 %v3801, 1.0
        %v3818 = vmul.f32 %v3690, %v3802
        %v3819 = vmul.f32 %v3691, %v3803
        %v3820 = vmul.f32 %v3692, %v3804
        %v3821 = vmul.f32 %v3693, %v3805
        %v3822 = vmul.f32 %v3694, %v3806
        %v3823 = vmul.f32 %v3695, %v3807
        %v3824 = vmul.f32 %v3696, %v3808
        %v3825 = vmul.f32 %v3697, %v3809
        %v3826 = vmul.f32 %v3698, %v3810
        %v3827 = vmul.f32 %v3699, %v3811
        %v3828 = vmul.f32 %v3700, %v3812
        %v3829 = vmul.f32 %v3701, %v3813
        %v3830 = vmul.f32 %v3702, %v3814
        %v3831 = vmul.f32 %v3703, %v3815
        %v3832 = vmul.f32 %v3704, %v3816
        %v3833 = vmul.f32 %v3705, %v3817
        %v3834 = vpack.c.bf16 %v3819, %v3818
        %v3835 = vpack.c.bf16 %v3821, %v3820
        %v3836 = vpack.c.bf16 %v3823, %v3822
        %v3837 = vpack.c.bf16 %v3825, %v3824
        %v3838 = vpack.c.bf16 %v3827, %v3826
        %v3839 = vpack.c.bf16 %v3829, %v3828
        %v3840 = vpack.c.bf16 %v3831, %v3830
        %v3841 = vpack.c.bf16 %v3833, %v3832
        %v3842 = vld [vmem:[%s12] sm:$0xf]
        %v3843 = vld [vmem:[%s12 + $0x4] sm:$0xf]
        %v3844 = vld [vmem:[%s12 + $0x8] sm:$0xf]
        %v3845 = vld [vmem:[%s12 + $0xc] sm:$0xf]
        %v3846 = vld [vmem:[%s12 + $0x10] sm:$0xf]
        %v3847 = vld [vmem:[%s12 + $0x14] sm:$0xf]
        %v3848 = vld [vmem:[%s12 + $0x18] sm:$0xf]
        %v3849 = vld [vmem:[%s12 + $0x1c] sm:$0xf]
        %v3850 = vld [vmem:[%s12 + $0x20] sm:$0xf]
        %v3851 = vld [vmem:[%s12 + $0x24] sm:$0xf]
        %v3852 = vld [vmem:[%s12 + $0x28] sm:$0xf]
        %v3853 = vld [vmem:[%s12 + $0x2c] sm:$0xf]
        %v3854 = vld [vmem:[%s12 + $0x30] sm:$0xf]
        %v3855 = vld [vmem:[%s12 + $0x34] sm:$0xf]
        %v3856 = vld [vmem:[%s12 + $0x38] sm:$0xf]
        %v3857 = vld [vmem:[%s12 + $0x3c] sm:$0xf]
        %v3858 = vld [vmem:[%s13] sm:$0x1]
        %v3860 = vperm.slane %v3858, 0
        %v3878 = vunpack.c.l.b16 %v3842
        %v3879 = vunpack.c.l.b16 %v3843
        %v3880 = vunpack.c.l.b16 %v3844
        %v3881 = vunpack.c.l.b16 %v3845
        %v3882 = vunpack.c.l.b16 %v3846
        %v3883 = vunpack.c.l.b16 %v3847
        %v3884 = vunpack.c.l.b16 %v3848
        %v3885 = vunpack.c.l.b16 %v3849
        %v3886 = vunpack.c.l.b16 %v3850
        %v3887 = vunpack.c.l.b16 %v3851
        %v3888 = vunpack.c.l.b16 %v3852
        %v3889 = vunpack.c.l.b16 %v3853
        %v3890 = vunpack.c.l.b16 %v3854
        %v3891 = vunpack.c.l.b16 %v3855
        %v3892 = vunpack.c.l.b16 %v3856
        %v3893 = vunpack.c.l.b16 %v3857
        %v3894 = vpack.c.b16 %v3879, %v3878
        %v3895 = vpack.c.b16 %v3881, %v3880
        %v3896 = vpack.c.b16 %v3883, %v3882
        %v3897 = vpack.c.b16 %v3885, %v3884
        %v3898 = vpack.c.b16 %v3887, %v3886
        %v3899 = vpack.c.b16 %v3889, %v3888
        %v3900 = vpack.c.b16 %v3891, %v3890
        %v3901 = vpack.c.b16 %v3893, %v3892
        %3910 = vmatpush.bf16.msra.mxu0 %v3901
        %3911 = vmatpush.bf16.msra.mxu0 %v3900
        %3912 = vmatpush.bf16.msra.mxu0 %v3899
        %3913 = vmatpush.bf16.msra.mxu0 %v3898
        %3914 = vmatpush.bf16.msra.mxu0 %v3897
        %3915 = vmatpush.bf16.msra.mxu0 %v3896
        %3916 = vmatpush.bf16.msra.mxu0 %v3895
        %3917 = vmatpush.bf16.msra.mxu0 %v3894
        %3918 = vmatmul.bf16.gmra.mxu0 %v3834
        %v3919 = vpop.f32.mrf.mxu0
        %v3920 = vadd.f32 %v3860, %v3919
        %v3921 = vpop.f32.mrf.mxu0
        %v3922 = vadd.f32 %v3860, %v3921
        %3923 = vmatmul.bf16.gmra.mxu0 %v3835
        %v3924 = vpop.f32.mrf.mxu0
        %v3925 = vadd.f32 %v3860, %v3924
        %v3926 = vpop.f32.mrf.mxu0
        %v3927 = vadd.f32 %v3860, %v3926
        %3928 = vmatmul.bf16.gmra.mxu0 %v3836
        %v3929 = vpop.f32.mrf.mxu0
        %v3930 = vadd.f32 %v3860, %v3929
        %v3931 = vpop.f32.mrf.mxu0
        %v3932 = vadd.f32 %v3860, %v3931
        %3933 = vmatmul.bf16.gmra.mxu0 %v3837
        %v3934 = vpop.f32.mrf.mxu0
        %v3935 = vadd.f32 %v3860, %v3934
        %v3936 = vpop.f32.mrf.mxu0
        %v3937 = vadd.f32 %v3860, %v3936
        %3938 = vmatmul.bf16.gmra.mxu0 %v3838
        %v3939 = vpop.f32.mrf.mxu0
        %v3940 = vadd.f32 %v3860, %v3939
        %v3941 = vpop.f32.mrf.mxu0
        %v3942 = vadd.f32 %v3860, %v3941
        %3943 = vmatmul.bf16.gmra.mxu0 %v3839
        %v3944 = vpop.f32.mrf.mxu0
        %v3945 = vadd.f32 %v3860, %v3944
        %v3946 = vpop.f32.mrf.mxu0
        %v3947 = vadd.f32 %v3860, %v3946
        %3948 = vmatmul.bf16.gmra.mxu0 %v3840
        %v3949 = vpop.f32.mrf.mxu0
        %v3950 = vadd.f32 %v3860, %v3949
        %v3951 = vpop.f32.mrf.mxu0
        %v3952 = vadd.f32 %v3860, %v3951
        %3953 = vmatmul.bf16.gmra.mxu0 %v3841
        %v3954 = vpop.f32.mrf.mxu0
        %v3955 = vadd.f32 %v3860, %v3954
        %v3956 = vpop.f32.mrf.mxu0
        %v3957 = vadd.f32 %v3860, %v3956
        %3958 = vdwg.mxu0
        %v3959 = vadd.f32 %v3149, %v3920
        %v3960 = vadd.f32 %v3150, %v3922
        %v3961 = vadd.f32 %v3151, %v3925
        %v3962 = vadd.f32 %v3152, %v3927
        %v3963 = vadd.f32 %v3153, %v3930
        %v3964 = vadd.f32 %v3154, %v3932
        %v3965 = vadd.f32 %v3155, %v3935
        %v3966 = vadd.f32 %v3156, %v3937
        %v3967 = vadd.f32 %v3157, %v3940
        %v3968 = vadd.f32 %v3158, %v3942
        %v3969 = vadd.f32 %v3159, %v3945
        %v3970 = vadd.f32 %v3160, %v3947
        %v3971 = vadd.f32 %v3161, %v3950
        %v3972 = vadd.f32 %v3162, %v3952
        %v3973 = vadd.f32 %v3163, %v3955
        %v3974 = vadd.f32 %v3164, %v3957
        %s3975 = scalar_lea.vmem [#allocation6], 1
        %v3976 = vld [vmem:[%s3975] sm:$0x1]
        %s3977 = scalar_lea.vmem [#allocation8], 1
        %v3978 = vld [vmem:[%s3977] sm:$0x1]
        %v3979 = vsel %vm688, %v3959, 0.0
        %3980 = vadd.xlane.f32.xlu0 %v3979
        %v3981 = vpop.xlane.xlu0 %3980
        %v3982 = vsel %vm688, %v3960, 0.0
        %3983 = vadd.xlane.f32.xlu0 %v3982
        %v3984 = vpop.xlane.xlu0 %3983
        %v3985 = vsel %vm688, %v3961, 0.0
        %3986 = vadd.xlane.f32.xlu0 %v3985
        %v3987 = vpop.xlane.xlu0 %3986
        %v3988 = vsel %vm688, %v3962, 0.0
        %3989 = vadd.xlane.f32.xlu0 %v3988
        %v3990 = vpop.xlane.xlu0 %3989
        %v3991 = vsel %vm688, %v3963, 0.0
        %3992 = vadd.xlane.f32.xlu0 %v3991
        %v3993 = vpop.xlane.xlu0 %3992
        %v3994 = vsel %vm688, %v3964, 0.0
        %3995 = vadd.xlane.f32.xlu0 %v3994
        %v3996 = vpop.xlane.xlu0 %3995
        %v3997 = vsel %vm688, %v3965, 0.0
        %3998 = vadd.xlane.f32.xlu0 %v3997
        %v3999 = vpop.xlane.xlu0 %3998
        %v4000 = vsel %vm688, %v3966, 0.0
        %4001 = vadd.xlane.f32.xlu0 %v4000
        %v4002 = vpop.xlane.xlu0 %4001
        %v4003 = vsel %vm688, %v3967, 0.0
        %4004 = vadd.xlane.f32.xlu0 %v4003
        %v4005 = vpop.xlane.xlu0 %4004
        %v4006 = vsel %vm688, %v3968, 0.0
        %4007 = vadd.xlane.f32.xlu0 %v4006
        %v4008 = vpop.xlane.xlu0 %4007
        %v4009 = vsel %vm688, %v3969, 0.0
        %4010 = vadd.xlane.f32.xlu0 %v4009
        %v4011 = vpop.xlane.xlu0 %4010
        %v4012 = vsel %vm688, %v3970, 0.0
        %4013 = vadd.xlane.f32.xlu0 %v4012
        %v4014 = vpop.xlane.xlu0 %4013
        %v4015 = vsel %vm688, %v3971, 0.0
        %4016 = vadd.xlane.f32.xlu0 %v4015
        %v4017 = vpop.xlane.xlu0 %4016
        %v4018 = vsel %vm688, %v3972, 0.0
        %4019 = vadd.xlane.f32.xlu0 %v4018
        %v4020 = vpop.xlane.xlu0 %4019
        %v4021 = vsel %vm688, %v3973, 0.0
        %4022 = vadd.xlane.f32.xlu0 %v4021
        %v4023 = vpop.xlane.xlu0 %4022
        %v4024 = vsel %vm688, %v3974, 0.0
        %4025 = vadd.xlane.f32.xlu0 %v4024
        %v4026 = vpop.xlane.xlu0 %4025
        %v4027 = vmul.f32 %v3981, %v743
        %v4028 = vmul.f32 %v3984, %v743
        %v4029 = vmul.f32 %v3987, %v743
        %v4030 = vmul.f32 %v3990, %v743
        %v4031 = vmul.f32 %v3993, %v743
        %v4032 = vmul.f32 %v3996, %v743
        %v4033 = vmul.f32 %v3999, %v743
        %v4034 = vmul.f32 %v4002, %v743
        %v4035 = vmul.f32 %v4005, %v743
        %v4036 = vmul.f32 %v4008, %v743
        %v4037 = vmul.f32 %v4011, %v743
        %v4038 = vmul.f32 %v4014, %v743
        %v4039 = vmul.f32 %v4017, %v743
        %v4040 = vmul.f32 %v4020, %v743
        %v4041 = vmul.f32 %v4023, %v743
        %v4042 = vmul.f32 %v4026, %v743
        %v4043 = vmul.f32 %v3959, %v3959
        %v4044 = vmul.f32 %v3960, %v3960
        %v4045 = vmul.f32 %v3961, %v3961
        %v4046 = vmul.f32 %v3962, %v3962
        %v4047 = vmul.f32 %v3963, %v3963
        %v4048 = vmul.f32 %v3964, %v3964
        %v4049 = vmul.f32 %v3965, %v3965
        %v4050 = vmul.f32 %v3966, %v3966
        %v4051 = vmul.f32 %v3967, %v3967
        %v4052 = vmul.f32 %v3968, %v3968
        %v4053 = vmul.f32 %v3969, %v3969
        %v4054 = vmul.f32 %v3970, %v3970
        %v4055 = vmul.f32 %v3971, %v3971
        %v4056 = vmul.f32 %v3972, %v3972
        %v4057 = vmul.f32 %v3973, %v3973
        %v4058 = vmul.f32 %v3974, %v3974
        %v4059 = vsel %vm688, %v4043, 0.0
        %4060 = vadd.xlane.f32.xlu0 %v4059
        %v4061 = vpop.xlane.xlu0 %4060
        %v4062 = vsel %vm688, %v4044, 0.0
        %4063 = vadd.xlane.f32.xlu0 %v4062
        %v4064 = vpop.xlane.xlu0 %4063
        %v4065 = vsel %vm688, %v4045, 0.0
        %4066 = vadd.xlane.f32.xlu0 %v4065
        %v4067 = vpop.xlane.xlu0 %4066
        %v4068 = vsel %vm688, %v4046, 0.0
        %4069 = vadd.xlane.f32.xlu0 %v4068
        %v4070 = vpop.xlane.xlu0 %4069
        %v4071 = vsel %vm688, %v4047, 0.0
        %4072 = vadd.xlane.f32.xlu0 %v4071
        %v4073 = vpop.xlane.xlu0 %4072
        %v4074 = vsel %vm688, %v4048, 0.0
        %4075 = vadd.xlane.f32.xlu0 %v4074
        %v4076 = vpop.xlane.xlu0 %4075
        %v4077 = vsel %vm688, %v4049, 0.0
        %4078 = vadd.xlane.f32.xlu0 %v4077
        %v4079 = vpop.xlane.xlu0 %4078
        %v4080 = vsel %vm688, %v4050, 0.0
        %4081 = vadd.xlane.f32.xlu0 %v4080
        %v4082 = vpop.xlane.xlu0 %4081
        %v4083 = vsel %vm688, %v4051, 0.0
        %4084 = vadd.xlane.f32.xlu0 %v4083
        %v4085 = vpop.xlane.xlu0 %4084
        %v4086 = vsel %vm688, %v4052, 0.0
        %4087 = vadd.xlane.f32.xlu0 %v4086
        %v4088 = vpop.xlane.xlu0 %4087
        %v4089 = vsel %vm688, %v4053, 0.0
        %4090 = vadd.xlane.f32.xlu0 %v4089
        %v4091 = vpop.xlane.xlu0 %4090
        %v4092 = vsel %vm688, %v4054, 0.0
        %4093 = vadd.xlane.f32.xlu0 %v4092
        %v4094 = vpop.xlane.xlu0 %4093
        %v4095 = vsel %vm688, %v4055, 0.0
        %4096 = vadd.xlane.f32.xlu0 %v4095
        %v4097 = vpop.xlane.xlu0 %4096
        %v4098 = vsel %vm688, %v4056, 0.0
        %4099 = vadd.xlane.f32.xlu0 %v4098
        %v4100 = vpop.xlane.xlu0 %4099
        %v4101 = vsel %vm688, %v4057, 0.0
        %4102 = vadd.xlane.f32.xlu0 %v4101
        %v4103 = vpop.xlane.xlu0 %4102
        %v4104 = vsel %vm688, %v4058, 0.0
        %4105 = vadd.xlane.f32.xlu0 %v4104
        %v4106 = vpop.xlane.xlu0 %4105
        %v4107 = vmul.f32 %v4061, %v743
        %v4108 = vmul.f32 %v4064, %v743
        %v4109 = vmul.f32 %v4067, %v743
        %v4110 = vmul.f32 %v4070, %v743
        %v4111 = vmul.f32 %v4073, %v743
        %v4112 = vmul.f32 %v4076, %v743
        %v4113 = vmul.f32 %v4079, %v743
        %v4114 = vmul.f32 %v4082, %v743
        %v4115 = vmul.f32 %v4085, %v743
        %v4116 = vmul.f32 %v4088, %v743
        %v4117 = vmul.f32 %v4091, %v743
        %v4118 = vmul.f32 %v4094, %v743
        %v4119 = vmul.f32 %v4097, %v743
        %v4120 = vmul.f32 %v4100, %v743
        %v4121 = vmul.f32 %v4103, %v743
        %v4122 = vmul.f32 %v4106, %v743
        %v4123 = vmul.f32 %v4027, %v4027
        %v4124 = vmul.f32 %v4028, %v4028
        %v4125 = vmul.f32 %v4029, %v4029
        %v4126 = vmul.f32 %v4030, %v4030
        %v4127 = vmul.f32 %v4031, %v4031
        %v4128 = vmul.f32 %v4032, %v4032
        %v4129 = vmul.f32 %v4033, %v4033
        %v4130 = vmul.f32 %v4034, %v4034
        %v4131 = vmul.f32 %v4035, %v4035
        %v4132 = vmul.f32 %v4036, %v4036
        %v4133 = vmul.f32 %v4037, %v4037
        %v4134 = vmul.f32 %v4038, %v4038
        %v4135 = vmul.f32 %v4039, %v4039
        %v4136 = vmul.f32 %v4040, %v4040
        %v4137 = vmul.f32 %v4041, %v4041
        %v4138 = vmul.f32 %v4042, %v4042
        %v4139 = vsub.f32 %v4107, %v4123
        %v4140 = vsub.f32 %v4108, %v4124
        %v4141 = vsub.f32 %v4109, %v4125
        %v4142 = vsub.f32 %v4110, %v4126
        %v4143 = vsub.f32 %v4111, %v4127
        %v4144 = vsub.f32 %v4112, %v4128
        %v4145 = vsub.f32 %v4113, %v4129
        %v4146 = vsub.f32 %v4114, %v4130
        %v4147 = vsub.f32 %v4115, %v4131
        %v4148 = vsub.f32 %v4116, %v4132
        %v4149 = vsub.f32 %v4117, %v4133
        %v4150 = vsub.f32 %v4118, %v4134
        %v4151 = vsub.f32 %v4119, %v4135
        %v4152 = vsub.f32 %v4120, %v4136
        %v4153 = vsub.f32 %v4121, %v4137
        %v4154 = vsub.f32 %v4122, %v4138
        %v4155 = vsub.f32 %v3959, %v4027
        %v4156 = vsub.f32 %v3960, %v4028
        %v4157 = vsub.f32 %v3961, %v4029
        %v4158 = vsub.f32 %v3962, %v4030
        %v4159 = vsub.f32 %v3963, %v4031
        %v4160 = vsub.f32 %v3964, %v4032
        %v4161 = vsub.f32 %v3965, %v4033
        %v4162 = vsub.f32 %v3966, %v4034
        %v4163 = vsub.f32 %v3967, %v4035
        %v4164 = vsub.f32 %v3968, %v4036
        %v4165 = vsub.f32 %v3969, %v4037
        %v4166 = vsub.f32 %v3970, %v4038
        %v4167 = vsub.f32 %v3971, %v4039
        %v4168 = vsub.f32 %v3972, %v4040
        %v4169 = vsub.f32 %v3973, %v4041
        %v4170 = vsub.f32 %v3974, %v4042
        %v4171 = vadd.f32 %v4139, 1e-05
        %v4172 = vadd.f32 %v4140, 1e-05
        %v4173 = vadd.f32 %v4141, 1e-05
        %v4174 = vadd.f32 %v4142, 1e-05
        %v4175 = vadd.f32 %v4143, 1e-05
        %v4176 = vadd.f32 %v4144, 1e-05
        %v4177 = vadd.f32 %v4145, 1e-05
        %v4178 = vadd.f32 %v4146, 1e-05
        %v4179 = vadd.f32 %v4147, 1e-05
        %v4180 = vadd.f32 %v4148, 1e-05
        %v4181 = vadd.f32 %v4149, 1e-05
        %v4182 = vadd.f32 %v4150, 1e-05
        %v4183 = vadd.f32 %v4151, 1e-05
        %v4184 = vadd.f32 %v4152, 1e-05
        %v4185 = vadd.f32 %v4153, 1e-05
        %v4186 = vadd.f32 %v4154, 1e-05
        %v4187 = vrsqrt.pop %v4171
        %v4188 = vmul.f32 %v4187, %v4171
        %v4189 = vmul.f32 %v4188, %v4187
        %v4190 = vmul.f32 0.5, %v4189
        %v4191 = vsub.f32 1.5, %v4190
        %v4192 = vmul.f32 %v4187, %v4191
        %vm4193 = vweird.f32 %v4171
        %vm4194 = vweird.f32 %v4187
        %vm4195 = vmor %vm4193, %vm4194
        %v4196 = vsel %vm4195, %v4187, %v4192
        %v4197 = vrsqrt.pop %v4172
        %v4198 = vmul.f32 %v4197, %v4172
        %v4199 = vmul.f32 %v4198, %v4197
        %v4200 = vmul.f32 0.5, %v4199
        %v4201 = vsub.f32 1.5, %v4200
        %v4202 = vmul.f32 %v4197, %v4201
        %vm4203 = vweird.f32 %v4172
        %vm4204 = vweird.f32 %v4197
        %vm4205 = vmor %vm4203, %vm4204
        %v4206 = vsel %vm4205, %v4197, %v4202
        %v4207 = vrsqrt.pop %v4173
        %v4208 = vmul.f32 %v4207, %v4173
        %v4209 = vmul.f32 %v4208, %v4207
        %v4210 = vmul.f32 0.5, %v4209
        %v4211 = vsub.f32 1.5, %v4210
        %v4212 = vmul.f32 %v4207, %v4211
        %vm4213 = vweird.f32 %v4173
        %vm4214 = vweird.f32 %v4207
        %vm4215 = vmor %vm4213, %vm4214
        %v4216 = vsel %vm4215, %v4207, %v4212
        %v4217 = vrsqrt.pop %v4174
        %v4218 = vmul.f32 %v4217, %v4174
        %v4219 = vmul.f32 %v4218, %v4217
        %v4220 = vmul.f32 0.5, %v4219
        %v4221 = vsub.f32 1.5, %v4220
        %v4222 = vmul.f32 %v4217, %v4221
        %vm4223 = vweird.f32 %v4174
        %vm4224 = vweird.f32 %v4217
        %vm4225 = vmor %vm4223, %vm4224
        %v4226 = vsel %vm4225, %v4217, %v4222
        %v4227 = vrsqrt.pop %v4175
        %v4228 = vmul.f32 %v4227, %v4175
        %v4229 = vmul.f32 %v4228, %v4227
        %v4230 = vmul.f32 0.5, %v4229
        %v4231 = vsub.f32 1.5, %v4230
        %v4232 = vmul.f32 %v4227, %v4231
        %vm4233 = vweird.f32 %v4175
        %vm4234 = vweird.f32 %v4227
        %vm4235 = vmor %vm4233, %vm4234
        %v4236 = vsel %vm4235, %v4227, %v4232
        %v4237 = vrsqrt.pop %v4176
        %v4238 = vmul.f32 %v4237, %v4176
        %v4239 = vmul.f32 %v4238, %v4237
        %v4240 = vmul.f32 0.5, %v4239
        %v4241 = vsub.f32 1.5, %v4240
        %v4242 = vmul.f32 %v4237, %v4241
        %vm4243 = vweird.f32 %v4176
        %vm4244 = vweird.f32 %v4237
        %vm4245 = vmor %vm4243, %vm4244
        %v4246 = vsel %vm4245, %v4237, %v4242
        %v4247 = vrsqrt.pop %v4177
        %v4248 = vmul.f32 %v4247, %v4177
        %v4249 = vmul.f32 %v4248, %v4247
        %v4250 = vmul.f32 0.5, %v4249
        %v4251 = vsub.f32 1.5, %v4250
        %v4252 = vmul.f32 %v4247, %v4251
        %vm4253 = vweird.f32 %v4177
        %vm4254 = vweird.f32 %v4247
        %vm4255 = vmor %vm4253, %vm4254
        %v4256 = vsel %vm4255, %v4247, %v4252
        %v4257 = vrsqrt.pop %v4178
        %v4258 = vmul.f32 %v4257, %v4178
        %v4259 = vmul.f32 %v4258, %v4257
        %v4260 = vmul.f32 0.5, %v4259
        %v4261 = vsub.f32 1.5, %v4260
        %v4262 = vmul.f32 %v4257, %v4261
        %vm4263 = vweird.f32 %v4178
        %vm4264 = vweird.f32 %v4257
        %vm4265 = vmor %vm4263, %vm4264
        %v4266 = vsel %vm4265, %v4257, %v4262
        %v4267 = vrsqrt.pop %v4179
        %v4268 = vmul.f32 %v4267, %v4179
        %v4269 = vmul.f32 %v4268, %v4267
        %v4270 = vmul.f32 0.5, %v4269
        %v4271 = vsub.f32 1.5, %v4270
        %v4272 = vmul.f32 %v4267, %v4271
        %vm4273 = vweird.f32 %v4179
        %vm4274 = vweird.f32 %v4267
        %vm4275 = vmor %vm4273, %vm4274
        %v4276 = vsel %vm4275, %v4267, %v4272
        %v4277 = vrsqrt.pop %v4180
        %v4278 = vmul.f32 %v4277, %v4180
        %v4279 = vmul.f32 %v4278, %v4277
        %v4280 = vmul.f32 0.5, %v4279
        %v4281 = vsub.f32 1.5, %v4280
        %v4282 = vmul.f32 %v4277, %v4281
        %vm4283 = vweird.f32 %v4180
        %vm4284 = vweird.f32 %v4277
        %vm4285 = vmor %vm4283, %vm4284
        %v4286 = vsel %vm4285, %v4277, %v4282
        %v4287 = vrsqrt.pop %v4181
        %v4288 = vmul.f32 %v4287, %v4181
        %v4289 = vmul.f32 %v4288, %v4287
        %v4290 = vmul.f32 0.5, %v4289
        %v4291 = vsub.f32 1.5, %v4290
        %v4292 = vmul.f32 %v4287, %v4291
        %vm4293 = vweird.f32 %v4181
        %vm4294 = vweird.f32 %v4287
        %vm4295 = vmor %vm4293, %vm4294
        %v4296 = vsel %vm4295, %v4287, %v4292
        %v4297 = vrsqrt.pop %v4182
        %v4298 = vmul.f32 %v4297, %v4182
        %v4299 = vmul.f32 %v4298, %v4297
        %v4300 = vmul.f32 0.5, %v4299
        %v4301 = vsub.f32 1.5, %v4300
        %v4302 = vmul.f32 %v4297, %v4301
        %vm4303 = vweird.f32 %v4182
        %vm4304 = vweird.f32 %v4297
        %vm4305 = vmor %vm4303, %vm4304
        %v4306 = vsel %vm4305, %v4297, %v4302
        %v4307 = vrsqrt.pop %v4183
        %v4308 = vmul.f32 %v4307, %v4183
        %v4309 = vmul.f32 %v4308, %v4307
        %v4310 = vmul.f32 0.5, %v4309
        %v4311 = vsub.f32 1.5, %v4310
        %v4312 = vmul.f32 %v4307, %v4311
        %vm4313 = vweird.f32 %v4183
        %vm4314 = vweird.f32 %v4307
        %vm4315 = vmor %vm4313, %vm4314
        %v4316 = vsel %vm4315, %v4307, %v4312
        %v4317 = vrsqrt.pop %v4184
        %v4318 = vmul.f32 %v4317, %v4184
        %v4319 = vmul.f32 %v4318, %v4317
        %v4320 = vmul.f32 0.5, %v4319
        %v4321 = vsub.f32 1.5, %v4320
        %v4322 = vmul.f32 %v4317, %v4321
        %vm4323 = vweird.f32 %v4184
        %vm4324 = vweird.f32 %v4317
        %vm4325 = vmor %vm4323, %vm4324
        %v4326 = vsel %vm4325, %v4317, %v4322
        %v4327 = vrsqrt.pop %v4185
        %v4328 = vmul.f32 %v4327, %v4185
        %v4329 = vmul.f32 %v4328, %v4327
        %v4330 = vmul.f32 0.5, %v4329
        %v4331 = vsub.f32 1.5, %v4330
        %v4332 = vmul.f32 %v4327, %v4331
        %vm4333 = vweird.f32 %v4185
        %vm4334 = vweird.f32 %v4327
        %vm4335 = vmor %vm4333, %vm4334
        %v4336 = vsel %vm4335, %v4327, %v4332
        %v4337 = vrsqrt.pop %v4186
        %v4338 = vmul.f32 %v4337, %v4186
        %v4339 = vmul.f32 %v4338, %v4337
        %v4340 = vmul.f32 0.5, %v4339
        %v4341 = vsub.f32 1.5, %v4340
        %v4342 = vmul.f32 %v4337, %v4341
        %vm4343 = vweird.f32 %v4186
        %vm4344 = vweird.f32 %v4337
        %vm4345 = vmor %vm4343, %vm4344
        %v4346 = vsel %vm4345, %v4337, %v4342
        %v4347 = vmul.f32 %v4155, %v4196
        %v4348 = vmul.f32 %v4156, %v4206
        %v4349 = vmul.f32 %v4157, %v4216
        %v4350 = vmul.f32 %v4158, %v4226
        %v4351 = vmul.f32 %v4159, %v4236
        %v4352 = vmul.f32 %v4160, %v4246
        %v4353 = vmul.f32 %v4161, %v4256
        %v4354 = vmul.f32 %v4162, %v4266
        %v4355 = vmul.f32 %v4163, %v4276
        %v4356 = vmul.f32 %v4164, %v4286
        %v4357 = vmul.f32 %v4165, %v4296
        %v4358 = vmul.f32 %v4166, %v4306
        %v4359 = vmul.f32 %v4167, %v4316
        %v4360 = vmul.f32 %v4168, %v4326
        %v4361 = vmul.f32 %v4169, %v4336
        %v4362 = vmul.f32 %v4170, %v4346
        %v4364 = vperm.slane %v3976, 0
        %v4366 = vmul.f32 %v4347, %v4364
        %v4367 = vmul.f32 %v4348, %v4364
        %v4368 = vmul.f32 %v4349, %v4364
        %v4369 = vmul.f32 %v4350, %v4364
        %v4370 = vmul.f32 %v4351, %v4364
        %v4371 = vmul.f32 %v4352, %v4364
        %v4372 = vmul.f32 %v4353, %v4364
        %v4373 = vmul.f32 %v4354, %v4364
        %v4374 = vmul.f32 %v4355, %v4364
        %v4375 = vmul.f32 %v4356, %v4364
        %v4376 = vmul.f32 %v4357, %v4364
        %v4377 = vmul.f32 %v4358, %v4364
        %v4378 = vmul.f32 %v4359, %v4364
        %v4379 = vmul.f32 %v4360, %v4364
        %v4380 = vmul.f32 %v4361, %v4364
        %v4381 = vmul.f32 %v4362, %v4364
        %v4383 = vperm.slane %v3978, 0
        %v4385 = vadd.f32 %v4366, %v4383
        %v4386 = vadd.f32 %v4367, %v4383
        %v4387 = vadd.f32 %v4368, %v4383
        %v4388 = vadd.f32 %v4369, %v4383
        %v4389 = vadd.f32 %v4370, %v4383
        %v4390 = vadd.f32 %v4371, %v4383
        %v4391 = vadd.f32 %v4372, %v4383
        %v4392 = vadd.f32 %v4373, %v4383
        %v4393 = vadd.f32 %v4374, %v4383
        %v4394 = vadd.f32 %v4375, %v4383
        %v4395 = vadd.f32 %v4376, %v4383
        %v4396 = vadd.f32 %v4377, %v4383
        %v4397 = vadd.f32 %v4378, %v4383
        %v4398 = vadd.f32 %v4379, %v4383
        %v4399 = vadd.f32 %v4380, %v4383
        %v4400 = vadd.f32 %v4381, %v4383
        %v4401 = vpack.c.bf16 %v4386, %v4385
        %v4402 = vpack.c.bf16 %v4388, %v4387
        %v4403 = vpack.c.bf16 %v4390, %v4389
        %v4404 = vpack.c.bf16 %v4392, %v4391
        %v4405 = vpack.c.bf16 %v4394, %v4393
        %v4406 = vpack.c.bf16 %v4396, %v4395
        %v4407 = vpack.c.bf16 %v4398, %v4397
        %v4408 = vpack.c.bf16 %v4400, %v4399
        %s4409 = scalar_lea.vmem %s6, 16
        %v4410 = vld [vmem:[%s4409] sm:$0xf]
        %v4411 = vld [vmem:[%s4409 + $0x4] sm:$0xf]
        %v4412 = vld [vmem:[%s4409 + $0x8] sm:$0xf]
        %v4413 = vld [vmem:[%s4409 + $0xc] sm:$0xf]
        %s4414 = scalar_lea.vmem %s7, 1
        %v4415 = vld [vmem:[%s4414] sm:$0x1]
        %v4417 = vperm.slane %v4415, 0
        %v4423 = vunpack.c.l.b16 %v4410
        %v4424 = vunpack.c.l.b16 %v4411
        %v4425 = vunpack.c.l.b16 %v4412
        %v4426 = vunpack.c.l.b16 %v4413
        %v4427 = vpack.c.b16 %v4424, %v4423
        %v4428 = vpack.c.b16 %v4426, %v4425
        %v4432 = vsel %vm688, %v4401, 0
        %v4435 = vsel %vm688, %v4402, 0
        %v4438 = vsel %vm688, %v4403, 0
        %v4441 = vsel %vm688, %v4404, 0
        %v4444 = vsel %vm688, %v4405, 0
        %v4447 = vsel %vm688, %v4406, 0
        %v4450 = vsel %vm688, %v4407, 0
        %v4453 = vsel %vm688, %v4408, 0
        %4455 = vmatpush.bf16.msra.mxu0 0
        %4456 = vmatpush.bf16.msra.mxu0 0
        %4457 = vmatpush.bf16.msra.mxu0 0
        %4458 = vmatpush.bf16.msra.mxu0 0
        %4459 = vmatpush.bf16.msra.mxu0 0
        %4460 = vmatpush.bf16.msra.mxu0 0
        %4461 = vmatpush.bf16.msra.mxu0 %v4428
        %4462 = vmatpush.bf16.msra.mxu0 %v4427
        %4463 = vmatmul.bf16.gmra.mxu0 %v4432
        %v4464 = vpop.f32.mrf.mxu0
        %v4465 = vadd.f32 %v4417, %v4464
        %v4466 = vpop.f32.mrf.mxu0
        %v4467 = vadd.f32 %v4417, %v4466
        %4468 = vmatmul.bf16.gmra.mxu0 %v4435
        %v4469 = vpop.f32.mrf.mxu0
        %v4470 = vadd.f32 %v4417, %v4469
        %v4471 = vpop.f32.mrf.mxu0
        %v4472 = vadd.f32 %v4417, %v4471
        %4473 = vmatmul.bf16.gmra.mxu0 %v4438
        %v4474 = vpop.f32.mrf.mxu0
        %v4475 = vadd.f32 %v4417, %v4474
        %v4476 = vpop.f32.mrf.mxu0
        %v4477 = vadd.f32 %v4417, %v4476
        %4478 = vmatmul.bf16.gmra.mxu0 %v4441
        %v4479 = vpop.f32.mrf.mxu0
        %v4480 = vadd.f32 %v4417, %v4479
        %v4481 = vpop.f32.mrf.mxu0
        %v4482 = vadd.f32 %v4417, %v4481
        %4483 = vmatmul.bf16.gmra.mxu0 %v4444
        %v4484 = vpop.f32.mrf.mxu0
        %v4485 = vadd.f32 %v4417, %v4484
        %v4486 = vpop.f32.mrf.mxu0
        %v4487 = vadd.f32 %v4417, %v4486
        %4488 = vmatmul.bf16.gmra.mxu0 %v4447
        %v4489 = vpop.f32.mrf.mxu0
        %v4490 = vadd.f32 %v4417, %v4489
        %v4491 = vpop.f32.mrf.mxu0
        %v4492 = vadd.f32 %v4417, %v4491
        %4493 = vmatmul.bf16.gmra.mxu0 %v4450
        %v4494 = vpop.f32.mrf.mxu0
        %v4495 = vadd.f32 %v4417, %v4494
        %v4496 = vpop.f32.mrf.mxu0
        %v4497 = vadd.f32 %v4417, %v4496
        %4498 = vmatmul.bf16.gmra.mxu0 %v4453
        %v4499 = vpop.f32.mrf.mxu0
        %v4500 = vadd.f32 %v4417, %v4499
        %v4501 = vpop.f32.mrf.mxu0
        %v4502 = vadd.f32 %v4417, %v4501
        %4503 = vdwg.mxu0
        %v4504 = vpack.c.bf16 %v4465, %v4465
        %v4505 = vpack.c.bf16 %v4467, %v4467
        %v4506 = vpack.c.bf16 %v4470, %v4470
        %v4507 = vpack.c.bf16 %v4472, %v4472
        %v4508 = vpack.c.bf16 %v4475, %v4475
        %v4509 = vpack.c.bf16 %v4477, %v4477
        %v4510 = vpack.c.bf16 %v4480, %v4480
        %v4511 = vpack.c.bf16 %v4482, %v4482
        %v4512 = vpack.c.bf16 %v4485, %v4485
        %v4513 = vpack.c.bf16 %v4487, %v4487
        %v4514 = vpack.c.bf16 %v4490, %v4490
        %v4515 = vpack.c.bf16 %v4492, %v4492
        %v4516 = vpack.c.bf16 %v4495, %v4495
        %v4517 = vpack.c.bf16 %v4497, %v4497
        %v4518 = vpack.c.bf16 %v4500, %v4500
        %v4519 = vpack.c.bf16 %v4502, %v4502
        %v4536 = vunpack.c.l.b16 %v4504
        %v4537 = vunpack.c.l.b16 %v4505
        %v4538 = vunpack.c.l.b16 %v4506
        %v4539 = vunpack.c.l.b16 %v4507
        %v4540 = vunpack.c.l.b16 %v4508
        %v4541 = vunpack.c.l.b16 %v4509
        %v4542 = vunpack.c.l.b16 %v4510
        %v4543 = vunpack.c.l.b16 %v4511
        %v4544 = vunpack.c.l.b16 %v4512
        %v4545 = vunpack.c.l.b16 %v4513
        %v4546 = vunpack.c.l.b16 %v4514
        %v4547 = vunpack.c.l.b16 %v4515
        %v4548 = vunpack.c.l.b16 %v4516
        %v4549 = vunpack.c.l.b16 %v4517
        %v4550 = vunpack.c.l.b16 %v4518
        %v4551 = vunpack.c.l.b16 %v4519
        %v4552 = vpack.c.b16 %v4537, %v4536
        %v4553 = vpack.c.b16 %v4539, %v4538
        %v4554 = vpack.c.b16 %v4541, %v4540
        %v4555 = vpack.c.b16 %v4543, %v4542
        %v4556 = vpack.c.b16 %v4545, %v4544
        %v4557 = vpack.c.b16 %v4547, %v4546
        %v4558 = vpack.c.b16 %v4549, %v4548
        %v4559 = vpack.c.b16 %v4551, %v4550
        %4560 = vrot.lane.b32.xlu0 %v4552, 96
        %v4561 = vpop.permute.xlu0 %4560
        %4562 = vrot.lane.b32.xlu0 %v4553, 96
        %v4563 = vpop.permute.xlu0 %4562
        %4564 = vrot.lane.b32.xlu0 %v4554, 96
        %v4565 = vpop.permute.xlu0 %4564
        %4566 = vrot.lane.b32.xlu0 %v4555, 96
        %v4567 = vpop.permute.xlu0 %4566
        %4568 = vrot.lane.b32.xlu0 %v4556, 96
        %v4569 = vpop.permute.xlu0 %4568
        %4570 = vrot.lane.b32.xlu0 %v4557, 96
        %v4571 = vpop.permute.xlu0 %4570
        %4572 = vrot.lane.b32.xlu0 %v4558, 96
        %v4573 = vpop.permute.xlu0 %4572
        %4574 = vrot.lane.b32.xlu0 %v4559, 96
        %v4575 = vpop.permute.xlu0 %4574
        %v4577 = vsel %vm1291, %v4552, 0
        %v4580 = vsel %vm1291, %v4553, 0
        %v4583 = vsel %vm1291, %v4554, 0
        %v4586 = vsel %vm1291, %v4555, 0
        %v4589 = vsel %vm1291, %v4556, 0
        %v4592 = vsel %vm1291, %v4557, 0
        %v4595 = vsel %vm1291, %v4558, 0
        %v4598 = vsel %vm1291, %v4559, 0
        %v4601 = vsel %vm1291, %v4561, 0
        %v4604 = vsel %vm1291, %v4563, 0
        %v4607 = vsel %vm1291, %v4565, 0
        %v4610 = vsel %vm1291, %v4567, 0
        %v4613 = vsel %vm1291, %v4569, 0
        %v4616 = vsel %vm1291, %v4571, 0
        %v4619 = vsel %vm1291, %v4573, 0
        %v4622 = vsel %vm1291, %v4575, 0
        %4624 = vmatpush.bf16.xpose.msra.mxu0 %v4622
        %4625 = vmatpush.bf16.xpose.msra.mxu0 %v4619
        %4626 = vmatpush.bf16.xpose.msra.mxu0 %v4616
        %4627 = vmatpush.bf16.xpose.msra.mxu0 %v4613
        %4628 = vmatpush.bf16.xpose.msra.mxu0 %v4610
        %4629 = vmatpush.bf16.xpose.msra.mxu0 %v4607
        %4630 = vmatpush.bf16.xpose.msra.mxu0 %v4604
        %4631 = vmatpush.bf16.xpose.msra.mxu0 %v4601
        %4632 = vmatmul.bf16.gmra.mxu0 %v4577
        %v4633 = vpop.f32.mrf.mxu0
        %v4634 = vadd.f32 %v670, %v4633
        %v4635 = vpop.f32.mrf.mxu0
        %v4636 = vadd.f32 %v671, %v4635
        %4637 = vmatmul.bf16.gmra.mxu0 %v4580
        %v4638 = vpop.f32.mrf.mxu0
        %v4639 = vadd.f32 %v672, %v4638
        %v4640 = vpop.f32.mrf.mxu0
        %v4641 = vadd.f32 %v673, %v4640
        %4642 = vmatmul.bf16.gmra.mxu0 %v4583
        %v4643 = vpop.f32.mrf.mxu0
        %v4644 = vadd.f32 %v674, %v4643
        %v4645 = vpop.f32.mrf.mxu0
        %v4646 = vadd.f32 %v675, %v4645
        %4647 = vmatmul.bf16.gmra.mxu0 %v4586
        %v4648 = vpop.f32.mrf.mxu0
        %v4649 = vadd.f32 %v676, %v4648
        %v4650 = vpop.f32.mrf.mxu0
        %v4651 = vadd.f32 %v677, %v4650
        %4652 = vmatmul.bf16.gmra.mxu0 %v4589
        %v4653 = vpop.f32.mrf.mxu0
        %v4654 = vadd.f32 %v678, %v4653
        %v4655 = vpop.f32.mrf.mxu0
        %v4656 = vadd.f32 %v679, %v4655
        %4657 = vmatmul.bf16.gmra.mxu0 %v4592
        %v4658 = vpop.f32.mrf.mxu0
        %v4659 = vadd.f32 %v680, %v4658
        %v4660 = vpop.f32.mrf.mxu0
        %v4661 = vadd.f32 %v681, %v4660
        %4662 = vmatmul.bf16.gmra.mxu0 %v4595
        %v4663 = vpop.f32.mrf.mxu0
        %v4664 = vadd.f32 %v682, %v4663
        %v4665 = vpop.f32.mrf.mxu0
        %v4666 = vadd.f32 %v683, %v4665
        %4667 = vmatmul.bf16.gmra.mxu0 %v4598
        %v4668 = vpop.f32.mrf.mxu0
        %v4669 = vadd.f32 %v684, %v4668
        %v4670 = vpop.f32.mrf.mxu0
        %v4671 = vadd.f32 %v685, %v4670
        %4672 = vdwg.mxu0
        %4673 = vmax.xlane.f32.xlu0 %v4634
        %v4674 = vpop.xlane.xlu0 %4673
        %4675 = vmax.xlane.f32.xlu0 %v4636
        %v4676 = vpop.xlane.xlu0 %4675
        %4677 = vmax.xlane.f32.xlu0 %v4639
        %v4678 = vpop.xlane.xlu0 %4677
        %4679 = vmax.xlane.f32.xlu0 %v4641
        %v4680 = vpop.xlane.xlu0 %4679
        %4681 = vmax.xlane.f32.xlu0 %v4644
        %v4682 = vpop.xlane.xlu0 %4681
        %4683 = vmax.xlane.f32.xlu0 %v4646
        %v4684 = vpop.xlane.xlu0 %4683
        %4685 = vmax.xlane.f32.xlu0 %v4649
        %v4686 = vpop.xlane.xlu0 %4685
        %4687 = vmax.xlane.f32.xlu0 %v4651
        %v4688 = vpop.xlane.xlu0 %4687
        %4689 = vmax.xlane.f32.xlu0 %v4654
        %v4690 = vpop.xlane.xlu0 %4689
        %4691 = vmax.xlane.f32.xlu0 %v4656
        %v4692 = vpop.xlane.xlu0 %4691
        %4693 = vmax.xlane.f32.xlu0 %v4659
        %v4694 = vpop.xlane.xlu0 %4693
        %4695 = vmax.xlane.f32.xlu0 %v4661
        %v4696 = vpop.xlane.xlu0 %4695
        %4697 = vmax.xlane.f32.xlu0 %v4664
        %v4698 = vpop.xlane.xlu0 %4697
        %4699 = vmax.xlane.f32.xlu0 %v4666
        %v4700 = vpop.xlane.xlu0 %4699
        %4701 = vmax.xlane.f32.xlu0 %v4669
        %v4702 = vpop.xlane.xlu0 %4701
        %4703 = vmax.xlane.f32.xlu0 %v4671
        %v4704 = vpop.xlane.xlu0 %4703
        %v4705 = vsub.f32 %v4634, %v4674
        %v4706 = vsub.f32 %v4636, %v4676
        %v4707 = vsub.f32 %v4639, %v4678
        %v4708 = vsub.f32 %v4641, %v4680
        %v4709 = vsub.f32 %v4644, %v4682
        %v4710 = vsub.f32 %v4646, %v4684
        %v4711 = vsub.f32 %v4649, %v4686
        %v4712 = vsub.f32 %v4651, %v4688
        %v4713 = vsub.f32 %v4654, %v4690
        %v4714 = vsub.f32 %v4656, %v4692
        %v4715 = vsub.f32 %v4659, %v4694
        %v4716 = vsub.f32 %v4661, %v4696
        %v4717 = vsub.f32 %v4664, %v4698
        %v4718 = vsub.f32 %v4666, %v4700
        %v4719 = vsub.f32 %v4669, %v4702
        %v4720 = vsub.f32 %v4671, %v4704
        %v4721 = vmul.f32 %v4705, 1.442695
        %v4722 = vpow.pop %v4721
        %v4723 = vmul.f32 %v4706, 1.442695
        %v4724 = vpow.pop %v4723
        %v4725 = vmul.f32 %v4707, 1.442695
        %v4726 = vpow.pop %v4725
        %v4727 = vmul.f32 %v4708, 1.442695
        %v4728 = vpow.pop %v4727
        %v4729 = vmul.f32 %v4709, 1.442695
        %v4730 = vpow.pop %v4729
        %v4731 = vmul.f32 %v4710, 1.442695
        %v4732 = vpow.pop %v4731
        %v4733 = vmul.f32 %v4711, 1.442695
        %v4734 = vpow.pop %v4733
        %v4735 = vmul.f32 %v4712, 1.442695
        %v4736 = vpow.pop %v4735
        %v4737 = vmul.f32 %v4713, 1.442695
        %v4738 = vpow.pop %v4737
        %v4739 = vmul.f32 %v4714, 1.442695
        %v4740 = vpow.pop %v4739
        %v4741 = vmul.f32 %v4715, 1.442695
        %v4742 = vpow.pop %v4741
        %v4743 = vmul.f32 %v4716, 1.442695
        %v4744 = vpow.pop %v4743
        %v4745 = vmul.f32 %v4717, 1.442695
        %v4746 = vpow.pop %v4745
        %v4747 = vmul.f32 %v4718, 1.442695
        %v4748 = vpow.pop %v4747
        %v4749 = vmul.f32 %v4719, 1.442695
        %v4750 = vpow.pop %v4749
        %v4751 = vmul.f32 %v4720, 1.442695
        %v4752 = vpow.pop %v4751
        %4753 = vadd.xlane.f32.xlu0 %v4722
        %v4754 = vpop.xlane.xlu0 %4753
        %4755 = vadd.xlane.f32.xlu0 %v4724
        %v4756 = vpop.xlane.xlu0 %4755
        %4757 = vadd.xlane.f32.xlu0 %v4726
        %v4758 = vpop.xlane.xlu0 %4757
        %4759 = vadd.xlane.f32.xlu0 %v4728
        %v4760 = vpop.xlane.xlu0 %4759
        %4761 = vadd.xlane.f32.xlu0 %v4730
        %v4762 = vpop.xlane.xlu0 %4761
        %4763 = vadd.xlane.f32.xlu0 %v4732
        %v4764 = vpop.xlane.xlu0 %4763
        %4765 = vadd.xlane.f32.xlu0 %v4734
        %v4766 = vpop.xlane.xlu0 %4765
        %4767 = vadd.xlane.f32.xlu0 %v4736
        %v4768 = vpop.xlane.xlu0 %4767
        %4769 = vadd.xlane.f32.xlu0 %v4738
        %v4770 = vpop.xlane.xlu0 %4769
        %4771 = vadd.xlane.f32.xlu0 %v4740
        %v4772 = vpop.xlane.xlu0 %4771
        %4773 = vadd.xlane.f32.xlu0 %v4742
        %v4774 = vpop.xlane.xlu0 %4773
        %4775 = vadd.xlane.f32.xlu0 %v4744
        %v4776 = vpop.xlane.xlu0 %4775
        %4777 = vadd.xlane.f32.xlu0 %v4746
        %v4778 = vpop.xlane.xlu0 %4777
        %4779 = vadd.xlane.f32.xlu0 %v4748
        %v4780 = vpop.xlane.xlu0 %4779
        %4781 = vadd.xlane.f32.xlu0 %v4750
        %v4782 = vpop.xlane.xlu0 %4781
        %4783 = vadd.xlane.f32.xlu0 %v4752
        %v4784 = vpop.xlane.xlu0 %4783
        %v4785 = vrcp.pop %v4754
        %v4786 = vrcp.pop %v4756
        %v4787 = vrcp.pop %v4758
        %v4788 = vrcp.pop %v4760
        %v4789 = vrcp.pop %v4762
        %v4790 = vrcp.pop %v4764
        %v4791 = vrcp.pop %v4766
        %v4792 = vrcp.pop %v4768
        %v4793 = vrcp.pop %v4770
        %v4794 = vrcp.pop %v4772
        %v4795 = vrcp.pop %v4774
        %v4796 = vrcp.pop %v4776
        %v4797 = vrcp.pop %v4778
        %v4798 = vrcp.pop %v4780
        %v4799 = vrcp.pop %v4782
        %v4800 = vrcp.pop %v4784
        %v4801 = vmul.f32 %v4722, %v4785
        %v4802 = vmul.f32 %v4724, %v4786
        %v4803 = vmul.f32 %v4726, %v4787
        %v4804 = vmul.f32 %v4728, %v4788
        %v4805 = vmul.f32 %v4730, %v4789
        %v4806 = vmul.f32 %v4732, %v4790
        %v4807 = vmul.f32 %v4734, %v4791
        %v4808 = vmul.f32 %v4736, %v4792
        %v4809 = vmul.f32 %v4738, %v4793
        %v4810 = vmul.f32 %v4740, %v4794
        %v4811 = vmul.f32 %v4742, %v4795
        %v4812 = vmul.f32 %v4744, %v4796
        %v4813 = vmul.f32 %v4746, %v4797
        %v4814 = vmul.f32 %v4748, %v4798
        %v4815 = vmul.f32 %v4750, %v4799
        %v4816 = vmul.f32 %v4752, %v4800
        %v4817 = vpack.c.bf16 %v4802, %v4801
        %v4818 = vpack.c.bf16 %v4804, %v4803
        %v4819 = vpack.c.bf16 %v4806, %v4805
        %v4820 = vpack.c.bf16 %v4808, %v4807
        %v4821 = vpack.c.bf16 %v4810, %v4809
        %v4822 = vpack.c.bf16 %v4812, %v4811
        %v4823 = vpack.c.bf16 %v4814, %v4813
        %v4824 = vpack.c.bf16 %v4816, %v4815
        %4825 = vrot.lane.b32.xlu0 %v4552, 64
        %v4826 = vpop.permute.xlu0 %4825
        %4827 = vrot.lane.b32.xlu0 %v4553, 64
        %v4828 = vpop.permute.xlu0 %4827
        %4829 = vrot.lane.b32.xlu0 %v4554, 64
        %v4830 = vpop.permute.xlu0 %4829
        %4831 = vrot.lane.b32.xlu0 %v4555, 64
        %v4832 = vpop.permute.xlu0 %4831
        %4833 = vrot.lane.b32.xlu0 %v4556, 64
        %v4834 = vpop.permute.xlu0 %4833
        %4835 = vrot.lane.b32.xlu0 %v4557, 64
        %v4836 = vpop.permute.xlu0 %4835
        %4837 = vrot.lane.b32.xlu0 %v4558, 64
        %v4838 = vpop.permute.xlu0 %4837
        %4839 = vrot.lane.b32.xlu0 %v4559, 64
        %v4840 = vpop.permute.xlu0 %4839
        %4849 = vmatpush.bf16.msra.mxu0 %v4840
        %4850 = vmatpush.bf16.msra.mxu0 %v4838
        %4851 = vmatpush.bf16.msra.mxu0 %v4836
        %4852 = vmatpush.bf16.msra.mxu0 %v4834
        %4853 = vmatpush.bf16.msra.mxu0 %v4832
        %4854 = vmatpush.bf16.msra.mxu0 %v4830
        %4855 = vmatpush.bf16.msra.mxu0 %v4828
        %4856 = vmatpush.bf16.msra.mxu0 %v4826
        %4857 = vmatmul.bf16.gmra.mxu0 %v4817
        %v4858 = vpop.f32.mrf.mxu0
        %v4859 = vadd.f32 0.0, %v4858
        %v4860 = vpop.f32.mrf.mxu0
        %v4861 = vadd.f32 0.0, %v4860
        %4862 = vmatmul.bf16.gmra.mxu0 %v4818
        %v4863 = vpop.f32.mrf.mxu0
        %v4864 = vadd.f32 0.0, %v4863
        %v4865 = vpop.f32.mrf.mxu0
        %v4866 = vadd.f32 0.0, %v4865
        %4867 = vmatmul.bf16.gmra.mxu0 %v4819
        %v4868 = vpop.f32.mrf.mxu0
        %v4869 = vadd.f32 0.0, %v4868
        %v4870 = vpop.f32.mrf.mxu0
        %v4871 = vadd.f32 0.0, %v4870
        %4872 = vmatmul.bf16.gmra.mxu0 %v4820
        %v4873 = vpop.f32.mrf.mxu0
        %v4874 = vadd.f32 0.0, %v4873
        %v4875 = vpop.f32.mrf.mxu0
        %v4876 = vadd.f32 0.0, %v4875
        %4877 = vmatmul.bf16.gmra.mxu0 %v4821
        %v4878 = vpop.f32.mrf.mxu0
        %v4879 = vadd.f32 0.0, %v4878
        %v4880 = vpop.f32.mrf.mxu0
        %v4881 = vadd.f32 0.0, %v4880
        %4882 = vmatmul.bf16.gmra.mxu0 %v4822
        %v4883 = vpop.f32.mrf.mxu0
        %v4884 = vadd.f32 0.0, %v4883
        %v4885 = vpop.f32.mrf.mxu0
        %v4886 = vadd.f32 0.0, %v4885
        %4887 = vmatmul.bf16.gmra.mxu0 %v4823
        %v4888 = vpop.f32.mrf.mxu0
        %v4889 = vadd.f32 0.0, %v4888
        %v4890 = vpop.f32.mrf.mxu0
        %v4891 = vadd.f32 0.0, %v4890
        %4892 = vmatmul.bf16.gmra.mxu0 %v4824
        %v4893 = vpop.f32.mrf.mxu0
        %v4894 = vadd.f32 0.0, %v4893
        %v4895 = vpop.f32.mrf.mxu0
        %v4896 = vadd.f32 0.0, %v4895
        %4897 = vdwg.mxu0
        %v4898 = vpack.c.bf16 %v4859, %v4859
        %v4899 = vpack.c.bf16 %v4861, %v4861
        %v4900 = vpack.c.bf16 %v4864, %v4864
        %v4901 = vpack.c.bf16 %v4866, %v4866
        %v4902 = vpack.c.bf16 %v4869, %v4869
        %v4903 = vpack.c.bf16 %v4871, %v4871
        %v4904 = vpack.c.bf16 %v4874, %v4874
        %v4905 = vpack.c.bf16 %v4876, %v4876
        %v4906 = vpack.c.bf16 %v4879, %v4879
        %v4907 = vpack.c.bf16 %v4881, %v4881
        %v4908 = vpack.c.bf16 %v4884, %v4884
        %v4909 = vpack.c.bf16 %v4886, %v4886
        %v4910 = vpack.c.bf16 %v4889, %v4889
        %v4911 = vpack.c.bf16 %v4891, %v4891
        %v4912 = vpack.c.bf16 %v4894, %v4894
        %v4913 = vpack.c.bf16 %v4896, %v4896
        %4914 = vst.msk [vmem:[#allocation2] sm:$0xf] %vm1630, %v4898
        %4915 = vst.msk [vmem:[#allocation2 + $0x4] sm:$0xf] %vm1630, %v4899
        %4916 = vst.msk [vmem:[#allocation2 + $0x8] sm:$0xf] %vm1630, %v4900
        %4917 = vst.msk [vmem:[#allocation2 + $0xc] sm:$0xf] %vm1630, %v4901
        %4918 = vst.msk [vmem:[#allocation2 + $0x10] sm:$0xf] %vm1630, %v4902
        %4919 = vst.msk [vmem:[#allocation2 + $0x14] sm:$0xf] %vm1630, %v4903
        %4920 = vst.msk [vmem:[#allocation2 + $0x18] sm:$0xf] %vm1630, %v4904
        %4921 = vst.msk [vmem:[#allocation2 + $0x1c] sm:$0xf] %vm1630, %v4905
        %4922 = vst.msk [vmem:[#allocation2 + $0x20] sm:$0xf] %vm1630, %v4906
        %4923 = vst.msk [vmem:[#allocation2 + $0x24] sm:$0xf] %vm1630, %v4907
        %4924 = vst.msk [vmem:[#allocation2 + $0x28] sm:$0xf] %vm1630, %v4908
        %4925 = vst.msk [vmem:[#allocation2 + $0x2c] sm:$0xf] %vm1630, %v4909
        %4926 = vst.msk [vmem:[#allocation2 + $0x30] sm:$0xf] %vm1630, %v4910
        %4927 = vst.msk [vmem:[#allocation2 + $0x34] sm:$0xf] %vm1630, %v4911
        %4928 = vst.msk [vmem:[#allocation2 + $0x38] sm:$0xf] %vm1630, %v4912
        %4929 = vst.msk [vmem:[#allocation2 + $0x3c] sm:$0xf] %vm1630, %v4913
        %4930 = vrot.lane.b32.xlu0 %v4552, 120
        %v4931 = vpop.permute.xlu0 %4930
        %4932 = vrot.lane.b32.xlu0 %v4553, 120
        %v4933 = vpop.permute.xlu0 %4932
        %4934 = vrot.lane.b32.xlu0 %v4554, 120
        %v4935 = vpop.permute.xlu0 %4934
        %4936 = vrot.lane.b32.xlu0 %v4555, 120
        %v4937 = vpop.permute.xlu0 %4936
        %4938 = vrot.lane.b32.xlu0 %v4556, 120
        %v4939 = vpop.permute.xlu0 %4938
        %4940 = vrot.lane.b32.xlu0 %v4557, 120
        %v4941 = vpop.permute.xlu0 %4940
        %4942 = vrot.lane.b32.xlu0 %v4558, 120
        %v4943 = vpop.permute.xlu0 %4942
        %4944 = vrot.lane.b32.xlu0 %v4559, 120
        %v4945 = vpop.permute.xlu0 %4944
        %4946 = vrot.lane.b32.xlu0 %v4552, 88
        %v4947 = vpop.permute.xlu0 %4946
        %4948 = vrot.lane.b32.xlu0 %v4553, 88
        %v4949 = vpop.permute.xlu0 %4948
        %4950 = vrot.lane.b32.xlu0 %v4554, 88
        %v4951 = vpop.permute.xlu0 %4950
        %4952 = vrot.lane.b32.xlu0 %v4555, 88
        %v4953 = vpop.permute.xlu0 %4952
        %4954 = vrot.lane.b32.xlu0 %v4556, 88
        %v4955 = vpop.permute.xlu0 %4954
        %4956 = vrot.lane.b32.xlu0 %v4557, 88
        %v4957 = vpop.permute.xlu0 %4956
        %4958 = vrot.lane.b32.xlu0 %v4558, 88
        %v4959 = vpop.permute.xlu0 %4958
        %4960 = vrot.lane.b32.xlu0 %v4559, 88
        %v4961 = vpop.permute.xlu0 %4960
        %v4963 = vsel %vm1291, %v4931, 0
        %v4966 = vsel %vm1291, %v4933, 0
        %v4969 = vsel %vm1291, %v4935, 0
        %v4972 = vsel %vm1291, %v4937, 0
        %v4975 = vsel %vm1291, %v4939, 0
        %v4978 = vsel %vm1291, %v4941, 0
        %v4981 = vsel %vm1291, %v4943, 0
        %v4984 = vsel %vm1291, %v4945, 0
        %v4987 = vsel %vm1291, %v4947, 0
        %v4990 = vsel %vm1291, %v4949, 0
        %v4993 = vsel %vm1291, %v4951, 0
        %v4996 = vsel %vm1291, %v4953, 0
        %v4999 = vsel %vm1291, %v4955, 0
        %v5002 = vsel %vm1291, %v4957, 0
        %v5005 = vsel %vm1291, %v4959, 0
        %v5008 = vsel %vm1291, %v4961, 0
        %5010 = vmatpush.bf16.xpose.msra.mxu0 %v5008
        %5011 = vmatpush.bf16.xpose.msra.mxu0 %v5005
        %5012 = vmatpush.bf16.xpose.msra.mxu0 %v5002
        %5013 = vmatpush.bf16.xpose.msra.mxu0 %v4999
        %5014 = vmatpush.bf16.xpose.msra.mxu0 %v4996
        %5015 = vmatpush.bf16.xpose.msra.mxu0 %v4993
        %5016 = vmatpush.bf16.xpose.msra.mxu0 %v4990
        %5017 = vmatpush.bf16.xpose.msra.mxu0 %v4987
        %5018 = vmatmul.bf16.gmra.mxu0 %v4963
        %v5019 = vpop.f32.mrf.mxu0
        %v5020 = vadd.f32 %v670, %v5019
        %v5021 = vpop.f32.mrf.mxu0
        %v5022 = vadd.f32 %v671, %v5021
        %5023 = vmatmul.bf16.gmra.mxu0 %v4966
        %v5024 = vpop.f32.mrf.mxu0
        %v5025 = vadd.f32 %v672, %v5024
        %v5026 = vpop.f32.mrf.mxu0
        %v5027 = vadd.f32 %v673, %v5026
        %5028 = vmatmul.bf16.gmra.mxu0 %v4969
        %v5029 = vpop.f32.mrf.mxu0
        %v5030 = vadd.f32 %v674, %v5029
        %v5031 = vpop.f32.mrf.mxu0
        %v5032 = vadd.f32 %v675, %v5031
        %5033 = vmatmul.bf16.gmra.mxu0 %v4972
        %v5034 = vpop.f32.mrf.mxu0
        %v5035 = vadd.f32 %v676, %v5034
        %v5036 = vpop.f32.mrf.mxu0
        %v5037 = vadd.f32 %v677, %v5036
        %5038 = vmatmul.bf16.gmra.mxu0 %v4975
        %v5039 = vpop.f32.mrf.mxu0
        %v5040 = vadd.f32 %v678, %v5039
        %v5041 = vpop.f32.mrf.mxu0
        %v5042 = vadd.f32 %v679, %v5041
        %5043 = vmatmul.bf16.gmra.mxu0 %v4978
        %v5044 = vpop.f32.mrf.mxu0
        %v5045 = vadd.f32 %v680, %v5044
        %v5046 = vpop.f32.mrf.mxu0
        %v5047 = vadd.f32 %v681, %v5046
        %5048 = vmatmul.bf16.gmra.mxu0 %v4981
        %v5049 = vpop.f32.mrf.mxu0
        %v5050 = vadd.f32 %v682, %v5049
        %v5051 = vpop.f32.mrf.mxu0
        %v5052 = vadd.f32 %v683, %v5051
        %5053 = vmatmul.bf16.gmra.mxu0 %v4984
        %v5054 = vpop.f32.mrf.mxu0
        %v5055 = vadd.f32 %v684, %v5054
        %v5056 = vpop.f32.mrf.mxu0
        %v5057 = vadd.f32 %v685, %v5056
        %5058 = vdwg.mxu0
        %5059 = vmax.xlane.f32.xlu0 %v5020
        %v5060 = vpop.xlane.xlu0 %5059
        %5061 = vmax.xlane.f32.xlu0 %v5022
        %v5062 = vpop.xlane.xlu0 %5061
        %5063 = vmax.xlane.f32.xlu0 %v5025
        %v5064 = vpop.xlane.xlu0 %5063
        %5065 = vmax.xlane.f32.xlu0 %v5027
        %v5066 = vpop.xlane.xlu0 %5065
        %5067 = vmax.xlane.f32.xlu0 %v5030
        %v5068 = vpop.xlane.xlu0 %5067
        %5069 = vmax.xlane.f32.xlu0 %v5032
        %v5070 = vpop.xlane.xlu0 %5069
        %5071 = vmax.xlane.f32.xlu0 %v5035
        %v5072 = vpop.xlane.xlu0 %5071
        %5073 = vmax.xlane.f32.xlu0 %v5037
        %v5074 = vpop.xlane.xlu0 %5073
        %5075 = vmax.xlane.f32.xlu0 %v5040
        %v5076 = vpop.xlane.xlu0 %5075
        %5077 = vmax.xlane.f32.xlu0 %v5042
        %v5078 = vpop.xlane.xlu0 %5077
        %5079 = vmax.xlane.f32.xlu0 %v5045
        %v5080 = vpop.xlane.xlu0 %5079
        %5081 = vmax.xlane.f32.xlu0 %v5047
        %v5082 = vpop.xlane.xlu0 %5081
        %5083 = vmax.xlane.f32.xlu0 %v5050
        %v5084 = vpop.xlane.xlu0 %5083
        %5085 = vmax.xlane.f32.xlu0 %v5052
        %v5086 = vpop.xlane.xlu0 %5085
        %5087 = vmax.xlane.f32.xlu0 %v5055
        %v5088 = vpop.xlane.xlu0 %5087
        %5089 = vmax.xlane.f32.xlu0 %v5057
        %v5090 = vpop.xlane.xlu0 %5089
        %v5091 = vsub.f32 %v5020, %v5060
        %v5092 = vsub.f32 %v5022, %v5062
        %v5093 = vsub.f32 %v5025, %v5064
        %v5094 = vsub.f32 %v5027, %v5066
        %v5095 = vsub.f32 %v5030, %v5068
        %v5096 = vsub.f32 %v5032, %v5070
        %v5097 = vsub.f32 %v5035, %v5072
        %v5098 = vsub.f32 %v5037, %v5074
        %v5099 = vsub.f32 %v5040, %v5076
        %v5100 = vsub.f32 %v5042, %v5078
        %v5101 = vsub.f32 %v5045, %v5080
        %v5102 = vsub.f32 %v5047, %v5082
        %v5103 = vsub.f32 %v5050, %v5084
        %v5104 = vsub.f32 %v5052, %v5086
        %v5105 = vsub.f32 %v5055, %v5088
        %v5106 = vsub.f32 %v5057, %v5090
        %v5107 = vmul.f32 %v5091, 1.442695
        %v5108 = vpow.pop %v5107
        %v5109 = vmul.f32 %v5092, 1.442695
        %v5110 = vpow.pop %v5109
        %v5111 = vmul.f32 %v5093, 1.442695
        %v5112 = vpow.pop %v5111
        %v5113 = vmul.f32 %v5094, 1.442695
        %v5114 = vpow.pop %v5113
        %v5115 = vmul.f32 %v5095, 1.442695
        %v5116 = vpow.pop %v5115
        %v5117 = vmul.f32 %v5096, 1.442695
        %v5118 = vpow.pop %v5117
        %v5119 = vmul.f32 %v5097, 1.442695
        %v5120 = vpow.pop %v5119
        %v5121 = vmul.f32 %v5098, 1.442695
        %v5122 = vpow.pop %v5121
        %v5123 = vmul.f32 %v5099, 1.442695
        %v5124 = vpow.pop %v5123
        %v5125 = vmul.f32 %v5100, 1.442695
        %v5126 = vpow.pop %v5125
        %v5127 = vmul.f32 %v5101, 1.442695
        %v5128 = vpow.pop %v5127
        %v5129 = vmul.f32 %v5102, 1.442695
        %v5130 = vpow.pop %v5129
        %v5131 = vmul.f32 %v5103, 1.442695
        %v5132 = vpow.pop %v5131
        %v5133 = vmul.f32 %v5104, 1.442695
        %v5134 = vpow.pop %v5133
        %v5135 = vmul.f32 %v5105, 1.442695
        %v5136 = vpow.pop %v5135
        %v5137 = vmul.f32 %v5106, 1.442695
        %v5138 = vpow.pop %v5137
        %5139 = vadd.xlane.f32.xlu0 %v5108
        %v5140 = vpop.xlane.xlu0 %5139
        %5141 = vadd.xlane.f32.xlu0 %v5110
        %v5142 = vpop.xlane.xlu0 %5141
        %5143 = vadd.xlane.f32.xlu0 %v5112
        %v5144 = vpop.xlane.xlu0 %5143
        %5145 = vadd.xlane.f32.xlu0 %v5114
        %v5146 = vpop.xlane.xlu0 %5145
        %5147 = vadd.xlane.f32.xlu0 %v5116
        %v5148 = vpop.xlane.xlu0 %5147
        %5149 = vadd.xlane.f32.xlu0 %v5118
        %v5150 = vpop.xlane.xlu0 %5149
        %5151 = vadd.xlane.f32.xlu0 %v5120
        %v5152 = vpop.xlane.xlu0 %5151
        %5153 = vadd.xlane.f32.xlu0 %v5122
        %v5154 = vpop.xlane.xlu0 %5153
        %5155 = vadd.xlane.f32.xlu0 %v5124
        %v5156 = vpop.xlane.xlu0 %5155
        %5157 = vadd.xlane.f32.xlu0 %v5126
        %v5158 = vpop.xlane.xlu0 %5157
        %5159 = vadd.xlane.f32.xlu0 %v5128
        %v5160 = vpop.xlane.xlu0 %5159
        %5161 = vadd.xlane.f32.xlu0 %v5130
        %v5162 = vpop.xlane.xlu0 %5161
        %5163 = vadd.xlane.f32.xlu0 %v5132
        %v5164 = vpop.xlane.xlu0 %5163
        %5165 = vadd.xlane.f32.xlu0 %v5134
        %v5166 = vpop.xlane.xlu0 %5165
        %5167 = vadd.xlane.f32.xlu0 %v5136
        %v5168 = vpop.xlane.xlu0 %5167
        %5169 = vadd.xlane.f32.xlu0 %v5138
        %v5170 = vpop.xlane.xlu0 %5169
        %v5171 = vrcp.pop %v5140
        %v5172 = vrcp.pop %v5142
        %v5173 = vrcp.pop %v5144
        %v5174 = vrcp.pop %v5146
        %v5175 = vrcp.pop %v5148
        %v5176 = vrcp.pop %v5150
        %v5177 = vrcp.pop %v5152
        %v5178 = vrcp.pop %v5154
        %v5179 = vrcp.pop %v5156
        %v5180 = vrcp.pop %v5158
        %v5181 = vrcp.pop %v5160
        %v5182 = vrcp.pop %v5162
        %v5183 = vrcp.pop %v5164
        %v5184 = vrcp.pop %v5166
        %v5185 = vrcp.pop %v5168
        %v5186 = vrcp.pop %v5170
        %v5187 = vmul.f32 %v5108, %v5171
        %v5188 = vmul.f32 %v5110, %v5172
        %v5189 = vmul.f32 %v5112, %v5173
        %v5190 = vmul.f32 %v5114, %v5174
        %v5191 = vmul.f32 %v5116, %v5175
        %v5192 = vmul.f32 %v5118, %v5176
        %v5193 = vmul.f32 %v5120, %v5177
        %v5194 = vmul.f32 %v5122, %v5178
        %v5195 = vmul.f32 %v5124, %v5179
        %v5196 = vmul.f32 %v5126, %v5180
        %v5197 = vmul.f32 %v5128, %v5181
        %v5198 = vmul.f32 %v5130, %v5182
        %v5199 = vmul.f32 %v5132, %v5183
        %v5200 = vmul.f32 %v5134, %v5184
        %v5201 = vmul.f32 %v5136, %v5185
        %v5202 = vmul.f32 %v5138, %v5186
        %v5203 = vpack.c.bf16 %v5188, %v5187
        %v5204 = vpack.c.bf16 %v5190, %v5189
        %v5205 = vpack.c.bf16 %v5192, %v5191
        %v5206 = vpack.c.bf16 %v5194, %v5193
        %v5207 = vpack.c.bf16 %v5196, %v5195
        %v5208 = vpack.c.bf16 %v5198, %v5197
        %v5209 = vpack.c.bf16 %v5200, %v5199
        %v5210 = vpack.c.bf16 %v5202, %v5201
        %5211 = vrot.lane.b32.xlu0 %v4552, 56
        %v5212 = vpop.permute.xlu0 %5211
        %5213 = vrot.lane.b32.xlu0 %v4553, 56
        %v5214 = vpop.permute.xlu0 %5213
        %5215 = vrot.lane.b32.xlu0 %v4554, 56
        %v5216 = vpop.permute.xlu0 %5215
        %5217 = vrot.lane.b32.xlu0 %v4555, 56
        %v5218 = vpop.permute.xlu0 %5217
        %5219 = vrot.lane.b32.xlu0 %v4556, 56
        %v5220 = vpop.permute.xlu0 %5219
        %5221 = vrot.lane.b32.xlu0 %v4557, 56
        %v5222 = vpop.permute.xlu0 %5221
        %5223 = vrot.lane.b32.xlu0 %v4558, 56
        %v5224 = vpop.permute.xlu0 %5223
        %5225 = vrot.lane.b32.xlu0 %v4559, 56
        %v5226 = vpop.permute.xlu0 %5225
        %5235 = vmatpush.bf16.msra.mxu0 %v5226
        %5236 = vmatpush.bf16.msra.mxu0 %v5224
        %5237 = vmatpush.bf16.msra.mxu0 %v5222
        %5238 = vmatpush.bf16.msra.mxu0 %v5220
        %5239 = vmatpush.bf16.msra.mxu0 %v5218
        %5240 = vmatpush.bf16.msra.mxu0 %v5216
        %5241 = vmatpush.bf16.msra.mxu0 %v5214
        %5242 = vmatpush.bf16.msra.mxu0 %v5212
        %5243 = vmatmul.bf16.gmra.mxu0 %v5203
        %v5244 = vpop.f32.mrf.mxu0
        %v5245 = vadd.f32 0.0, %v5244
        %v5246 = vpop.f32.mrf.mxu0
        %v5247 = vadd.f32 0.0, %v5246
        %5248 = vmatmul.bf16.gmra.mxu0 %v5204
        %v5249 = vpop.f32.mrf.mxu0
        %v5250 = vadd.f32 0.0, %v5249
        %v5251 = vpop.f32.mrf.mxu0
        %v5252 = vadd.f32 0.0, %v5251
        %5253 = vmatmul.bf16.gmra.mxu0 %v5205
        %v5254 = vpop.f32.mrf.mxu0
        %v5255 = vadd.f32 0.0, %v5254
        %v5256 = vpop.f32.mrf.mxu0
        %v5257 = vadd.f32 0.0, %v5256
        %5258 = vmatmul.bf16.gmra.mxu0 %v5206
        %v5259 = vpop.f32.mrf.mxu0
        %v5260 = vadd.f32 0.0, %v5259
        %v5261 = vpop.f32.mrf.mxu0
        %v5262 = vadd.f32 0.0, %v5261
        %5263 = vmatmul.bf16.gmra.mxu0 %v5207
        %v5264 = vpop.f32.mrf.mxu0
        %v5265 = vadd.f32 0.0, %v5264
        %v5266 = vpop.f32.mrf.mxu0
        %v5267 = vadd.f32 0.0, %v5266
        %5268 = vmatmul.bf16.gmra.mxu0 %v5208
        %v5269 = vpop.f32.mrf.mxu0
        %v5270 = vadd.f32 0.0, %v5269
        %v5271 = vpop.f32.mrf.mxu0
        %v5272 = vadd.f32 0.0, %v5271
        %5273 = vmatmul.bf16.gmra.mxu0 %v5209
        %v5274 = vpop.f32.mrf.mxu0
        %v5275 = vadd.f32 0.0, %v5274
        %v5276 = vpop.f32.mrf.mxu0
        %v5277 = vadd.f32 0.0, %v5276
        %5278 = vmatmul.bf16.gmra.mxu0 %v5210
        %v5279 = vpop.f32.mrf.mxu0
        %v5280 = vadd.f32 0.0, %v5279
        %v5281 = vpop.f32.mrf.mxu0
        %v5282 = vadd.f32 0.0, %v5281
        %5283 = vdwg.mxu0
        %v5284 = vpack.c.bf16 %v5245, %v5245
        %v5285 = vpack.c.bf16 %v5247, %v5247
        %v5286 = vpack.c.bf16 %v5250, %v5250
        %v5287 = vpack.c.bf16 %v5252, %v5252
        %v5288 = vpack.c.bf16 %v5255, %v5255
        %v5289 = vpack.c.bf16 %v5257, %v5257
        %v5290 = vpack.c.bf16 %v5260, %v5260
        %v5291 = vpack.c.bf16 %v5262, %v5262
        %v5292 = vpack.c.bf16 %v5265, %v5265
        %v5293 = vpack.c.bf16 %v5267, %v5267
        %v5294 = vpack.c.bf16 %v5270, %v5270
        %v5295 = vpack.c.bf16 %v5272, %v5272
        %v5296 = vpack.c.bf16 %v5275, %v5275
        %v5297 = vpack.c.bf16 %v5277, %v5277
        %v5298 = vpack.c.bf16 %v5280, %v5280
        %v5299 = vpack.c.bf16 %v5282, %v5282
        %5316 = vrot.lane.b32.xlu0 %v5284, 8
        %v5317 = vpop.permute.xlu0 %5316
        %5318 = vrot.lane.b32.xlu0 %v5285, 8
        %v5319 = vpop.permute.xlu0 %5318
        %5320 = vrot.lane.b32.xlu0 %v5286, 8
        %v5321 = vpop.permute.xlu0 %5320
        %5322 = vrot.lane.b32.xlu0 %v5287, 8
        %v5323 = vpop.permute.xlu0 %5322
        %5324 = vrot.lane.b32.xlu0 %v5288, 8
        %v5325 = vpop.permute.xlu0 %5324
        %5326 = vrot.lane.b32.xlu0 %v5289, 8
        %v5327 = vpop.permute.xlu0 %5326
        %5328 = vrot.lane.b32.xlu0 %v5290, 8
        %v5329 = vpop.permute.xlu0 %5328
        %5330 = vrot.lane.b32.xlu0 %v5291, 8
        %v5331 = vpop.permute.xlu0 %5330
        %5332 = vrot.lane.b32.xlu0 %v5292, 8
        %v5333 = vpop.permute.xlu0 %5332
        %5334 = vrot.lane.b32.xlu0 %v5293, 8
        %v5335 = vpop.permute.xlu0 %5334
        %5336 = vrot.lane.b32.xlu0 %v5294, 8
        %v5337 = vpop.permute.xlu0 %5336
        %5338 = vrot.lane.b32.xlu0 %v5295, 8
        %v5339 = vpop.permute.xlu0 %5338
        %5340 = vrot.lane.b32.xlu0 %v5296, 8
        %v5341 = vpop.permute.xlu0 %5340
        %5342 = vrot.lane.b32.xlu0 %v5297, 8
        %v5343 = vpop.permute.xlu0 %5342
        %5344 = vrot.lane.b32.xlu0 %v5298, 8
        %v5345 = vpop.permute.xlu0 %5344
        %5346 = vrot.lane.b32.xlu0 %v5299, 8
        %v5347 = vpop.permute.xlu0 %5346
        %5364 = vst.msk [vmem:[#allocation2] sm:$0xf] %vm2081, %v5317
        %5365 = vst.msk [vmem:[#allocation2 + $0x4] sm:$0xf] %vm2081, %v5319
        %5366 = vst.msk [vmem:[#allocation2 + $0x8] sm:$0xf] %vm2081, %v5321
        %5367 = vst.msk [vmem:[#allocation2 + $0xc] sm:$0xf] %vm2081, %v5323
        %5368 = vst.msk [vmem:[#allocation2 + $0x10] sm:$0xf] %vm2081, %v5325
        %5369 = vst.msk [vmem:[#allocation2 + $0x14] sm:$0xf] %vm2081, %v5327
        %5370 = vst.msk [vmem:[#allocation2 + $0x18] sm:$0xf] %vm2081, %v5329
        %5371 = vst.msk [vmem:[#allocation2 + $0x1c] sm:$0xf] %vm2081, %v5331
        %5372 = vst.msk [vmem:[#allocation2 + $0x20] sm:$0xf] %vm2081, %v5333
        %5373 = vst.msk [vmem:[#allocation2 + $0x24] sm:$0xf] %vm2081, %v5335
        %5374 = vst.msk [vmem:[#allocation2 + $0x28] sm:$0xf] %vm2081, %v5337
        %5375 = vst.msk [vmem:[#allocation2 + $0x2c] sm:$0xf] %vm2081, %v5339
        %5376 = vst.msk [vmem:[#allocation2 + $0x30] sm:$0xf] %vm2081, %v5341
        %5377 = vst.msk [vmem:[#allocation2 + $0x34] sm:$0xf] %vm2081, %v5343
        %5378 = vst.msk [vmem:[#allocation2 + $0x38] sm:$0xf] %vm2081, %v5345
        %5379 = vst.msk [vmem:[#allocation2 + $0x3c] sm:$0xf] %vm2081, %v5347
        %5380 = vrot.lane.b32.xlu0 %v4552, 112
        %v5381 = vpop.permute.xlu0 %5380
        %5382 = vrot.lane.b32.xlu0 %v4553, 112
        %v5383 = vpop.permute.xlu0 %5382
        %5384 = vrot.lane.b32.xlu0 %v4554, 112
        %v5385 = vpop.permute.xlu0 %5384
        %5386 = vrot.lane.b32.xlu0 %v4555, 112
        %v5387 = vpop.permute.xlu0 %5386
        %5388 = vrot.lane.b32.xlu0 %v4556, 112
        %v5389 = vpop.permute.xlu0 %5388
        %5390 = vrot.lane.b32.xlu0 %v4557, 112
        %v5391 = vpop.permute.xlu0 %5390
        %5392 = vrot.lane.b32.xlu0 %v4558, 112
        %v5393 = vpop.permute.xlu0 %5392
        %5394 = vrot.lane.b32.xlu0 %v4559, 112
        %v5395 = vpop.permute.xlu0 %5394
        %5396 = vrot.lane.b32.xlu0 %v4552, 80
        %v5397 = vpop.permute.xlu0 %5396
        %5398 = vrot.lane.b32.xlu0 %v4553, 80
        %v5399 = vpop.permute.xlu0 %5398
        %5400 = vrot.lane.b32.xlu0 %v4554, 80
        %v5401 = vpop.permute.xlu0 %5400
        %5402 = vrot.lane.b32.xlu0 %v4555, 80
        %v5403 = vpop.permute.xlu0 %5402
        %5404 = vrot.lane.b32.xlu0 %v4556, 80
        %v5405 = vpop.permute.xlu0 %5404
        %5406 = vrot.lane.b32.xlu0 %v4557, 80
        %v5407 = vpop.permute.xlu0 %5406
        %5408 = vrot.lane.b32.xlu0 %v4558, 80
        %v5409 = vpop.permute.xlu0 %5408
        %5410 = vrot.lane.b32.xlu0 %v4559, 80
        %v5411 = vpop.permute.xlu0 %5410
        %v5413 = vsel %vm1291, %v5381, 0
        %v5416 = vsel %vm1291, %v5383, 0
        %v5419 = vsel %vm1291, %v5385, 0
        %v5422 = vsel %vm1291, %v5387, 0
        %v5425 = vsel %vm1291, %v5389, 0
        %v5428 = vsel %vm1291, %v5391, 0
        %v5431 = vsel %vm1291, %v5393, 0
        %v5434 = vsel %vm1291, %v5395, 0
        %v5437 = vsel %vm1291, %v5397, 0
        %v5440 = vsel %vm1291, %v5399, 0
        %v5443 = vsel %vm1291, %v5401, 0
        %v5446 = vsel %vm1291, %v5403, 0
        %v5449 = vsel %vm1291, %v5405, 0
        %v5452 = vsel %vm1291, %v5407, 0
        %v5455 = vsel %vm1291, %v5409, 0
        %v5458 = vsel %vm1291, %v5411, 0
        %5460 = vmatpush.bf16.xpose.msra.mxu0 %v5458
        %5461 = vmatpush.bf16.xpose.msra.mxu0 %v5455
        %5462 = vmatpush.bf16.xpose.msra.mxu0 %v5452
        %5463 = vmatpush.bf16.xpose.msra.mxu0 %v5449
        %5464 = vmatpush.bf16.xpose.msra.mxu0 %v5446
        %5465 = vmatpush.bf16.xpose.msra.mxu0 %v5443
        %5466 = vmatpush.bf16.xpose.msra.mxu0 %v5440
        %5467 = vmatpush.bf16.xpose.msra.mxu0 %v5437
        %5468 = vmatmul.bf16.gmra.mxu0 %v5413
        %v5469 = vpop.f32.mrf.mxu0
        %v5470 = vadd.f32 %v670, %v5469
        %v5471 = vpop.f32.mrf.mxu0
        %v5472 = vadd.f32 %v671, %v5471
        %5473 = vmatmul.bf16.gmra.mxu0 %v5416
        %v5474 = vpop.f32.mrf.mxu0
        %v5475 = vadd.f32 %v672, %v5474
        %v5476 = vpop.f32.mrf.mxu0
        %v5477 = vadd.f32 %v673, %v5476
        %5478 = vmatmul.bf16.gmra.mxu0 %v5419
        %v5479 = vpop.f32.mrf.mxu0
        %v5480 = vadd.f32 %v674, %v5479
        %v5481 = vpop.f32.mrf.mxu0
        %v5482 = vadd.f32 %v675, %v5481
        %5483 = vmatmul.bf16.gmra.mxu0 %v5422
        %v5484 = vpop.f32.mrf.mxu0
        %v5485 = vadd.f32 %v676, %v5484
        %v5486 = vpop.f32.mrf.mxu0
        %v5487 = vadd.f32 %v677, %v5486
        %5488 = vmatmul.bf16.gmra.mxu0 %v5425
        %v5489 = vpop.f32.mrf.mxu0
        %v5490 = vadd.f32 %v678, %v5489
        %v5491 = vpop.f32.mrf.mxu0
        %v5492 = vadd.f32 %v679, %v5491
        %5493 = vmatmul.bf16.gmra.mxu0 %v5428
        %v5494 = vpop.f32.mrf.mxu0
        %v5495 = vadd.f32 %v680, %v5494
        %v5496 = vpop.f32.mrf.mxu0
        %v5497 = vadd.f32 %v681, %v5496
        %5498 = vmatmul.bf16.gmra.mxu0 %v5431
        %v5499 = vpop.f32.mrf.mxu0
        %v5500 = vadd.f32 %v682, %v5499
        %v5501 = vpop.f32.mrf.mxu0
        %v5502 = vadd.f32 %v683, %v5501
        %5503 = vmatmul.bf16.gmra.mxu0 %v5434
        %v5504 = vpop.f32.mrf.mxu0
        %v5505 = vadd.f32 %v684, %v5504
        %v5506 = vpop.f32.mrf.mxu0
        %v5507 = vadd.f32 %v685, %v5506
        %5508 = vdwg.mxu0
        %5509 = vmax.xlane.f32.xlu0 %v5470
        %v5510 = vpop.xlane.xlu0 %5509
        %5511 = vmax.xlane.f32.xlu0 %v5472
        %v5512 = vpop.xlane.xlu0 %5511
        %5513 = vmax.xlane.f32.xlu0 %v5475
        %v5514 = vpop.xlane.xlu0 %5513
        %5515 = vmax.xlane.f32.xlu0 %v5477
        %v5516 = vpop.xlane.xlu0 %5515
        %5517 = vmax.xlane.f32.xlu0 %v5480
        %v5518 = vpop.xlane.xlu0 %5517
        %5519 = vmax.xlane.f32.xlu0 %v5482
        %v5520 = vpop.xlane.xlu0 %5519
        %5521 = vmax.xlane.f32.xlu0 %v5485
        %v5522 = vpop.xlane.xlu0 %5521
        %5523 = vmax.xlane.f32.xlu0 %v5487
        %v5524 = vpop.xlane.xlu0 %5523
        %5525 = vmax.xlane.f32.xlu0 %v5490
        %v5526 = vpop.xlane.xlu0 %5525
        %5527 = vmax.xlane.f32.xlu0 %v5492
        %v5528 = vpop.xlane.xlu0 %5527
        %5529 = vmax.xlane.f32.xlu0 %v5495
        %v5530 = vpop.xlane.xlu0 %5529
        %5531 = vmax.xlane.f32.xlu0 %v5497
        %v5532 = vpop.xlane.xlu0 %5531
        %5533 = vmax.xlane.f32.xlu0 %v5500
        %v5534 = vpop.xlane.xlu0 %5533
        %5535 = vmax.xlane.f32.xlu0 %v5502
        %v5536 = vpop.xlane.xlu0 %5535
        %5537 = vmax.xlane.f32.xlu0 %v5505
        %v5538 = vpop.xlane.xlu0 %5537
        %5539 = vmax.xlane.f32.xlu0 %v5507
        %v5540 = vpop.xlane.xlu0 %5539
        %v5541 = vsub.f32 %v5470, %v5510
        %v5542 = vsub.f32 %v5472, %v5512
        %v5543 = vsub.f32 %v5475, %v5514
        %v5544 = vsub.f32 %v5477, %v5516
        %v5545 = vsub.f32 %v5480, %v5518
        %v5546 = vsub.f32 %v5482, %v5520
        %v5547 = vsub.f32 %v5485, %v5522
        %v5548 = vsub.f32 %v5487, %v5524
        %v5549 = vsub.f32 %v5490, %v5526
        %v5550 = vsub.f32 %v5492, %v5528
        %v5551 = vsub.f32 %v5495, %v5530
        %v5552 = vsub.f32 %v5497, %v5532
        %v5553 = vsub.f32 %v5500, %v5534
        %v5554 = vsub.f32 %v5502, %v5536
        %v5555 = vsub.f32 %v5505, %v5538
        %v5556 = vsub.f32 %v5507, %v5540
        %v5557 = vmul.f32 %v5541, 1.442695
        %v5558 = vpow.pop %v5557
        %v5559 = vmul.f32 %v5542, 1.442695
        %v5560 = vpow.pop %v5559
        %v5561 = vmul.f32 %v5543, 1.442695
        %v5562 = vpow.pop %v5561
        %v5563 = vmul.f32 %v5544, 1.442695
        %v5564 = vpow.pop %v5563
        %v5565 = vmul.f32 %v5545, 1.442695
        %v5566 = vpow.pop %v5565
        %v5567 = vmul.f32 %v5546, 1.442695
        %v5568 = vpow.pop %v5567
        %v5569 = vmul.f32 %v5547, 1.442695
        %v5570 = vpow.pop %v5569
        %v5571 = vmul.f32 %v5548, 1.442695
        %v5572 = vpow.pop %v5571
        %v5573 = vmul.f32 %v5549, 1.442695
        %v5574 = vpow.pop %v5573
        %v5575 = vmul.f32 %v5550, 1.442695
        %v5576 = vpow.pop %v5575
        %v5577 = vmul.f32 %v5551, 1.442695
        %v5578 = vpow.pop %v5577
        %v5579 = vmul.f32 %v5552, 1.442695
        %v5580 = vpow.pop %v5579
        %v5581 = vmul.f32 %v5553, 1.442695
        %v5582 = vpow.pop %v5581
        %v5583 = vmul.f32 %v5554, 1.442695
        %v5584 = vpow.pop %v5583
        %v5585 = vmul.f32 %v5555, 1.442695
        %v5586 = vpow.pop %v5585
        %v5587 = vmul.f32 %v5556, 1.442695
        %v5588 = vpow.pop %v5587
        %5589 = vadd.xlane.f32.xlu0 %v5558
        %v5590 = vpop.xlane.xlu0 %5589
        %5591 = vadd.xlane.f32.xlu0 %v5560
        %v5592 = vpop.xlane.xlu0 %5591
        %5593 = vadd.xlane.f32.xlu0 %v5562
        %v5594 = vpop.xlane.xlu0 %5593
        %5595 = vadd.xlane.f32.xlu0 %v5564
        %v5596 = vpop.xlane.xlu0 %5595
        %5597 = vadd.xlane.f32.xlu0 %v5566
        %v5598 = vpop.xlane.xlu0 %5597
        %5599 = vadd.xlane.f32.xlu0 %v5568
        %v5600 = vpop.xlane.xlu0 %5599
        %5601 = vadd.xlane.f32.xlu0 %v5570
        %v5602 = vpop.xlane.xlu0 %5601
        %5603 = vadd.xlane.f32.xlu0 %v5572
        %v5604 = vpop.xlane.xlu0 %5603
        %5605 = vadd.xlane.f32.xlu0 %v5574
        %v5606 = vpop.xlane.xlu0 %5605
        %5607 = vadd.xlane.f32.xlu0 %v5576
        %v5608 = vpop.xlane.xlu0 %5607
        %5609 = vadd.xlane.f32.xlu0 %v5578
        %v5610 = vpop.xlane.xlu0 %5609
        %5611 = vadd.xlane.f32.xlu0 %v5580
        %v5612 = vpop.xlane.xlu0 %5611
        %5613 = vadd.xlane.f32.xlu0 %v5582
        %v5614 = vpop.xlane.xlu0 %5613
        %5615 = vadd.xlane.f32.xlu0 %v5584
        %v5616 = vpop.xlane.xlu0 %5615
        %5617 = vadd.xlane.f32.xlu0 %v5586
        %v5618 = vpop.xlane.xlu0 %5617
        %5619 = vadd.xlane.f32.xlu0 %v5588
        %v5620 = vpop.xlane.xlu0 %5619
        %v5621 = vrcp.pop %v5590
        %v5622 = vrcp.pop %v5592
        %v5623 = vrcp.pop %v5594
        %v5624 = vrcp.pop %v5596
        %v5625 = vrcp.pop %v5598
        %v5626 = vrcp.pop %v5600
        %v5627 = vrcp.pop %v5602
        %v5628 = vrcp.pop %v5604
        %v5629 = vrcp.pop %v5606
        %v5630 = vrcp.pop %v5608
        %v5631 = vrcp.pop %v5610
        %v5632 = vrcp.pop %v5612
        %v5633 = vrcp.pop %v5614
        %v5634 = vrcp.pop %v5616
        %v5635 = vrcp.pop %v5618
        %v5636 = vrcp.pop %v5620
        %v5637 = vmul.f32 %v5558, %v5621
        %v5638 = vmul.f32 %v5560, %v5622
        %v5639 = vmul.f32 %v5562, %v5623
        %v5640 = vmul.f32 %v5564, %v5624
        %v5641 = vmul.f32 %v5566, %v5625
        %v5642 = vmul.f32 %v5568, %v5626
        %v5643 = vmul.f32 %v5570, %v5627
        %v5644 = vmul.f32 %v5572, %v5628
        %v5645 = vmul.f32 %v5574, %v5629
        %v5646 = vmul.f32 %v5576, %v5630
        %v5647 = vmul.f32 %v5578, %v5631
        %v5648 = vmul.f32 %v5580, %v5632
        %v5649 = vmul.f32 %v5582, %v5633
        %v5650 = vmul.f32 %v5584, %v5634
        %v5651 = vmul.f32 %v5586, %v5635
        %v5652 = vmul.f32 %v5588, %v5636
        %v5653 = vpack.c.bf16 %v5638, %v5637
        %v5654 = vpack.c.bf16 %v5640, %v5639
        %v5655 = vpack.c.bf16 %v5642, %v5641
        %v5656 = vpack.c.bf16 %v5644, %v5643
        %v5657 = vpack.c.bf16 %v5646, %v5645
        %v5658 = vpack.c.bf16 %v5648, %v5647
        %v5659 = vpack.c.bf16 %v5650, %v5649
        %v5660 = vpack.c.bf16 %v5652, %v5651
        %5661 = vrot.lane.b32.xlu0 %v4552, 48
        %v5662 = vpop.permute.xlu0 %5661
        %5663 = vrot.lane.b32.xlu0 %v4553, 48
        %v5664 = vpop.permute.xlu0 %5663
        %5665 = vrot.lane.b32.xlu0 %v4554, 48
        %v5666 = vpop.permute.xlu0 %5665
        %5667 = vrot.lane.b32.xlu0 %v4555, 48
        %v5668 = vpop.permute.xlu0 %5667
        %5669 = vrot.lane.b32.xlu0 %v4556, 48
        %v5670 = vpop.permute.xlu0 %5669
        %5671 = vrot.lane.b32.xlu0 %v4557, 48
        %v5672 = vpop.permute.xlu0 %5671
        %5673 = vrot.lane.b32.xlu0 %v4558, 48
        %v5674 = vpop.permute.xlu0 %5673
        %5675 = vrot.lane.b32.xlu0 %v4559, 48
        %v5676 = vpop.permute.xlu0 %5675
        %5685 = vmatpush.bf16.msra.mxu0 %v5676
        %5686 = vmatpush.bf16.msra.mxu0 %v5674
        %5687 = vmatpush.bf16.msra.mxu0 %v5672
        %5688 = vmatpush.bf16.msra.mxu0 %v5670
        %5689 = vmatpush.bf16.msra.mxu0 %v5668
        %5690 = vmatpush.bf16.msra.mxu0 %v5666
        %5691 = vmatpush.bf16.msra.mxu0 %v5664
        %5692 = vmatpush.bf16.msra.mxu0 %v5662
        %5693 = vmatmul.bf16.gmra.mxu0 %v5653
        %v5694 = vpop.f32.mrf.mxu0
        %v5695 = vadd.f32 0.0, %v5694
        %v5696 = vpop.f32.mrf.mxu0
        %v5697 = vadd.f32 0.0, %v5696
        %5698 = vmatmul.bf16.gmra.mxu0 %v5654
        %v5699 = vpop.f32.mrf.mxu0
        %v5700 = vadd.f32 0.0, %v5699
        %v5701 = vpop.f32.mrf.mxu0
        %v5702 = vadd.f32 0.0, %v5701
        %5703 = vmatmul.bf16.gmra.mxu0 %v5655
        %v5704 = vpop.f32.mrf.mxu0
        %v5705 = vadd.f32 0.0, %v5704
        %v5706 = vpop.f32.mrf.mxu0
        %v5707 = vadd.f32 0.0, %v5706
        %5708 = vmatmul.bf16.gmra.mxu0 %v5656
        %v5709 = vpop.f32.mrf.mxu0
        %v5710 = vadd.f32 0.0, %v5709
        %v5711 = vpop.f32.mrf.mxu0
        %v5712 = vadd.f32 0.0, %v5711
        %5713 = vmatmul.bf16.gmra.mxu0 %v5657
        %v5714 = vpop.f32.mrf.mxu0
        %v5715 = vadd.f32 0.0, %v5714
        %v5716 = vpop.f32.mrf.mxu0
        %v5717 = vadd.f32 0.0, %v5716
        %5718 = vmatmul.bf16.gmra.mxu0 %v5658
        %v5719 = vpop.f32.mrf.mxu0
        %v5720 = vadd.f32 0.0, %v5719
        %v5721 = vpop.f32.mrf.mxu0
        %v5722 = vadd.f32 0.0, %v5721
        %5723 = vmatmul.bf16.gmra.mxu0 %v5659
        %v5724 = vpop.f32.mrf.mxu0
        %v5725 = vadd.f32 0.0, %v5724
        %v5726 = vpop.f32.mrf.mxu0
        %v5727 = vadd.f32 0.0, %v5726
        %5728 = vmatmul.bf16.gmra.mxu0 %v5660
        %v5729 = vpop.f32.mrf.mxu0
        %v5730 = vadd.f32 0.0, %v5729
        %v5731 = vpop.f32.mrf.mxu0
        %v5732 = vadd.f32 0.0, %v5731
        %5733 = vdwg.mxu0
        %v5734 = vpack.c.bf16 %v5695, %v5695
        %v5735 = vpack.c.bf16 %v5697, %v5697
        %v5736 = vpack.c.bf16 %v5700, %v5700
        %v5737 = vpack.c.bf16 %v5702, %v5702
        %v5738 = vpack.c.bf16 %v5705, %v5705
        %v5739 = vpack.c.bf16 %v5707, %v5707
        %v5740 = vpack.c.bf16 %v5710, %v5710
        %v5741 = vpack.c.bf16 %v5712, %v5712
        %v5742 = vpack.c.bf16 %v5715, %v5715
        %v5743 = vpack.c.bf16 %v5717, %v5717
        %v5744 = vpack.c.bf16 %v5720, %v5720
        %v5745 = vpack.c.bf16 %v5722, %v5722
        %v5746 = vpack.c.bf16 %v5725, %v5725
        %v5747 = vpack.c.bf16 %v5727, %v5727
        %v5748 = vpack.c.bf16 %v5730, %v5730
        %v5749 = vpack.c.bf16 %v5732, %v5732
        %5766 = vrot.lane.b32.xlu0 %v5734, 16
        %v5767 = vpop.permute.xlu0 %5766
        %5768 = vrot.lane.b32.xlu0 %v5735, 16
        %v5769 = vpop.permute.xlu0 %5768
        %5770 = vrot.lane.b32.xlu0 %v5736, 16
        %v5771 = vpop.permute.xlu0 %5770
        %5772 = vrot.lane.b32.xlu0 %v5737, 16
        %v5773 = vpop.permute.xlu0 %5772
        %5774 = vrot.lane.b32.xlu0 %v5738, 16
        %v5775 = vpop.permute.xlu0 %5774
        %5776 = vrot.lane.b32.xlu0 %v5739, 16
        %v5777 = vpop.permute.xlu0 %5776
        %5778 = vrot.lane.b32.xlu0 %v5740, 16
        %v5779 = vpop.permute.xlu0 %5778
        %5780 = vrot.lane.b32.xlu0 %v5741, 16
        %v5781 = vpop.permute.xlu0 %5780
        %5782 = vrot.lane.b32.xlu0 %v5742, 16
        %v5783 = vpop.permute.xlu0 %5782
        %5784 = vrot.lane.b32.xlu0 %v5743, 16
        %v5785 = vpop.permute.xlu0 %5784
        %5786 = vrot.lane.b32.xlu0 %v5744, 16
        %v5787 = vpop.permute.xlu0 %5786
        %5788 = vrot.lane.b32.xlu0 %v5745, 16
        %v5789 = vpop.permute.xlu0 %5788
        %5790 = vrot.lane.b32.xlu0 %v5746, 16
        %v5791 = vpop.permute.xlu0 %5790
        %5792 = vrot.lane.b32.xlu0 %v5747, 16
        %v5793 = vpop.permute.xlu0 %5792
        %5794 = vrot.lane.b32.xlu0 %v5748, 16
        %v5795 = vpop.permute.xlu0 %5794
        %5796 = vrot.lane.b32.xlu0 %v5749, 16
        %v5797 = vpop.permute.xlu0 %5796
        %5814 = vst.msk [vmem:[#allocation2] sm:$0xf] %vm2532, %v5767
        %5815 = vst.msk [vmem:[#allocation2 + $0x4] sm:$0xf] %vm2532, %v5769
        %5816 = vst.msk [vmem:[#allocation2 + $0x8] sm:$0xf] %vm2532, %v5771
        %5817 = vst.msk [vmem:[#allocation2 + $0xc] sm:$0xf] %vm2532, %v5773
        %5818 = vst.msk [vmem:[#allocation2 + $0x10] sm:$0xf] %vm2532, %v5775
        %5819 = vst.msk [vmem:[#allocation2 + $0x14] sm:$0xf] %vm2532, %v5777
        %5820 = vst.msk [vmem:[#allocation2 + $0x18] sm:$0xf] %vm2532, %v5779
        %5821 = vst.msk [vmem:[#allocation2 + $0x1c] sm:$0xf] %vm2532, %v5781
        %5822 = vst.msk [vmem:[#allocation2 + $0x20] sm:$0xf] %vm2532, %v5783
        %5823 = vst.msk [vmem:[#allocation2 + $0x24] sm:$0xf] %vm2532, %v5785
        %5824 = vst.msk [vmem:[#allocation2 + $0x28] sm:$0xf] %vm2532, %v5787
        %5825 = vst.msk [vmem:[#allocation2 + $0x2c] sm:$0xf] %vm2532, %v5789
        %5826 = vst.msk [vmem:[#allocation2 + $0x30] sm:$0xf] %vm2532, %v5791
        %5827 = vst.msk [vmem:[#allocation2 + $0x34] sm:$0xf] %vm2532, %v5793
        %5828 = vst.msk [vmem:[#allocation2 + $0x38] sm:$0xf] %vm2532, %v5795
        %5829 = vst.msk [vmem:[#allocation2 + $0x3c] sm:$0xf] %vm2532, %v5797
        %5830 = vrot.lane.b32.xlu0 %v4552, 104
        %v5831 = vpop.permute.xlu0 %5830
        %5832 = vrot.lane.b32.xlu0 %v4553, 104
        %v5833 = vpop.permute.xlu0 %5832
        %5834 = vrot.lane.b32.xlu0 %v4554, 104
        %v5835 = vpop.permute.xlu0 %5834
        %5836 = vrot.lane.b32.xlu0 %v4555, 104
        %v5837 = vpop.permute.xlu0 %5836
        %5838 = vrot.lane.b32.xlu0 %v4556, 104
        %v5839 = vpop.permute.xlu0 %5838
        %5840 = vrot.lane.b32.xlu0 %v4557, 104
        %v5841 = vpop.permute.xlu0 %5840
        %5842 = vrot.lane.b32.xlu0 %v4558, 104
        %v5843 = vpop.permute.xlu0 %5842
        %5844 = vrot.lane.b32.xlu0 %v4559, 104
        %v5845 = vpop.permute.xlu0 %5844
        %5846 = vrot.lane.b32.xlu0 %v4552, 72
        %v5847 = vpop.permute.xlu0 %5846
        %5848 = vrot.lane.b32.xlu0 %v4553, 72
        %v5849 = vpop.permute.xlu0 %5848
        %5850 = vrot.lane.b32.xlu0 %v4554, 72
        %v5851 = vpop.permute.xlu0 %5850
        %5852 = vrot.lane.b32.xlu0 %v4555, 72
        %v5853 = vpop.permute.xlu0 %5852
        %5854 = vrot.lane.b32.xlu0 %v4556, 72
        %v5855 = vpop.permute.xlu0 %5854
        %5856 = vrot.lane.b32.xlu0 %v4557, 72
        %v5857 = vpop.permute.xlu0 %5856
        %5858 = vrot.lane.b32.xlu0 %v4558, 72
        %v5859 = vpop.permute.xlu0 %5858
        %5860 = vrot.lane.b32.xlu0 %v4559, 72
        %v5861 = vpop.permute.xlu0 %5860
        %v5863 = vsel %vm1291, %v5831, 0
        %v5866 = vsel %vm1291, %v5833, 0
        %v5869 = vsel %vm1291, %v5835, 0
        %v5872 = vsel %vm1291, %v5837, 0
        %v5875 = vsel %vm1291, %v5839, 0
        %v5878 = vsel %vm1291, %v5841, 0
        %v5881 = vsel %vm1291, %v5843, 0
        %v5884 = vsel %vm1291, %v5845, 0
        %v5887 = vsel %vm1291, %v5847, 0
        %v5890 = vsel %vm1291, %v5849, 0
        %v5893 = vsel %vm1291, %v5851, 0
        %v5896 = vsel %vm1291, %v5853, 0
        %v5899 = vsel %vm1291, %v5855, 0
        %v5902 = vsel %vm1291, %v5857, 0
        %v5905 = vsel %vm1291, %v5859, 0
        %v5908 = vsel %vm1291, %v5861, 0
        %5910 = vmatpush.bf16.xpose.msra.mxu0 %v5908
        %5911 = vmatpush.bf16.xpose.msra.mxu0 %v5905
        %5912 = vmatpush.bf16.xpose.msra.mxu0 %v5902
        %5913 = vmatpush.bf16.xpose.msra.mxu0 %v5899
        %5914 = vmatpush.bf16.xpose.msra.mxu0 %v5896
        %5915 = vmatpush.bf16.xpose.msra.mxu0 %v5893
        %5916 = vmatpush.bf16.xpose.msra.mxu0 %v5890
        %5917 = vmatpush.bf16.xpose.msra.mxu0 %v5887
        %5918 = vmatmul.bf16.gmra.mxu0 %v5863
        %v5919 = vpop.f32.mrf.mxu0
        %v5920 = vadd.f32 %v670, %v5919
        %v5921 = vpop.f32.mrf.mxu0
        %v5922 = vadd.f32 %v671, %v5921
        %5923 = vmatmul.bf16.gmra.mxu0 %v5866
        %v5924 = vpop.f32.mrf.mxu0
        %v5925 = vadd.f32 %v672, %v5924
        %v5926 = vpop.f32.mrf.mxu0
        %v5927 = vadd.f32 %v673, %v5926
        %5928 = vmatmul.bf16.gmra.mxu0 %v5869
        %v5929 = vpop.f32.mrf.mxu0
        %v5930 = vadd.f32 %v674, %v5929
        %v5931 = vpop.f32.mrf.mxu0
        %v5932 = vadd.f32 %v675, %v5931
        %5933 = vmatmul.bf16.gmra.mxu0 %v5872
        %v5934 = vpop.f32.mrf.mxu0
        %v5935 = vadd.f32 %v676, %v5934
        %v5936 = vpop.f32.mrf.mxu0
        %v5937 = vadd.f32 %v677, %v5936
        %5938 = vmatmul.bf16.gmra.mxu0 %v5875
        %v5939 = vpop.f32.mrf.mxu0
        %v5940 = vadd.f32 %v678, %v5939
        %v5941 = vpop.f32.mrf.mxu0
        %v5942 = vadd.f32 %v679, %v5941
        %5943 = vmatmul.bf16.gmra.mxu0 %v5878
        %v5944 = vpop.f32.mrf.mxu0
        %v5945 = vadd.f32 %v680, %v5944
        %v5946 = vpop.f32.mrf.mxu0
        %v5947 = vadd.f32 %v681, %v5946
        %5948 = vmatmul.bf16.gmra.mxu0 %v5881
        %v5949 = vpop.f32.mrf.mxu0
        %v5950 = vadd.f32 %v682, %v5949
        %v5951 = vpop.f32.mrf.mxu0
        %v5952 = vadd.f32 %v683, %v5951
        %5953 = vmatmul.bf16.gmra.mxu0 %v5884
        %v5954 = vpop.f32.mrf.mxu0
        %v5955 = vadd.f32 %v684, %v5954
        %v5956 = vpop.f32.mrf.mxu0
        %v5957 = vadd.f32 %v685, %v5956
        %5958 = vdwg.mxu0
        %5959 = vmax.xlane.f32.xlu0 %v5920
        %v5960 = vpop.xlane.xlu0 %5959
        %5961 = vmax.xlane.f32.xlu0 %v5922
        %v5962 = vpop.xlane.xlu0 %5961
        %5963 = vmax.xlane.f32.xlu0 %v5925
        %v5964 = vpop.xlane.xlu0 %5963
        %5965 = vmax.xlane.f32.xlu0 %v5927
        %v5966 = vpop.xlane.xlu0 %5965
        %5967 = vmax.xlane.f32.xlu0 %v5930
        %v5968 = vpop.xlane.xlu0 %5967
        %5969 = vmax.xlane.f32.xlu0 %v5932
        %v5970 = vpop.xlane.xlu0 %5969
        %5971 = vmax.xlane.f32.xlu0 %v5935
        %v5972 = vpop.xlane.xlu0 %5971
        %5973 = vmax.xlane.f32.xlu0 %v5937
        %v5974 = vpop.xlane.xlu0 %5973
        %5975 = vmax.xlane.f32.xlu0 %v5940
        %v5976 = vpop.xlane.xlu0 %5975
        %5977 = vmax.xlane.f32.xlu0 %v5942
        %v5978 = vpop.xlane.xlu0 %5977
        %5979 = vmax.xlane.f32.xlu0 %v5945
        %v5980 = vpop.xlane.xlu0 %5979
        %5981 = vmax.xlane.f32.xlu0 %v5947
        %v5982 = vpop.xlane.xlu0 %5981
        %5983 = vmax.xlane.f32.xlu0 %v5950
        %v5984 = vpop.xlane.xlu0 %5983
        %5985 = vmax.xlane.f32.xlu0 %v5952
        %v5986 = vpop.xlane.xlu0 %5985
        %5987 = vmax.xlane.f32.xlu0 %v5955
        %v5988 = vpop.xlane.xlu0 %5987
        %5989 = vmax.xlane.f32.xlu0 %v5957
        %v5990 = vpop.xlane.xlu0 %5989
        %v5991 = vsub.f32 %v5920, %v5960
        %v5992 = vsub.f32 %v5922, %v5962
        %v5993 = vsub.f32 %v5925, %v5964
        %v5994 = vsub.f32 %v5927, %v5966
        %v5995 = vsub.f32 %v5930, %v5968
        %v5996 = vsub.f32 %v5932, %v5970
        %v5997 = vsub.f32 %v5935, %v5972
        %v5998 = vsub.f32 %v5937, %v5974
        %v5999 = vsub.f32 %v5940, %v5976
        %v6000 = vsub.f32 %v5942, %v5978
        %v6001 = vsub.f32 %v5945, %v5980
        %v6002 = vsub.f32 %v5947, %v5982
        %v6003 = vsub.f32 %v5950, %v5984
        %v6004 = vsub.f32 %v5952, %v5986
        %v6005 = vsub.f32 %v5955, %v5988
        %v6006 = vsub.f32 %v5957, %v5990
        %v6007 = vmul.f32 %v5991, 1.442695
        %v6008 = vpow.pop %v6007
        %v6009 = vmul.f32 %v5992, 1.442695
        %v6010 = vpow.pop %v6009
        %v6011 = vmul.f32 %v5993, 1.442695
        %v6012 = vpow.pop %v6011
        %v6013 = vmul.f32 %v5994, 1.442695
        %v6014 = vpow.pop %v6013
        %v6015 = vmul.f32 %v5995, 1.442695
        %v6016 = vpow.pop %v6015
        %v6017 = vmul.f32 %v5996, 1.442695
        %v6018 = vpow.pop %v6017
        %v6019 = vmul.f32 %v5997, 1.442695
        %v6020 = vpow.pop %v6019
        %v6021 = vmul.f32 %v5998, 1.442695
        %v6022 = vpow.pop %v6021
        %v6023 = vmul.f32 %v5999, 1.442695
        %v6024 = vpow.pop %v6023
        %v6025 = vmul.f32 %v6000, 1.442695
        %v6026 = vpow.pop %v6025
        %v6027 = vmul.f32 %v6001, 1.442695
        %v6028 = vpow.pop %v6027
        %v6029 = vmul.f32 %v6002, 1.442695
        %v6030 = vpow.pop %v6029
        %v6031 = vmul.f32 %v6003, 1.442695
        %v6032 = vpow.pop %v6031
        %v6033 = vmul.f32 %v6004, 1.442695
        %v6034 = vpow.pop %v6033
        %v6035 = vmul.f32 %v6005, 1.442695
        %v6036 = vpow.pop %v6035
        %v6037 = vmul.f32 %v6006, 1.442695
        %v6038 = vpow.pop %v6037
        %6039 = vadd.xlane.f32.xlu0 %v6008
        %v6040 = vpop.xlane.xlu0 %6039
        %6041 = vadd.xlane.f32.xlu0 %v6010
        %v6042 = vpop.xlane.xlu0 %6041
        %6043 = vadd.xlane.f32.xlu0 %v6012
        %v6044 = vpop.xlane.xlu0 %6043
        %6045 = vadd.xlane.f32.xlu0 %v6014
        %v6046 = vpop.xlane.xlu0 %6045
        %6047 = vadd.xlane.f32.xlu0 %v6016
        %v6048 = vpop.xlane.xlu0 %6047
        %6049 = vadd.xlane.f32.xlu0 %v6018
        %v6050 = vpop.xlane.xlu0 %6049
        %6051 = vadd.xlane.f32.xlu0 %v6020
        %v6052 = vpop.xlane.xlu0 %6051
        %6053 = vadd.xlane.f32.xlu0 %v6022
        %v6054 = vpop.xlane.xlu0 %6053
        %6055 = vadd.xlane.f32.xlu0 %v6024
        %v6056 = vpop.xlane.xlu0 %6055
        %6057 = vadd.xlane.f32.xlu0 %v6026
        %v6058 = vpop.xlane.xlu0 %6057
        %6059 = vadd.xlane.f32.xlu0 %v6028
        %v6060 = vpop.xlane.xlu0 %6059
        %6061 = vadd.xlane.f32.xlu0 %v6030
        %v6062 = vpop.xlane.xlu0 %6061
        %6063 = vadd.xlane.f32.xlu0 %v6032
        %v6064 = vpop.xlane.xlu0 %6063
        %6065 = vadd.xlane.f32.xlu0 %v6034
        %v6066 = vpop.xlane.xlu0 %6065
        %6067 = vadd.xlane.f32.xlu0 %v6036
        %v6068 = vpop.xlane.xlu0 %6067
        %6069 = vadd.xlane.f32.xlu0 %v6038
        %v6070 = vpop.xlane.xlu0 %6069
        %v6071 = vrcp.pop %v6040
        %v6072 = vrcp.pop %v6042
        %v6073 = vrcp.pop %v6044
        %v6074 = vrcp.pop %v6046
        %v6075 = vrcp.pop %v6048
        %v6076 = vrcp.pop %v6050
        %v6077 = vrcp.pop %v6052
        %v6078 = vrcp.pop %v6054
        %v6079 = vrcp.pop %v6056
        %v6080 = vrcp.pop %v6058
        %v6081 = vrcp.pop %v6060
        %v6082 = vrcp.pop %v6062
        %v6083 = vrcp.pop %v6064
        %v6084 = vrcp.pop %v6066
        %v6085 = vrcp.pop %v6068
        %v6086 = vrcp.pop %v6070
        %v6087 = vmul.f32 %v6008, %v6071
        %v6088 = vmul.f32 %v6010, %v6072
        %v6089 = vmul.f32 %v6012, %v6073
        %v6090 = vmul.f32 %v6014, %v6074
        %v6091 = vmul.f32 %v6016, %v6075
        %v6092 = vmul.f32 %v6018, %v6076
        %v6093 = vmul.f32 %v6020, %v6077
        %v6094 = vmul.f32 %v6022, %v6078
        %v6095 = vmul.f32 %v6024, %v6079
        %v6096 = vmul.f32 %v6026, %v6080
        %v6097 = vmul.f32 %v6028, %v6081
        %v6098 = vmul.f32 %v6030, %v6082
        %v6099 = vmul.f32 %v6032, %v6083
        %v6100 = vmul.f32 %v6034, %v6084
        %v6101 = vmul.f32 %v6036, %v6085
        %v6102 = vmul.f32 %v6038, %v6086
        %v6103 = vpack.c.bf16 %v6088, %v6087
        %v6104 = vpack.c.bf16 %v6090, %v6089
        %v6105 = vpack.c.bf16 %v6092, %v6091
        %v6106 = vpack.c.bf16 %v6094, %v6093
        %v6107 = vpack.c.bf16 %v6096, %v6095
        %v6108 = vpack.c.bf16 %v6098, %v6097
        %v6109 = vpack.c.bf16 %v6100, %v6099
        %v6110 = vpack.c.bf16 %v6102, %v6101
        %6111 = vrot.lane.b32.xlu0 %v4552, 40
        %v6112 = vpop.permute.xlu0 %6111
        %6113 = vrot.lane.b32.xlu0 %v4553, 40
        %v6114 = vpop.permute.xlu0 %6113
        %6115 = vrot.lane.b32.xlu0 %v4554, 40
        %v6116 = vpop.permute.xlu0 %6115
        %6117 = vrot.lane.b32.xlu0 %v4555, 40
        %v6118 = vpop.permute.xlu0 %6117
        %6119 = vrot.lane.b32.xlu0 %v4556, 40
        %v6120 = vpop.permute.xlu0 %6119
        %6121 = vrot.lane.b32.xlu0 %v4557, 40
        %v6122 = vpop.permute.xlu0 %6121
        %6123 = vrot.lane.b32.xlu0 %v4558, 40
        %v6124 = vpop.permute.xlu0 %6123
        %6125 = vrot.lane.b32.xlu0 %v4559, 40
        %v6126 = vpop.permute.xlu0 %6125
        %6135 = vmatpush.bf16.msra.mxu0 %v6126
        %6136 = vmatpush.bf16.msra.mxu0 %v6124
        %6137 = vmatpush.bf16.msra.mxu0 %v6122
        %6138 = vmatpush.bf16.msra.mxu0 %v6120
        %6139 = vmatpush.bf16.msra.mxu0 %v6118
        %6140 = vmatpush.bf16.msra.mxu0 %v6116
        %6141 = vmatpush.bf16.msra.mxu0 %v6114
        %6142 = vmatpush.bf16.msra.mxu0 %v6112
        %6143 = vmatmul.bf16.gmra.mxu0 %v6103
        %v6144 = vpop.f32.mrf.mxu0
        %v6145 = vadd.f32 0.0, %v6144
        %v6146 = vpop.f32.mrf.mxu0
        %v6147 = vadd.f32 0.0, %v6146
        %6148 = vmatmul.bf16.gmra.mxu0 %v6104
        %v6149 = vpop.f32.mrf.mxu0
        %v6150 = vadd.f32 0.0, %v6149
        %v6151 = vpop.f32.mrf.mxu0
        %v6152 = vadd.f32 0.0, %v6151
        %6153 = vmatmul.bf16.gmra.mxu0 %v6105
        %v6154 = vpop.f32.mrf.mxu0
        %v6155 = vadd.f32 0.0, %v6154
        %v6156 = vpop.f32.mrf.mxu0
        %v6157 = vadd.f32 0.0, %v6156
        %6158 = vmatmul.bf16.gmra.mxu0 %v6106
        %v6159 = vpop.f32.mrf.mxu0
        %v6160 = vadd.f32 0.0, %v6159
        %v6161 = vpop.f32.mrf.mxu0
        %v6162 = vadd.f32 0.0, %v6161
        %6163 = vmatmul.bf16.gmra.mxu0 %v6107
        %v6164 = vpop.f32.mrf.mxu0
        %v6165 = vadd.f32 0.0, %v6164
        %v6166 = vpop.f32.mrf.mxu0
        %v6167 = vadd.f32 0.0, %v6166
        %6168 = vmatmul.bf16.gmra.mxu0 %v6108
        %v6169 = vpop.f32.mrf.mxu0
        %v6170 = vadd.f32 0.0, %v6169
        %v6171 = vpop.f32.mrf.mxu0
        %v6172 = vadd.f32 0.0, %v6171
        %6173 = vmatmul.bf16.gmra.mxu0 %v6109
        %v6174 = vpop.f32.mrf.mxu0
        %v6175 = vadd.f32 0.0, %v6174
        %v6176 = vpop.f32.mrf.mxu0
        %v6177 = vadd.f32 0.0, %v6176
        %6178 = vmatmul.bf16.gmra.mxu0 %v6110
        %v6179 = vpop.f32.mrf.mxu0
        %v6180 = vadd.f32 0.0, %v6179
        %v6181 = vpop.f32.mrf.mxu0
        %v6182 = vadd.f32 0.0, %v6181
        %6183 = vdwg.mxu0
        %v6184 = vpack.c.bf16 %v6145, %v6145
        %v6185 = vpack.c.bf16 %v6147, %v6147
        %v6186 = vpack.c.bf16 %v6150, %v6150
        %v6187 = vpack.c.bf16 %v6152, %v6152
        %v6188 = vpack.c.bf16 %v6155, %v6155
        %v6189 = vpack.c.bf16 %v6157, %v6157
        %v6190 = vpack.c.bf16 %v6160, %v6160
        %v6191 = vpack.c.bf16 %v6162, %v6162
        %v6192 = vpack.c.bf16 %v6165, %v6165
        %v6193 = vpack.c.bf16 %v6167, %v6167
        %v6194 = vpack.c.bf16 %v6170, %v6170
        %v6195 = vpack.c.bf16 %v6172, %v6172
        %v6196 = vpack.c.bf16 %v6175, %v6175
        %v6197 = vpack.c.bf16 %v6177, %v6177
        %v6198 = vpack.c.bf16 %v6180, %v6180
        %v6199 = vpack.c.bf16 %v6182, %v6182
        %6216 = vrot.lane.b32.xlu0 %v6184, 24
        %v6217 = vpop.permute.xlu0 %6216
        %6218 = vrot.lane.b32.xlu0 %v6185, 24
        %v6219 = vpop.permute.xlu0 %6218
        %6220 = vrot.lane.b32.xlu0 %v6186, 24
        %v6221 = vpop.permute.xlu0 %6220
        %6222 = vrot.lane.b32.xlu0 %v6187, 24
        %v6223 = vpop.permute.xlu0 %6222
        %6224 = vrot.lane.b32.xlu0 %v6188, 24
        %v6225 = vpop.permute.xlu0 %6224
        %6226 = vrot.lane.b32.xlu0 %v6189, 24
        %v6227 = vpop.permute.xlu0 %6226
        %6228 = vrot.lane.b32.xlu0 %v6190, 24
        %v6229 = vpop.permute.xlu0 %6228
        %6230 = vrot.lane.b32.xlu0 %v6191, 24
        %v6231 = vpop.permute.xlu0 %6230
        %6232 = vrot.lane.b32.xlu0 %v6192, 24
        %v6233 = vpop.permute.xlu0 %6232
        %6234 = vrot.lane.b32.xlu0 %v6193, 24
        %v6235 = vpop.permute.xlu0 %6234
        %6236 = vrot.lane.b32.xlu0 %v6194, 24
        %v6237 = vpop.permute.xlu0 %6236
        %6238 = vrot.lane.b32.xlu0 %v6195, 24
        %v6239 = vpop.permute.xlu0 %6238
        %6240 = vrot.lane.b32.xlu0 %v6196, 24
        %v6241 = vpop.permute.xlu0 %6240
        %6242 = vrot.lane.b32.xlu0 %v6197, 24
        %v6243 = vpop.permute.xlu0 %6242
        %6244 = vrot.lane.b32.xlu0 %v6198, 24
        %v6245 = vpop.permute.xlu0 %6244
        %6246 = vrot.lane.b32.xlu0 %v6199, 24
        %v6247 = vpop.permute.xlu0 %6246
        %6264 = vst.msk [vmem:[#allocation2] sm:$0xf] %vm2983, %v6217
        %6265 = vst.msk [vmem:[#allocation2 + $0x4] sm:$0xf] %vm2983, %v6219
        %6266 = vst.msk [vmem:[#allocation2 + $0x8] sm:$0xf] %vm2983, %v6221
        %6267 = vst.msk [vmem:[#allocation2 + $0xc] sm:$0xf] %vm2983, %v6223
        %6268 = vst.msk [vmem:[#allocation2 + $0x10] sm:$0xf] %vm2983, %v6225
        %6269 = vst.msk [vmem:[#allocation2 + $0x14] sm:$0xf] %vm2983, %v6227
        %6270 = vst.msk [vmem:[#allocation2 + $0x18] sm:$0xf] %vm2983, %v6229
        %6271 = vst.msk [vmem:[#allocation2 + $0x1c] sm:$0xf] %vm2983, %v6231
        %6272 = vst.msk [vmem:[#allocation2 + $0x20] sm:$0xf] %vm2983, %v6233
        %6273 = vst.msk [vmem:[#allocation2 + $0x24] sm:$0xf] %vm2983, %v6235
        %6274 = vst.msk [vmem:[#allocation2 + $0x28] sm:$0xf] %vm2983, %v6237
        %6275 = vst.msk [vmem:[#allocation2 + $0x2c] sm:$0xf] %vm2983, %v6239
        %6276 = vst.msk [vmem:[#allocation2 + $0x30] sm:$0xf] %vm2983, %v6241
        %6277 = vst.msk [vmem:[#allocation2 + $0x34] sm:$0xf] %vm2983, %v6243
        %6278 = vst.msk [vmem:[#allocation2 + $0x38] sm:$0xf] %vm2983, %v6245
        %6279 = vst.msk [vmem:[#allocation2 + $0x3c] sm:$0xf] %vm2983, %v6247
        %v6280 = vld [vmem:[#allocation2] sm:$0xf]
        %v6281 = vld [vmem:[#allocation2 + $0x4] sm:$0xf]
        %v6282 = vld [vmem:[#allocation2 + $0x8] sm:$0xf]
        %v6283 = vld [vmem:[#allocation2 + $0xc] sm:$0xf]
        %v6284 = vld [vmem:[#allocation2 + $0x10] sm:$0xf]
        %v6285 = vld [vmem:[#allocation2 + $0x14] sm:$0xf]
        %v6286 = vld [vmem:[#allocation2 + $0x18] sm:$0xf]
        %v6287 = vld [vmem:[#allocation2 + $0x1c] sm:$0xf]
        %v6288 = vld [vmem:[#allocation2 + $0x20] sm:$0xf]
        %v6289 = vld [vmem:[#allocation2 + $0x24] sm:$0xf]
        %v6290 = vld [vmem:[#allocation2 + $0x28] sm:$0xf]
        %v6291 = vld [vmem:[#allocation2 + $0x2c] sm:$0xf]
        %v6292 = vld [vmem:[#allocation2 + $0x30] sm:$0xf]
        %v6293 = vld [vmem:[#allocation2 + $0x34] sm:$0xf]
        %v6294 = vld [vmem:[#allocation2 + $0x38] sm:$0xf]
        %v6295 = vld [vmem:[#allocation2 + $0x3c] sm:$0xf]
        %s6296 = scalar_lea.vmem %s8, 16
        %v6297 = vld [vmem:[%s6296] sm:$0xf]
        %v6298 = vld [vmem:[%s6296 + $0x4] sm:$0xf]
        %v6299 = vld [vmem:[%s6296 + $0x8] sm:$0xf]
        %v6300 = vld [vmem:[%s6296 + $0xc] sm:$0xf]
        %s6301 = scalar_lea.vmem %s9, 1
        %v6302 = vld [vmem:[%s6301] sm:$0x1]
        %v6304 = vperm.slane %v6302, 0
        %v6322 = vunpack.c.l.b16 %v6280
        %v6323 = vunpack.c.l.b16 %v6281
        %v6324 = vunpack.c.l.b16 %v6282
        %v6325 = vunpack.c.l.b16 %v6283
        %v6326 = vunpack.c.l.b16 %v6284
        %v6327 = vunpack.c.l.b16 %v6285
        %v6328 = vunpack.c.l.b16 %v6286
        %v6329 = vunpack.c.l.b16 %v6287
        %v6330 = vunpack.c.l.b16 %v6288
        %v6331 = vunpack.c.l.b16 %v6289
        %v6332 = vunpack.c.l.b16 %v6290
        %v6333 = vunpack.c.l.b16 %v6291
        %v6334 = vunpack.c.l.b16 %v6292
        %v6335 = vunpack.c.l.b16 %v6293
        %v6336 = vunpack.c.l.b16 %v6294
        %v6337 = vunpack.c.l.b16 %v6295
        %v6338 = vpack.c.b16 %v6323, %v6322
        %v6339 = vpack.c.b16 %v6325, %v6324
        %v6340 = vpack.c.b16 %v6327, %v6326
        %v6341 = vpack.c.b16 %v6329, %v6328
        %v6342 = vpack.c.b16 %v6331, %v6330
        %v6343 = vpack.c.b16 %v6333, %v6332
        %v6344 = vpack.c.b16 %v6335, %v6334
        %v6345 = vpack.c.b16 %v6337, %v6336
        %v6350 = vunpack.c.l.b16 %v6297
        %v6351 = vunpack.c.l.b16 %v6298
        %v6352 = vunpack.c.l.b16 %v6299
        %v6353 = vunpack.c.l.b16 %v6300
        %v6354 = vpack.c.b16 %v6351, %v6350
        %v6355 = vpack.c.b16 %v6353, %v6352
        %v6359 = vsel %vm688, %v6338, 0
        %v6362 = vsel %vm688, %v6339, 0
        %v6365 = vsel %vm688, %v6340, 0
        %v6368 = vsel %vm688, %v6341, 0
        %v6371 = vsel %vm688, %v6342, 0
        %v6374 = vsel %vm688, %v6343, 0
        %v6377 = vsel %vm688, %v6344, 0
        %v6380 = vsel %vm688, %v6345, 0
        %6382 = vmatpush.bf16.msra.mxu0 0
        %6383 = vmatpush.bf16.msra.mxu0 0
        %6384 = vmatpush.bf16.msra.mxu0 0
        %6385 = vmatpush.bf16.msra.mxu0 0
        %6386 = vmatpush.bf16.msra.mxu0 0
        %6387 = vmatpush.bf16.msra.mxu0 0
        %6388 = vmatpush.bf16.msra.mxu0 %v6355
        %6389 = vmatpush.bf16.msra.mxu0 %v6354
        %6390 = vmatmul.bf16.gmra.mxu0 %v6359
        %v6391 = vpop.f32.mrf.mxu0
        %v6392 = vadd.f32 %v6304, %v6391
        %v6393 = vpop.f32.mrf.mxu0
        %v6394 = vadd.f32 %v6304, %v6393
        %6395 = vmatmul.bf16.gmra.mxu0 %v6362
        %v6396 = vpop.f32.mrf.mxu0
        %v6397 = vadd.f32 %v6304, %v6396
        %v6398 = vpop.f32.mrf.mxu0
        %v6399 = vadd.f32 %v6304, %v6398
        %6400 = vmatmul.bf16.gmra.mxu0 %v6365
        %v6401 = vpop.f32.mrf.mxu0
        %v6402 = vadd.f32 %v6304, %v6401
        %v6403 = vpop.f32.mrf.mxu0
        %v6404 = vadd.f32 %v6304, %v6403
        %6405 = vmatmul.bf16.gmra.mxu0 %v6368
        %v6406 = vpop.f32.mrf.mxu0
        %v6407 = vadd.f32 %v6304, %v6406
        %v6408 = vpop.f32.mrf.mxu0
        %v6409 = vadd.f32 %v6304, %v6408
        %6410 = vmatmul.bf16.gmra.mxu0 %v6371
        %v6411 = vpop.f32.mrf.mxu0
        %v6412 = vadd.f32 %v6304, %v6411
        %v6413 = vpop.f32.mrf.mxu0
        %v6414 = vadd.f32 %v6304, %v6413
        %6415 = vmatmul.bf16.gmra.mxu0 %v6374
        %v6416 = vpop.f32.mrf.mxu0
        %v6417 = vadd.f32 %v6304, %v6416
        %v6418 = vpop.f32.mrf.mxu0
        %v6419 = vadd.f32 %v6304, %v6418
        %6420 = vmatmul.bf16.gmra.mxu0 %v6377
        %v6421 = vpop.f32.mrf.mxu0
        %v6422 = vadd.f32 %v6304, %v6421
        %v6423 = vpop.f32.mrf.mxu0
        %v6424 = vadd.f32 %v6304, %v6423
        %6425 = vmatmul.bf16.gmra.mxu0 %v6380
        %v6426 = vpop.f32.mrf.mxu0
        %v6427 = vadd.f32 %v6304, %v6426
        %v6428 = vpop.f32.mrf.mxu0
        %v6429 = vadd.f32 %v6304, %v6428
        %6430 = vdwg.mxu0
        %v6431 = vadd.f32 %v3959, %v6392
        %v6432 = vadd.f32 %v3960, %v6394
        %v6433 = vadd.f32 %v3961, %v6397
        %v6434 = vadd.f32 %v3962, %v6399
        %v6435 = vadd.f32 %v3963, %v6402
        %v6436 = vadd.f32 %v3964, %v6404
        %v6437 = vadd.f32 %v3965, %v6407
        %v6438 = vadd.f32 %v3966, %v6409
        %v6439 = vadd.f32 %v3967, %v6412
        %v6440 = vadd.f32 %v3968, %v6414
        %v6441 = vadd.f32 %v3969, %v6417
        %v6442 = vadd.f32 %v3970, %v6419
        %v6443 = vadd.f32 %v3971, %v6422
        %v6444 = vadd.f32 %v3972, %v6424
        %v6445 = vadd.f32 %v3973, %v6427
        %v6446 = vadd.f32 %v3974, %v6429
        %s6447 = scalar_lea.vmem %s4, 1
        %v6448 = vld [vmem:[%s6447] sm:$0x1]
        %s6449 = scalar_lea.vmem [#allocation9], 1
        %v6450 = vld [vmem:[%s6449] sm:$0x1]
        %v6451 = vsel %vm688, %v6431, 0.0
        %6452 = vadd.xlane.f32.xlu0 %v6451
        %v6453 = vpop.xlane.xlu0 %6452
        %v6454 = vsel %vm688, %v6432, 0.0
        %6455 = vadd.xlane.f32.xlu0 %v6454
        %v6456 = vpop.xlane.xlu0 %6455
        %v6457 = vsel %vm688, %v6433, 0.0
        %6458 = vadd.xlane.f32.xlu0 %v6457
        %v6459 = vpop.xlane.xlu0 %6458
        %v6460 = vsel %vm688, %v6434, 0.0
        %6461 = vadd.xlane.f32.xlu0 %v6460
        %v6462 = vpop.xlane.xlu0 %6461
        %v6463 = vsel %vm688, %v6435, 0.0
        %6464 = vadd.xlane.f32.xlu0 %v6463
        %v6465 = vpop.xlane.xlu0 %6464
        %v6466 = vsel %vm688, %v6436, 0.0
        %6467 = vadd.xlane.f32.xlu0 %v6466
        %v6468 = vpop.xlane.xlu0 %6467
        %v6469 = vsel %vm688, %v6437, 0.0
        %6470 = vadd.xlane.f32.xlu0 %v6469
        %v6471 = vpop.xlane.xlu0 %6470
        %v6472 = vsel %vm688, %v6438, 0.0
        %6473 = vadd.xlane.f32.xlu0 %v6472
        %v6474 = vpop.xlane.xlu0 %6473
        %v6475 = vsel %vm688, %v6439, 0.0
        %6476 = vadd.xlane.f32.xlu0 %v6475
        %v6477 = vpop.xlane.xlu0 %6476
        %v6478 = vsel %vm688, %v6440, 0.0
        %6479 = vadd.xlane.f32.xlu0 %v6478
        %v6480 = vpop.xlane.xlu0 %6479
        %v6481 = vsel %vm688, %v6441, 0.0
        %6482 = vadd.xlane.f32.xlu0 %v6481
        %v6483 = vpop.xlane.xlu0 %6482
        %v6484 = vsel %vm688, %v6442, 0.0
        %6485 = vadd.xlane.f32.xlu0 %v6484
        %v6486 = vpop.xlane.xlu0 %6485
        %v6487 = vsel %vm688, %v6443, 0.0
        %6488 = vadd.xlane.f32.xlu0 %v6487
        %v6489 = vpop.xlane.xlu0 %6488
        %v6490 = vsel %vm688, %v6444, 0.0
        %6491 = vadd.xlane.f32.xlu0 %v6490
        %v6492 = vpop.xlane.xlu0 %6491
        %v6493 = vsel %vm688, %v6445, 0.0
        %6494 = vadd.xlane.f32.xlu0 %v6493
        %v6495 = vpop.xlane.xlu0 %6494
        %v6496 = vsel %vm688, %v6446, 0.0
        %6497 = vadd.xlane.f32.xlu0 %v6496
        %v6498 = vpop.xlane.xlu0 %6497
        %v6499 = vmul.f32 %v6453, %v743
        %v6500 = vmul.f32 %v6456, %v743
        %v6501 = vmul.f32 %v6459, %v743
        %v6502 = vmul.f32 %v6462, %v743
        %v6503 = vmul.f32 %v6465, %v743
        %v6504 = vmul.f32 %v6468, %v743
        %v6505 = vmul.f32 %v6471, %v743
        %v6506 = vmul.f32 %v6474, %v743
        %v6507 = vmul.f32 %v6477, %v743
        %v6508 = vmul.f32 %v6480, %v743
        %v6509 = vmul.f32 %v6483, %v743
        %v6510 = vmul.f32 %v6486, %v743
        %v6511 = vmul.f32 %v6489, %v743
        %v6512 = vmul.f32 %v6492, %v743
        %v6513 = vmul.f32 %v6495, %v743
        %v6514 = vmul.f32 %v6498, %v743
        %v6515 = vmul.f32 %v6431, %v6431
        %v6516 = vmul.f32 %v6432, %v6432
        %v6517 = vmul.f32 %v6433, %v6433
        %v6518 = vmul.f32 %v6434, %v6434
        %v6519 = vmul.f32 %v6435, %v6435
        %v6520 = vmul.f32 %v6436, %v6436
        %v6521 = vmul.f32 %v6437, %v6437
        %v6522 = vmul.f32 %v6438, %v6438
        %v6523 = vmul.f32 %v6439, %v6439
        %v6524 = vmul.f32 %v6440, %v6440
        %v6525 = vmul.f32 %v6441, %v6441
        %v6526 = vmul.f32 %v6442, %v6442
        %v6527 = vmul.f32 %v6443, %v6443
        %v6528 = vmul.f32 %v6444, %v6444
        %v6529 = vmul.f32 %v6445, %v6445
        %v6530 = vmul.f32 %v6446, %v6446
        %v6531 = vsel %vm688, %v6515, 0.0
        %6532 = vadd.xlane.f32.xlu0 %v6531
        %v6533 = vpop.xlane.xlu0 %6532
        %v6534 = vsel %vm688, %v6516, 0.0
        %6535 = vadd.xlane.f32.xlu0 %v6534
        %v6536 = vpop.xlane.xlu0 %6535
        %v6537 = vsel %vm688, %v6517, 0.0
        %6538 = vadd.xlane.f32.xlu0 %v6537
        %v6539 = vpop.xlane.xlu0 %6538
        %v6540 = vsel %vm688, %v6518, 0.0
        %6541 = vadd.xlane.f32.xlu0 %v6540
        %v6542 = vpop.xlane.xlu0 %6541
        %v6543 = vsel %vm688, %v6519, 0.0
        %6544 = vadd.xlane.f32.xlu0 %v6543
        %v6545 = vpop.xlane.xlu0 %6544
        %v6546 = vsel %vm688, %v6520, 0.0
        %6547 = vadd.xlane.f32.xlu0 %v6546
        %v6548 = vpop.xlane.xlu0 %6547
        %v6549 = vsel %vm688, %v6521, 0.0
        %6550 = vadd.xlane.f32.xlu0 %v6549
        %v6551 = vpop.xlane.xlu0 %6550
        %v6552 = vsel %vm688, %v6522, 0.0
        %6553 = vadd.xlane.f32.xlu0 %v6552
        %v6554 = vpop.xlane.xlu0 %6553
        %v6555 = vsel %vm688, %v6523, 0.0
        %6556 = vadd.xlane.f32.xlu0 %v6555
        %v6557 = vpop.xlane.xlu0 %6556
        %v6558 = vsel %vm688, %v6524, 0.0
        %6559 = vadd.xlane.f32.xlu0 %v6558
        %v6560 = vpop.xlane.xlu0 %6559
        %v6561 = vsel %vm688, %v6525, 0.0
        %6562 = vadd.xlane.f32.xlu0 %v6561
        %v6563 = vpop.xlane.xlu0 %6562
        %v6564 = vsel %vm688, %v6526, 0.0
        %6565 = vadd.xlane.f32.xlu0 %v6564
        %v6566 = vpop.xlane.xlu0 %6565
        %v6567 = vsel %vm688, %v6527, 0.0
        %6568 = vadd.xlane.f32.xlu0 %v6567
        %v6569 = vpop.xlane.xlu0 %6568
        %v6570 = vsel %vm688, %v6528, 0.0
        %6571 = vadd.xlane.f32.xlu0 %v6570
        %v6572 = vpop.xlane.xlu0 %6571
        %v6573 = vsel %vm688, %v6529, 0.0
        %6574 = vadd.xlane.f32.xlu0 %v6573
        %v6575 = vpop.xlane.xlu0 %6574
        %v6576 = vsel %vm688, %v6530, 0.0
        %6577 = vadd.xlane.f32.xlu0 %v6576
        %v6578 = vpop.xlane.xlu0 %6577
        %v6579 = vmul.f32 %v6533, %v743
        %v6580 = vmul.f32 %v6536, %v743
        %v6581 = vmul.f32 %v6539, %v743
        %v6582 = vmul.f32 %v6542, %v743
        %v6583 = vmul.f32 %v6545, %v743
        %v6584 = vmul.f32 %v6548, %v743
        %v6585 = vmul.f32 %v6551, %v743
        %v6586 = vmul.f32 %v6554, %v743
        %v6587 = vmul.f32 %v6557, %v743
        %v6588 = vmul.f32 %v6560, %v743
        %v6589 = vmul.f32 %v6563, %v743
        %v6590 = vmul.f32 %v6566, %v743
        %v6591 = vmul.f32 %v6569, %v743
        %v6592 = vmul.f32 %v6572, %v743
        %v6593 = vmul.f32 %v6575, %v743
        %v6594 = vmul.f32 %v6578, %v743
        %v6595 = vmul.f32 %v6499, %v6499
        %v6596 = vmul.f32 %v6500, %v6500
        %v6597 = vmul.f32 %v6501, %v6501
        %v6598 = vmul.f32 %v6502, %v6502
        %v6599 = vmul.f32 %v6503, %v6503
        %v6600 = vmul.f32 %v6504, %v6504
        %v6601 = vmul.f32 %v6505, %v6505
        %v6602 = vmul.f32 %v6506, %v6506
        %v6603 = vmul.f32 %v6507, %v6507
        %v6604 = vmul.f32 %v6508, %v6508
        %v6605 = vmul.f32 %v6509, %v6509
        %v6606 = vmul.f32 %v6510, %v6510
        %v6607 = vmul.f32 %v6511, %v6511
        %v6608 = vmul.f32 %v6512, %v6512
        %v6609 = vmul.f32 %v6513, %v6513
        %v6610 = vmul.f32 %v6514, %v6514
        %v6611 = vsub.f32 %v6579, %v6595
        %v6612 = vsub.f32 %v6580, %v6596
        %v6613 = vsub.f32 %v6581, %v6597
        %v6614 = vsub.f32 %v6582, %v6598
        %v6615 = vsub.f32 %v6583, %v6599
        %v6616 = vsub.f32 %v6584, %v6600
        %v6617 = vsub.f32 %v6585, %v6601
        %v6618 = vsub.f32 %v6586, %v6602
        %v6619 = vsub.f32 %v6587, %v6603
        %v6620 = vsub.f32 %v6588, %v6604
        %v6621 = vsub.f32 %v6589, %v6605
        %v6622 = vsub.f32 %v6590, %v6606
        %v6623 = vsub.f32 %v6591, %v6607
        %v6624 = vsub.f32 %v6592, %v6608
        %v6625 = vsub.f32 %v6593, %v6609
        %v6626 = vsub.f32 %v6594, %v6610
        %v6627 = vsub.f32 %v6431, %v6499
        %v6628 = vsub.f32 %v6432, %v6500
        %v6629 = vsub.f32 %v6433, %v6501
        %v6630 = vsub.f32 %v6434, %v6502
        %v6631 = vsub.f32 %v6435, %v6503
        %v6632 = vsub.f32 %v6436, %v6504
        %v6633 = vsub.f32 %v6437, %v6505
        %v6634 = vsub.f32 %v6438, %v6506
        %v6635 = vsub.f32 %v6439, %v6507
        %v6636 = vsub.f32 %v6440, %v6508
        %v6637 = vsub.f32 %v6441, %v6509
        %v6638 = vsub.f32 %v6442, %v6510
        %v6639 = vsub.f32 %v6443, %v6511
        %v6640 = vsub.f32 %v6444, %v6512
        %v6641 = vsub.f32 %v6445, %v6513
        %v6642 = vsub.f32 %v6446, %v6514
        %v6643 = vadd.f32 %v6611, 1e-05
        %v6644 = vadd.f32 %v6612, 1e-05
        %v6645 = vadd.f32 %v6613, 1e-05
        %v6646 = vadd.f32 %v6614, 1e-05
        %v6647 = vadd.f32 %v6615, 1e-05
        %v6648 = vadd.f32 %v6616, 1e-05
        %v6649 = vadd.f32 %v6617, 1e-05
        %v6650 = vadd.f32 %v6618, 1e-05
        %v6651 = vadd.f32 %v6619, 1e-05
        %v6652 = vadd.f32 %v6620, 1e-05
        %v6653 = vadd.f32 %v6621, 1e-05
        %v6654 = vadd.f32 %v6622, 1e-05
        %v6655 = vadd.f32 %v6623, 1e-05
        %v6656 = vadd.f32 %v6624, 1e-05
        %v6657 = vadd.f32 %v6625, 1e-05
        %v6658 = vadd.f32 %v6626, 1e-05
        %v6659 = vrsqrt.pop %v6643
        %v6660 = vmul.f32 %v6659, %v6643
        %v6661 = vmul.f32 %v6660, %v6659
        %v6662 = vmul.f32 0.5, %v6661
        %v6663 = vsub.f32 1.5, %v6662
        %v6664 = vmul.f32 %v6659, %v6663
        %vm6665 = vweird.f32 %v6643
        %vm6666 = vweird.f32 %v6659
        %vm6667 = vmor %vm6665, %vm6666
        %v6668 = vsel %vm6667, %v6659, %v6664
        %v6669 = vrsqrt.pop %v6644
        %v6670 = vmul.f32 %v6669, %v6644
        %v6671 = vmul.f32 %v6670, %v6669
        %v6672 = vmul.f32 0.5, %v6671
        %v6673 = vsub.f32 1.5, %v6672
        %v6674 = vmul.f32 %v6669, %v6673
        %vm6675 = vweird.f32 %v6644
        %vm6676 = vweird.f32 %v6669
        %vm6677 = vmor %vm6675, %vm6676
        %v6678 = vsel %vm6677, %v6669, %v6674
        %v6679 = vrsqrt.pop %v6645
        %v6680 = vmul.f32 %v6679, %v6645
        %v6681 = vmul.f32 %v6680, %v6679
        %v6682 = vmul.f32 0.5, %v6681
        %v6683 = vsub.f32 1.5, %v6682
        %v6684 = vmul.f32 %v6679, %v6683
        %vm6685 = vweird.f32 %v6645
        %vm6686 = vweird.f32 %v6679
        %vm6687 = vmor %vm6685, %vm6686
        %v6688 = vsel %vm6687, %v6679, %v6684
        %v6689 = vrsqrt.pop %v6646
        %v6690 = vmul.f32 %v6689, %v6646
        %v6691 = vmul.f32 %v6690, %v6689
        %v6692 = vmul.f32 0.5, %v6691
        %v6693 = vsub.f32 1.5, %v6692
        %v6694 = vmul.f32 %v6689, %v6693
        %vm6695 = vweird.f32 %v6646
        %vm6696 = vweird.f32 %v6689
        %vm6697 = vmor %vm6695, %vm6696
        %v6698 = vsel %vm6697, %v6689, %v6694
        %v6699 = vrsqrt.pop %v6647
        %v6700 = vmul.f32 %v6699, %v6647
        %v6701 = vmul.f32 %v6700, %v6699
        %v6702 = vmul.f32 0.5, %v6701
        %v6703 = vsub.f32 1.5, %v6702
        %v6704 = vmul.f32 %v6699, %v6703
        %vm6705 = vweird.f32 %v6647
        %vm6706 = vweird.f32 %v6699
        %vm6707 = vmor %vm6705, %vm6706
        %v6708 = vsel %vm6707, %v6699, %v6704
        %v6709 = vrsqrt.pop %v6648
        %v6710 = vmul.f32 %v6709, %v6648
        %v6711 = vmul.f32 %v6710, %v6709
        %v6712 = vmul.f32 0.5, %v6711
        %v6713 = vsub.f32 1.5, %v6712
        %v6714 = vmul.f32 %v6709, %v6713
        %vm6715 = vweird.f32 %v6648
        %vm6716 = vweird.f32 %v6709
        %vm6717 = vmor %vm6715, %vm6716
        %v6718 = vsel %vm6717, %v6709, %v6714
        %v6719 = vrsqrt.pop %v6649
        %v6720 = vmul.f32 %v6719, %v6649
        %v6721 = vmul.f32 %v6720, %v6719
        %v6722 = vmul.f32 0.5, %v6721
        %v6723 = vsub.f32 1.5, %v6722
        %v6724 = vmul.f32 %v6719, %v6723
        %vm6725 = vweird.f32 %v6649
        %vm6726 = vweird.f32 %v6719
        %vm6727 = vmor %vm6725, %vm6726
        %v6728 = vsel %vm6727, %v6719, %v6724
        %v6729 = vrsqrt.pop %v6650
        %v6730 = vmul.f32 %v6729, %v6650
        %v6731 = vmul.f32 %v6730, %v6729
        %v6732 = vmul.f32 0.5, %v6731
        %v6733 = vsub.f32 1.5, %v6732
        %v6734 = vmul.f32 %v6729, %v6733
        %vm6735 = vweird.f32 %v6650
        %vm6736 = vweird.f32 %v6729
        %vm6737 = vmor %vm6735, %vm6736
        %v6738 = vsel %vm6737, %v6729, %v6734
        %v6739 = vrsqrt.pop %v6651
        %v6740 = vmul.f32 %v6739, %v6651
        %v6741 = vmul.f32 %v6740, %v6739
        %v6742 = vmul.f32 0.5, %v6741
        %v6743 = vsub.f32 1.5, %v6742
        %v6744 = vmul.f32 %v6739, %v6743
        %vm6745 = vweird.f32 %v6651
        %vm6746 = vweird.f32 %v6739
        %vm6747 = vmor %vm6745, %vm6746
        %v6748 = vsel %vm6747, %v6739, %v6744
        %v6749 = vrsqrt.pop %v6652
        %v6750 = vmul.f32 %v6749, %v6652
        %v6751 = vmul.f32 %v6750, %v6749
        %v6752 = vmul.f32 0.5, %v6751
        %v6753 = vsub.f32 1.5, %v6752
        %v6754 = vmul.f32 %v6749, %v6753
        %vm6755 = vweird.f32 %v6652
        %vm6756 = vweird.f32 %v6749
        %vm6757 = vmor %vm6755, %vm6756
        %v6758 = vsel %vm6757, %v6749, %v6754
        %v6759 = vrsqrt.pop %v6653
        %v6760 = vmul.f32 %v6759, %v6653
        %v6761 = vmul.f32 %v6760, %v6759
        %v6762 = vmul.f32 0.5, %v6761
        %v6763 = vsub.f32 1.5, %v6762
        %v6764 = vmul.f32 %v6759, %v6763
        %vm6765 = vweird.f32 %v6653
        %vm6766 = vweird.f32 %v6759
        %vm6767 = vmor %vm6765, %vm6766
        %v6768 = vsel %vm6767, %v6759, %v6764
        %v6769 = vrsqrt.pop %v6654
        %v6770 = vmul.f32 %v6769, %v6654
        %v6771 = vmul.f32 %v6770, %v6769
        %v6772 = vmul.f32 0.5, %v6771
        %v6773 = vsub.f32 1.5, %v6772
        %v6774 = vmul.f32 %v6769, %v6773
        %vm6775 = vweird.f32 %v6654
        %vm6776 = vweird.f32 %v6769
        %vm6777 = vmor %vm6775, %vm6776
        %v6778 = vsel %vm6777, %v6769, %v6774
        %v6779 = vrsqrt.pop %v6655
        %v6780 = vmul.f32 %v6779, %v6655
        %v6781 = vmul.f32 %v6780, %v6779
        %v6782 = vmul.f32 0.5, %v6781
        %v6783 = vsub.f32 1.5, %v6782
        %v6784 = vmul.f32 %v6779, %v6783
        %vm6785 = vweird.f32 %v6655
        %vm6786 = vweird.f32 %v6779
        %vm6787 = vmor %vm6785, %vm6786
        %v6788 = vsel %vm6787, %v6779, %v6784
        %v6789 = vrsqrt.pop %v6656
        %v6790 = vmul.f32 %v6789, %v6656
        %v6791 = vmul.f32 %v6790, %v6789
        %v6792 = vmul.f32 0.5, %v6791
        %v6793 = vsub.f32 1.5, %v6792
        %v6794 = vmul.f32 %v6789, %v6793
        %vm6795 = vweird.f32 %v6656
        %vm6796 = vweird.f32 %v6789
        %vm6797 = vmor %vm6795, %vm6796
        %v6798 = vsel %vm6797, %v6789, %v6794
        %v6799 = vrsqrt.pop %v6657
        %v6800 = vmul.f32 %v6799, %v6657
        %v6801 = vmul.f32 %v6800, %v6799
        %v6802 = vmul.f32 0.5, %v6801
        %v6803 = vsub.f32 1.5, %v6802
        %v6804 = vmul.f32 %v6799, %v6803
        %vm6805 = vweird.f32 %v6657
        %vm6806 = vweird.f32 %v6799
        %vm6807 = vmor %vm6805, %vm6806
        %v6808 = vsel %vm6807, %v6799, %v6804
        %v6809 = vrsqrt.pop %v6658
        %v6810 = vmul.f32 %v6809, %v6658
        %v6811 = vmul.f32 %v6810, %v6809
        %v6812 = vmul.f32 0.5, %v6811
        %v6813 = vsub.f32 1.5, %v6812
        %v6814 = vmul.f32 %v6809, %v6813
        %vm6815 = vweird.f32 %v6658
        %vm6816 = vweird.f32 %v6809
        %vm6817 = vmor %vm6815, %vm6816
        %v6818 = vsel %vm6817, %v6809, %v6814
        %v6819 = vmul.f32 %v6627, %v6668
        %v6820 = vmul.f32 %v6628, %v6678
        %v6821 = vmul.f32 %v6629, %v6688
        %v6822 = vmul.f32 %v6630, %v6698
        %v6823 = vmul.f32 %v6631, %v6708
        %v6824 = vmul.f32 %v6632, %v6718
        %v6825 = vmul.f32 %v6633, %v6728
        %v6826 = vmul.f32 %v6634, %v6738
        %v6827 = vmul.f32 %v6635, %v6748
        %v6828 = vmul.f32 %v6636, %v6758
        %v6829 = vmul.f32 %v6637, %v6768
        %v6830 = vmul.f32 %v6638, %v6778
        %v6831 = vmul.f32 %v6639, %v6788
        %v6832 = vmul.f32 %v6640, %v6798
        %v6833 = vmul.f32 %v6641, %v6808
        %v6834 = vmul.f32 %v6642, %v6818
        %v6836 = vperm.slane %v6448, 0
        %v6838 = vmul.f32 %v6819, %v6836
        %v6839 = vmul.f32 %v6820, %v6836
        %v6840 = vmul.f32 %v6821, %v6836
        %v6841 = vmul.f32 %v6822, %v6836
        %v6842 = vmul.f32 %v6823, %v6836
        %v6843 = vmul.f32 %v6824, %v6836
        %v6844 = vmul.f32 %v6825, %v6836
        %v6845 = vmul.f32 %v6826, %v6836
        %v6846 = vmul.f32 %v6827, %v6836
        %v6847 = vmul.f32 %v6828, %v6836
        %v6848 = vmul.f32 %v6829, %v6836
        %v6849 = vmul.f32 %v6830, %v6836
        %v6850 = vmul.f32 %v6831, %v6836
        %v6851 = vmul.f32 %v6832, %v6836
        %v6852 = vmul.f32 %v6833, %v6836
        %v6853 = vmul.f32 %v6834, %v6836
        %v6855 = vperm.slane %v6450, 0
        %v6857 = vadd.f32 %v6838, %v6855
        %v6858 = vadd.f32 %v6839, %v6855
        %v6859 = vadd.f32 %v6840, %v6855
        %v6860 = vadd.f32 %v6841, %v6855
        %v6861 = vadd.f32 %v6842, %v6855
        %v6862 = vadd.f32 %v6843, %v6855
        %v6863 = vadd.f32 %v6844, %v6855
        %v6864 = vadd.f32 %v6845, %v6855
        %v6865 = vadd.f32 %v6846, %v6855
        %v6866 = vadd.f32 %v6847, %v6855
        %v6867 = vadd.f32 %v6848, %v6855
        %v6868 = vadd.f32 %v6849, %v6855
        %v6869 = vadd.f32 %v6850, %v6855
        %v6870 = vadd.f32 %v6851, %v6855
        %v6871 = vadd.f32 %v6852, %v6855
        %v6872 = vadd.f32 %v6853, %v6855
        %v6873 = vpack.c.bf16 %v6858, %v6857
        %v6874 = vpack.c.bf16 %v6860, %v6859
        %v6875 = vpack.c.bf16 %v6862, %v6861
        %v6876 = vpack.c.bf16 %v6864, %v6863
        %v6877 = vpack.c.bf16 %v6866, %v6865
        %v6878 = vpack.c.bf16 %v6868, %v6867
        %v6879 = vpack.c.bf16 %v6870, %v6869
        %v6880 = vpack.c.bf16 %v6872, %v6871
        %s6881 = scalar_lea.vmem %s10, 16
        %v6882 = vld [vmem:[%s6881] sm:$0xf]
        %v6883 = vld [vmem:[%s6881 + $0x4] sm:$0xf]
        %v6884 = vld [vmem:[%s6881 + $0x8] sm:$0xf]
        %v6885 = vld [vmem:[%s6881 + $0xc] sm:$0xf]
        %s6886 = scalar_lea.vmem %s11, 1
        %v6887 = vld [vmem:[%s6886] sm:$0x1]
        %v6889 = vperm.slane %v6887, 0
        %v6895 = vunpack.c.l.b16 %v6882
        %v6896 = vunpack.c.l.b16 %v6883
        %v6897 = vunpack.c.l.b16 %v6884
        %v6898 = vunpack.c.l.b16 %v6885
        %v6899 = vpack.c.b16 %v6896, %v6895
        %v6900 = vpack.c.b16 %v6898, %v6897
        %v6904 = vsel %vm688, %v6873, 0
        %v6907 = vsel %vm688, %v6874, 0
        %v6910 = vsel %vm688, %v6875, 0
        %v6913 = vsel %vm688, %v6876, 0
        %v6916 = vsel %vm688, %v6877, 0
        %v6919 = vsel %vm688, %v6878, 0
        %v6922 = vsel %vm688, %v6879, 0
        %v6925 = vsel %vm688, %v6880, 0
        %6927 = vmatpush.bf16.msra.mxu0 0
        %6928 = vmatpush.bf16.msra.mxu0 0
        %6929 = vmatpush.bf16.msra.mxu0 0
        %6930 = vmatpush.bf16.msra.mxu0 0
        %6931 = vmatpush.bf16.msra.mxu0 0
        %6932 = vmatpush.bf16.msra.mxu0 0
        %6933 = vmatpush.bf16.msra.mxu0 %v6900
        %6934 = vmatpush.bf16.msra.mxu0 %v6899
        %6935 = vmatmul.bf16.gmra.mxu0 %v6904
        %v6936 = vpop.f32.mrf.mxu0
        %v6937 = vadd.f32 %v6889, %v6936
        %v6938 = vpop.f32.mrf.mxu0
        %v6939 = vadd.f32 %v6889, %v6938
        %6940 = vmatmul.bf16.gmra.mxu0 %v6907
        %v6941 = vpop.f32.mrf.mxu0
        %v6942 = vadd.f32 %v6889, %v6941
        %v6943 = vpop.f32.mrf.mxu0
        %v6944 = vadd.f32 %v6889, %v6943
        %6945 = vmatmul.bf16.gmra.mxu0 %v6910
        %v6946 = vpop.f32.mrf.mxu0
        %v6947 = vadd.f32 %v6889, %v6946
        %v6948 = vpop.f32.mrf.mxu0
        %v6949 = vadd.f32 %v6889, %v6948
        %6950 = vmatmul.bf16.gmra.mxu0 %v6913
        %v6951 = vpop.f32.mrf.mxu0
        %v6952 = vadd.f32 %v6889, %v6951
        %v6953 = vpop.f32.mrf.mxu0
        %v6954 = vadd.f32 %v6889, %v6953
        %6955 = vmatmul.bf16.gmra.mxu0 %v6916
        %v6956 = vpop.f32.mrf.mxu0
        %v6957 = vadd.f32 %v6889, %v6956
        %v6958 = vpop.f32.mrf.mxu0
        %v6959 = vadd.f32 %v6889, %v6958
        %6960 = vmatmul.bf16.gmra.mxu0 %v6919
        %v6961 = vpop.f32.mrf.mxu0
        %v6962 = vadd.f32 %v6889, %v6961
        %v6963 = vpop.f32.mrf.mxu0
        %v6964 = vadd.f32 %v6889, %v6963
        %6965 = vmatmul.bf16.gmra.mxu0 %v6922
        %v6966 = vpop.f32.mrf.mxu0
        %v6967 = vadd.f32 %v6889, %v6966
        %v6968 = vpop.f32.mrf.mxu0
        %v6969 = vadd.f32 %v6889, %v6968
        %6970 = vmatmul.bf16.gmra.mxu0 %v6925
        %v6971 = vpop.f32.mrf.mxu0
        %v6972 = vadd.f32 %v6889, %v6971
        %v6973 = vpop.f32.mrf.mxu0
        %v6974 = vadd.f32 %v6889, %v6973
        %6975 = vdwg.mxu0
        %v6976 = vmul.f32 %v6937, 0.5
        %v6977 = vmul.f32 %v6939, 0.5
        %v6978 = vmul.f32 %v6942, 0.5
        %v6979 = vmul.f32 %v6944, 0.5
        %v6980 = vmul.f32 %v6947, 0.5
        %v6981 = vmul.f32 %v6949, 0.5
        %v6982 = vmul.f32 %v6952, 0.5
        %v6983 = vmul.f32 %v6954, 0.5
        %v6984 = vmul.f32 %v6957, 0.5
        %v6985 = vmul.f32 %v6959, 0.5
        %v6986 = vmul.f32 %v6962, 0.5
        %v6987 = vmul.f32 %v6964, 0.5
        %v6988 = vmul.f32 %v6967, 0.5
        %v6989 = vmul.f32 %v6969, 0.5
        %v6990 = vmul.f32 %v6972, 0.5
        %v6991 = vmul.f32 %v6974, 0.5
        %v6992 = vmul.f32 %v6937, 0.044715
        %v6993 = vmul.f32 %v6939, 0.044715
        %v6994 = vmul.f32 %v6942, 0.044715
        %v6995 = vmul.f32 %v6944, 0.044715
        %v6996 = vmul.f32 %v6947, 0.044715
        %v6997 = vmul.f32 %v6949, 0.044715
        %v6998 = vmul.f32 %v6952, 0.044715
        %v6999 = vmul.f32 %v6954, 0.044715
        %v7000 = vmul.f32 %v6957, 0.044715
        %v7001 = vmul.f32 %v6959, 0.044715
        %v7002 = vmul.f32 %v6962, 0.044715
        %v7003 = vmul.f32 %v6964, 0.044715
        %v7004 = vmul.f32 %v6967, 0.044715
        %v7005 = vmul.f32 %v6969, 0.044715
        %v7006 = vmul.f32 %v6972, 0.044715
        %v7007 = vmul.f32 %v6974, 0.044715
        %v7008 = vmul.f32 %v6992, %v6937
        %v7009 = vmul.f32 %v6993, %v6939
        %v7010 = vmul.f32 %v6994, %v6942
        %v7011 = vmul.f32 %v6995, %v6944
        %v7012 = vmul.f32 %v6996, %v6947
        %v7013 = vmul.f32 %v6997, %v6949
        %v7014 = vmul.f32 %v6998, %v6952
        %v7015 = vmul.f32 %v6999, %v6954
        %v7016 = vmul.f32 %v7000, %v6957
        %v7017 = vmul.f32 %v7001, %v6959
        %v7018 = vmul.f32 %v7002, %v6962
        %v7019 = vmul.f32 %v7003, %v6964
        %v7020 = vmul.f32 %v7004, %v6967
        %v7021 = vmul.f32 %v7005, %v6969
        %v7022 = vmul.f32 %v7006, %v6972
        %v7023 = vmul.f32 %v7007, %v6974
        %v7024 = vmul.f32 %v7008, %v6937
        %v7025 = vmul.f32 %v7009, %v6939
        %v7026 = vmul.f32 %v7010, %v6942
        %v7027 = vmul.f32 %v7011, %v6944
        %v7028 = vmul.f32 %v7012, %v6947
        %v7029 = vmul.f32 %v7013, %v6949
        %v7030 = vmul.f32 %v7014, %v6952
        %v7031 = vmul.f32 %v7015, %v6954
        %v7032 = vmul.f32 %v7016, %v6957
        %v7033 = vmul.f32 %v7017, %v6959
        %v7034 = vmul.f32 %v7018, %v6962
        %v7035 = vmul.f32 %v7019, %v6964
        %v7036 = vmul.f32 %v7020, %v6967
        %v7037 = vmul.f32 %v7021, %v6969
        %v7038 = vmul.f32 %v7022, %v6972
        %v7039 = vmul.f32 %v7023, %v6974
        %v7040 = vadd.f32 %v6937, %v7024
        %v7041 = vadd.f32 %v6939, %v7025
        %v7042 = vadd.f32 %v6942, %v7026
        %v7043 = vadd.f32 %v6944, %v7027
        %v7044 = vadd.f32 %v6947, %v7028
        %v7045 = vadd.f32 %v6949, %v7029
        %v7046 = vadd.f32 %v6952, %v7030
        %v7047 = vadd.f32 %v6954, %v7031
        %v7048 = vadd.f32 %v6957, %v7032
        %v7049 = vadd.f32 %v6959, %v7033
        %v7050 = vadd.f32 %v6962, %v7034
        %v7051 = vadd.f32 %v6964, %v7035
        %v7052 = vadd.f32 %v6967, %v7036
        %v7053 = vadd.f32 %v6969, %v7037
        %v7054 = vadd.f32 %v6972, %v7038
        %v7055 = vadd.f32 %v6974, %v7039
        %v7056 = vmul.f32 %v7040, 0.7978846
        %v7057 = vmul.f32 %v7041, 0.7978846
        %v7058 = vmul.f32 %v7042, 0.7978846
        %v7059 = vmul.f32 %v7043, 0.7978846
        %v7060 = vmul.f32 %v7044, 0.7978846
        %v7061 = vmul.f32 %v7045, 0.7978846
        %v7062 = vmul.f32 %v7046, 0.7978846
        %v7063 = vmul.f32 %v7047, 0.7978846
        %v7064 = vmul.f32 %v7048, 0.7978846
        %v7065 = vmul.f32 %v7049, 0.7978846
        %v7066 = vmul.f32 %v7050, 0.7978846
        %v7067 = vmul.f32 %v7051, 0.7978846
        %v7068 = vmul.f32 %v7052, 0.7978846
        %v7069 = vmul.f32 %v7053, 0.7978846
        %v7070 = vmul.f32 %v7054, 0.7978846
        %v7071 = vmul.f32 %v7055, 0.7978846
        %v7072 = vtanh.pop %v7056
        %v7073 = vtanh.pop %v7057
        %v7074 = vtanh.pop %v7058
        %v7075 = vtanh.pop %v7059
        %v7076 = vtanh.pop %v7060
        %v7077 = vtanh.pop %v7061
        %v7078 = vtanh.pop %v7062
        %v7079 = vtanh.pop %v7063
        %v7080 = vtanh.pop %v7064
        %v7081 = vtanh.pop %v7065
        %v7082 = vtanh.pop %v7066
        %v7083 = vtanh.pop %v7067
        %v7084 = vtanh.pop %v7068
        %v7085 = vtanh.pop %v7069
        %v7086 = vtanh.pop %v7070
        %v7087 = vtanh.pop %v7071
        %v7088 = vadd.f32 %v7072, 1.0
        %v7089 = vadd.f32 %v7073, 1.0
        %v7090 = vadd.f32 %v7074, 1.0
        %v7091 = vadd.f32 %v7075, 1.0
        %v7092 = vadd.f32 %v7076, 1.0
        %v7093 = vadd.f32 %v7077, 1.0
        %v7094 = vadd.f32 %v7078, 1.0
        %v7095 = vadd.f32 %v7079, 1.0
        %v7096 = vadd.f32 %v7080, 1.0
        %v7097 = vadd.f32 %v7081, 1.0
        %v7098 = vadd.f32 %v7082, 1.0
        %v7099 = vadd.f32 %v7083, 1.0
        %v7100 = vadd.f32 %v7084, 1.0
        %v7101 = vadd.f32 %v7085, 1.0
        %v7102 = vadd.f32 %v7086, 1.0
        %v7103 = vadd.f32 %v7087, 1.0
        %v7104 = vmul.f32 %v6976, %v7088
        %v7105 = vmul.f32 %v6977, %v7089
        %v7106 = vmul.f32 %v6978, %v7090
        %v7107 = vmul.f32 %v6979, %v7091
        %v7108 = vmul.f32 %v6980, %v7092
        %v7109 = vmul.f32 %v6981, %v7093
        %v7110 = vmul.f32 %v6982, %v7094
        %v7111 = vmul.f32 %v6983, %v7095
        %v7112 = vmul.f32 %v6984, %v7096
        %v7113 = vmul.f32 %v6985, %v7097
        %v7114 = vmul.f32 %v6986, %v7098
        %v7115 = vmul.f32 %v6987, %v7099
        %v7116 = vmul.f32 %v6988, %v7100
        %v7117 = vmul.f32 %v6989, %v7101
        %v7118 = vmul.f32 %v6990, %v7102
        %v7119 = vmul.f32 %v6991, %v7103
        %v7120 = vpack.c.bf16 %v7105, %v7104
        %v7121 = vpack.c.bf16 %v7107, %v7106
        %v7122 = vpack.c.bf16 %v7109, %v7108
        %v7123 = vpack.c.bf16 %v7111, %v7110
        %v7124 = vpack.c.bf16 %v7113, %v7112
        %v7125 = vpack.c.bf16 %v7115, %v7114
        %v7126 = vpack.c.bf16 %v7117, %v7116
        %v7127 = vpack.c.bf16 %v7119, %v7118
        %s7128 = scalar_lea.vmem %s12, 64
        %v7129 = vld [vmem:[%s7128] sm:$0xf]
        %v7130 = vld [vmem:[%s7128 + $0x4] sm:$0xf]
        %v7131 = vld [vmem:[%s7128 + $0x8] sm:$0xf]
        %v7132 = vld [vmem:[%s7128 + $0xc] sm:$0xf]
        %v7133 = vld [vmem:[%s7128 + $0x10] sm:$0xf]
        %v7134 = vld [vmem:[%s7128 + $0x14] sm:$0xf]
        %v7135 = vld [vmem:[%s7128 + $0x18] sm:$0xf]
        %v7136 = vld [vmem:[%s7128 + $0x1c] sm:$0xf]
        %v7137 = vld [vmem:[%s7128 + $0x20] sm:$0xf]
        %v7138 = vld [vmem:[%s7128 + $0x24] sm:$0xf]
        %v7139 = vld [vmem:[%s7128 + $0x28] sm:$0xf]
        %v7140 = vld [vmem:[%s7128 + $0x2c] sm:$0xf]
        %v7141 = vld [vmem:[%s7128 + $0x30] sm:$0xf]
        %v7142 = vld [vmem:[%s7128 + $0x34] sm:$0xf]
        %v7143 = vld [vmem:[%s7128 + $0x38] sm:$0xf]
        %v7144 = vld [vmem:[%s7128 + $0x3c] sm:$0xf]
        %s7145 = scalar_lea.vmem %s13, 1
        %v7146 = vld [vmem:[%s7145] sm:$0x1]
        %v7148 = vperm.slane %v7146, 0
        %v7166 = vunpack.c.l.b16 %v7129
        %v7167 = vunpack.c.l.b16 %v7130
        %v7168 = vunpack.c.l.b16 %v7131
        %v7169 = vunpack.c.l.b16 %v7132
        %v7170 = vunpack.c.l.b16 %v7133
        %v7171 = vunpack.c.l.b16 %v7134
        %v7172 = vunpack.c.l.b16 %v7135
        %v7173 = vunpack.c.l.b16 %v7136
        %v7174 = vunpack.c.l.b16 %v7137
        %v7175 = vunpack.c.l.b16 %v7138
        %v7176 = vunpack.c.l.b16 %v7139
        %v7177 = vunpack.c.l.b16 %v7140
        %v7178 = vunpack.c.l.b16 %v7141
        %v7179 = vunpack.c.l.b16 %v7142
        %v7180 = vunpack.c.l.b16 %v7143
        %v7181 = vunpack.c.l.b16 %v7144
        %v7182 = vpack.c.b16 %v7167, %v7166
        %v7183 = vpack.c.b16 %v7169, %v7168
        %v7184 = vpack.c.b16 %v7171, %v7170
        %v7185 = vpack.c.b16 %v7173, %v7172
        %v7186 = vpack.c.b16 %v7175, %v7174
        %v7187 = vpack.c.b16 %v7177, %v7176
        %v7188 = vpack.c.b16 %v7179, %v7178
        %v7189 = vpack.c.b16 %v7181, %v7180
        %7198 = vmatpush.bf16.msra.mxu0 %v7189
        %7199 = vmatpush.bf16.msra.mxu0 %v7188
        %7200 = vmatpush.bf16.msra.mxu0 %v7187
        %7201 = vmatpush.bf16.msra.mxu0 %v7186
        %7202 = vmatpush.bf16.msra.mxu0 %v7185
        %7203 = vmatpush.bf16.msra.mxu0 %v7184
        %7204 = vmatpush.bf16.msra.mxu0 %v7183
        %7205 = vmatpush.bf16.msra.mxu0 %v7182
        %7206 = vmatmul.bf16.gmra.mxu0 %v7120
        %v7207 = vpop.f32.mrf.mxu0
        %v7208 = vadd.f32 %v7148, %v7207
        %v7209 = vpop.f32.mrf.mxu0
        %v7210 = vadd.f32 %v7148, %v7209
        %7211 = vmatmul.bf16.gmra.mxu0 %v7121
        %v7212 = vpop.f32.mrf.mxu0
        %v7213 = vadd.f32 %v7148, %v7212
        %v7214 = vpop.f32.mrf.mxu0
        %v7215 = vadd.f32 %v7148, %v7214
        %7216 = vmatmul.bf16.gmra.mxu0 %v7122
        %v7217 = vpop.f32.mrf.mxu0
        %v7218 = vadd.f32 %v7148, %v7217
        %v7219 = vpop.f32.mrf.mxu0
        %v7220 = vadd.f32 %v7148, %v7219
        %7221 = vmatmul.bf16.gmra.mxu0 %v7123
        %v7222 = vpop.f32.mrf.mxu0
        %v7223 = vadd.f32 %v7148, %v7222
        %v7224 = vpop.f32.mrf.mxu0
        %v7225 = vadd.f32 %v7148, %v7224
        %7226 = vmatmul.bf16.gmra.mxu0 %v7124
        %v7227 = vpop.f32.mrf.mxu0
        %v7228 = vadd.f32 %v7148, %v7227
        %v7229 = vpop.f32.mrf.mxu0
        %v7230 = vadd.f32 %v7148, %v7229
        %7231 = vmatmul.bf16.gmra.mxu0 %v7125
        %v7232 = vpop.f32.mrf.mxu0
        %v7233 = vadd.f32 %v7148, %v7232
        %v7234 = vpop.f32.mrf.mxu0
        %v7235 = vadd.f32 %v7148, %v7234
        %7236 = vmatmul.bf16.gmra.mxu0 %v7126
        %v7237 = vpop.f32.mrf.mxu0
        %v7238 = vadd.f32 %v7148, %v7237
        %v7239 = vpop.f32.mrf.mxu0
        %v7240 = vadd.f32 %v7148, %v7239
        %7241 = vmatmul.bf16.gmra.mxu0 %v7127
        %v7242 = vpop.f32.mrf.mxu0
        %v7243 = vadd.f32 %v7148, %v7242
        %v7244 = vpop.f32.mrf.mxu0
        %v7245 = vadd.f32 %v7148, %v7244
        %7246 = vdwg.mxu0
        %v7247 = vadd.f32 %v6431, %v7208
        %v7248 = vadd.f32 %v6432, %v7210
        %v7249 = vadd.f32 %v6433, %v7213
        %v7250 = vadd.f32 %v6434, %v7215
        %v7251 = vadd.f32 %v6435, %v7218
        %v7252 = vadd.f32 %v6436, %v7220
        %v7253 = vadd.f32 %v6437, %v7223
        %v7254 = vadd.f32 %v6438, %v7225
        %v7255 = vadd.f32 %v6439, %v7228
        %v7256 = vadd.f32 %v6440, %v7230
        %v7257 = vadd.f32 %v6441, %v7233
        %v7258 = vadd.f32 %v6442, %v7235
        %v7259 = vadd.f32 %v6443, %v7238
        %v7260 = vadd.f32 %v6444, %v7240
        %v7261 = vadd.f32 %v6445, %v7243
        %v7262 = vadd.f32 %v6446, %v7245
        %v7263 = vld [vmem:[%s14] sm:$0x1]
        %v7264 = vld [vmem:[%s15] sm:$0x1]
        %v7265 = vsel %vm688, %v7247, 0.0
        %7266 = vadd.xlane.f32.xlu0 %v7265
        %v7267 = vpop.xlane.xlu0 %7266
        %v7268 = vsel %vm688, %v7248, 0.0
        %7269 = vadd.xlane.f32.xlu0 %v7268
        %v7270 = vpop.xlane.xlu0 %7269
        %v7271 = vsel %vm688, %v7249, 0.0
        %7272 = vadd.xlane.f32.xlu0 %v7271
        %v7273 = vpop.xlane.xlu0 %7272
        %v7274 = vsel %vm688, %v7250, 0.0
        %7275 = vadd.xlane.f32.xlu0 %v7274
        %v7276 = vpop.xlane.xlu0 %7275
        %v7277 = vsel %vm688, %v7251, 0.0
        %7278 = vadd.xlane.f32.xlu0 %v7277
        %v7279 = vpop.xlane.xlu0 %7278
        %v7280 = vsel %vm688, %v7252, 0.0
        %7281 = vadd.xlane.f32.xlu0 %v7280
        %v7282 = vpop.xlane.xlu0 %7281
        %v7283 = vsel %vm688, %v7253, 0.0
        %7284 = vadd.xlane.f32.xlu0 %v7283
        %v7285 = vpop.xlane.xlu0 %7284
        %v7286 = vsel %vm688, %v7254, 0.0
        %7287 = vadd.xlane.f32.xlu0 %v7286
        %v7288 = vpop.xlane.xlu0 %7287
        %v7289 = vsel %vm688, %v7255, 0.0
        %7290 = vadd.xlane.f32.xlu0 %v7289
        %v7291 = vpop.xlane.xlu0 %7290
        %v7292 = vsel %vm688, %v7256, 0.0
        %7293 = vadd.xlane.f32.xlu0 %v7292
        %v7294 = vpop.xlane.xlu0 %7293
        %v7295 = vsel %vm688, %v7257, 0.0
        %7296 = vadd.xlane.f32.xlu0 %v7295
        %v7297 = vpop.xlane.xlu0 %7296
        %v7298 = vsel %vm688, %v7258, 0.0
        %7299 = vadd.xlane.f32.xlu0 %v7298
        %v7300 = vpop.xlane.xlu0 %7299
        %v7301 = vsel %vm688, %v7259, 0.0
        %7302 = vadd.xlane.f32.xlu0 %v7301
        %v7303 = vpop.xlane.xlu0 %7302
        %v7304 = vsel %vm688, %v7260, 0.0
        %7305 = vadd.xlane.f32.xlu0 %v7304
        %v7306 = vpop.xlane.xlu0 %7305
        %v7307 = vsel %vm688, %v7261, 0.0
        %7308 = vadd.xlane.f32.xlu0 %v7307
        %v7309 = vpop.xlane.xlu0 %7308
        %v7310 = vsel %vm688, %v7262, 0.0
        %7311 = vadd.xlane.f32.xlu0 %v7310
        %v7312 = vpop.xlane.xlu0 %7311
        %v7313 = vmul.f32 %v7267, %v743
        %v7314 = vmul.f32 %v7270, %v743
        %v7315 = vmul.f32 %v7273, %v743
        %v7316 = vmul.f32 %v7276, %v743
        %v7317 = vmul.f32 %v7279, %v743
        %v7318 = vmul.f32 %v7282, %v743
        %v7319 = vmul.f32 %v7285, %v743
        %v7320 = vmul.f32 %v7288, %v743
        %v7321 = vmul.f32 %v7291, %v743
        %v7322 = vmul.f32 %v7294, %v743
        %v7323 = vmul.f32 %v7297, %v743
        %v7324 = vmul.f32 %v7300, %v743
        %v7325 = vmul.f32 %v7303, %v743
        %v7326 = vmul.f32 %v7306, %v743
        %v7327 = vmul.f32 %v7309, %v743
        %v7328 = vmul.f32 %v7312, %v743
        %v7329 = vmul.f32 %v7247, %v7247
        %v7330 = vmul.f32 %v7248, %v7248
        %v7331 = vmul.f32 %v7249, %v7249
        %v7332 = vmul.f32 %v7250, %v7250
        %v7333 = vmul.f32 %v7251, %v7251
        %v7334 = vmul.f32 %v7252, %v7252
        %v7335 = vmul.f32 %v7253, %v7253
        %v7336 = vmul.f32 %v7254, %v7254
        %v7337 = vmul.f32 %v7255, %v7255
        %v7338 = vmul.f32 %v7256, %v7256
        %v7339 = vmul.f32 %v7257, %v7257
        %v7340 = vmul.f32 %v7258, %v7258
        %v7341 = vmul.f32 %v7259, %v7259
        %v7342 = vmul.f32 %v7260, %v7260
        %v7343 = vmul.f32 %v7261, %v7261
        %v7344 = vmul.f32 %v7262, %v7262
        %v7345 = vsel %vm688, %v7329, 0.0
        %7346 = vadd.xlane.f32.xlu0 %v7345
        %v7347 = vpop.xlane.xlu0 %7346
        %v7348 = vsel %vm688, %v7330, 0.0
        %7349 = vadd.xlane.f32.xlu0 %v7348
        %v7350 = vpop.xlane.xlu0 %7349
        %v7351 = vsel %vm688, %v7331, 0.0
        %7352 = vadd.xlane.f32.xlu0 %v7351
        %v7353 = vpop.xlane.xlu0 %7352
        %v7354 = vsel %vm688, %v7332, 0.0
        %7355 = vadd.xlane.f32.xlu0 %v7354
        %v7356 = vpop.xlane.xlu0 %7355
        %v7357 = vsel %vm688, %v7333, 0.0
        %7358 = vadd.xlane.f32.xlu0 %v7357
        %v7359 = vpop.xlane.xlu0 %7358
        %v7360 = vsel %vm688, %v7334, 0.0
        %7361 = vadd.xlane.f32.xlu0 %v7360
        %v7362 = vpop.xlane.xlu0 %7361
        %v7363 = vsel %vm688, %v7335, 0.0
        %7364 = vadd.xlane.f32.xlu0 %v7363
        %v7365 = vpop.xlane.xlu0 %7364
        %v7366 = vsel %vm688, %v7336, 0.0
        %7367 = vadd.xlane.f32.xlu0 %v7366
        %v7368 = vpop.xlane.xlu0 %7367
        %v7369 = vsel %vm688, %v7337, 0.0
        %7370 = vadd.xlane.f32.xlu0 %v7369
        %v7371 = vpop.xlane.xlu0 %7370
        %v7372 = vsel %vm688, %v7338, 0.0
        %7373 = vadd.xlane.f32.xlu0 %v7372
        %v7374 = vpop.xlane.xlu0 %7373
        %v7375 = vsel %vm688, %v7339, 0.0
        %7376 = vadd.xlane.f32.xlu0 %v7375
        %v7377 = vpop.xlane.xlu0 %7376
        %v7378 = vsel %vm688, %v7340, 0.0
        %7379 = vadd.xlane.f32.xlu0 %v7378
        %v7380 = vpop.xlane.xlu0 %7379
        %v7381 = vsel %vm688, %v7341, 0.0
        %7382 = vadd.xlane.f32.xlu0 %v7381
        %v7383 = vpop.xlane.xlu0 %7382
        %v7384 = vsel %vm688, %v7342, 0.0
        %7385 = vadd.xlane.f32.xlu0 %v7384
        %v7386 = vpop.xlane.xlu0 %7385
        %v7387 = vsel %vm688, %v7343, 0.0
        %7388 = vadd.xlane.f32.xlu0 %v7387
        %v7389 = vpop.xlane.xlu0 %7388
        %v7390 = vsel %vm688, %v7344, 0.0
        %7391 = vadd.xlane.f32.xlu0 %v7390
        %v7392 = vpop.xlane.xlu0 %7391
        %v7393 = vmul.f32 %v7347, %v743
        %v7394 = vmul.f32 %v7350, %v743
        %v7395 = vmul.f32 %v7353, %v743
        %v7396 = vmul.f32 %v7356, %v743
        %v7397 = vmul.f32 %v7359, %v743
        %v7398 = vmul.f32 %v7362, %v743
        %v7399 = vmul.f32 %v7365, %v743
        %v7400 = vmul.f32 %v7368, %v743
        %v7401 = vmul.f32 %v7371, %v743
        %v7402 = vmul.f32 %v7374, %v743
        %v7403 = vmul.f32 %v7377, %v743
        %v7404 = vmul.f32 %v7380, %v743
        %v7405 = vmul.f32 %v7383, %v743
        %v7406 = vmul.f32 %v7386, %v743
        %v7407 = vmul.f32 %v7389, %v743
        %v7408 = vmul.f32 %v7392, %v743
        %v7409 = vmul.f32 %v7313, %v7313
        %v7410 = vmul.f32 %v7314, %v7314
        %v7411 = vmul.f32 %v7315, %v7315
        %v7412 = vmul.f32 %v7316, %v7316
        %v7413 = vmul.f32 %v7317, %v7317
        %v7414 = vmul.f32 %v7318, %v7318
        %v7415 = vmul.f32 %v7319, %v7319
        %v7416 = vmul.f32 %v7320, %v7320
        %v7417 = vmul.f32 %v7321, %v7321
        %v7418 = vmul.f32 %v7322, %v7322
        %v7419 = vmul.f32 %v7323, %v7323
        %v7420 = vmul.f32 %v7324, %v7324
        %v7421 = vmul.f32 %v7325, %v7325
        %v7422 = vmul.f32 %v7326, %v7326
        %v7423 = vmul.f32 %v7327, %v7327
        %v7424 = vmul.f32 %v7328, %v7328
        %v7425 = vsub.f32 %v7393, %v7409
        %v7426 = vsub.f32 %v7394, %v7410
        %v7427 = vsub.f32 %v7395, %v7411
        %v7428 = vsub.f32 %v7396, %v7412
        %v7429 = vsub.f32 %v7397, %v7413
        %v7430 = vsub.f32 %v7398, %v7414
        %v7431 = vsub.f32 %v7399, %v7415
        %v7432 = vsub.f32 %v7400, %v7416
        %v7433 = vsub.f32 %v7401, %v7417
        %v7434 = vsub.f32 %v7402, %v7418
        %v7435 = vsub.f32 %v7403, %v7419
        %v7436 = vsub.f32 %v7404, %v7420
        %v7437 = vsub.f32 %v7405, %v7421
        %v7438 = vsub.f32 %v7406, %v7422
        %v7439 = vsub.f32 %v7407, %v7423
        %v7440 = vsub.f32 %v7408, %v7424
        %v7441 = vsub.f32 %v7247, %v7313
        %v7442 = vsub.f32 %v7248, %v7314
        %v7443 = vsub.f32 %v7249, %v7315
        %v7444 = vsub.f32 %v7250, %v7316
        %v7445 = vsub.f32 %v7251, %v7317
        %v7446 = vsub.f32 %v7252, %v7318
        %v7447 = vsub.f32 %v7253, %v7319
        %v7448 = vsub.f32 %v7254, %v7320
        %v7449 = vsub.f32 %v7255, %v7321
        %v7450 = vsub.f32 %v7256, %v7322
        %v7451 = vsub.f32 %v7257, %v7323
        %v7452 = vsub.f32 %v7258, %v7324
        %v7453 = vsub.f32 %v7259, %v7325
        %v7454 = vsub.f32 %v7260, %v7326
        %v7455 = vsub.f32 %v7261, %v7327
        %v7456 = vsub.f32 %v7262, %v7328
        %v7457 = vadd.f32 %v7425, 1e-05
        %v7458 = vadd.f32 %v7426, 1e-05
        %v7459 = vadd.f32 %v7427, 1e-05
        %v7460 = vadd.f32 %v7428, 1e-05
        %v7461 = vadd.f32 %v7429, 1e-05
        %v7462 = vadd.f32 %v7430, 1e-05
        %v7463 = vadd.f32 %v7431, 1e-05
        %v7464 = vadd.f32 %v7432, 1e-05
        %v7465 = vadd.f32 %v7433, 1e-05
        %v7466 = vadd.f32 %v7434, 1e-05
        %v7467 = vadd.f32 %v7435, 1e-05
        %v7468 = vadd.f32 %v7436, 1e-05
        %v7469 = vadd.f32 %v7437, 1e-05
        %v7470 = vadd.f32 %v7438, 1e-05
        %v7471 = vadd.f32 %v7439, 1e-05
        %v7472 = vadd.f32 %v7440, 1e-05
        %v7473 = vrsqrt.pop %v7457
        %v7474 = vmul.f32 %v7473, %v7457
        %v7475 = vmul.f32 %v7474, %v7473
        %v7476 = vmul.f32 0.5, %v7475
        %v7477 = vsub.f32 1.5, %v7476
        %v7478 = vmul.f32 %v7473, %v7477
        %vm7479 = vweird.f32 %v7457
        %vm7480 = vweird.f32 %v7473
        %vm7481 = vmor %vm7479, %vm7480
        %v7482 = vsel %vm7481, %v7473, %v7478
        %v7483 = vrsqrt.pop %v7458
        %v7484 = vmul.f32 %v7483, %v7458
        %v7485 = vmul.f32 %v7484, %v7483
        %v7486 = vmul.f32 0.5, %v7485
        %v7487 = vsub.f32 1.5, %v7486
        %v7488 = vmul.f32 %v7483, %v7487
        %vm7489 = vweird.f32 %v7458
        %vm7490 = vweird.f32 %v7483
        %vm7491 = vmor %vm7489, %vm7490
        %v7492 = vsel %vm7491, %v7483, %v7488
        %v7493 = vrsqrt.pop %v7459
        %v7494 = vmul.f32 %v7493, %v7459
        %v7495 = vmul.f32 %v7494, %v7493
        %v7496 = vmul.f32 0.5, %v7495
        %v7497 = vsub.f32 1.5, %v7496
        %v7498 = vmul.f32 %v7493, %v7497
        %vm7499 = vweird.f32 %v7459
        %vm7500 = vweird.f32 %v7493
        %vm7501 = vmor %vm7499, %vm7500
        %v7502 = vsel %vm7501, %v7493, %v7498
        %v7503 = vrsqrt.pop %v7460
        %v7504 = vmul.f32 %v7503, %v7460
        %v7505 = vmul.f32 %v7504, %v7503
        %v7506 = vmul.f32 0.5, %v7505
        %v7507 = vsub.f32 1.5, %v7506
        %v7508 = vmul.f32 %v7503, %v7507
        %vm7509 = vweird.f32 %v7460
        %vm7510 = vweird.f32 %v7503
        %vm7511 = vmor %vm7509, %vm7510
        %v7512 = vsel %vm7511, %v7503, %v7508
        %v7513 = vrsqrt.pop %v7461
        %v7514 = vmul.f32 %v7513, %v7461
        %v7515 = vmul.f32 %v7514, %v7513
        %v7516 = vmul.f32 0.5, %v7515
        %v7517 = vsub.f32 1.5, %v7516
        %v7518 = vmul.f32 %v7513, %v7517
        %vm7519 = vweird.f32 %v7461
        %vm7520 = vweird.f32 %v7513
        %vm7521 = vmor %vm7519, %vm7520
        %v7522 = vsel %vm7521, %v7513, %v7518
        %v7523 = vrsqrt.pop %v7462
        %v7524 = vmul.f32 %v7523, %v7462
        %v7525 = vmul.f32 %v7524, %v7523
        %v7526 = vmul.f32 0.5, %v7525
        %v7527 = vsub.f32 1.5, %v7526
        %v7528 = vmul.f32 %v7523, %v7527
        %vm7529 = vweird.f32 %v7462
        %vm7530 = vweird.f32 %v7523
        %vm7531 = vmor %vm7529, %vm7530
        %v7532 = vsel %vm7531, %v7523, %v7528
        %v7533 = vrsqrt.pop %v7463
        %v7534 = vmul.f32 %v7533, %v7463
        %v7535 = vmul.f32 %v7534, %v7533
        %v7536 = vmul.f32 0.5, %v7535
        %v7537 = vsub.f32 1.5, %v7536
        %v7538 = vmul.f32 %v7533, %v7537
        %vm7539 = vweird.f32 %v7463
        %vm7540 = vweird.f32 %v7533
        %vm7541 = vmor %vm7539, %vm7540
        %v7542 = vsel %vm7541, %v7533, %v7538
        %v7543 = vrsqrt.pop %v7464
        %v7544 = vmul.f32 %v7543, %v7464
        %v7545 = vmul.f32 %v7544, %v7543
        %v7546 = vmul.f32 0.5, %v7545
        %v7547 = vsub.f32 1.5, %v7546
        %v7548 = vmul.f32 %v7543, %v7547
        %vm7549 = vweird.f32 %v7464
        %vm7550 = vweird.f32 %v7543
        %vm7551 = vmor %vm7549, %vm7550
        %v7552 = vsel %vm7551, %v7543, %v7548
        %v7553 = vrsqrt.pop %v7465
        %v7554 = vmul.f32 %v7553, %v7465
        %v7555 = vmul.f32 %v7554, %v7553
        %v7556 = vmul.f32 0.5, %v7555
        %v7557 = vsub.f32 1.5, %v7556
        %v7558 = vmul.f32 %v7553, %v7557
        %vm7559 = vweird.f32 %v7465
        %vm7560 = vweird.f32 %v7553
        %vm7561 = vmor %vm7559, %vm7560
        %v7562 = vsel %vm7561, %v7553, %v7558
        %v7563 = vrsqrt.pop %v7466
        %v7564 = vmul.f32 %v7563, %v7466
        %v7565 = vmul.f32 %v7564, %v7563
        %v7566 = vmul.f32 0.5, %v7565
        %v7567 = vsub.f32 1.5, %v7566
        %v7568 = vmul.f32 %v7563, %v7567
        %vm7569 = vweird.f32 %v7466
        %vm7570 = vweird.f32 %v7563
        %vm7571 = vmor %vm7569, %vm7570
        %v7572 = vsel %vm7571, %v7563, %v7568
        %v7573 = vrsqrt.pop %v7467
        %v7574 = vmul.f32 %v7573, %v7467
        %v7575 = vmul.f32 %v7574, %v7573
        %v7576 = vmul.f32 0.5, %v7575
        %v7577 = vsub.f32 1.5, %v7576
        %v7578 = vmul.f32 %v7573, %v7577
        %vm7579 = vweird.f32 %v7467
        %vm7580 = vweird.f32 %v7573
        %vm7581 = vmor %vm7579, %vm7580
        %v7582 = vsel %vm7581, %v7573, %v7578
        %v7583 = vrsqrt.pop %v7468
        %v7584 = vmul.f32 %v7583, %v7468
        %v7585 = vmul.f32 %v7584, %v7583
        %v7586 = vmul.f32 0.5, %v7585
        %v7587 = vsub.f32 1.5, %v7586
        %v7588 = vmul.f32 %v7583, %v7587
        %vm7589 = vweird.f32 %v7468
        %vm7590 = vweird.f32 %v7583
        %vm7591 = vmor %vm7589, %vm7590
        %v7592 = vsel %vm7591, %v7583, %v7588
        %v7593 = vrsqrt.pop %v7469
        %v7594 = vmul.f32 %v7593, %v7469
        %v7595 = vmul.f32 %v7594, %v7593
        %v7596 = vmul.f32 0.5, %v7595
        %v7597 = vsub.f32 1.5, %v7596
        %v7598 = vmul.f32 %v7593, %v7597
        %vm7599 = vweird.f32 %v7469
        %vm7600 = vweird.f32 %v7593
        %vm7601 = vmor %vm7599, %vm7600
        %v7602 = vsel %vm7601, %v7593, %v7598
        %v7603 = vrsqrt.pop %v7470
        %v7604 = vmul.f32 %v7603, %v7470
        %v7605 = vmul.f32 %v7604, %v7603
        %v7606 = vmul.f32 0.5, %v7605
        %v7607 = vsub.f32 1.5, %v7606
        %v7608 = vmul.f32 %v7603, %v7607
        %vm7609 = vweird.f32 %v7470
        %vm7610 = vweird.f32 %v7603
        %vm7611 = vmor %vm7609, %vm7610
        %v7612 = vsel %vm7611, %v7603, %v7608
        %v7613 = vrsqrt.pop %v7471
        %v7614 = vmul.f32 %v7613, %v7471
        %v7615 = vmul.f32 %v7614, %v7613
        %v7616 = vmul.f32 0.5, %v7615
        %v7617 = vsub.f32 1.5, %v7616
        %v7618 = vmul.f32 %v7613, %v7617
        %vm7619 = vweird.f32 %v7471
        %vm7620 = vweird.f32 %v7613
        %vm7621 = vmor %vm7619, %vm7620
        %v7622 = vsel %vm7621, %v7613, %v7618
        %v7623 = vrsqrt.pop %v7472
        %v7624 = vmul.f32 %v7623, %v7472
        %v7625 = vmul.f32 %v7624, %v7623
        %v7626 = vmul.f32 0.5, %v7625
        %v7627 = vsub.f32 1.5, %v7626
        %v7628 = vmul.f32 %v7623, %v7627
        %vm7629 = vweird.f32 %v7472
        %vm7630 = vweird.f32 %v7623
        %vm7631 = vmor %vm7629, %vm7630
        %v7632 = vsel %vm7631, %v7623, %v7628
        %v7633 = vmul.f32 %v7441, %v7482
        %v7634 = vmul.f32 %v7442, %v7492
        %v7635 = vmul.f32 %v7443, %v7502
        %v7636 = vmul.f32 %v7444, %v7512
        %v7637 = vmul.f32 %v7445, %v7522
        %v7638 = vmul.f32 %v7446, %v7532
        %v7639 = vmul.f32 %v7447, %v7542
        %v7640 = vmul.f32 %v7448, %v7552
        %v7641 = vmul.f32 %v7449, %v7562
        %v7642 = vmul.f32 %v7450, %v7572
        %v7643 = vmul.f32 %v7451, %v7582
        %v7644 = vmul.f32 %v7452, %v7592
        %v7645 = vmul.f32 %v7453, %v7602
        %v7646 = vmul.f32 %v7454, %v7612
        %v7647 = vmul.f32 %v7455, %v7622
        %v7648 = vmul.f32 %v7456, %v7632
        %v7650 = vperm.slane %v7263, 0
        %v7652 = vmul.f32 %v7633, %v7650
        %v7653 = vmul.f32 %v7634, %v7650
        %v7654 = vmul.f32 %v7635, %v7650
        %v7655 = vmul.f32 %v7636, %v7650
        %v7656 = vmul.f32 %v7637, %v7650
        %v7657 = vmul.f32 %v7638, %v7650
        %v7658 = vmul.f32 %v7639, %v7650
        %v7659 = vmul.f32 %v7640, %v7650
        %v7660 = vmul.f32 %v7641, %v7650
        %v7661 = vmul.f32 %v7642, %v7650
        %v7662 = vmul.f32 %v7643, %v7650
        %v7663 = vmul.f32 %v7644, %v7650
        %v7664 = vmul.f32 %v7645, %v7650
        %v7665 = vmul.f32 %v7646, %v7650
        %v7666 = vmul.f32 %v7647, %v7650
        %v7667 = vmul.f32 %v7648, %v7650
        %v7669 = vperm.slane %v7264, 0
        %v7671 = vadd.f32 %v7652, %v7669
        %v7672 = vadd.f32 %v7653, %v7669
        %v7673 = vadd.f32 %v7654, %v7669
        %v7674 = vadd.f32 %v7655, %v7669
        %v7675 = vadd.f32 %v7656, %v7669
        %v7676 = vadd.f32 %v7657, %v7669
        %v7677 = vadd.f32 %v7658, %v7669
        %v7678 = vadd.f32 %v7659, %v7669
        %v7679 = vadd.f32 %v7660, %v7669
        %v7680 = vadd.f32 %v7661, %v7669
        %v7681 = vadd.f32 %v7662, %v7669
        %v7682 = vadd.f32 %v7663, %v7669
        %v7683 = vadd.f32 %v7664, %v7669
        %v7684 = vadd.f32 %v7665, %v7669
        %v7685 = vadd.f32 %v7666, %v7669
        %v7686 = vadd.f32 %v7667, %v7669
        %v7687 = vpack.c.bf16 %v7672, %v7671
        %v7688 = vpack.c.bf16 %v7674, %v7673
        %v7689 = vpack.c.bf16 %v7676, %v7675
        %v7690 = vpack.c.bf16 %v7678, %v7677
        %v7691 = vpack.c.bf16 %v7680, %v7679
        %v7692 = vpack.c.bf16 %v7682, %v7681
        %v7693 = vpack.c.bf16 %v7684, %v7683
        %v7694 = vpack.c.bf16 %v7686, %v7685
        %v7695 = vld [vmem:[#allocation11] sm:$0xf]
        %v7696 = vld [vmem:[#allocation11 + $0x4] sm:$0xf]
        %v7697 = vld [vmem:[#allocation11 + $0x8] sm:$0xf]
        %v7698 = vld [vmem:[#allocation11 + $0xc] sm:$0xf]
        %v7703 = vunpack.c.l.b16 %v7695
        %v7704 = vunpack.c.l.b16 %v7696
        %v7705 = vunpack.c.l.b16 %v7697
        %v7706 = vunpack.c.l.b16 %v7698
        %v7707 = vpack.c.b16 %v7704, %v7703
        %v7708 = vpack.c.b16 %v7706, %v7705
        %v7712 = vsel %vm688, %v7687, 0
        %v7715 = vsel %vm688, %v7688, 0
        %v7718 = vsel %vm688, %v7689, 0
        %v7721 = vsel %vm688, %v7690, 0
        %v7724 = vsel %vm688, %v7691, 0
        %v7727 = vsel %vm688, %v7692, 0
        %v7730 = vsel %vm688, %v7693, 0
        %v7733 = vsel %vm688, %v7694, 0
        %7735 = vmatpush.bf16.msra.mxu0 0
        %7736 = vmatpush.bf16.msra.mxu0 0
        %7737 = vmatpush.bf16.msra.mxu0 0
        %7738 = vmatpush.bf16.msra.mxu0 0
        %7739 = vmatpush.bf16.msra.mxu0 0
        %7740 = vmatpush.bf16.msra.mxu0 0
        %7741 = vmatpush.bf16.msra.mxu0 %v7708
        %7742 = vmatpush.bf16.msra.mxu0 %v7707
        %7743 = vmatmul.bf16.gmra.mxu0 %v7712
        %v7744 = vpop.f32.mrf.mxu0
        %v7745 = vadd.f32 0.0, %v7744
        %v7746 = vpop.f32.mrf.mxu0
        %v7747 = vadd.f32 0.0, %v7746
        %7748 = vmatmul.bf16.gmra.mxu0 %v7715
        %v7749 = vpop.f32.mrf.mxu0
        %v7750 = vadd.f32 0.0, %v7749
        %v7751 = vpop.f32.mrf.mxu0
        %v7752 = vadd.f32 0.0, %v7751
        %7753 = vmatmul.bf16.gmra.mxu0 %v7718
        %v7754 = vpop.f32.mrf.mxu0
        %v7755 = vadd.f32 0.0, %v7754
        %v7756 = vpop.f32.mrf.mxu0
        %v7757 = vadd.f32 0.0, %v7756
        %7758 = vmatmul.bf16.gmra.mxu0 %v7721
        %v7759 = vpop.f32.mrf.mxu0
        %v7760 = vadd.f32 0.0, %v7759
        %v7761 = vpop.f32.mrf.mxu0
        %v7762 = vadd.f32 0.0, %v7761
        %7763 = vmatmul.bf16.gmra.mxu0 %v7724
        %v7764 = vpop.f32.mrf.mxu0
        %v7765 = vadd.f32 0.0, %v7764
        %v7766 = vpop.f32.mrf.mxu0
        %v7767 = vadd.f32 0.0, %v7766
        %7768 = vmatmul.bf16.gmra.mxu0 %v7727
        %v7769 = vpop.f32.mrf.mxu0
        %v7770 = vadd.f32 0.0, %v7769
        %v7771 = vpop.f32.mrf.mxu0
        %v7772 = vadd.f32 0.0, %v7771
        %7773 = vmatmul.bf16.gmra.mxu0 %v7730
        %v7774 = vpop.f32.mrf.mxu0
        %v7775 = vadd.f32 0.0, %v7774
        %v7776 = vpop.f32.mrf.mxu0
        %v7777 = vadd.f32 0.0, %v7776
        %7778 = vmatmul.bf16.gmra.mxu0 %v7733
        %v7779 = vpop.f32.mrf.mxu0
        %v7780 = vadd.f32 0.0, %v7779
        %v7781 = vpop.f32.mrf.mxu0
        %v7782 = vadd.f32 0.0, %v7781
        %7783 = vdwg.mxu0
        %7784 = vst [vmem:[%s634] sm:$0xff] %v7745
        %7785 = vst [vmem:[%s634 + $0x8] sm:$0xff] %v7747
        %7786 = vst [vmem:[%s634 + $0x10] sm:$0xff] %v7750
        %7787 = vst [vmem:[%s634 + $0x18] sm:$0xff] %v7752
        %7788 = vst [vmem:[%s634 + $0x20] sm:$0xff] %v7755
        %7789 = vst [vmem:[%s634 + $0x28] sm:$0xff] %v7757
        %7790 = vst [vmem:[%s634 + $0x30] sm:$0xff] %v7760
        %7791 = vst [vmem:[%s634 + $0x38] sm:$0xff] %v7762
        %7792 = vst [vmem:[%s634 + $0x40] sm:$0xff] %v7765
        %7793 = vst [vmem:[%s634 + $0x48] sm:$0xff] %v7767
        %7794 = vst [vmem:[%s634 + $0x50] sm:$0xff] %v7770
        %7795 = vst [vmem:[%s634 + $0x58] sm:$0xff] %v7772
        %7796 = vst [vmem:[%s634 + $0x60] sm:$0xff] %v7775
        %7797 = vst [vmem:[%s634 + $0x68] sm:$0xff] %v7777
        %7798 = vst [vmem:[%s634 + $0x70] sm:$0xff] %v7780
        %7799 = vst [vmem:[%s634 + $0x78] sm:$0xff] %v7782
        %s7800 = sand.u32 %s406, 1
        %s7801 = scalar_lea.sflag [#allocation5], %s7800
        %s7802 = sand.u32 %s406, 1
        %s7803 = smul.addr %s7802, 128
        %s7804 = scalar_lea.vmem [#allocation12], %s7803
        // Predicated region
        $region109: #{tpu_custom_call.1} parent=87 // pred_check
          %p7805 = pneg %p416
        $region110: #{tpu_custom_call.1} parent=87 // pred_check_branch
          %7807 = sbr.rel (%p7805) target = $region112
        $region111: #{tpu_custom_call.1} parent=87 // pred_region
          %s7808 = smul.u32 16, %s36
          %7810 = vsyncadd %s7801, 0
          %s7811 = smul.addr %s7808, 8
          %s7812 = scalar_lea.hbm %s17, %s7811
          %s7813 = sshll.u32 %s7804, 4
          %s7814 = int_to_ptr.vmem [resolvable:$true] %s7813
          %s7815 = sshll.u32 %s7812, 4
          %s7816 = int_to_ptr.hbm [resolvable:$true] %s7815
          %7821 = dma.vmem_to_hbm [thread:$0]  %s7814, 2048, %s7816, %s7801, 128, 128, 8
        $region112: #{tpu_custom_call.1} parent=87 // pred_fallthru
          _
      $region88: #{tpu_custom_call.1} parent=5 // pred_fallthru
        _
      %p7822 = scmp.le.s32.totalorder 2, %s31
      // Predicated region
      $region113: #{tpu_custom_call.1} parent=5 // pred_check
        %p7823 = pneg %p7822
      $region114: #{tpu_custom_call.1} parent=5 // pred_check_branch
        %7825 = sbr.rel (%p7823) target = $region116
      $region115: #{tpu_custom_call.1} parent=5 // pred_region
        %s7826 = ssub.s32 %s31, 2
        // Predicated region
        $region117: #{tpu_custom_call.1} parent=115 // pred_check
          %p7827 = pneg %p422
        $region118: #{tpu_custom_call.1} parent=115 // pred_check_branch
          %7829 = sbr.rel (%p7827) target = $region120
        $region119: #{tpu_custom_call.1} parent=115 // pred_region
          %s7830 = sand.u32 %s407, 1
          %s7831 = scalar_lea.sflag [#allocation5], %s7830
          %s7832 = sand.u32 %s407, 1
          %s7833 = smul.addr %s7832, 128
          %s7834 = scalar_lea.vmem [#allocation12], %s7833
          %7836 = dma.done %s7831, 2048
        $region120: #{tpu_custom_call.1} parent=115 // pred_fallthru
          _
      $region116: #{tpu_custom_call.1} parent=5 // pred_fallthru
        _
    $region6: #{tpu_custom_call.1} parent=1 // loop_footer
      %s35 = sadd.s32 1, %s31
    $region7: #{tpu_custom_call.1} parent=1 // loop_footer_branch
      %30 = sbr.rel target = $region3
    $region8: #{tpu_custom_call.1} parent=1 // loop_exit
      _
    %7837 = vsyncpa [#allocation4], 1
    %s7838 = scalar_lea.sflag [#allocation4], 1
    %7839 = vsyncpa %s7838, 1
    %7840 = vsyncpa [#allocation7], 1
    %7841 = vsyncpa [#allocation10], 1
    %7842 = vsyncpa [#allocation5], 1
    %s7843 = scalar_lea.sflag [#allocation5], 1
    %7844 = vsyncpa %s7843, 1

</llo_original>
